<compile_context>
chip_gen: v7x
topology: tpu7x:2x2x1
jax: 0.10.0
libtpu: 0.0.40
codegen_flags: <defaults>
</compile_context>

<pallas_src>
import numpy as np
import jax
import jax.numpy as jnp
from jax.experimental import pallas as pl
from jax.experimental.pallas import tpu as pltpu

_K = 3          # conv kernel size used by every layer of the module
_CIN_PAD = 8    # first conv's 3 input channels padded to 8 (aligned scratch rows)


# ----------------------------------------------------------------------------
# The fused kernel (runs once per sample; grid=(bs,))
# ----------------------------------------------------------------------------
def _vae_fused_kernel(
    # per-sample activations / noise
    x_ref, eps_ref,
    # encoder convs: (gather-tap stack (T, Pin, Pout), im2col weight, bias)
    sg1_ref, wc1_ref, bc1_ref,
    sg2_ref, wc2_ref, bc2_ref,
    sg3_ref, wc3_ref, bc3_ref,
    # fc1 (flatten folded into per-position weight blocks)
    wf1_ref, bf1_ref,
    # fc31 || fc32 fused, fc4
    w3132_ref, b3132_ref, w4_ref, b4_ref,
    # fc7 + un-flatten (per-position weight/bias blocks + one-hot placement rows)
    wf7_ref, bf7_ref, eye_ref,
    # decoder conv-transposes
    dg1_ref, wd1_ref, bd1_ref,
    dg2_ref, wd2_ref, bd2_ref,
    dg3_ref, wd3_ref, bd3_ref,
    # outputs
    recon_ref, stats_ref,
    # scratch: shared im2col buffer (9*16, H*W) f32
    imc_ref,
):
    f32, bf16 = jnp.float32, jnp.bfloat16

    def conv_im2col(x, sg_ref, w_ref, b_ref):
        """One conv / conv-transpose layer, channels-first (Cin, Pin) -> (Cout, Pout).

        For tap t: write (x @ S_t^T) into rows [t*Cin, (t+1)*Cin) of the im2col
        scratch (exact, f32).  Then a single (Cout, 9*Cin) @ (9*Cin, Pout) matmul.
        """
        taps, _, pout = sg_ref.shape
        cin = x.shape[0]
        xb = x.astype(bf16)                       # one cast per layer
        for t in range(taps):
            g = jnp.dot(xb, sg_ref[t], preferred_element_type=f32)   # (Cin, Pout)
            imc_ref[t * cin:(t + 1) * cin, :pout] = g
        col = imc_ref[:taps * cin, :pout].astype(bf16)               # one cast per layer
        return jnp.dot(w_ref[...], col, preferred_element_type=f32) + b_ref[...]

    relu = lambda a: jnp.maximum(a, 0.0)
    lrelu = lambda a: jnp.where(a >= 0.0, a, 0.01 * a)     # F.leaky_relu default
    sigmoid = lambda a: 0.5 * (jnp.tanh(0.5 * a) + 1.0)    # stable sigmoid (EUP)

    # ------------------------------ encoder ------------------------------
    h = relu(conv_im2col(x_ref[...], sg1_ref, wc1_ref, bc1_ref))      # (16, HW/4)
    h = relu(conv_im2col(h, sg2_ref, wc2_ref, bc2_ref))               # (16, HW/16)
    h = relu(conv_im2col(h, sg3_ref, wc3_ref, bc3_ref))               # (16, HW/64)

    # fc1: PyTorch NCHW flatten folded into per-position (32, 16) weight blocks
    npos = wf1_ref.shape[0]
    acc = bf1_ref[...]                                                # (32, 1)
    for s in range(npos):
        acc = acc + jnp.dot(wf1_ref[s], h[:, s:s + 1], preferred_element_type=f32)
    v1 = relu(acc)                                                    # (32, 1)

    # fc31 || fc32 fused -> (2*ls, 1)
    stats = jnp.dot(w3132_ref[...], v1, preferred_element_type=f32) + b3132_ref[...]
    ls = eps_ref.shape[0]
    mu = stats[:ls, :]
    log_var = stats[ls:, :]

    # -------------------------- reparameterization -----------------------
    z = mu + eps_ref[...] * jnp.exp(0.5 * log_var)                    # (ls, 1)

    # ------------------------------ decoder ------------------------------
    v4 = relu(jnp.dot(w4_ref[...], z, preferred_element_type=f32) + b4_ref[...])

    # fc7 + view(16, hc, wc): per-position columns placed with one-hot rows
    nposd = wf7_ref.shape[0]
    d = None
    for s in range(nposd):
        col = relu(jnp.dot(wf7_ref[s], v4, preferred_element_type=f32) + bf7_ref[s])
        piece = col * eye_ref[s:s + 1, :]                             # (16, nposd)
        d = piece if d is None else d + piece

    d = lrelu(conv_im2col(d, dg1_ref, wd1_ref, bd1_ref))              # (16, 4*P0)
    d = lrelu(conv_im2col(d, dg2_ref, wd2_ref, bd2_ref))              # (16, 16*P0)
    recon_ref[...] = sigmoid(conv_im2col(d, dg3_ref, wd3_ref, bd3_ref))   # (3, HW)
    stats_ref[...] = stats


# ----------------------------------------------------------------------------
# One-time preprocessing: per-image gather operators + im2col weight layouts
# ----------------------------------------------------------------------------
def prepare_inputs(params, H, W, ls):
    assert H % 8 == 0 and W % 8 == 0
    f32, bf16 = jnp.float32, jnp.bfloat16
    k = _K

    def conv_out(n):
        return (n + 2 - k) // 2 + 1

    h1, w1 = conv_out(H), conv_out(W)
    h2, w2 = conv_out(h1), conv_out(w1)
    h3, w3 = conv_out(h2), conv_out(w2)
    hc, wc = H // 8, W // 8
    assert (h3, w3) == (hc, wc)

    # --- per-image spatial gather operators, stored transposed: (taps, Pin, Pout)
    def conv_gather_T(hin, win, hout, wout):
        s = np.zeros((k * k, hin * win, hout * wout), np.float32)
        for ho in range(hout):
            for wo in range(wout):
                po = ho * wout + wo
                for kh in range(k):
                    hi = ho * 2 - 1 + kh
                    if not (0 <= hi < hin):
                        continue
                    for kw in range(k):
                        wi = wo * 2 - 1 + kw
                        if not (0 <= wi < win):
                            continue
                        s[kh * k + kw, hi * win + wi, po] = 1.0
        return jnp.asarray(s, bf16)

    def deconv_gather_T(hin, win, hout, wout):
        g = np.zeros((k * k, hin * win, hout * wout), np.float32)
        for hi in range(hin):
            for wi in range(win):
                pi = hi * win + wi
                for kh in range(k):
                    ho = hi * 2 - 1 + kh
                    if not (0 <= ho < hout):
                        continue
                    for kw in range(k):
                        wo = wi * 2 - 1 + kw
                        if not (0 <= wo < wout):
                            continue
                        g[kh * k + kw, pi, ho * wout + wo] = 1.0
        return jnp.asarray(g, bf16)

    sg1 = conv_gather_T(H, W, h1, w1)
    sg2 = conv_gather_T(h1, w1, h2, w2)
    sg3 = conv_gather_T(h2, w2, h3, w3)
    dg1 = deconv_gather_T(hc, wc, 2 * hc, 2 * wc)
    dg2 = deconv_gather_T(2 * hc, 2 * wc, 4 * hc, 4 * wc)
    dg3 = deconv_gather_T(4 * hc, 4 * wc, 8 * hc, 8 * wc)

    # --- im2col weights: (Cout, k*k*Cin) with column t*Cin+ci for tap t, channel ci
    def conv_w_im2col(w, cin_pad=None):
        w = np.asarray(w, np.float32)
        co, ci = w.shape[0], w.shape[1]
        wt = np.transpose(w, (2, 3, 1, 0))                 # (kh, kw, Cin, Cout)
        if cin_pad is not None and cin_pad > ci:
            pad = np.zeros((k, k, cin_pad - ci, co), np.float32)
            wt = np.concatenate([wt, pad], axis=2)
            ci = cin_pad
        return jnp.asarray(wt.reshape(k * k * ci, co).T, bf16)

    def deconv_w_im2col(w):
        w = np.asarray(w, np.float32)
        ci, co = w.shape[0], w.shape[1]
        wt = np.transpose(w, (2, 3, 0, 1))                 # (kh, kw, Cin, Cout)
        return jnp.asarray(wt.reshape(k * k * ci, co).T, bf16)

    def colbias(b):
        return jnp.asarray(np.asarray(b, np.float32).reshape(-1, 1), f32)

    # fc1: flat index = c*npos + s  ->  per-position (32, 16) blocks
    npos = h3 * w3
    wf1s = jnp.asarray(
        np.asarray(params["fc1_w"], np.float32).reshape(32, 16, npos).transpose(2, 0, 1),
        f32)                                               # (npos, 32, 16)

    # fc31 || fc32 fused
    w3132 = jnp.asarray(
        np.concatenate([np.asarray(params["fc31_w"], np.float32),
                        np.asarray(params["fc32_w"], np.float32)], axis=0), f32)
    b3132 = colbias(np.concatenate([np.asarray(params["fc31_b"], np.float32),
                                    np.asarray(params["fc32_b"], np.float32)]))

    w4 = jnp.asarray(np.asarray(params["fc4_w"], np.float32), f32)     # (32, ls)

    # fc7 + view(16, hc, wc): per-position (16, 32) blocks + (16, 1) biases
    nposd = hc * wc
    wf7s = jnp.asarray(
        np.asarray(params["fc7_w"], np.float32).reshape(16, nposd, 32).transpose(1, 0, 2),
        f32)                                               # (nposd, 16, 32)
    bf7s = jnp.asarray(
        np.asarray(params["fc7_b"], np.float32).reshape(16, nposd).T.reshape(nposd, 16, 1),
        f32)
    eye = jnp.asarray(np.eye(nposd, dtype=np.float32), f32)            # one-hot rows

    return (
        sg1, conv_w_im2col(params["cv1_w"], cin_pad=_CIN_PAD), colbias(params["cv1_b"]),
        sg2, conv_w_im2col(params["cv2_w"]), colbias(params["cv2_b"]),
        sg3, conv_w_im2col(params["cv3_w"]), colbias(params["cv3_b"]),
        wf1s, colbias(params["fc1_b"]),
        w3132, b3132,
        w4, colbias(params["fc4_b"]),
        wf7s, bf7s, eye,
        dg1, deconv_w_im2col(params["cvL1_w"]), colbias(params["cvL1_b"]),
        dg2, deconv_w_im2col(params["cvL2_w"]), colbias(params["cvL2_b"]),
        dg3, deconv_w_im2col(params["cvL3_w"]), colbias(params["cvL3_b"]),
    )


# ----------------------------------------------------------------------------
# Forward: one pallas_call, grid over batch, both boundaries are pure reshapes
# ----------------------------------------------------------------------------
@jax.jit
def topview_vae_forward(prep, x, eps):
    bs, cin, H, W = x.shape
    ls = eps.shape[-1]
    P = H * W
    cout = prep[-1].shape[0]                       # final bias -> output channels (3)

    # NCHW -> channels-first pixel columns (pure reshape) + pad Cin 3 -> 8
    x3 = x.reshape(bs, cin, P)
    x8 = jnp.concatenate([x3, jnp.zeros((bs, _CIN_PAD - cin, P), x3.dtype)], axis=1)
    eps3 = eps.reshape(bs, ls, 1)

    def _const_block(a):
        zero = (0,) * a.ndim
        return pl.BlockSpec(a.shape, lambda b, _z=zero: _z)

    in_specs = [
        pl.BlockSpec((None, _CIN_PAD, P), lambda b: (b, 0, 0)),
        pl.BlockSpec((None, ls, 1), lambda b: (b, 0, 0)),
    ] + [_const_block(a) for a in prep]

    out_shape = (
        jax.ShapeDtypeStruct((bs, cout, P), jnp.float32),      # recon, lane-dense
        jax.ShapeDtypeStruct((bs, 2 * ls, 1), jnp.float32),    # mu || log_var
    )
    out_specs = (
        pl.BlockSpec((None, cout, P), lambda b: (b, 0, 0)),
        pl.BlockSpec((None, 2 * ls, 1), lambda b: (b, 0, 0)),
    )

    # advisory cost estimate so XLA can schedule around the fused custom call
    flops = 0
    for gi in (0, 3, 6, 18, 21, 24):               # (gather, im2col-weight) pairs
        sg, w = prep[gi], prep[gi + 1]
        taps, pin, pout = sg.shape
        co_, tcin = w.shape
        flops += 2 * (tcin * pin * pout + co_ * tcin * pout)
    flops = bs * (flops + 2 * (64 * 32 + 32 * 2 * ls + ls * 32 + 32 * 64))
    bytes_accessed = int(x8.size * 4 + eps3.size * 4
                         + sum(int(p.size) * p.dtype.itemsize for p in prep)
                         + bs * (cout * P + 2 * ls) * 4)
    transcendentals = bs * (cout * P + ls)

    recon2d, stats = pl.pallas_call(
        _vae_fused_kernel,
        grid=(bs,),
        in_specs=in_specs,
        out_specs=out_specs,
        out_shape=out_shape,
        scratch_shapes=[pltpu.VMEM((_K * _K * 16, P), jnp.float32)],   # shared im2col
        compiler_params=pltpu.CompilerParams(
            dimension_semantics=("parallel",),      # v7x: one sample per TensorCore
            vmem_limit_bytes=32 * 1024 * 1024,      # working set ~2 MiB at toy size
        ),
        cost_estimate=pl.CostEstimate(
            flops=int(flops),
            transcendentals=int(transcendentals),
            bytes_accessed=int(bytes_accessed),
        ),
    )(x8, eps3, *prep)

    recon = recon2d.reshape(bs, cout, H, W)        # pure reshape back to NCHW
    mu = stats[:, :ls, 0]
    log_var = stats[:, ls:, 0]
    return recon, mu, log_var


# ----------------------------------------------------------------------------
# Parameter init (synthetic, shapes follow the PyTorch module __init__)
# ----------------------------------------------------------------------------
def init_params(key, H, W, ls):
    feat = H // 8 * W // 8 * 16
    shapes = {
        "cv1_w": (16, 3, 3, 3),    "cv1_b": (16,),
        "cv2_w": (16, 16, 3, 3),   "cv2_b": (16,),
        "cv3_w": (16, 16, 3, 3),   "cv3_b": (16,),
        "fc1_w": (32, feat),       "fc1_b": (32,),
        "fc31_w": (ls, 32),        "fc31_b": (ls,),
        "fc32_w": (ls, 32),        "fc32_b": (ls,),
        "fc4_w": (32, ls),         "fc4_b": (32,),
        "fc7_w": (feat, 32),       "fc7_b": (feat,),
        "cvL1_w": (16, 16, 3, 3),  "cvL1_b": (16,),
        "cvL2_w": (16, 16, 3, 3),  "cvL2_b": (16,),
        "cvL3_w": (16, 3, 3, 3),   "cvL3_b": (3,),
    }
    keys = jax.random.split(key, len(shapes))
    return {name: (0.05 * jax.random.normal(k, shape)).astype(jnp.float32)
            for k, (name, shape) in zip(keys, shapes.items())}


# ----------------------------------------------------------------------------
# NumPy reference (straight port of the PyTorch module) for self-check
# ----------------------------------------------------------------------------
def _np_conv2d(x, w, b, stride, pad):
    bs, ci, h, wd = x.shape
    co, _, k, _ = w.shape
    ho = (h + 2 * pad - k) // stride + 1
    wo = (wd + 2 * pad - k) // stride + 1
    xp = np.pad(x, ((0, 0), (0, 0), (pad, pad), (pad, pad)))
    y = np.zeros((bs, co, ho, wo), np.float32)
    for i in range(ho):
        for j in range(wo):
            patch = xp[:, :, i * stride:i * stride + k, j * stride:j * stride + k]
            y[:, :, i, j] = np.tensordot(patch, w, axes=([1, 2, 3], [1, 2, 3]))
    return y + b.reshape(1, co, 1, 1)


def _np_deconv2d(x, w, b, stride, pad, opad):
    bs, ci, h, wd = x.shape
    _, co, k, _ = w.shape
    ho = (h - 1) * stride - 2 * pad + k + opad
    wo = (wd - 1) * stride - 2 * pad + k + opad
    y = np.zeros((bs, co, ho, wo), np.float32)
    for i in range(h):
        for j in range(wd):
            for kh in range(k):
                for kw in range(k):
                    oi, oj = i * stride - pad + kh, j * stride - pad + kw
                    if 0 <= oi < ho and 0 <= oj < wo:
                        y[:, :, oi, oj] += x[:, :, i, j] @ w[:, :, kh, kw]
    return y + b.reshape(1, co, 1, 1)


def reference_forward(p, x, eps, H, W, ls, bs):
    relu = lambda a: np.maximum(a, 0.0)
    lrelu = lambda a: np.where(a >= 0, a, 0.01 * a)
    h = relu(_np_conv2d(x, p["cv1_w"], p["cv1_b"], 2, 1))
    h = relu(_np_conv2d(h, p["cv2_w"], p["cv2_b"], 2, 1))
    h = relu(_np_conv2d(h, p["cv3_w"], p["cv3_b"], 2, 1))
    h = h.reshape(bs, -1)
    h = relu(h @ p["fc1_w"].T + p["fc1_b"])
    mu = h @ p["fc31_w"].T + p["fc31_b"]
    log_var = h @ p["fc32_w"].T + p["fc32_b"]
    z = mu + eps * np.exp(0.5 * log_var)
    h = relu(z @ p["fc4_w"].T + p["fc4_b"])
    h = relu(h @ p["fc7_w"].T + p["fc7_b"])
    h = h.reshape(bs, 16, H // 8, W // 8)
    h = lrelu(_np_deconv2d(h, p["cvL1_w"], p["cvL1_b"], 2, 1, 1))
    h = lrelu(_np_deconv2d(h, p["cvL2_w"], p["cvL2_b"], 2, 1, 1))
    h = _np_deconv2d(h, p["cvL3_w"], p["cvL3_b"], 2, 1, 1)
    return 1.0 / (1.0 + np.exp(-h)), mu, log_var


if __name__ == "__main__":
    H = W = 16
    LS = 8
    BS = 2

    key = jax.random.PRNGKey(0)
    kx, keps, kp = jax.random.split(key, 3)
    x = jax.random.uniform(kx, (BS, 3, H, W), jnp.float32)    # NCHW input
    # TODO(synk): torch.randn_like inside sampling() is replaced by an explicit
    # eps input (deterministic, comparable against the reference).
    eps = jax.random.normal(keps, (BS, LS), jnp.float32)
    params = init_params(kp, H, W, LS)

    prep = prepare_inputs(params, H, W, LS)                   # one-time weight prep
    recon, mu, log_var = topview_vae_forward(prep, x, eps)
    jax.block_until_ready((recon, mu, log_var))

    assert recon.shape == (BS, 3, H, W)
    assert mu.shape == (BS, LS) and log_var.shape == (BS, LS)

    # numerical self-check against a straight NumPy port of the PyTorch module
    np_p = {name: np.asarray(val, np.float32) for name, val in params.items()}
    r_ref, mu_ref, lv_ref = reference_forward(np_p, np.asarray(x), np.asarray(eps),
                                              H, W, LS, BS)
    np.testing.assert_allclose(np.asarray(mu), mu_ref, rtol=2e-2, atol=5e-3)
    np.testing.assert_allclose(np.asarray(log_var), lv_ref, rtol=2e-2, atol=5e-3)
    np.testing.assert_allclose(np.asarray(recon), r_ref, rtol=2e-2, atol=5e-3)
    print("KERNEL_OK")
</pallas_src>

<mosaic_0001>
module attributes {stable_mosaic.version = 11 : i64} {
  func.func @_vae_fused_kernel(%arg0: i32, %arg1: memref<1x8x256xf32, #tpu.memory_space<vmem>>, %arg2: memref<1x8x1xf32, #tpu.memory_space<vmem>>, %arg3: memref<9x256x64xbf16, #tpu.memory_space<vmem>>, %arg4: memref<16x72xbf16, #tpu.memory_space<vmem>>, %arg5: memref<16x1xf32, #tpu.memory_space<vmem>>, %arg6: memref<9x64x16xbf16, #tpu.memory_space<vmem>>, %arg7: memref<16x144xbf16, #tpu.memory_space<vmem>>, %arg8: memref<16x1xf32, #tpu.memory_space<vmem>>, %arg9: memref<9x16x4xbf16, #tpu.memory_space<vmem>>, %arg10: memref<16x144xbf16, #tpu.memory_space<vmem>>, %arg11: memref<16x1xf32, #tpu.memory_space<vmem>>, %arg12: memref<4x32x16xf32, #tpu.memory_space<vmem>>, %arg13: memref<32x1xf32, #tpu.memory_space<vmem>>, %arg14: memref<16x32xf32, #tpu.memory_space<vmem>>, %arg15: memref<16x1xf32, #tpu.memory_space<vmem>>, %arg16: memref<32x8xf32, #tpu.memory_space<vmem>>, %arg17: memref<32x1xf32, #tpu.memory_space<vmem>>, %arg18: memref<4x16x32xf32, #tpu.memory_space<vmem>>, %arg19: memref<4x16x1xf32, #tpu.memory_space<vmem>>, %arg20: memref<4x4xf32, #tpu.memory_space<vmem>>, %arg21: memref<9x4x16xbf16, #tpu.memory_space<vmem>>, %arg22: memref<16x144xbf16, #tpu.memory_space<vmem>>, %arg23: memref<16x1xf32, #tpu.memory_space<vmem>>, %arg24: memref<9x16x64xbf16, #tpu.memory_space<vmem>>, %arg25: memref<16x144xbf16, #tpu.memory_space<vmem>>, %arg26: memref<16x1xf32, #tpu.memory_space<vmem>>, %arg27: memref<9x64x256xbf16, #tpu.memory_space<vmem>>, %arg28: memref<3x144xbf16, #tpu.memory_space<vmem>>, %arg29: memref<3x1xf32, #tpu.memory_space<vmem>>, %arg30: memref<1x3x256xf32, #tpu.memory_space<vmem>>, %arg31: memref<1x16x1xf32, #tpu.memory_space<vmem>>, %arg32: memref<144x256xf32, #tpu.memory_space<vmem>>) attributes {dimension_semantics = [#tpu.dimension_semantics<parallel>], iteration_bounds = array<i64: 2>, scalar_prefetch = 0 : i64, scratch_operands = 1 : i64, tpu.core_type = #tpu.core_type<tc>, window_params = [{transform_indices = @transform_0, window_bounds = array<i64: 1, 8, 256>}, {transform_indices = @transform_1, window_bounds = array<i64: 1, 8, 1>}, {pipeline_mode = #tpu.pipeline_mode<synchronous>, transform_indices = @transform_2, window_bounds = array<i64: 9, 256, 64>}, {pipeline_mode = #tpu.pipeline_mode<synchronous>, transform_indices = @transform_3, window_bounds = array<i64: 16, 72>}, {pipeline_mode = #tpu.pipeline_mode<synchronous>, transform_indices = @transform_4, window_bounds = array<i64: 16, 1>}, {pipeline_mode = #tpu.pipeline_mode<synchronous>, transform_indices = @transform_5, window_bounds = array<i64: 9, 64, 16>}, {pipeline_mode = #tpu.pipeline_mode<synchronous>, transform_indices = @transform_6, window_bounds = array<i64: 16, 144>}, {pipeline_mode = #tpu.pipeline_mode<synchronous>, transform_indices = @transform_7, window_bounds = array<i64: 16, 1>}, {pipeline_mode = #tpu.pipeline_mode<synchronous>, transform_indices = @transform_8, window_bounds = array<i64: 9, 16, 4>}, {pipeline_mode = #tpu.pipeline_mode<synchronous>, transform_indices = @transform_9, window_bounds = array<i64: 16, 144>}, {pipeline_mode = #tpu.pipeline_mode<synchronous>, transform_indices = @transform_10, window_bounds = array<i64: 16, 1>}, {pipeline_mode = #tpu.pipeline_mode<synchronous>, transform_indices = @transform_11, window_bounds = array<i64: 4, 32, 16>}, {pipeline_mode = #tpu.pipeline_mode<synchronous>, transform_indices = @transform_12, window_bounds = array<i64: 32, 1>}, {pipeline_mode = #tpu.pipeline_mode<synchronous>, transform_indices = @transform_13, window_bounds = array<i64: 16, 32>}, {pipeline_mode = #tpu.pipeline_mode<synchronous>, transform_indices = @transform_14, window_bounds = array<i64: 16, 1>}, {pipeline_mode = #tpu.pipeline_mode<synchronous>, transform_indices = @transform_15, window_bounds = array<i64: 32, 8>}, {pipeline_mode = #tpu.pipeline_mode<synchronous>, transform_indices = @transform_16, window_bounds = array<i64: 32, 1>}, {pipeline_mode = #tpu.pipeline_mode<synchronous>, transform_indices = @transform_17, window_bounds = array<i64: 4, 16, 32>}, {pipeline_mode = #tpu.pipeline_mode<synchronous>, transform_indices = @transform_18, window_bounds = array<i64: 4, 16, 1>}, {pipeline_mode = #tpu.pipeline_mode<synchronous>, transform_indices = @transform_19, window_bounds = array<i64: 4, 4>}, {pipeline_mode = #tpu.pipeline_mode<synchronous>, transform_indices = @transform_20, window_bounds = array<i64: 9, 4, 16>}, {pipeline_mode = #tpu.pipeline_mode<synchronous>, transform_indices = @transform_21, window_bounds = array<i64: 16, 144>}, {pipeline_mode = #tpu.pipeline_mode<synchronous>, transform_indices = @transform_22, window_bounds = array<i64: 16, 1>}, {pipeline_mode = #tpu.pipeline_mode<synchronous>, transform_indices = @transform_23, window_bounds = array<i64: 9, 16, 64>}, {pipeline_mode = #tpu.pipeline_mode<synchronous>, transform_indices = @transform_24, window_bounds = array<i64: 16, 144>}, {pipeline_mode = #tpu.pipeline_mode<synchronous>, transform_indices = @transform_25, window_bounds = array<i64: 16, 1>}, {pipeline_mode = #tpu.pipeline_mode<synchronous>, transform_indices = @transform_26, window_bounds = array<i64: 9, 64, 256>}, {pipeline_mode = #tpu.pipeline_mode<synchronous>, transform_indices = @transform_27, window_bounds = array<i64: 3, 144>}, {pipeline_mode = #tpu.pipeline_mode<synchronous>, transform_indices = @transform_28, window_bounds = array<i64: 3, 1>}, {transform_indices = @transform_29, window_bounds = array<i64: 1, 3, 256>}, {transform_indices = @transform_30, window_bounds = array<i64: 1, 16, 1>}]} {
    %c0 = arith.constant 0 : index
    %c0_0 = arith.constant 0 : index
    %c0_1 = arith.constant 0 : index
    %0 = vector.load %arg1[%c0, %c0_0, %c0_1] : memref<1x8x256xf32, #tpu.memory_space<vmem>>, vector<1x8x256xf32>
    %1 = vector.shape_cast %0 : vector<1x8x256xf32> to vector<8x256xf32>
    %2 = arith.truncf %1 : vector<8x256xf32> to vector<8x256xbf16>
    %c0_2 = arith.constant 0 : index
    %c0_3 = arith.constant 0 : index
    %c0_4 = arith.constant 0 : index
    %3 = vector.load %arg3[%c0_2, %c0_3, %c0_4] : memref<9x256x64xbf16, #tpu.memory_space<vmem>>, vector<1x256x64xbf16>
    %4 = vector.shape_cast %3 : vector<1x256x64xbf16> to vector<256x64xbf16>
    %cst = arith.constant dense<0.000000e+00> : vector<8x64xf32>
    %5 = tpu.matmul %2, %4, %cst {dimension_numbers = #tpu.dot_dimension_numbers<[1], [0], [0], [1], [0, 0, 1, 1], [], []>} : vector<8x256xbf16>, vector<256x64xbf16>, vector<8x64xf32> -> vector<8x64xf32>
    %c0_5 = arith.constant 0 : index
    %c0_6 = arith.constant 0 : index
    %6 = vector.load %arg32[%c0_5, %c0_6] : memref<144x256xf32, #tpu.memory_space<vmem>>, vector<8x64xf32>
    tpu.vector_store %arg32[%c0_5, %c0_6], %5 {strides = array<i32>} : memref<144x256xf32, #tpu.memory_space<vmem>>, vector<8x64xf32>,
    %c1 = arith.constant 1 : index
    %c0_7 = arith.constant 0 : index
    %c0_8 = arith.constant 0 : index
    %7 = vector.load %arg3[%c1, %c0_7, %c0_8] : memref<9x256x64xbf16, #tpu.memory_space<vmem>>, vector<1x256x64xbf16>
    %8 = vector.shape_cast %7 : vector<1x256x64xbf16> to vector<256x64xbf16>
    %cst_9 = arith.constant dense<0.000000e+00> : vector<8x64xf32>
    %9 = tpu.matmul %2, %8, %cst_9 {dimension_numbers = #tpu.dot_dimension_numbers<[1], [0], [0], [1], [0, 0, 1, 1], [], []>} : vector<8x256xbf16>, vector<256x64xbf16>, vector<8x64xf32> -> vector<8x64xf32>
    %c8 = arith.constant 8 : index
    %c0_10 = arith.constant 0 : index
    %10 = vector.load %arg32[%c8, %c0_10] : memref<144x256xf32, #tpu.memory_space<vmem>>, vector<8x64xf32>
    tpu.vector_store %arg32[%c8, %c0_10], %9 {strides = array<i32>} : memref<144x256xf32, #tpu.memory_space<vmem>>, vector<8x64xf32>,
    %c2 = arith.constant 2 : index
    %c0_11 = arith.constant 0 : index
    %c0_12 = arith.constant 0 : index
    %11 = vector.load %arg3[%c2, %c0_11, %c0_12] : memref<9x256x64xbf16, #tpu.memory_space<vmem>>, vector<1x256x64xbf16>
    %12 = vector.shape_cast %11 : vector<1x256x64xbf16> to vector<256x64xbf16>
    %cst_13 = arith.constant dense<0.000000e+00> : vector<8x64xf32>
    %13 = tpu.matmul %2, %12, %cst_13 {dimension_numbers = #tpu.dot_dimension_numbers<[1], [0], [0], [1], [0, 0, 1, 1], [], []>} : vector<8x256xbf16>, vector<256x64xbf16>, vector<8x64xf32> -> vector<8x64xf32>
    %c16 = arith.constant 16 : index
    %c0_14 = arith.constant 0 : index
    %14 = vector.load %arg32[%c16, %c0_14] : memref<144x256xf32, #tpu.memory_space<vmem>>, vector<8x64xf32>
    tpu.vector_store %arg32[%c16, %c0_14], %13 {strides = array<i32>} : memref<144x256xf32, #tpu.memory_space<vmem>>, vector<8x64xf32>,
    %c3 = arith.constant 3 : index
    %c0_15 = arith.constant 0 : index
    %c0_16 = arith.constant 0 : index
    %15 = vector.load %arg3[%c3, %c0_15, %c0_16] : memref<9x256x64xbf16, #tpu.memory_space<vmem>>, vector<1x256x64xbf16>
    %16 = vector.shape_cast %15 : vector<1x256x64xbf16> to vector<256x64xbf16>
    %cst_17 = arith.constant dense<0.000000e+00> : vector<8x64xf32>
    %17 = tpu.matmul %2, %16, %cst_17 {dimension_numbers = #tpu.dot_dimension_numbers<[1], [0], [0], [1], [0, 0, 1, 1], [], []>} : vector<8x256xbf16>, vector<256x64xbf16>, vector<8x64xf32> -> vector<8x64xf32>
    %c24 = arith.constant 24 : index
    %c0_18 = arith.constant 0 : index
    %18 = vector.load %arg32[%c24, %c0_18] : memref<144x256xf32, #tpu.memory_space<vmem>>, vector<8x64xf32>
    tpu.vector_store %arg32[%c24, %c0_18], %17 {strides = array<i32>} : memref<144x256xf32, #tpu.memory_space<vmem>>, vector<8x64xf32>,
    %c4 = arith.constant 4 : index
    %c0_19 = arith.constant 0 : index
    %c0_20 = arith.constant 0 : index
    %19 = vector.load %arg3[%c4, %c0_19, %c0_20] : memref<9x256x64xbf16, #tpu.memory_space<vmem>>, vector<1x256x64xbf16>
    %20 = vector.shape_cast %19 : vector<1x256x64xbf16> to vector<256x64xbf16>
    %cst_21 = arith.constant dense<0.000000e+00> : vector<8x64xf32>
    %21 = tpu.matmul %2, %20, %cst_21 {dimension_numbers = #tpu.dot_dimension_numbers<[1], [0], [0], [1], [0, 0, 1, 1], [], []>} : vector<8x256xbf16>, vector<256x64xbf16>, vector<8x64xf32> -> vector<8x64xf32>
    %c32 = arith.constant 32 : index
    %c0_22 = arith.constant 0 : index
    %22 = vector.load %arg32[%c32, %c0_22] : memref<144x256xf32, #tpu.memory_space<vmem>>, vector<8x64xf32>
    tpu.vector_store %arg32[%c32, %c0_22], %21 {strides = array<i32>} : memref<144x256xf32, #tpu.memory_space<vmem>>, vector<8x64xf32>,
    %c5 = arith.constant 5 : index
    %c0_23 = arith.constant 0 : index
    %c0_24 = arith.constant 0 : index
    %23 = vector.load %arg3[%c5, %c0_23, %c0_24] : memref<9x256x64xbf16, #tpu.memory_space<vmem>>, vector<1x256x64xbf16>
    %24 = vector.shape_cast %23 : vector<1x256x64xbf16> to vector<256x64xbf16>
    %cst_25 = arith.constant dense<0.000000e+00> : vector<8x64xf32>
    %25 = tpu.matmul %2, %24, %cst_25 {dimension_numbers = #tpu.dot_dimension_numbers<[1], [0], [0], [1], [0, 0, 1, 1], [], []>} : vector<8x256xbf16>, vector<256x64xbf16>, vector<8x64xf32> -> vector<8x64xf32>
    %c40 = arith.constant 40 : index
    %c0_26 = arith.constant 0 : index
    %26 = vector.load %arg32[%c40, %c0_26] : memref<144x256xf32, #tpu.memory_space<vmem>>, vector<8x64xf32>
    tpu.vector_store %arg32[%c40, %c0_26], %25 {strides = array<i32>} : memref<144x256xf32, #tpu.memory_space<vmem>>, vector<8x64xf32>,
    %c6 = arith.constant 6 : index
    %c0_27 = arith.constant 0 : index
    %c0_28 = arith.constant 0 : index
    %27 = vector.load %arg3[%c6, %c0_27, %c0_28] : memref<9x256x64xbf16, #tpu.memory_space<vmem>>, vector<1x256x64xbf16>
    %28 = vector.shape_cast %27 : vector<1x256x64xbf16> to vector<256x64xbf16>
    %cst_29 = arith.constant dense<0.000000e+00> : vector<8x64xf32>
    %29 = tpu.matmul %2, %28, %cst_29 {dimension_numbers = #tpu.dot_dimension_numbers<[1], [0], [0], [1], [0, 0, 1, 1], [], []>} : vector<8x256xbf16>, vector<256x64xbf16>, vector<8x64xf32> -> vector<8x64xf32>
    %c48 = arith.constant 48 : index
    %c0_30 = arith.constant 0 : index
    %30 = vector.load %arg32[%c48, %c0_30] : memref<144x256xf32, #tpu.memory_space<vmem>>, vector<8x64xf32>
    tpu.vector_store %arg32[%c48, %c0_30], %29 {strides = array<i32>} : memref<144x256xf32, #tpu.memory_space<vmem>>, vector<8x64xf32>,
    %c7 = arith.constant 7 : index
    %c0_31 = arith.constant 0 : index
    %c0_32 = arith.constant 0 : index
    %31 = vector.load %arg3[%c7, %c0_31, %c0_32] : memref<9x256x64xbf16, #tpu.memory_space<vmem>>, vector<1x256x64xbf16>
    %32 = vector.shape_cast %31 : vector<1x256x64xbf16> to vector<256x64xbf16>
    %cst_33 = arith.constant dense<0.000000e+00> : vector<8x64xf32>
    %33 = tpu.matmul %2, %32, %cst_33 {dimension_numbers = #tpu.dot_dimension_numbers<[1], [0], [0], [1], [0, 0, 1, 1], [], []>} : vector<8x256xbf16>, vector<256x64xbf16>, vector<8x64xf32> -> vector<8x64xf32>
    %c56 = arith.constant 56 : index
    %c0_34 = arith.constant 0 : index
    %34 = vector.load %arg32[%c56, %c0_34] : memref<144x256xf32, #tpu.memory_space<vmem>>, vector<8x64xf32>
    tpu.vector_store %arg32[%c56, %c0_34], %33 {strides = array<i32>} : memref<144x256xf32, #tpu.memory_space<vmem>>, vector<8x64xf32>,
    %c8_35 = arith.constant 8 : index
    %c0_36 = arith.constant 0 : index
    %c0_37 = arith.constant 0 : index
    %35 = vector.load %arg3[%c8_35, %c0_36, %c0_37] : memref<9x256x64xbf16, #tpu.memory_space<vmem>>, vector<1x256x64xbf16>
    %36 = vector.shape_cast %35 : vector<1x256x64xbf16> to vector<256x64xbf16>
    %cst_38 = arith.constant dense<0.000000e+00> : vector<8x64xf32>
    %37 = tpu.matmul %2, %36, %cst_38 {dimension_numbers = #tpu.dot_dimension_numbers<[1], [0], [0], [1], [0, 0, 1, 1], [], []>} : vector<8x256xbf16>, vector<256x64xbf16>, vector<8x64xf32> -> vector<8x64xf32>
    %c64 = arith.constant 64 : index
    %c0_39 = arith.constant 0 : index
    %38 = vector.load %arg32[%c64, %c0_39] : memref<144x256xf32, #tpu.memory_space<vmem>>, vector<8x64xf32>
    tpu.vector_store %arg32[%c64, %c0_39], %37 {strides = array<i32>} : memref<144x256xf32, #tpu.memory_space<vmem>>, vector<8x64xf32>,
    %c0_40 = arith.constant 0 : index
    %c0_41 = arith.constant 0 : index
    %39 = vector.load %arg32[%c0_40, %c0_41] : memref<144x256xf32, #tpu.memory_space<vmem>>, vector<72x64xf32>
    %40 = arith.truncf %39 : vector<72x64xf32> to vector<72x64xbf16>
    %c0_42 = arith.constant 0 : index
    %c0_43 = arith.constant 0 : index
    %41 = vector.load %arg4[%c0_42, %c0_43] : memref<16x72xbf16, #tpu.memory_space<vmem>>, vector<16x72xbf16>
    %cst_44 = arith.constant dense<0.000000e+00> : vector<16x64xf32>
    %42 = tpu.matmul %41, %40, %cst_44 {dimension_numbers = #tpu.dot_dimension_numbers<[1], [0], [0], [1], [0, 0, 1, 1], [], []>} : vector<16x72xbf16>, vector<72x64xbf16>, vector<16x64xf32> -> vector<16x64xf32>
    %c0_45 = arith.constant 0 : index
    %c0_46 = arith.constant 0 : index
    %43 = vector.load %arg5[%c0_45, %c0_46] : memref<16x1xf32, #tpu.memory_space<vmem>>, vector<16x1xf32>
    %44 = vector.broadcast %43 : vector<16x1xf32> to vector<16x64xf32>
    %45 = arith.addf %42, %44 : vector<16x64xf32>
    %cst_47 = arith.constant 0.000000e+00 : f32
    %46 = vector.broadcast %cst_47 : f32 to vector<16x64xf32>
    %47 = arith.maximumf %45, %46 : vector<16x64xf32>
    %48 = arith.truncf %47 : vector<16x64xf32> to vector<16x64xbf16>
    %c0_48 = arith.constant 0 : index
    %c0_49 = arith.constant 0 : index
    %c0_50 = arith.constant 0 : index
    %49 = vector.load %arg6[%c0_48, %c0_49, %c0_50] : memref<9x64x16xbf16, #tpu.memory_space<vmem>>, vector<1x64x16xbf16>
    %50 = vector.shape_cast %49 : vector<1x64x16xbf16> to vector<64x16xbf16>
    %cst_51 = arith.constant dense<0.000000e+00> : vector<16x16xf32>
    %51 = tpu.matmul %48, %50, %cst_51 {dimension_numbers = #tpu.dot_dimension_numbers<[1], [0], [0], [1], [0, 0, 1, 1], [], []>} : vector<16x64xbf16>, vector<64x16xbf16>, vector<16x16xf32> -> vector<16x16xf32>
    %c0_52 = arith.constant 0 : index
    %c0_53 = arith.constant 0 : index
    %52 = vector.load %arg32[%c0_52, %c0_53] : memref<144x256xf32, #tpu.memory_space<vmem>>, vector<16x16xf32>
    tpu.vector_store %arg32[%c0_52, %c0_53], %51 {strides = array<i32>} : memref<144x256xf32, #tpu.memory_space<vmem>>, vector<16x16xf32>,
    %c1_54 = arith.constant 1 : index
    %c0_55 = arith.constant 0 : index
    %c0_56 = arith.constant 0 : index
    %53 = vector.load %arg6[%c1_54, %c0_55, %c0_56] : memref<9x64x16xbf16, #tpu.memory_space<vmem>>, vector<1x64x16xbf16>
    %54 = vector.shape_cast %53 : vector<1x64x16xbf16> to vector<64x16xbf16>
    %cst_57 = arith.constant dense<0.000000e+00> : vector<16x16xf32>
    %55 = tpu.matmul %48, %54, %cst_57 {dimension_numbers = #tpu.dot_dimension_numbers<[1], [0], [0], [1], [0, 0, 1, 1], [], []>} : vector<16x64xbf16>, vector<64x16xbf16>, vector<16x16xf32> -> vector<16x16xf32>
    %c16_58 = arith.constant 16 : index
    %c0_59 = arith.constant 0 : index
    %56 = vector.load %arg32[%c16_58, %c0_59] : memref<144x256xf32, #tpu.memory_space<vmem>>, vector<16x16xf32>
    tpu.vector_store %arg32[%c16_58, %c0_59], %55 {strides = array<i32>} : memref<144x256xf32, #tpu.memory_space<vmem>>, vector<16x16xf32>,
    %c2_60 = arith.constant 2 : index
    %c0_61 = arith.constant 0 : index
    %c0_62 = arith.constant 0 : index
    %57 = vector.load %arg6[%c2_60, %c0_61, %c0_62] : memref<9x64x16xbf16, #tpu.memory_space<vmem>>, vector<1x64x16xbf16>
    %58 = vector.shape_cast %57 : vector<1x64x16xbf16> to vector<64x16xbf16>
    %cst_63 = arith.constant dense<0.000000e+00> : vector<16x16xf32>
    %59 = tpu.matmul %48, %58, %cst_63 {dimension_numbers = #tpu.dot_dimension_numbers<[1], [0], [0], [1], [0, 0, 1, 1], [], []>} : vector<16x64xbf16>, vector<64x16xbf16>, vector<16x16xf32> -> vector<16x16xf32>
    %c32_64 = arith.constant 32 : index
    %c0_65 = arith.constant 0 : index
    %60 = vector.load %arg32[%c32_64, %c0_65] : memref<144x256xf32, #tpu.memory_space<vmem>>, vector<16x16xf32>
    tpu.vector_store %arg32[%c32_64, %c0_65], %59 {strides = array<i32>} : memref<144x256xf32, #tpu.memory_space<vmem>>, vector<16x16xf32>,
    %c3_66 = arith.constant 3 : index
    %c0_67 = arith.constant 0 : index
    %c0_68 = arith.constant 0 : index
    %61 = vector.load %arg6[%c3_66, %c0_67, %c0_68] : memref<9x64x16xbf16, #tpu.memory_space<vmem>>, vector<1x64x16xbf16>
    %62 = vector.shape_cast %61 : vector<1x64x16xbf16> to vector<64x16xbf16>
    %cst_69 = arith.constant dense<0.000000e+00> : vector<16x16xf32>
    %63 = tpu.matmul %48, %62, %cst_69 {dimension_numbers = #tpu.dot_dimension_numbers<[1], [0], [0], [1], [0, 0, 1, 1], [], []>} : vector<16x64xbf16>, vector<64x16xbf16>, vector<16x16xf32> -> vector<16x16xf32>
    %c48_70 = arith.constant 48 : index
    %c0_71 = arith.constant 0 : index
    %64 = vector.load %arg32[%c48_70, %c0_71] : memref<144x256xf32, #tpu.memory_space<vmem>>, vector<16x16xf32>
    tpu.vector_store %arg32[%c48_70, %c0_71], %63 {strides = array<i32>} : memref<144x256xf32, #tpu.memory_space<vmem>>, vector<16x16xf32>,
    %c4_72 = arith.constant 4 : index
    %c0_73 = arith.constant 0 : index
    %c0_74 = arith.constant 0 : index
    %65 = vector.load %arg6[%c4_72, %c0_73, %c0_74] : memref<9x64x16xbf16, #tpu.memory_space<vmem>>, vector<1x64x16xbf16>
    %66 = vector.shape_cast %65 : vector<1x64x16xbf16> to vector<64x16xbf16>
    %cst_75 = arith.constant dense<0.000000e+00> : vector<16x16xf32>
    %67 = tpu.matmul %48, %66, %cst_75 {dimension_numbers = #tpu.dot_dimension_numbers<[1], [0], [0], [1], [0, 0, 1, 1], [], []>} : vector<16x64xbf16>, vector<64x16xbf16>, vector<16x16xf32> -> vector<16x16xf32>
    %c64_76 = arith.constant 64 : index
    %c0_77 = arith.constant 0 : index
    %68 = vector.load %arg32[%c64_76, %c0_77] : memref<144x256xf32, #tpu.memory_space<vmem>>, vector<16x16xf32>
    tpu.vector_store %arg32[%c64_76, %c0_77], %67 {strides = array<i32>} : memref<144x256xf32, #tpu.memory_space<vmem>>, vector<16x16xf32>,
    %c5_78 = arith.constant 5 : index
    %c0_79 = arith.constant 0 : index
    %c0_80 = arith.constant 0 : index
    %69 = vector.load %arg6[%c5_78, %c0_79, %c0_80] : memref<9x64x16xbf16, #tpu.memory_space<vmem>>, vector<1x64x16xbf16>
    %70 = vector.shape_cast %69 : vector<1x64x16xbf16> to vector<64x16xbf16>
    %cst_81 = arith.constant dense<0.000000e+00> : vector<16x16xf32>
    %71 = tpu.matmul %48, %70, %cst_81 {dimension_numbers = #tpu.dot_dimension_numbers<[1], [0], [0], [1], [0, 0, 1, 1], [], []>} : vector<16x64xbf16>, vector<64x16xbf16>, vector<16x16xf32> -> vector<16x16xf32>
    %c80 = arith.constant 80 : index
    %c0_82 = arith.constant 0 : index
    %72 = vector.load %arg32[%c80, %c0_82] : memref<144x256xf32, #tpu.memory_space<vmem>>, vector<16x16xf32>
    tpu.vector_store %arg32[%c80, %c0_82], %71 {strides = array<i32>} : memref<144x256xf32, #tpu.memory_space<vmem>>, vector<16x16xf32>,
    %c6_83 = arith.constant 6 : index
    %c0_84 = arith.constant 0 : index
    %c0_85 = arith.constant 0 : index
    %73 = vector.load %arg6[%c6_83, %c0_84, %c0_85] : memref<9x64x16xbf16, #tpu.memory_space<vmem>>, vector<1x64x16xbf16>
    %74 = vector.shape_cast %73 : vector<1x64x16xbf16> to vector<64x16xbf16>
    %cst_86 = arith.constant dense<0.000000e+00> : vector<16x16xf32>
    %75 = tpu.matmul %48, %74, %cst_86 {dimension_numbers = #tpu.dot_dimension_numbers<[1], [0], [0], [1], [0, 0, 1, 1], [], []>} : vector<16x64xbf16>, vector<64x16xbf16>, vector<16x16xf32> -> vector<16x16xf32>
    %c96 = arith.constant 96 : index
    %c0_87 = arith.constant 0 : index
    %76 = vector.load %arg32[%c96, %c0_87] : memref<144x256xf32, #tpu.memory_space<vmem>>, vector<16x16xf32>
    tpu.vector_store %arg32[%c96, %c0_87], %75 {strides = array<i32>} : memref<144x256xf32, #tpu.memory_space<vmem>>, vector<16x16xf32>,
    %c7_88 = arith.constant 7 : index
    %c0_89 = arith.constant 0 : index
    %c0_90 = arith.constant 0 : index
    %77 = vector.load %arg6[%c7_88, %c0_89, %c0_90] : memref<9x64x16xbf16, #tpu.memory_space<vmem>>, vector<1x64x16xbf16>
    %78 = vector.shape_cast %77 : vector<1x64x16xbf16> to vector<64x16xbf16>
    %cst_91 = arith.constant dense<0.000000e+00> : vector<16x16xf32>
    %79 = tpu.matmul %48, %78, %cst_91 {dimension_numbers = #tpu.dot_dimension_numbers<[1], [0], [0], [1], [0, 0, 1, 1], [], []>} : vector<16x64xbf16>, vector<64x16xbf16>, vector<16x16xf32> -> vector<16x16xf32>
    %c112 = arith.constant 112 : index
    %c0_92 = arith.constant 0 : index
    %80 = vector.load %arg32[%c112, %c0_92] : memref<144x256xf32, #tpu.memory_space<vmem>>, vector<16x16xf32>
    tpu.vector_store %arg32[%c112, %c0_92], %79 {strides = array<i32>} : memref<144x256xf32, #tpu.memory_space<vmem>>, vector<16x16xf32>,
    %c8_93 = arith.constant 8 : index
    %c0_94 = arith.constant 0 : index
    %c0_95 = arith.constant 0 : index
    %81 = vector.load %arg6[%c8_93, %c0_94, %c0_95] : memref<9x64x16xbf16, #tpu.memory_space<vmem>>, vector<1x64x16xbf16>
    %82 = vector.shape_cast %81 : vector<1x64x16xbf16> to vector<64x16xbf16>
    %cst_96 = arith.constant dense<0.000000e+00> : vector<16x16xf32>
    %83 = tpu.matmul %48, %82, %cst_96 {dimension_numbers = #tpu.dot_dimension_numbers<[1], [0], [0], [1], [0, 0, 1, 1], [], []>} : vector<16x64xbf16>, vector<64x16xbf16>, vector<16x16xf32> -> vector<16x16xf32>
    %c128 = arith.constant 128 : index
    %c0_97 = arith.constant 0 : index
    %84 = vector.load %arg32[%c128, %c0_97] : memref<144x256xf32, #tpu.memory_space<vmem>>, vector<16x16xf32>
    tpu.vector_store %arg32[%c128, %c0_97], %83 {strides = array<i32>} : memref<144x256xf32, #tpu.memory_space<vmem>>, vector<16x16xf32>,
    %c0_98 = arith.constant 0 : index
    %c0_99 = arith.constant 0 : index
    %85 = vector.load %arg32[%c0_98, %c0_99] : memref<144x256xf32, #tpu.memory_space<vmem>>, vector<144x16xf32>
    %86 = arith.truncf %85 : vector<144x16xf32> to vector<144x16xbf16>
    %c0_100 = arith.constant 0 : index
    %c0_101 = arith.constant 0 : index
    %87 = vector.load %arg7[%c0_100, %c0_101] : memref<16x144xbf16, #tpu.memory_space<vmem>>, vector<16x144xbf16>
    %cst_102 = arith.constant dense<0.000000e+00> : vector<16x16xf32>
    %88 = tpu.matmul %87, %86, %cst_102 {dimension_numbers = #tpu.dot_dimension_numbers<[1], [0], [0], [1], [0, 0, 1, 1], [], []>} : vector<16x144xbf16>, vector<144x16xbf16>, vector<16x16xf32> -> vector<16x16xf32>
    %c0_103 = arith.constant 0 : index
    %c0_104 = arith.constant 0 : index
    %89 = vector.load %arg8[%c0_103, %c0_104] : memref<16x1xf32, #tpu.memory_space<vmem>>, vector<16x1xf32>
    %90 = vector.broadcast %89 : vector<16x1xf32> to vector<16x16xf32>
    %91 = arith.addf %88, %90 : vector<16x16xf32>
    %cst_105 = arith.constant 0.000000e+00 : f32
    %92 = vector.broadcast %cst_105 : f32 to vector<16x16xf32>
    %93 = arith.maximumf %91, %92 : vector<16x16xf32>
    %94 = arith.truncf %93 : vector<16x16xf32> to vector<16x16xbf16>
    %c0_106 = arith.constant 0 : index
    %c0_107 = arith.constant 0 : index
    %c0_108 = arith.constant 0 : index
    %95 = vector.load %arg9[%c0_106, %c0_107, %c0_108] : memref<9x16x4xbf16, #tpu.memory_space<vmem>>, vector<1x16x4xbf16>
    %96 = vector.shape_cast %95 : vector<1x16x4xbf16> to vector<16x4xbf16>
    %cst_109 = arith.constant dense<0.000000e+00> : vector<16x4xf32>
    %97 = tpu.matmul %94, %96, %cst_109 {dimension_numbers = #tpu.dot_dimension_numbers<[1], [0], [0], [1], [0, 0, 1, 1], [], []>} : vector<16x16xbf16>, vector<16x4xbf16>, vector<16x4xf32> -> vector<16x4xf32>
    %c0_110 = arith.constant 0 : index
    %c0_111 = arith.constant 0 : index
    %98 = vector.load %arg32[%c0_110, %c0_111] : memref<144x256xf32, #tpu.memory_space<vmem>>, vector<16x4xf32>
    tpu.vector_store %arg32[%c0_110, %c0_111], %97 {strides = array<i32>} : memref<144x256xf32, #tpu.memory_space<vmem>>, vector<16x4xf32>,
    %c1_112 = arith.constant 1 : index
    %c0_113 = arith.constant 0 : index
    %c0_114 = arith.constant 0 : index
    %99 = vector.load %arg9[%c1_112, %c0_113, %c0_114] : memref<9x16x4xbf16, #tpu.memory_space<vmem>>, vector<1x16x4xbf16>
    %100 = vector.shape_cast %99 : vector<1x16x4xbf16> to vector<16x4xbf16>
    %cst_115 = arith.constant dense<0.000000e+00> : vector<16x4xf32>
    %101 = tpu.matmul %94, %100, %cst_115 {dimension_numbers = #tpu.dot_dimension_numbers<[1], [0], [0], [1], [0, 0, 1, 1], [], []>} : vector<16x16xbf16>, vector<16x4xbf16>, vector<16x4xf32> -> vector<16x4xf32>
    %c16_116 = arith.constant 16 : index
    %c0_117 = arith.constant 0 : index
    %102 = vector.load %arg32[%c16_116, %c0_117] : memref<144x256xf32, #tpu.memory_space<vmem>>, vector<16x4xf32>
    tpu.vector_store %arg32[%c16_116, %c0_117], %101 {strides = array<i32>} : memref<144x256xf32, #tpu.memory_space<vmem>>, vector<16x4xf32>,
    %c2_118 = arith.constant 2 : index
    %c0_119 = arith.constant 0 : index
    %c0_120 = arith.constant 0 : index
    %103 = vector.load %arg9[%c2_118, %c0_119, %c0_120] : memref<9x16x4xbf16, #tpu.memory_space<vmem>>, vector<1x16x4xbf16>
    %104 = vector.shape_cast %103 : vector<1x16x4xbf16> to vector<16x4xbf16>
    %cst_121 = arith.constant dense<0.000000e+00> : vector<16x4xf32>
    %105 = tpu.matmul %94, %104, %cst_121 {dimension_numbers = #tpu.dot_dimension_numbers<[1], [0], [0], [1], [0, 0, 1, 1], [], []>} : vector<16x16xbf16>, vector<16x4xbf16>, vector<16x4xf32> -> vector<16x4xf32>
    %c32_122 = arith.constant 32 : index
    %c0_123 = arith.constant 0 : index
    %106 = vector.load %arg32[%c32_122, %c0_123] : memref<144x256xf32, #tpu.memory_space<vmem>>, vector<16x4xf32>
    tpu.vector_store %arg32[%c32_122, %c0_123], %105 {strides = array<i32>} : memref<144x256xf32, #tpu.memory_space<vmem>>, vector<16x4xf32>,
    %c3_124 = arith.constant 3 : index
    %c0_125 = arith.constant 0 : index
    %c0_126 = arith.constant 0 : index
    %107 = vector.load %arg9[%c3_124, %c0_125, %c0_126] : memref<9x16x4xbf16, #tpu.memory_space<vmem>>, vector<1x16x4xbf16>
    %108 = vector.shape_cast %107 : vector<1x16x4xbf16> to vector<16x4xbf16>
    %cst_127 = arith.constant dense<0.000000e+00> : vector<16x4xf32>
    %109 = tpu.matmul %94, %108, %cst_127 {dimension_numbers = #tpu.dot_dimension_numbers<[1], [0], [0], [1], [0, 0, 1, 1], [], []>} : vector<16x16xbf16>, vector<16x4xbf16>, vector<16x4xf32> -> vector<16x4xf32>
    %c48_128 = arith.constant 48 : index
    %c0_129 = arith.constant 0 : index
    %110 = vector.load %arg32[%c48_128, %c0_129] : memref<144x256xf32, #tpu.memory_space<vmem>>, vector<16x4xf32>
    tpu.vector_store %arg32[%c48_128, %c0_129], %109 {strides = array<i32>} : memref<144x256xf32, #tpu.memory_space<vmem>>, vector<16x4xf32>,
    %c4_130 = arith.constant 4 : index
    %c0_131 = arith.constant 0 : index
    %c0_132 = arith.constant 0 : index
    %111 = vector.load %arg9[%c4_130, %c0_131, %c0_132] : memref<9x16x4xbf16, #tpu.memory_space<vmem>>, vector<1x16x4xbf16>
    %112 = vector.shape_cast %111 : vector<1x16x4xbf16> to vector<16x4xbf16>
    %cst_133 = arith.constant dense<0.000000e+00> : vector<16x4xf32>
    %113 = tpu.matmul %94, %112, %cst_133 {dimension_numbers = #tpu.dot_dimension_numbers<[1], [0], [0], [1], [0, 0, 1, 1], [], []>} : vector<16x16xbf16>, vector<16x4xbf16>, vector<16x4xf32> -> vector<16x4xf32>
    %c64_134 = arith.constant 64 : index
    %c0_135 = arith.constant 0 : index
    %114 = vector.load %arg32[%c64_134, %c0_135] : memref<144x256xf32, #tpu.memory_space<vmem>>, vector<16x4xf32>
    tpu.vector_store %arg32[%c64_134, %c0_135], %113 {strides = array<i32>} : memref<144x256xf32, #tpu.memory_space<vmem>>, vector<16x4xf32>,
    %c5_136 = arith.constant 5 : index
    %c0_137 = arith.constant 0 : index
    %c0_138 = arith.constant 0 : index
    %115 = vector.load %arg9[%c5_136, %c0_137, %c0_138] : memref<9x16x4xbf16, #tpu.memory_space<vmem>>, vector<1x16x4xbf16>
    %116 = vector.shape_cast %115 : vector<1x16x4xbf16> to vector<16x4xbf16>
    %cst_139 = arith.constant dense<0.000000e+00> : vector<16x4xf32>
    %117 = tpu.matmul %94, %116, %cst_139 {dimension_numbers = #tpu.dot_dimension_numbers<[1], [0], [0], [1], [0, 0, 1, 1], [], []>} : vector<16x16xbf16>, vector<16x4xbf16>, vector<16x4xf32> -> vector<16x4xf32>
    %c80_140 = arith.constant 80 : index
    %c0_141 = arith.constant 0 : index
    %118 = vector.load %arg32[%c80_140, %c0_141] : memref<144x256xf32, #tpu.memory_space<vmem>>, vector<16x4xf32>
    tpu.vector_store %arg32[%c80_140, %c0_141], %117 {strides = array<i32>} : memref<144x256xf32, #tpu.memory_space<vmem>>, vector<16x4xf32>,
    %c6_142 = arith.constant 6 : index
    %c0_143 = arith.constant 0 : index
    %c0_144 = arith.constant 0 : index
    %119 = vector.load %arg9[%c6_142, %c0_143, %c0_144] : memref<9x16x4xbf16, #tpu.memory_space<vmem>>, vector<1x16x4xbf16>
    %120 = vector.shape_cast %119 : vector<1x16x4xbf16> to vector<16x4xbf16>
    %cst_145 = arith.constant dense<0.000000e+00> : vector<16x4xf32>
    %121 = tpu.matmul %94, %120, %cst_145 {dimension_numbers = #tpu.dot_dimension_numbers<[1], [0], [0], [1], [0, 0, 1, 1], [], []>} : vector<16x16xbf16>, vector<16x4xbf16>, vector<16x4xf32> -> vector<16x4xf32>
    %c96_146 = arith.constant 96 : index
    %c0_147 = arith.constant 0 : index
    %122 = vector.load %arg32[%c96_146, %c0_147] : memref<144x256xf32, #tpu.memory_space<vmem>>, vector<16x4xf32>
    tpu.vector_store %arg32[%c96_146, %c0_147], %121 {strides = array<i32>} : memref<144x256xf32, #tpu.memory_space<vmem>>, vector<16x4xf32>,
    %c7_148 = arith.constant 7 : index
    %c0_149 = arith.constant 0 : index
    %c0_150 = arith.constant 0 : index
    %123 = vector.load %arg9[%c7_148, %c0_149, %c0_150] : memref<9x16x4xbf16, #tpu.memory_space<vmem>>, vector<1x16x4xbf16>
    %124 = vector.shape_cast %123 : vector<1x16x4xbf16> to vector<16x4xbf16>
    %cst_151 = arith.constant dense<0.000000e+00> : vector<16x4xf32>
    %125 = tpu.matmul %94, %124, %cst_151 {dimension_numbers = #tpu.dot_dimension_numbers<[1], [0], [0], [1], [0, 0, 1, 1], [], []>} : vector<16x16xbf16>, vector<16x4xbf16>, vector<16x4xf32> -> vector<16x4xf32>
    %c112_152 = arith.constant 112 : index
    %c0_153 = arith.constant 0 : index
    %126 = vector.load %arg32[%c112_152, %c0_153] : memref<144x256xf32, #tpu.memory_space<vmem>>, vector<16x4xf32>
    tpu.vector_store %arg32[%c112_152, %c0_153], %125 {strides = array<i32>} : memref<144x256xf32, #tpu.memory_space<vmem>>, vector<16x4xf32>,
    %c8_154 = arith.constant 8 : index
    %c0_155 = arith.constant 0 : index
    %c0_156 = arith.constant 0 : index
    %127 = vector.load %arg9[%c8_154, %c0_155, %c0_156] : memref<9x16x4xbf16, #tpu.memory_space<vmem>>, vector<1x16x4xbf16>
    %128 = vector.shape_cast %127 : vector<1x16x4xbf16> to vector<16x4xbf16>
    %cst_157 = arith.constant dense<0.000000e+00> : vector<16x4xf32>
    %129 = tpu.matmul %94, %128, %cst_157 {dimension_numbers = #tpu.dot_dimension_numbers<[1], [0], [0], [1], [0, 0, 1, 1], [], []>} : vector<16x16xbf16>, vector<16x4xbf16>, vector<16x4xf32> -> vector<16x4xf32>
    %c128_158 = arith.constant 128 : index
    %c0_159 = arith.constant 0 : index
    %130 = vector.load %arg32[%c128_158, %c0_159] : memref<144x256xf32, #tpu.memory_space<vmem>>, vector<16x4xf32>
    tpu.vector_store %arg32[%c128_158, %c0_159], %129 {strides = array<i32>} : memref<144x256xf32, #tpu.memory_space<vmem>>, vector<16x4xf32>,
    %c0_160 = arith.constant 0 : index
    %c0_161 = arith.constant 0 : index
    %131 = vector.load %arg32[%c0_160, %c0_161] : memref<144x256xf32, #tpu.memory_space<vmem>>, vector<144x4xf32>
    %132 = arith.truncf %131 : vector<144x4xf32> to vector<144x4xbf16>
    %c0_162 = arith.constant 0 : index
    %c0_163 = arith.constant 0 : index
    %133 = vector.load %arg10[%c0_162, %c0_163] : memref<16x144xbf16, #tpu.memory_space<vmem>>, vector<16x144xbf16>
    %cst_164 = arith.constant dense<0.000000e+00> : vector<16x4xf32>
    %134 = tpu.matmul %133, %132, %cst_164 {dimension_numbers = #tpu.dot_dimension_numbers<[1], [0], [0], [1], [0, 0, 1, 1], [], []>} : vector<16x144xbf16>, vector<144x4xbf16>, vector<16x4xf32> -> vector<16x4xf32>
    %c0_165 = arith.constant 0 : index
    %c0_166 = arith.constant 0 : index
    %135 = vector.load %arg11[%c0_165, %c0_166] : memref<16x1xf32, #tpu.memory_space<vmem>>, vector<16x1xf32>
    %136 = vector.broadcast %135 : vector<16x1xf32> to vector<16x4xf32>
    %137 = arith.addf %134, %136 : vector<16x4xf32>
    %cst_167 = arith.constant 0.000000e+00 : f32
    %138 = vector.broadcast %cst_167 : f32 to vector<16x4xf32>
    %139 = arith.maximumf %137, %138 : vector<16x4xf32>
    %c0_168 = arith.constant 0 : index
    %c0_169 = arith.constant 0 : index
    %140 = vector.load %arg13[%c0_168, %c0_169] : memref<32x1xf32, #tpu.memory_space<vmem>>, vector<32x1xf32>
    %c0_170 = arith.constant 0 : index
    %c0_171 = arith.constant 0 : index
    %c0_172 = arith.constant 0 : index
    %141 = vector.load %arg12[%c0_170, %c0_171, %c0_172] : memref<4x32x16xf32, #tpu.memory_space<vmem>>, vector<1x32x16xf32>
    %142 = vector.shape_cast %141 : vector<1x32x16xf32> to vector<32x16xf32>
    %143 = vector.extract_strided_slice %139 {offsets = [0, 0], sizes = [16, 1], strides = [1, 1]} : vector<16x4xf32> to vector<16x1xf32>
    %cst_173 = arith.constant dense<0.000000e+00> : vector<32x1xf32>
    %144 = tpu.matmul %142, %143, %cst_173 {dimension_numbers = #tpu.dot_dimension_numbers<[1], [0], [0], [1], [0, 0, 1, 1], [], []>} : vector<32x16xf32>, vector<16x1xf32>, vector<32x1xf32> -> vector<32x1xf32>
    %145 = arith.addf %140, %144 : vector<32x1xf32>
    %c1_174 = arith.constant 1 : index
    %c0_175 = arith.constant 0 : index
    %c0_176 = arith.constant 0 : index
    %146 = vector.load %arg12[%c1_174, %c0_175, %c0_176] : memref<4x32x16xf32, #tpu.memory_space<vmem>>, vector<1x32x16xf32>
    %147 = vector.shape_cast %146 : vector<1x32x16xf32> to vector<32x16xf32>
    %148 = vector.extract_strided_slice %139 {offsets = [0, 1], sizes = [16, 1], strides = [1, 1]} : vector<16x4xf32> to vector<16x1xf32>
    %cst_177 = arith.constant dense<0.000000e+00> : vector<32x1xf32>
    %149 = tpu.matmul %147, %148, %cst_177 {dimension_numbers = #tpu.dot_dimension_numbers<[1], [0], [0], [1], [0, 0, 1, 1], [], []>} : vector<32x16xf32>, vector<16x1xf32>, vector<32x1xf32> -> vector<32x1xf32>
    %150 = arith.addf %145, %149 : vector<32x1xf32>
    %c2_178 = arith.constant 2 : index
    %c0_179 = arith.constant 0 : index
    %c0_180 = arith.constant 0 : index
    %151 = vector.load %arg12[%c2_178, %c0_179, %c0_180] : memref<4x32x16xf32, #tpu.memory_space<vmem>>, vector<1x32x16xf32>
    %152 = vector.shape_cast %151 : vector<1x32x16xf32> to vector<32x16xf32>
    %153 = vector.extract_strided_slice %139 {offsets = [0, 2], sizes = [16, 1], strides = [1, 1]} : vector<16x4xf32> to vector<16x1xf32>
    %cst_181 = arith.constant dense<0.000000e+00> : vector<32x1xf32>
    %154 = tpu.matmul %152, %153, %cst_181 {dimension_numbers = #tpu.dot_dimension_numbers<[1], [0], [0], [1], [0, 0, 1, 1], [], []>} : vector<32x16xf32>, vector<16x1xf32>, vector<32x1xf32> -> vector<32x1xf32>
    %155 = arith.addf %150, %154 : vector<32x1xf32>
    %c3_182 = arith.constant 3 : index
    %c0_183 = arith.constant 0 : index
    %c0_184 = arith.constant 0 : index
    %156 = vector.load %arg12[%c3_182, %c0_183, %c0_184] : memref<4x32x16xf32, #tpu.memory_space<vmem>>, vector<1x32x16xf32>
    %157 = vector.shape_cast %156 : vector<1x32x16xf32> to vector<32x16xf32>
    %158 = vector.extract_strided_slice %139 {offsets = [0, 3], sizes = [16, 1], strides = [1, 1]} : vector<16x4xf32> to vector<16x1xf32>
    %cst_185 = arith.constant dense<0.000000e+00> : vector<32x1xf32>
    %159 = tpu.matmul %157, %158, %cst_185 {dimension_numbers = #tpu.dot_dimension_numbers<[1], [0], [0], [1], [0, 0, 1, 1], [], []>} : vector<32x16xf32>, vector<16x1xf32>, vector<32x1xf32> -> vector<32x1xf32>
    %160 = arith.addf %155, %159 : vector<32x1xf32>
    %cst_186 = arith.constant 0.000000e+00 : f32
    %161 = vector.broadcast %cst_186 : f32 to vector<32x1xf32>
    %162 = arith.maximumf %160, %161 : vector<32x1xf32>
    %c0_187 = arith.constant 0 : index
    %c0_188 = arith.constant 0 : index
    %163 = vector.load %arg14[%c0_187, %c0_188] : memref<16x32xf32, #tpu.memory_space<vmem>>, vector<16x32xf32>
    %cst_189 = arith.constant dense<0.000000e+00> : vector<16x1xf32>
    %164 = tpu.matmul %163, %162, %cst_189 {dimension_numbers = #tpu.dot_dimension_numbers<[1], [0], [0], [1], [0, 0, 1, 1], [], []>} : vector<16x32xf32>, vector<32x1xf32>, vector<16x1xf32> -> vector<16x1xf32>
    %c0_190 = arith.constant 0 : index
    %c0_191 = arith.constant 0 : index
    %165 = vector.load %arg15[%c0_190, %c0_191] : memref<16x1xf32, #tpu.memory_space<vmem>>, vector<16x1xf32>
    %166 = arith.addf %164, %165 : vector<16x1xf32>
    %167 = vector.extract_strided_slice %166 {offsets = [0, 0], sizes = [8, 1], strides = [1, 1]} : vector<16x1xf32> to vector<8x1xf32>
    %168 = vector.extract_strided_slice %166 {offsets = [8, 0], sizes = [8, 1], strides = [1, 1]} : vector<16x1xf32> to vector<8x1xf32>
    %c0_192 = arith.constant 0 : index
    %c0_193 = arith.constant 0 : index
    %c0_194 = arith.constant 0 : index
    %169 = vector.load %arg2[%c0_192, %c0_193, %c0_194] : memref<1x8x1xf32, #tpu.memory_space<vmem>>, vector<1x8x1xf32>
    %170 = vector.shape_cast %169 : vector<1x8x1xf32> to vector<8x1xf32>
    %cst_195 = arith.constant 5.000000e-01 : f32
    %171 = vector.broadcast %cst_195 : f32 to vector<8x1xf32>
    %172 = arith.mulf %171, %168 : vector<8x1xf32>
    %173 = math.exp %172 : vector<8x1xf32>
    %174 = arith.mulf %170, %173 : vector<8x1xf32>
    %175 = arith.addf %167, %174 : vector<8x1xf32>
    %c0_196 = arith.constant 0 : index
    %c0_197 = arith.constant 0 : index
    %176 = vector.load %arg16[%c0_196, %c0_197] : memref<32x8xf32, #tpu.memory_space<vmem>>, vector<32x8xf32>
    %cst_198 = arith.constant dense<0.000000e+00> : vector<32x1xf32>
    %177 = tpu.matmul %176, %175, %cst_198 {dimension_numbers = #tpu.dot_dimension_numbers<[1], [0], [0], [1], [0, 0, 1, 1], [], []>} : vector<32x8xf32>, vector<8x1xf32>, vector<32x1xf32> -> vector<32x1xf32>
    %c0_199 = arith.constant 0 : index
    %c0_200 = arith.constant 0 : index
    %178 = vector.load %arg17[%c0_199, %c0_200] : memref<32x1xf32, #tpu.memory_space<vmem>>, vector<32x1xf32>
    %179 = arith.addf %177, %178 : vector<32x1xf32>
    %cst_201 = arith.constant 0.000000e+00 : f32
    %180 = vector.broadcast %cst_201 : f32 to vector<32x1xf32>
    %181 = arith.maximumf %179, %180 : vector<32x1xf32>
    %c0_202 = arith.constant 0 : index
    %c0_203 = arith.constant 0 : index
    %c0_204 = arith.constant 0 : index
    %182 = vector.load %arg18[%c0_202, %c0_203, %c0_204] : memref<4x16x32xf32, #tpu.memory_space<vmem>>, vector<1x16x32xf32>
    %183 = vector.shape_cast %182 : vector<1x16x32xf32> to vector<16x32xf32>
    %cst_205 = arith.constant dense<0.000000e+00> : vector<16x1xf32>
    %184 = tpu.matmul %183, %181, %cst_205 {dimension_numbers = #tpu.dot_dimension_numbers<[1], [0], [0], [1], [0, 0, 1, 1], [], []>} : vector<16x32xf32>, vector<32x1xf32>, vector<16x1xf32> -> vector<16x1xf32>
    %c0_206 = arith.constant 0 : index
    %c0_207 = arith.constant 0 : index
    %c0_208 = arith.constant 0 : index
    %185 = vector.load %arg19[%c0_206, %c0_207, %c0_208] : memref<4x16x1xf32, #tpu.memory_space<vmem>>, vector<1x16x1xf32>
    %186 = vector.shape_cast %185 : vector<1x16x1xf32> to vector<16x1xf32>
    %187 = arith.addf %184, %186 : vector<16x1xf32>
    %cst_209 = arith.constant 0.000000e+00 : f32
    %188 = vector.broadcast %cst_209 : f32 to vector<16x1xf32>
    %189 = arith.maximumf %187, %188 : vector<16x1xf32>
    %c0_210 = arith.constant 0 : index
    %c0_211 = arith.constant 0 : index
    %190 = vector.load %arg20[%c0_210, %c0_211] : memref<4x4xf32, #tpu.memory_space<vmem>>, vector<1x4xf32>
    %191 = vector.broadcast %189 : vector<16x1xf32> to vector<16x4xf32>
    %192 = vector.broadcast %190 : vector<1x4xf32> to vector<16x4xf32>
    %193 = arith.mulf %191, %192 : vector<16x4xf32>
    %c1_212 = arith.constant 1 : index
    %c0_213 = arith.constant 0 : index
    %c0_214 = arith.constant 0 : index
    %194 = vector.load %arg18[%c1_212, %c0_213, %c0_214] : memref<4x16x32xf32, #tpu.memory_space<vmem>>, vector<1x16x32xf32>
    %195 = vector.shape_cast %194 : vector<1x16x32xf32> to vector<16x32xf32>
    %cst_215 = arith.constant dense<0.000000e+00> : vector<16x1xf32>
    %196 = tpu.matmul %195, %181, %cst_215 {dimension_numbers = #tpu.dot_dimension_numbers<[1], [0], [0], [1], [0, 0, 1, 1], [], []>} : vector<16x32xf32>, vector<32x1xf32>, vector<16x1xf32> -> vector<16x1xf32>
    %c1_216 = arith.constant 1 : index
    %c0_217 = arith.constant 0 : index
    %c0_218 = arith.constant 0 : index
    %197 = vector.load %arg19[%c1_216, %c0_217, %c0_218] : memref<4x16x1xf32, #tpu.memory_space<vmem>>, vector<1x16x1xf32>
    %198 = vector.shape_cast %197 : vector<1x16x1xf32> to vector<16x1xf32>
    %199 = arith.addf %196, %198 : vector<16x1xf32>
    %cst_219 = arith.constant 0.000000e+00 : f32
    %200 = vector.broadcast %cst_219 : f32 to vector<16x1xf32>
    %201 = arith.maximumf %199, %200 : vector<16x1xf32>
    %c1_220 = arith.constant 1 : index
    %c0_221 = arith.constant 0 : index
    %202 = vector.load %arg20[%c1_220, %c0_221] : memref<4x4xf32, #tpu.memory_space<vmem>>, vector<1x4xf32>
    %203 = vector.broadcast %201 : vector<16x1xf32> to vector<16x4xf32>
    %204 = vector.broadcast %202 : vector<1x4xf32> to vector<16x4xf32>
    %205 = arith.mulf %203, %204 : vector<16x4xf32>
    %206 = arith.addf %193, %205 : vector<16x4xf32>
    %c2_222 = arith.constant 2 : index
    %c0_223 = arith.constant 0 : index
    %c0_224 = arith.constant 0 : index
    %207 = vector.load %arg18[%c2_222, %c0_223, %c0_224] : memref<4x16x32xf32, #tpu.memory_space<vmem>>, vector<1x16x32xf32>
    %208 = vector.shape_cast %207 : vector<1x16x32xf32> to vector<16x32xf32>
    %cst_225 = arith.constant dense<0.000000e+00> : vector<16x1xf32>
    %209 = tpu.matmul %208, %181, %cst_225 {dimension_numbers = #tpu.dot_dimension_numbers<[1], [0], [0], [1], [0, 0, 1, 1], [], []>} : vector<16x32xf32>, vector<32x1xf32>, vector<16x1xf32> -> vector<16x1xf32>
    %c2_226 = arith.constant 2 : index
    %c0_227 = arith.constant 0 : index
    %c0_228 = arith.constant 0 : index
    %210 = vector.load %arg19[%c2_226, %c0_227, %c0_228] : memref<4x16x1xf32, #tpu.memory_space<vmem>>, vector<1x16x1xf32>
    %211 = vector.shape_cast %210 : vector<1x16x1xf32> to vector<16x1xf32>
    %212 = arith.addf %209, %211 : vector<16x1xf32>
    %cst_229 = arith.constant 0.000000e+00 : f32
    %213 = vector.broadcast %cst_229 : f32 to vector<16x1xf32>
    %214 = arith.maximumf %212, %213 : vector<16x1xf32>
    %c2_230 = arith.constant 2 : index
    %c0_231 = arith.constant 0 : index
    %215 = vector.load %arg20[%c2_230, %c0_231] : memref<4x4xf32, #tpu.memory_space<vmem>>, vector<1x4xf32>
    %216 = vector.broadcast %214 : vector<16x1xf32> to vector<16x4xf32>
    %217 = vector.broadcast %215 : vector<1x4xf32> to vector<16x4xf32>
    %218 = arith.mulf %216, %217 : vector<16x4xf32>
    %219 = arith.addf %206, %218 : vector<16x4xf32>
    %c3_232 = arith.constant 3 : index
    %c0_233 = arith.constant 0 : index
    %c0_234 = arith.constant 0 : index
    %220 = vector.load %arg18[%c3_232, %c0_233, %c0_234] : memref<4x16x32xf32, #tpu.memory_space<vmem>>, vector<1x16x32xf32>
    %221 = vector.shape_cast %220 : vector<1x16x32xf32> to vector<16x32xf32>
    %cst_235 = arith.constant dense<0.000000e+00> : vector<16x1xf32>
    %222 = tpu.matmul %221, %181, %cst_235 {dimension_numbers = #tpu.dot_dimension_numbers<[1], [0], [0], [1], [0, 0, 1, 1], [], []>} : vector<16x32xf32>, vector<32x1xf32>, vector<16x1xf32> -> vector<16x1xf32>
    %c3_236 = arith.constant 3 : index
    %c0_237 = arith.constant 0 : index
    %c0_238 = arith.constant 0 : index
    %223 = vector.load %arg19[%c3_236, %c0_237, %c0_238] : memref<4x16x1xf32, #tpu.memory_space<vmem>>, vector<1x16x1xf32>
    %224 = vector.shape_cast %223 : vector<1x16x1xf32> to vector<16x1xf32>
    %225 = arith.addf %222, %224 : vector<16x1xf32>
    %cst_239 = arith.constant 0.000000e+00 : f32
    %226 = vector.broadcast %cst_239 : f32 to vector<16x1xf32>
    %227 = arith.maximumf %225, %226 : vector<16x1xf32>
    %c3_240 = arith.constant 3 : index
    %c0_241 = arith.constant 0 : index
    %228 = vector.load %arg20[%c3_240, %c0_241] : memref<4x4xf32, #tpu.memory_space<vmem>>, vector<1x4xf32>
    %229 = vector.broadcast %227 : vector<16x1xf32> to vector<16x4xf32>
    %230 = vector.broadcast %228 : vector<1x4xf32> to vector<16x4xf32>
    %231 = arith.mulf %229, %230 : vector<16x4xf32>
    %232 = arith.addf %219, %231 : vector<16x4xf32>
    %233 = arith.truncf %232 : vector<16x4xf32> to vector<16x4xbf16>
    %c0_242 = arith.constant 0 : index
    %c0_243 = arith.constant 0 : index
    %c0_244 = arith.constant 0 : index
    %234 = vector.load %arg21[%c0_242, %c0_243, %c0_244] : memref<9x4x16xbf16, #tpu.memory_space<vmem>>, vector<1x4x16xbf16>
    %235 = vector.shape_cast %234 : vector<1x4x16xbf16> to vector<4x16xbf16>
    %cst_245 = arith.constant dense<0.000000e+00> : vector<16x16xf32>
    %236 = tpu.matmul %233, %235, %cst_245 {dimension_numbers = #tpu.dot_dimension_numbers<[1], [0], [0], [1], [0, 0, 1, 1], [], []>} : vector<16x4xbf16>, vector<4x16xbf16>, vector<16x16xf32> -> vector<16x16xf32>
    %c0_246 = arith.constant 0 : index
    %c0_247 = arith.constant 0 : index
    %237 = vector.load %arg32[%c0_246, %c0_247] : memref<144x256xf32, #tpu.memory_space<vmem>>, vector<16x16xf32>
    tpu.vector_store %arg32[%c0_246, %c0_247], %236 {strides = array<i32>} : memref<144x256xf32, #tpu.memory_space<vmem>>, vector<16x16xf32>,
    %c1_248 = arith.constant 1 : index
    %c0_249 = arith.constant 0 : index
    %c0_250 = arith.constant 0 : index
    %238 = vector.load %arg21[%c1_248, %c0_249, %c0_250] : memref<9x4x16xbf16, #tpu.memory_space<vmem>>, vector<1x4x16xbf16>
    %239 = vector.shape_cast %238 : vector<1x4x16xbf16> to vector<4x16xbf16>
    %cst_251 = arith.constant dense<0.000000e+00> : vector<16x16xf32>
    %240 = tpu.matmul %233, %239, %cst_251 {dimension_numbers = #tpu.dot_dimension_numbers<[1], [0], [0], [1], [0, 0, 1, 1], [], []>} : vector<16x4xbf16>, vector<4x16xbf16>, vector<16x16xf32> -> vector<16x16xf32>
    %c16_252 = arith.constant 16 : index
    %c0_253 = arith.constant 0 : index
    %241 = vector.load %arg32[%c16_252, %c0_253] : memref<144x256xf32, #tpu.memory_space<vmem>>, vector<16x16xf32>
    tpu.vector_store %arg32[%c16_252, %c0_253], %240 {strides = array<i32>} : memref<144x256xf32, #tpu.memory_space<vmem>>, vector<16x16xf32>,
    %c2_254 = arith.constant 2 : index
    %c0_255 = arith.constant 0 : index
    %c0_256 = arith.constant 0 : index
    %242 = vector.load %arg21[%c2_254, %c0_255, %c0_256] : memref<9x4x16xbf16, #tpu.memory_space<vmem>>, vector<1x4x16xbf16>
    %243 = vector.shape_cast %242 : vector<1x4x16xbf16> to vector<4x16xbf16>
    %cst_257 = arith.constant dense<0.000000e+00> : vector<16x16xf32>
    %244 = tpu.matmul %233, %243, %cst_257 {dimension_numbers = #tpu.dot_dimension_numbers<[1], [0], [0], [1], [0, 0, 1, 1], [], []>} : vector<16x4xbf16>, vector<4x16xbf16>, vector<16x16xf32> -> vector<16x16xf32>
    %c32_258 = arith.constant 32 : index
    %c0_259 = arith.constant 0 : index
    %245 = vector.load %arg32[%c32_258, %c0_259] : memref<144x256xf32, #tpu.memory_space<vmem>>, vector<16x16xf32>
    tpu.vector_store %arg32[%c32_258, %c0_259], %244 {strides = array<i32>} : memref<144x256xf32, #tpu.memory_space<vmem>>, vector<16x16xf32>,
    %c3_260 = arith.constant 3 : index
    %c0_261 = arith.constant 0 : index
    %c0_262 = arith.constant 0 : index
    %246 = vector.load %arg21[%c3_260, %c0_261, %c0_262] : memref<9x4x16xbf16, #tpu.memory_space<vmem>>, vector<1x4x16xbf16>
    %247 = vector.shape_cast %246 : vector<1x4x16xbf16> to vector<4x16xbf16>
    %cst_263 = arith.constant dense<0.000000e+00> : vector<16x16xf32>
    %248 = tpu.matmul %233, %247, %cst_263 {dimension_numbers = #tpu.dot_dimension_numbers<[1], [0], [0], [1], [0, 0, 1, 1], [], []>} : vector<16x4xbf16>, vector<4x16xbf16>, vector<16x16xf32> -> vector<16x16xf32>
    %c48_264 = arith.constant 48 : index
    %c0_265 = arith.constant 0 : index
    %249 = vector.load %arg32[%c48_264, %c0_265] : memref<144x256xf32, #tpu.memory_space<vmem>>, vector<16x16xf32>
    tpu.vector_store %arg32[%c48_264, %c0_265], %248 {strides = array<i32>} : memref<144x256xf32, #tpu.memory_space<vmem>>, vector<16x16xf32>,
    %c4_266 = arith.constant 4 : index
    %c0_267 = arith.constant 0 : index
    %c0_268 = arith.constant 0 : index
    %250 = vector.load %arg21[%c4_266, %c0_267, %c0_268] : memref<9x4x16xbf16, #tpu.memory_space<vmem>>, vector<1x4x16xbf16>
    %251 = vector.shape_cast %250 : vector<1x4x16xbf16> to vector<4x16xbf16>
    %cst_269 = arith.constant dense<0.000000e+00> : vector<16x16xf32>
    %252 = tpu.matmul %233, %251, %cst_269 {dimension_numbers = #tpu.dot_dimension_numbers<[1], [0], [0], [1], [0, 0, 1, 1], [], []>} : vector<16x4xbf16>, vector<4x16xbf16>, vector<16x16xf32> -> vector<16x16xf32>
    %c64_270 = arith.constant 64 : index
    %c0_271 = arith.constant 0 : index
    %253 = vector.load %arg32[%c64_270, %c0_271] : memref<144x256xf32, #tpu.memory_space<vmem>>, vector<16x16xf32>
    tpu.vector_store %arg32[%c64_270, %c0_271], %252 {strides = array<i32>} : memref<144x256xf32, #tpu.memory_space<vmem>>, vector<16x16xf32>,
    %c5_272 = arith.constant 5 : index
    %c0_273 = arith.constant 0 : index
    %c0_274 = arith.constant 0 : index
    %254 = vector.load %arg21[%c5_272, %c0_273, %c0_274] : memref<9x4x16xbf16, #tpu.memory_space<vmem>>, vector<1x4x16xbf16>
    %255 = vector.shape_cast %254 : vector<1x4x16xbf16> to vector<4x16xbf16>
    %cst_275 = arith.constant dense<0.000000e+00> : vector<16x16xf32>
    %256 = tpu.matmul %233, %255, %cst_275 {dimension_numbers = #tpu.dot_dimension_numbers<[1], [0], [0], [1], [0, 0, 1, 1], [], []>} : vector<16x4xbf16>, vector<4x16xbf16>, vector<16x16xf32> -> vector<16x16xf32>
    %c80_276 = arith.constant 80 : index
    %c0_277 = arith.constant 0 : index
    %257 = vector.load %arg32[%c80_276, %c0_277] : memref<144x256xf32, #tpu.memory_space<vmem>>, vector<16x16xf32>
    tpu.vector_store %arg32[%c80_276, %c0_277], %256 {strides = array<i32>} : memref<144x256xf32, #tpu.memory_space<vmem>>, vector<16x16xf32>,
    %c6_278 = arith.constant 6 : index
    %c0_279 = arith.constant 0 : index
    %c0_280 = arith.constant 0 : index
    %258 = vector.load %arg21[%c6_278, %c0_279, %c0_280] : memref<9x4x16xbf16, #tpu.memory_space<vmem>>, vector<1x4x16xbf16>
    %259 = vector.shape_cast %258 : vector<1x4x16xbf16> to vector<4x16xbf16>
    %cst_281 = arith.constant dense<0.000000e+00> : vector<16x16xf32>
    %260 = tpu.matmul %233, %259, %cst_281 {dimension_numbers = #tpu.dot_dimension_numbers<[1], [0], [0], [1], [0, 0, 1, 1], [], []>} : vector<16x4xbf16>, vector<4x16xbf16>, vector<16x16xf32> -> vector<16x16xf32>
    %c96_282 = arith.constant 96 : index
    %c0_283 = arith.constant 0 : index
    %261 = vector.load %arg32[%c96_282, %c0_283] : memref<144x256xf32, #tpu.memory_space<vmem>>, vector<16x16xf32>
    tpu.vector_store %arg32[%c96_282, %c0_283], %260 {strides = array<i32>} : memref<144x256xf32, #tpu.memory_space<vmem>>, vector<16x16xf32>,
    %c7_284 = arith.constant 7 : index
    %c0_285 = arith.constant 0 : index
    %c0_286 = arith.constant 0 : index
    %262 = vector.load %arg21[%c7_284, %c0_285, %c0_286] : memref<9x4x16xbf16, #tpu.memory_space<vmem>>, vector<1x4x16xbf16>
    %263 = vector.shape_cast %262 : vector<1x4x16xbf16> to vector<4x16xbf16>
    %cst_287 = arith.constant dense<0.000000e+00> : vector<16x16xf32>
    %264 = tpu.matmul %233, %263, %cst_287 {dimension_numbers = #tpu.dot_dimension_numbers<[1], [0], [0], [1], [0, 0, 1, 1], [], []>} : vector<16x4xbf16>, vector<4x16xbf16>, vector<16x16xf32> -> vector<16x16xf32>
    %c112_288 = arith.constant 112 : index
    %c0_289 = arith.constant 0 : index
    %265 = vector.load %arg32[%c112_288, %c0_289] : memref<144x256xf32, #tpu.memory_space<vmem>>, vector<16x16xf32>
    tpu.vector_store %arg32[%c112_288, %c0_289], %264 {strides = array<i32>} : memref<144x256xf32, #tpu.memory_space<vmem>>, vector<16x16xf32>,
    %c8_290 = arith.constant 8 : index
    %c0_291 = arith.constant 0 : index
    %c0_292 = arith.constant 0 : index
    %266 = vector.load %arg21[%c8_290, %c0_291, %c0_292] : memref<9x4x16xbf16, #tpu.memory_space<vmem>>, vector<1x4x16xbf16>
    %267 = vector.shape_cast %266 : vector<1x4x16xbf16> to vector<4x16xbf16>
    %cst_293 = arith.constant dense<0.000000e+00> : vector<16x16xf32>
    %268 = tpu.matmul %233, %267, %cst_293 {dimension_numbers = #tpu.dot_dimension_numbers<[1], [0], [0], [1], [0, 0, 1, 1], [], []>} : vector<16x4xbf16>, vector<4x16xbf16>, vector<16x16xf32> -> vector<16x16xf32>
    %c128_294 = arith.constant 128 : index
    %c0_295 = arith.constant 0 : index
    %269 = vector.load %arg32[%c128_294, %c0_295] : memref<144x256xf32, #tpu.memory_space<vmem>>, vector<16x16xf32>
    tpu.vector_store %arg32[%c128_294, %c0_295], %268 {strides = array<i32>} : memref<144x256xf32, #tpu.memory_space<vmem>>, vector<16x16xf32>,
    %c0_296 = arith.constant 0 : index
    %c0_297 = arith.constant 0 : index
    %270 = vector.load %arg32[%c0_296, %c0_297] : memref<144x256xf32, #tpu.memory_space<vmem>>, vector<144x16xf32>
    %271 = arith.truncf %270 : vector<144x16xf32> to vector<144x16xbf16>
    %c0_298 = arith.constant 0 : index
    %c0_299 = arith.constant 0 : index
    %272 = vector.load %arg22[%c0_298, %c0_299] : memref<16x144xbf16, #tpu.memory_space<vmem>>, vector<16x144xbf16>
    %cst_300 = arith.constant dense<0.000000e+00> : vector<16x16xf32>
    %273 = tpu.matmul %272, %271, %cst_300 {dimension_numbers = #tpu.dot_dimension_numbers<[1], [0], [0], [1], [0, 0, 1, 1], [], []>} : vector<16x144xbf16>, vector<144x16xbf16>, vector<16x16xf32> -> vector<16x16xf32>
    %c0_301 = arith.constant 0 : index
    %c0_302 = arith.constant 0 : index
    %274 = vector.load %arg23[%c0_301, %c0_302] : memref<16x1xf32, #tpu.memory_space<vmem>>, vector<16x1xf32>
    %275 = vector.broadcast %274 : vector<16x1xf32> to vector<16x16xf32>
    %276 = arith.addf %273, %275 : vector<16x16xf32>
    %cst_303 = arith.constant 0.000000e+00 : f32
    %277 = vector.broadcast %cst_303 : f32 to vector<16x16xf32>
    %278 = arith.cmpf oge, %276, %277 : vector<16x16xf32>
    %cst_304 = arith.constant 0.00999999977 : f32
    %279 = vector.broadcast %cst_304 : f32 to vector<16x16xf32>
    %280 = arith.mulf %279, %276 : vector<16x16xf32>
    %281 = arith.select %278, %276, %280 : vector<16x16xi1>, vector<16x16xf32>
    %282 = arith.truncf %281 : vector<16x16xf32> to vector<16x16xbf16>
    %c0_305 = arith.constant 0 : index
    %c0_306 = arith.constant 0 : index
    %c0_307 = arith.constant 0 : index
    %283 = vector.load %arg24[%c0_305, %c0_306, %c0_307] : memref<9x16x64xbf16, #tpu.memory_space<vmem>>, vector<1x16x64xbf16>
    %284 = vector.shape_cast %283 : vector<1x16x64xbf16> to vector<16x64xbf16>
    %cst_308 = arith.constant dense<0.000000e+00> : vector<16x64xf32>
    %285 = tpu.matmul %282, %284, %cst_308 {dimension_numbers = #tpu.dot_dimension_numbers<[1], [0], [0], [1], [0, 0, 1, 1], [], []>} : vector<16x16xbf16>, vector<16x64xbf16>, vector<16x64xf32> -> vector<16x64xf32>
    %c0_309 = arith.constant 0 : index
    %c0_310 = arith.constant 0 : index
    %286 = vector.load %arg32[%c0_309, %c0_310] : memref<144x256xf32, #tpu.memory_space<vmem>>, vector<16x64xf32>
    tpu.vector_store %arg32[%c0_309, %c0_310], %285 {strides = array<i32>} : memref<144x256xf32, #tpu.memory_space<vmem>>, vector<16x64xf32>,
    %c1_311 = arith.constant 1 : index
    %c0_312 = arith.constant 0 : index
    %c0_313 = arith.constant 0 : index
    %287 = vector.load %arg24[%c1_311, %c0_312, %c0_313] : memref<9x16x64xbf16, #tpu.memory_space<vmem>>, vector<1x16x64xbf16>
    %288 = vector.shape_cast %287 : vector<1x16x64xbf16> to vector<16x64xbf16>
    %cst_314 = arith.constant dense<0.000000e+00> : vector<16x64xf32>
    %289 = tpu.matmul %282, %288, %cst_314 {dimension_numbers = #tpu.dot_dimension_numbers<[1], [0], [0], [1], [0, 0, 1, 1], [], []>} : vector<16x16xbf16>, vector<16x64xbf16>, vector<16x64xf32> -> vector<16x64xf32>
    %c16_315 = arith.constant 16 : index
    %c0_316 = arith.constant 0 : index
    %290 = vector.load %arg32[%c16_315, %c0_316] : memref<144x256xf32, #tpu.memory_space<vmem>>, vector<16x64xf32>
    tpu.vector_store %arg32[%c16_315, %c0_316], %289 {strides = array<i32>} : memref<144x256xf32, #tpu.memory_space<vmem>>, vector<16x64xf32>,
    %c2_317 = arith.constant 2 : index
    %c0_318 = arith.constant 0 : index
    %c0_319 = arith.constant 0 : index
    %291 = vector.load %arg24[%c2_317, %c0_318, %c0_319] : memref<9x16x64xbf16, #tpu.memory_space<vmem>>, vector<1x16x64xbf16>
    %292 = vector.shape_cast %291 : vector<1x16x64xbf16> to vector<16x64xbf16>
    %cst_320 = arith.constant dense<0.000000e+00> : vector<16x64xf32>
    %293 = tpu.matmul %282, %292, %cst_320 {dimension_numbers = #tpu.dot_dimension_numbers<[1], [0], [0], [1], [0, 0, 1, 1], [], []>} : vector<16x16xbf16>, vector<16x64xbf16>, vector<16x64xf32> -> vector<16x64xf32>
    %c32_321 = arith.constant 32 : index
    %c0_322 = arith.constant 0 : index
    %294 = vector.load %arg32[%c32_321, %c0_322] : memref<144x256xf32, #tpu.memory_space<vmem>>, vector<16x64xf32>
    tpu.vector_store %arg32[%c32_321, %c0_322], %293 {strides = array<i32>} : memref<144x256xf32, #tpu.memory_space<vmem>>, vector<16x64xf32>,
    %c3_323 = arith.constant 3 : index
    %c0_324 = arith.constant 0 : index
    %c0_325 = arith.constant 0 : index
    %295 = vector.load %arg24[%c3_323, %c0_324, %c0_325] : memref<9x16x64xbf16, #tpu.memory_space<vmem>>, vector<1x16x64xbf16>
    %296 = vector.shape_cast %295 : vector<1x16x64xbf16> to vector<16x64xbf16>
    %cst_326 = arith.constant dense<0.000000e+00> : vector<16x64xf32>
    %297 = tpu.matmul %282, %296, %cst_326 {dimension_numbers = #tpu.dot_dimension_numbers<[1], [0], [0], [1], [0, 0, 1, 1], [], []>} : vector<16x16xbf16>, vector<16x64xbf16>, vector<16x64xf32> -> vector<16x64xf32>
    %c48_327 = arith.constant 48 : index
    %c0_328 = arith.constant 0 : index
    %298 = vector.load %arg32[%c48_327, %c0_328] : memref<144x256xf32, #tpu.memory_space<vmem>>, vector<16x64xf32>
    tpu.vector_store %arg32[%c48_327, %c0_328], %297 {strides = array<i32>} : memref<144x256xf32, #tpu.memory_space<vmem>>, vector<16x64xf32>,
    %c4_329 = arith.constant 4 : index
    %c0_330 = arith.constant 0 : index
    %c0_331 = arith.constant 0 : index
    %299 = vector.load %arg24[%c4_329, %c0_330, %c0_331] : memref<9x16x64xbf16, #tpu.memory_space<vmem>>, vector<1x16x64xbf16>
    %300 = vector.shape_cast %299 : vector<1x16x64xbf16> to vector<16x64xbf16>
    %cst_332 = arith.constant dense<0.000000e+00> : vector<16x64xf32>
    %301 = tpu.matmul %282, %300, %cst_332 {dimension_numbers = #tpu.dot_dimension_numbers<[1], [0], [0], [1], [0, 0, 1, 1], [], []>} : vector<16x16xbf16>, vector<16x64xbf16>, vector<16x64xf32> -> vector<16x64xf32>
    %c64_333 = arith.constant 64 : index
    %c0_334 = arith.constant 0 : index
    %302 = vector.load %arg32[%c64_333, %c0_334] : memref<144x256xf32, #tpu.memory_space<vmem>>, vector<16x64xf32>
    tpu.vector_store %arg32[%c64_333, %c0_334], %301 {strides = array<i32>} : memref<144x256xf32, #tpu.memory_space<vmem>>, vector<16x64xf32>,
    %c5_335 = arith.constant 5 : index
    %c0_336 = arith.constant 0 : index
    %c0_337 = arith.constant 0 : index
    %303 = vector.load %arg24[%c5_335, %c0_336, %c0_337] : memref<9x16x64xbf16, #tpu.memory_space<vmem>>, vector<1x16x64xbf16>
    %304 = vector.shape_cast %303 : vector<1x16x64xbf16> to vector<16x64xbf16>
    %cst_338 = arith.constant dense<0.000000e+00> : vector<16x64xf32>
    %305 = tpu.matmul %282, %304, %cst_338 {dimension_numbers = #tpu.dot_dimension_numbers<[1], [0], [0], [1], [0, 0, 1, 1], [], []>} : vector<16x16xbf16>, vector<16x64xbf16>, vector<16x64xf32> -> vector<16x64xf32>
    %c80_339 = arith.constant 80 : index
    %c0_340 = arith.constant 0 : index
    %306 = vector.load %arg32[%c80_339, %c0_340] : memref<144x256xf32, #tpu.memory_space<vmem>>, vector<16x64xf32>
    tpu.vector_store %arg32[%c80_339, %c0_340], %305 {strides = array<i32>} : memref<144x256xf32, #tpu.memory_space<vmem>>, vector<16x64xf32>,
    %c6_341 = arith.constant 6 : index
    %c0_342 = arith.constant 0 : index
    %c0_343 = arith.constant 0 : index
    %307 = vector.load %arg24[%c6_341, %c0_342, %c0_343] : memref<9x16x64xbf16, #tpu.memory_space<vmem>>, vector<1x16x64xbf16>
    %308 = vector.shape_cast %307 : vector<1x16x64xbf16> to vector<16x64xbf16>
    %cst_344 = arith.constant dense<0.000000e+00> : vector<16x64xf32>
    %309 = tpu.matmul %282, %308, %cst_344 {dimension_numbers = #tpu.dot_dimension_numbers<[1], [0], [0], [1], [0, 0, 1, 1], [], []>} : vector<16x16xbf16>, vector<16x64xbf16>, vector<16x64xf32> -> vector<16x64xf32>
    %c96_345 = arith.constant 96 : index
    %c0_346 = arith.constant 0 : index
    %310 = vector.load %arg32[%c96_345, %c0_346] : memref<144x256xf32, #tpu.memory_space<vmem>>, vector<16x64xf32>
    tpu.vector_store %arg32[%c96_345, %c0_346], %309 {strides = array<i32>} : memref<144x256xf32, #tpu.memory_space<vmem>>, vector<16x64xf32>,
    %c7_347 = arith.constant 7 : index
    %c0_348 = arith.constant 0 : index
    %c0_349 = arith.constant 0 : index
    %311 = vector.load %arg24[%c7_347, %c0_348, %c0_349] : memref<9x16x64xbf16, #tpu.memory_space<vmem>>, vector<1x16x64xbf16>
    %312 = vector.shape_cast %311 : vector<1x16x64xbf16> to vector<16x64xbf16>
    %cst_350 = arith.constant dense<0.000000e+00> : vector<16x64xf32>
    %313 = tpu.matmul %282, %312, %cst_350 {dimension_numbers = #tpu.dot_dimension_numbers<[1], [0], [0], [1], [0, 0, 1, 1], [], []>} : vector<16x16xbf16>, vector<16x64xbf16>, vector<16x64xf32> -> vector<16x64xf32>
    %c112_351 = arith.constant 112 : index
    %c0_352 = arith.constant 0 : index
    %314 = vector.load %arg32[%c112_351, %c0_352] : memref<144x256xf32, #tpu.memory_space<vmem>>, vector<16x64xf32>
    tpu.vector_store %arg32[%c112_351, %c0_352], %313 {strides = array<i32>} : memref<144x256xf32, #tpu.memory_space<vmem>>, vector<16x64xf32>,
    %c8_353 = arith.constant 8 : index
    %c0_354 = arith.constant 0 : index
    %c0_355 = arith.constant 0 : index
    %315 = vector.load %arg24[%c8_353, %c0_354, %c0_355] : memref<9x16x64xbf16, #tpu.memory_space<vmem>>, vector<1x16x64xbf16>
    %316 = vector.shape_cast %315 : vector<1x16x64xbf16> to vector<16x64xbf16>
    %cst_356 = arith.constant dense<0.000000e+00> : vector<16x64xf32>
    %317 = tpu.matmul %282, %316, %cst_356 {dimension_numbers = #tpu.dot_dimension_numbers<[1], [0], [0], [1], [0, 0, 1, 1], [], []>} : vector<16x16xbf16>, vector<16x64xbf16>, vector<16x64xf32> -> vector<16x64xf32>
    %c128_357 = arith.constant 128 : index
    %c0_358 = arith.constant 0 : index
    %318 = vector.load %arg32[%c128_357, %c0_358] : memref<144x256xf32, #tpu.memory_space<vmem>>, vector<16x64xf32>
    tpu.vector_store %arg32[%c128_357, %c0_358], %317 {strides = array<i32>} : memref<144x256xf32, #tpu.memory_space<vmem>>, vector<16x64xf32>,
    %c0_359 = arith.constant 0 : index
    %c0_360 = arith.constant 0 : index
    %319 = vector.load %arg32[%c0_359, %c0_360] : memref<144x256xf32, #tpu.memory_space<vmem>>, vector<144x64xf32>
    %320 = arith.truncf %319 : vector<144x64xf32> to vector<144x64xbf16>
    %c0_361 = arith.constant 0 : index
    %c0_362 = arith.constant 0 : index
    %321 = vector.load %arg25[%c0_361, %c0_362] : memref<16x144xbf16, #tpu.memory_space<vmem>>, vector<16x144xbf16>
    %cst_363 = arith.constant dense<0.000000e+00> : vector<16x64xf32>
    %322 = tpu.matmul %321, %320, %cst_363 {dimension_numbers = #tpu.dot_dimension_numbers<[1], [0], [0], [1], [0, 0, 1, 1], [], []>} : vector<16x144xbf16>, vector<144x64xbf16>, vector<16x64xf32> -> vector<16x64xf32>
    %c0_364 = arith.constant 0 : index
    %c0_365 = arith.constant 0 : index
    %323 = vector.load %arg26[%c0_364, %c0_365] : memref<16x1xf32, #tpu.memory_space<vmem>>, vector<16x1xf32>
    %324 = vector.broadcast %323 : vector<16x1xf32> to vector<16x64xf32>
    %325 = arith.addf %322, %324 : vector<16x64xf32>
    %cst_366 = arith.constant 0.000000e+00 : f32
    %326 = vector.broadcast %cst_366 : f32 to vector<16x64xf32>
    %327 = arith.cmpf oge, %325, %326 : vector<16x64xf32>
    %cst_367 = arith.constant 0.00999999977 : f32
    %328 = vector.broadcast %cst_367 : f32 to vector<16x64xf32>
    %329 = arith.mulf %328, %325 : vector<16x64xf32>
    %330 = arith.select %327, %325, %329 : vector<16x64xi1>, vector<16x64xf32>
    %331 = arith.truncf %330 : vector<16x64xf32> to vector<16x64xbf16>
    %c0_368 = arith.constant 0 : index
    %c0_369 = arith.constant 0 : index
    %c0_370 = arith.constant 0 : index
    %332 = vector.load %arg27[%c0_368, %c0_369, %c0_370] : memref<9x64x256xbf16, #tpu.memory_space<vmem>>, vector<1x64x256xbf16>
    %333 = vector.shape_cast %332 : vector<1x64x256xbf16> to vector<64x256xbf16>
    %cst_371 = arith.constant dense<0.000000e+00> : vector<16x256xf32>
    %334 = tpu.matmul %331, %333, %cst_371 {dimension_numbers = #tpu.dot_dimension_numbers<[1], [0], [0], [1], [0, 0, 1, 1], [], []>} : vector<16x64xbf16>, vector<64x256xbf16>, vector<16x256xf32> -> vector<16x256xf32>
    %c0_372 = arith.constant 0 : index
    %c0_373 = arith.constant 0 : index
    %335 = vector.load %arg32[%c0_372, %c0_373] : memref<144x256xf32, #tpu.memory_space<vmem>>, vector<16x256xf32>
    tpu.vector_store %arg32[%c0_372, %c0_373], %334 {strides = array<i32>} : memref<144x256xf32, #tpu.memory_space<vmem>>, vector<16x256xf32>,
    %c1_374 = arith.constant 1 : index
    %c0_375 = arith.constant 0 : index
    %c0_376 = arith.constant 0 : index
    %336 = vector.load %arg27[%c1_374, %c0_375, %c0_376] : memref<9x64x256xbf16, #tpu.memory_space<vmem>>, vector<1x64x256xbf16>
    %337 = vector.shape_cast %336 : vector<1x64x256xbf16> to vector<64x256xbf16>
    %cst_377 = arith.constant dense<0.000000e+00> : vector<16x256xf32>
    %338 = tpu.matmul %331, %337, %cst_377 {dimension_numbers = #tpu.dot_dimension_numbers<[1], [0], [0], [1], [0, 0, 1, 1], [], []>} : vector<16x64xbf16>, vector<64x256xbf16>, vector<16x256xf32> -> vector<16x256xf32>
    %c16_378 = arith.constant 16 : index
    %c0_379 = arith.constant 0 : index
    %339 = vector.load %arg32[%c16_378, %c0_379] : memref<144x256xf32, #tpu.memory_space<vmem>>, vector<16x256xf32>
    tpu.vector_store %arg32[%c16_378, %c0_379], %338 {strides = array<i32>} : memref<144x256xf32, #tpu.memory_space<vmem>>, vector<16x256xf32>,
    %c2_380 = arith.constant 2 : index
    %c0_381 = arith.constant 0 : index
    %c0_382 = arith.constant 0 : index
    %340 = vector.load %arg27[%c2_380, %c0_381, %c0_382] : memref<9x64x256xbf16, #tpu.memory_space<vmem>>, vector<1x64x256xbf16>
    %341 = vector.shape_cast %340 : vector<1x64x256xbf16> to vector<64x256xbf16>
    %cst_383 = arith.constant dense<0.000000e+00> : vector<16x256xf32>
    %342 = tpu.matmul %331, %341, %cst_383 {dimension_numbers = #tpu.dot_dimension_numbers<[1], [0], [0], [1], [0, 0, 1, 1], [], []>} : vector<16x64xbf16>, vector<64x256xbf16>, vector<16x256xf32> -> vector<16x256xf32>
    %c32_384 = arith.constant 32 : index
    %c0_385 = arith.constant 0 : index
    %343 = vector.load %arg32[%c32_384, %c0_385] : memref<144x256xf32, #tpu.memory_space<vmem>>, vector<16x256xf32>
    tpu.vector_store %arg32[%c32_384, %c0_385], %342 {strides = array<i32>} : memref<144x256xf32, #tpu.memory_space<vmem>>, vector<16x256xf32>,
    %c3_386 = arith.constant 3 : index
    %c0_387 = arith.constant 0 : index
    %c0_388 = arith.constant 0 : index
    %344 = vector.load %arg27[%c3_386, %c0_387, %c0_388] : memref<9x64x256xbf16, #tpu.memory_space<vmem>>, vector<1x64x256xbf16>
    %345 = vector.shape_cast %344 : vector<1x64x256xbf16> to vector<64x256xbf16>
    %cst_389 = arith.constant dense<0.000000e+00> : vector<16x256xf32>
    %346 = tpu.matmul %331, %345, %cst_389 {dimension_numbers = #tpu.dot_dimension_numbers<[1], [0], [0], [1], [0, 0, 1, 1], [], []>} : vector<16x64xbf16>, vector<64x256xbf16>, vector<16x256xf32> -> vector<16x256xf32>
    %c48_390 = arith.constant 48 : index
    %c0_391 = arith.constant 0 : index
    %347 = vector.load %arg32[%c48_390, %c0_391] : memref<144x256xf32, #tpu.memory_space<vmem>>, vector<16x256xf32>
    tpu.vector_store %arg32[%c48_390, %c0_391], %346 {strides = array<i32>} : memref<144x256xf32, #tpu.memory_space<vmem>>, vector<16x256xf32>,
    %c4_392 = arith.constant 4 : index
    %c0_393 = arith.constant 0 : index
    %c0_394 = arith.constant 0 : index
    %348 = vector.load %arg27[%c4_392, %c0_393, %c0_394] : memref<9x64x256xbf16, #tpu.memory_space<vmem>>, vector<1x64x256xbf16>
    %349 = vector.shape_cast %348 : vector<1x64x256xbf16> to vector<64x256xbf16>
    %cst_395 = arith.constant dense<0.000000e+00> : vector<16x256xf32>
    %350 = tpu.matmul %331, %349, %cst_395 {dimension_numbers = #tpu.dot_dimension_numbers<[1], [0], [0], [1], [0, 0, 1, 1], [], []>} : vector<16x64xbf16>, vector<64x256xbf16>, vector<16x256xf32> -> vector<16x256xf32>
    %c64_396 = arith.constant 64 : index
    %c0_397 = arith.constant 0 : index
    %351 = vector.load %arg32[%c64_396, %c0_397] : memref<144x256xf32, #tpu.memory_space<vmem>>, vector<16x256xf32>
    tpu.vector_store %arg32[%c64_396, %c0_397], %350 {strides = array<i32>} : memref<144x256xf32, #tpu.memory_space<vmem>>, vector<16x256xf32>,
    %c5_398 = arith.constant 5 : index
    %c0_399 = arith.constant 0 : index
    %c0_400 = arith.constant 0 : index
    %352 = vector.load %arg27[%c5_398, %c0_399, %c0_400] : memref<9x64x256xbf16, #tpu.memory_space<vmem>>, vector<1x64x256xbf16>
    %353 = vector.shape_cast %352 : vector<1x64x256xbf16> to vector<64x256xbf16>
    %cst_401 = arith.constant dense<0.000000e+00> : vector<16x256xf32>
    %354 = tpu.matmul %331, %353, %cst_401 {dimension_numbers = #tpu.dot_dimension_numbers<[1], [0], [0], [1], [0, 0, 1, 1], [], []>} : vector<16x64xbf16>, vector<64x256xbf16>, vector<16x256xf32> -> vector<16x256xf32>
    %c80_402 = arith.constant 80 : index
    %c0_403 = arith.constant 0 : index
    %355 = vector.load %arg32[%c80_402, %c0_403] : memref<144x256xf32, #tpu.memory_space<vmem>>, vector<16x256xf32>
    tpu.vector_store %arg32[%c80_402, %c0_403], %354 {strides = array<i32>} : memref<144x256xf32, #tpu.memory_space<vmem>>, vector<16x256xf32>,
    %c6_404 = arith.constant 6 : index
    %c0_405 = arith.constant 0 : index
    %c0_406 = arith.constant 0 : index
    %356 = vector.load %arg27[%c6_404, %c0_405, %c0_406] : memref<9x64x256xbf16, #tpu.memory_space<vmem>>, vector<1x64x256xbf16>
    %357 = vector.shape_cast %356 : vector<1x64x256xbf16> to vector<64x256xbf16>
    %cst_407 = arith.constant dense<0.000000e+00> : vector<16x256xf32>
    %358 = tpu.matmul %331, %357, %cst_407 {dimension_numbers = #tpu.dot_dimension_numbers<[1], [0], [0], [1], [0, 0, 1, 1], [], []>} : vector<16x64xbf16>, vector<64x256xbf16>, vector<16x256xf32> -> vector<16x256xf32>
    %c96_408 = arith.constant 96 : index
    %c0_409 = arith.constant 0 : index
    %359 = vector.load %arg32[%c96_408, %c0_409] : memref<144x256xf32, #tpu.memory_space<vmem>>, vector<16x256xf32>
    tpu.vector_store %arg32[%c96_408, %c0_409], %358 {strides = array<i32>} : memref<144x256xf32, #tpu.memory_space<vmem>>, vector<16x256xf32>,
    %c7_410 = arith.constant 7 : index
    %c0_411 = arith.constant 0 : index
    %c0_412 = arith.constant 0 : index
    %360 = vector.load %arg27[%c7_410, %c0_411, %c0_412] : memref<9x64x256xbf16, #tpu.memory_space<vmem>>, vector<1x64x256xbf16>
    %361 = vector.shape_cast %360 : vector<1x64x256xbf16> to vector<64x256xbf16>
    %cst_413 = arith.constant dense<0.000000e+00> : vector<16x256xf32>
    %362 = tpu.matmul %331, %361, %cst_413 {dimension_numbers = #tpu.dot_dimension_numbers<[1], [0], [0], [1], [0, 0, 1, 1], [], []>} : vector<16x64xbf16>, vector<64x256xbf16>, vector<16x256xf32> -> vector<16x256xf32>
    %c112_414 = arith.constant 112 : index
    %c0_415 = arith.constant 0 : index
    %363 = vector.load %arg32[%c112_414, %c0_415] : memref<144x256xf32, #tpu.memory_space<vmem>>, vector<16x256xf32>
    tpu.vector_store %arg32[%c112_414, %c0_415], %362 {strides = array<i32>} : memref<144x256xf32, #tpu.memory_space<vmem>>, vector<16x256xf32>,
    %c8_416 = arith.constant 8 : index
    %c0_417 = arith.constant 0 : index
    %c0_418 = arith.constant 0 : index
    %364 = vector.load %arg27[%c8_416, %c0_417, %c0_418] : memref<9x64x256xbf16, #tpu.memory_space<vmem>>, vector<1x64x256xbf16>
    %365 = vector.shape_cast %364 : vector<1x64x256xbf16> to vector<64x256xbf16>
    %cst_419 = arith.constant dense<0.000000e+00> : vector<16x256xf32>
    %366 = tpu.matmul %331, %365, %cst_419 {dimension_numbers = #tpu.dot_dimension_numbers<[1], [0], [0], [1], [0, 0, 1, 1], [], []>} : vector<16x64xbf16>, vector<64x256xbf16>, vector<16x256xf32> -> vector<16x256xf32>
    %c128_420 = arith.constant 128 : index
    %c0_421 = arith.constant 0 : index
    %367 = vector.load %arg32[%c128_420, %c0_421] : memref<144x256xf32, #tpu.memory_space<vmem>>, vector<16x256xf32>
    tpu.vector_store %arg32[%c128_420, %c0_421], %366 {strides = array<i32>} : memref<144x256xf32, #tpu.memory_space<vmem>>, vector<16x256xf32>,
    %c0_422 = arith.constant 0 : index
    %c0_423 = arith.constant 0 : index
    %368 = vector.load %arg32[%c0_422, %c0_423] : memref<144x256xf32, #tpu.memory_space<vmem>>, vector<144x256xf32>
    %369 = arith.truncf %368 : vector<144x256xf32> to vector<144x256xbf16>
    %c0_424 = arith.constant 0 : index
    %c0_425 = arith.constant 0 : index
    %370 = vector.load %arg28[%c0_424, %c0_425] : memref<3x144xbf16, #tpu.memory_space<vmem>>, vector<3x144xbf16>
    %cst_426 = arith.constant dense<0.000000e+00> : vector<3x256xf32>
    %371 = tpu.matmul %370, %369, %cst_426 {dimension_numbers = #tpu.dot_dimension_numbers<[1], [0], [0], [1], [0, 0, 1, 1], [], []>} : vector<3x144xbf16>, vector<144x256xbf16>, vector<3x256xf32> -> vector<3x256xf32>
    %c0_427 = arith.constant 0 : index
    %c0_428 = arith.constant 0 : index
    %372 = vector.load %arg29[%c0_427, %c0_428] : memref<3x1xf32, #tpu.memory_space<vmem>>, vector<3x1xf32>
    %373 = vector.broadcast %372 : vector<3x1xf32> to vector<3x256xf32>
    %374 = arith.addf %371, %373 : vector<3x256xf32>
    %cst_429 = arith.constant 5.000000e-01 : f32
    %375 = vector.broadcast %cst_429 : f32 to vector<3x256xf32>
    %376 = arith.mulf %375, %374 : vector<3x256xf32>
    %377 = math.tanh %376 : vector<3x256xf32>
    %cst_430 = arith.constant 1.000000e+00 : f32
    %378 = vector.broadcast %cst_430 : f32 to vector<3x256xf32>
    %379 = arith.addf %377, %378 : vector<3x256xf32>
    %cst_431 = arith.constant 5.000000e-01 : f32
    %380 = vector.broadcast %cst_431 : f32 to vector<3x256xf32>
    %381 = arith.mulf %380, %379 : vector<3x256xf32>
    %c0_432 = arith.constant 0 : index
    %c0_433 = arith.constant 0 : index
    %c0_434 = arith.constant 0 : index
    %382 = vector.load %arg30[%c0_432, %c0_433, %c0_434] : memref<1x3x256xf32, #tpu.memory_space<vmem>>, vector<1x3x256xf32>
    %383 = vector.shape_cast %382 : vector<1x3x256xf32> to vector<3x256xf32>
    %384 = vector.shape_cast %381 : vector<3x256xf32> to vector<1x3x256xf32>
    tpu.vector_store %arg30[%c0_432, %c0_433, %c0_434], %384 {strides = array<i32>} : memref<1x3x256xf32, #tpu.memory_space<vmem>>, vector<1x3x256xf32>,
    %c0_435 = arith.constant 0 : index
    %c0_436 = arith.constant 0 : index
    %c0_437 = arith.constant 0 : index
    %385 = vector.load %arg31[%c0_435, %c0_436, %c0_437] : memref<1x16x1xf32, #tpu.memory_space<vmem>>, vector<1x16x1xf32>
    %386 = vector.shape_cast %385 : vector<1x16x1xf32> to vector<16x1xf32>
    %387 = vector.shape_cast %166 : vector<16x1xf32> to vector<1x16x1xf32>
    tpu.vector_store %arg31[%c0_435, %c0_436, %c0_437], %387 {strides = array<i32>} : memref<1x16x1xf32, #tpu.memory_space<vmem>>, vector<1x16x1xf32>,
    return
  }
  func.func @transform_0(%arg0: i32) -> (i32, i32, i32) {
    %c0_i32 = arith.constant 0 : i32
    %c0_i32_0 = arith.constant 0 : i32
    %c0_i32_1 = arith.constant 0 : i32
    return %arg0, %c0_i32, %c0_i32_0 : i32, i32, i32
  }
  func.func @transform_1(%arg0: i32) -> (i32, i32, i32) {
    %c0_i32 = arith.constant 0 : i32
    %c0_i32_0 = arith.constant 0 : i32
    %c0_i32_1 = arith.constant 0 : i32
    return %arg0, %c0_i32, %c0_i32_0 : i32, i32, i32
  }
  func.func @transform_2(%arg0: i32) -> (i32, i32, i32) {
    %c0_i32 = arith.constant 0 : i32
    %c0_i32_0 = arith.constant 0 : i32
    %c0_i32_1 = arith.constant 0 : i32
    %c0_i32_2 = arith.constant 0 : i32
    return %c0_i32, %c0_i32_0, %c0_i32_1 : i32, i32, i32
  }
  func.func @transform_3(%arg0: i32) -> (i32, i32) {
    %c0_i32 = arith.constant 0 : i32
    %c0_i32_0 = arith.constant 0 : i32
    %c0_i32_1 = arith.constant 0 : i32
    return %c0_i32, %c0_i32_0 : i32, i32
  }
  func.func @transform_4(%arg0: i32) -> (i32, i32) {
    %c0_i32 = arith.constant 0 : i32
    %c0_i32_0 = arith.constant 0 : i32
    %c0_i32_1 = arith.constant 0 : i32
    return %c0_i32, %c0_i32_0 : i32, i32
  }
  func.func @transform_5(%arg0: i32) -> (i32, i32, i32) {
    %c0_i32 = arith.constant 0 : i32
    %c0_i32_0 = arith.constant 0 : i32
    %c0_i32_1 = arith.constant 0 : i32
    %c0_i32_2 = arith.constant 0 : i32
    return %c0_i32, %c0_i32_0, %c0_i32_1 : i32, i32, i32
  }
  func.func @transform_6(%arg0: i32) -> (i32, i32) {
    %c0_i32 = arith.constant 0 : i32
    %c0_i32_0 = arith.constant 0 : i32
    %c0_i32_1 = arith.constant 0 : i32
    return %c0_i32, %c0_i32_0 : i32, i32
  }
  func.func @transform_7(%arg0: i32) -> (i32, i32) {
    %c0_i32 = arith.constant 0 : i32
    %c0_i32_0 = arith.constant 0 : i32
    %c0_i32_1 = arith.constant 0 : i32
    return %c0_i32, %c0_i32_0 : i32, i32
  }
  func.func @transform_8(%arg0: i32) -> (i32, i32, i32) {
    %c0_i32 = arith.constant 0 : i32
    %c0_i32_0 = arith.constant 0 : i32
    %c0_i32_1 = arith.constant 0 : i32
    %c0_i32_2 = arith.constant 0 : i32
    return %c0_i32, %c0_i32_0, %c0_i32_1 : i32, i32, i32
  }
  func.func @transform_9(%arg0: i32) -> (i32, i32) {
    %c0_i32 = arith.constant 0 : i32
    %c0_i32_0 = arith.constant 0 : i32
    %c0_i32_1 = arith.constant 0 : i32
    return %c0_i32, %c0_i32_0 : i32, i32
  }
  func.func @transform_10(%arg0: i32) -> (i32, i32) {
    %c0_i32 = arith.constant 0 : i32
    %c0_i32_0 = arith.constant 0 : i32
    %c0_i32_1 = arith.constant 0 : i32
    return %c0_i32, %c0_i32_0 : i32, i32
  }
  func.func @transform_11(%arg0: i32) -> (i32, i32, i32) {
    %c0_i32 = arith.constant 0 : i32
    %c0_i32_0 = arith.constant 0 : i32
    %c0_i32_1 = arith.constant 0 : i32
    %c0_i32_2 = arith.constant 0 : i32
    return %c0_i32, %c0_i32_0, %c0_i32_1 : i32, i32, i32
  }
  func.func @transform_12(%arg0: i32) -> (i32, i32) {
    %c0_i32 = arith.constant 0 : i32
    %c0_i32_0 = arith.constant 0 : i32
    %c0_i32_1 = arith.constant 0 : i32
    return %c0_i32, %c0_i32_0 : i32, i32
  }
  func.func @transform_13(%arg0: i32) -> (i32, i32) {
    %c0_i32 = arith.constant 0 : i32
    %c0_i32_0 = arith.constant 0 : i32
    %c0_i32_1 = arith.constant 0 : i32
    return %c0_i32, %c0_i32_0 : i32, i32
  }
  func.func @transform_14(%arg0: i32) -> (i32, i32) {
    %c0_i32 = arith.constant 0 : i32
    %c0_i32_0 = arith.constant 0 : i32
    %c0_i32_1 = arith.constant 0 : i32
    return %c0_i32, %c0_i32_0 : i32, i32
  }
  func.func @transform_15(%arg0: i32) -> (i32, i32) {
    %c0_i32 = arith.constant 0 : i32
    %c0_i32_0 = arith.constant 0 : i32
    %c0_i32_1 = arith.constant 0 : i32
    return %c0_i32, %c0_i32_0 : i32, i32
  }
  func.func @transform_16(%arg0: i32) -> (i32, i32) {
    %c0_i32 = arith.constant 0 : i32
    %c0_i32_0 = arith.constant 0 : i32
    %c0_i32_1 = arith.constant 0 : i32
    return %c0_i32, %c0_i32_0 : i32, i32
  }
  func.func @transform_17(%arg0: i32) -> (i32, i32, i32) {
    %c0_i32 = arith.constant 0 : i32
    %c0_i32_0 = arith.constant 0 : i32
    %c0_i32_1 = arith.constant 0 : i32
    %c0_i32_2 = arith.constant 0 : i32
    return %c0_i32, %c0_i32_0, %c0_i32_1 : i32, i32, i32
  }
  func.func @transform_18(%arg0: i32) -> (i32, i32, i32) {
    %c0_i32 = arith.constant 0 : i32
    %c0_i32_0 = arith.constant 0 : i32
    %c0_i32_1 = arith.constant 0 : i32
    %c0_i32_2 = arith.constant 0 : i32
    return %c0_i32, %c0_i32_0, %c0_i32_1 : i32, i32, i32
  }
  func.func @transform_19(%arg0: i32) -> (i32, i32) {
    %c0_i32 = arith.constant 0 : i32
    %c0_i32_0 = arith.constant 0 : i32
    %c0_i32_1 = arith.constant 0 : i32
    return %c0_i32, %c0_i32_0 : i32, i32
  }
  func.func @transform_20(%arg0: i32) -> (i32, i32, i32) {
    %c0_i32 = arith.constant 0 : i32
    %c0_i32_0 = arith.constant 0 : i32
    %c0_i32_1 = arith.constant 0 : i32
    %c0_i32_2 = arith.constant 0 : i32
    return %c0_i32, %c0_i32_0, %c0_i32_1 : i32, i32, i32
  }
  func.func @transform_21(%arg0: i32) -> (i32, i32) {
    %c0_i32 = arith.constant 0 : i32
    %c0_i32_0 = arith.constant 0 : i32
    %c0_i32_1 = arith.constant 0 : i32
    return %c0_i32, %c0_i32_0 : i32, i32
  }
  func.func @transform_22(%arg0: i32) -> (i32, i32) {
    %c0_i32 = arith.constant 0 : i32
    %c0_i32_0 = arith.constant 0 : i32
    %c0_i32_1 = arith.constant 0 : i32
    return %c0_i32, %c0_i32_0 : i32, i32
  }
  func.func @transform_23(%arg0: i32) -> (i32, i32, i32) {
    %c0_i32 = arith.constant 0 : i32
    %c0_i32_0 = arith.constant 0 : i32
    %c0_i32_1 = arith.constant 0 : i32
    %c0_i32_2 = arith.constant 0 : i32
    return %c0_i32, %c0_i32_0, %c0_i32_1 : i32, i32, i32
  }
  func.func @transform_24(%arg0: i32) -> (i32, i32) {
    %c0_i32 = arith.constant 0 : i32
    %c0_i32_0 = arith.constant 0 : i32
    %c0_i32_1 = arith.constant 0 : i32
    return %c0_i32, %c0_i32_0 : i32, i32
  }
  func.func @transform_25(%arg0: i32) -> (i32, i32) {
    %c0_i32 = arith.constant 0 : i32
    %c0_i32_0 = arith.constant 0 : i32
    %c0_i32_1 = arith.constant 0 : i32
    return %c0_i32, %c0_i32_0 : i32, i32
  }
  func.func @transform_26(%arg0: i32) -> (i32, i32, i32) {
    %c0_i32 = arith.constant 0 : i32
    %c0_i32_0 = arith.constant 0 : i32
    %c0_i32_1 = arith.constant 0 : i32
    %c0_i32_2 = arith.constant 0 : i32
    return %c0_i32, %c0_i32_0, %c0_i32_1 : i32, i32, i32
  }
  func.func @transform_27(%arg0: i32) -> (i32, i32) {
    %c0_i32 = arith.constant 0 : i32
    %c0_i32_0 = arith.constant 0 : i32
    %c0_i32_1 = arith.constant 0 : i32
    return %c0_i32, %c0_i32_0 : i32, i32
  }
  func.func @transform_28(%arg0: i32) -> (i32, i32) {
    %c0_i32 = arith.constant 0 : i32
    %c0_i32_0 = arith.constant 0 : i32
    %c0_i32_1 = arith.constant 0 : i32
    return %c0_i32, %c0_i32_0 : i32, i32
  }
  func.func @transform_29(%arg0: i32) -> (i32, i32, i32) {
    %c0_i32 = arith.constant 0 : i32
    %c0_i32_0 = arith.constant 0 : i32
    %c0_i32_1 = arith.constant 0 : i32
    return %arg0, %c0_i32, %c0_i32_0 : i32, i32, i32
  }
  func.func @transform_30(%arg0: i32) -> (i32, i32, i32) {
    %c0_i32 = arith.constant 0 : i32
    %c0_i32_0 = arith.constant 0 : i32
    %c0_i32_1 = arith.constant 0 : i32
    return %arg0, %c0_i32, %c0_i32_0 : i32, i32, i32
  }
}

</mosaic_0001>

<llo_original>
// kernel: topview_vae_forward.1
$region0: #{topview_vae_forward.1}
  #allocation0 [shape = 'u32[]', space=smem, size = 0x4, offset = 0x4, fixed_abs, tag = 'smem constant byte address 0x4 - core index']
  #allocation1 [shape = 'u32[144,128]{1,0:T(1,128)}', space=vmem, size = 0x12000, scoped, tag = 'internal scratch']
  #allocation2 [shape = 'f32[144,256]{1,0:T(8,128)}', space=vmem, size = 0x24000, scoped, tag = 'scratch operand']
  %s0 = inlined_call_operand.smem [shape: u32[31], index: -1, kind: input, shape index: {}]
  %s1 = sld [smem:[%s0]]
  %s2 = scalar_lea.smem %s0, 1
  %s3 = sld [smem:[%s2]]
  %s4 = scalar_lea.smem %s0, 2
  %s5 = sld [smem:[%s4]]
  %s6 = scalar_lea.smem %s0, 3
  %s7 = sld [smem:[%s6]]
  %s8 = scalar_lea.smem %s0, 4
  %s9 = sld [smem:[%s8]]
  %s10 = scalar_lea.smem %s0, 5
  %s11 = sld [smem:[%s10]]
  %s12 = scalar_lea.smem %s0, 6
  %s13 = sld [smem:[%s12]]
  %s14 = scalar_lea.smem %s0, 7
  %s15 = sld [smem:[%s14]]
  %s16 = scalar_lea.smem %s0, 8
  %s17 = sld [smem:[%s16]]
  %s18 = scalar_lea.smem %s0, 9
  %s19 = sld [smem:[%s18]]
  %s20 = scalar_lea.smem %s0, 10
  %s21 = sld [smem:[%s20]]
  %s22 = scalar_lea.smem %s0, 11
  %s23 = sld [smem:[%s22]]
  %s24 = scalar_lea.smem %s0, 12
  %s25 = sld [smem:[%s24]]
  %s26 = scalar_lea.smem %s0, 13
  %s27 = sld [smem:[%s26]]
  %s28 = scalar_lea.smem %s0, 14
  %s29 = sld [smem:[%s28]]
  %s30 = scalar_lea.smem %s0, 15
  %s31 = sld [smem:[%s30]]
  %s32 = scalar_lea.smem %s0, 16
  %s33 = sld [smem:[%s32]]
  %s34 = scalar_lea.smem %s0, 17
  %s35 = sld [smem:[%s34]]
  %s36 = scalar_lea.smem %s0, 18
  %s37 = sld [smem:[%s36]]
  %s38 = scalar_lea.smem %s0, 19
  %s39 = sld [smem:[%s38]]
  %s40 = scalar_lea.smem %s0, 20
  %s41 = sld [smem:[%s40]]
  %s42 = scalar_lea.smem %s0, 21
  %s43 = sld [smem:[%s42]]
  %s44 = scalar_lea.smem %s0, 22
  %s45 = sld [smem:[%s44]]
  %s46 = scalar_lea.smem %s0, 23
  %s47 = sld [smem:[%s46]]
  %s48 = scalar_lea.smem %s0, 24
  %s49 = sld [smem:[%s48]]
  %s50 = scalar_lea.smem %s0, 25
  %s51 = sld [smem:[%s50]]
  %s52 = scalar_lea.smem %s0, 26
  %s53 = sld [smem:[%s52]]
  %s54 = scalar_lea.smem %s0, 27
  %s55 = sld [smem:[%s54]]
  %s56 = scalar_lea.smem %s0, 28
  %s57 = sld [smem:[%s56]]
  %s58 = scalar_lea.smem %s0, 29
  %s59 = sld [smem:[%s58]]
  %s60 = scalar_lea.smem %s0, 30
  %s61 = sld [smem:[%s60]]
  %62 = xla_tuple %s59, %s61
  %s63 = sld [smem:[#allocation0]]
  $region157: #{topview_vae_forward.1} parent=0
    _
  %s65 = ssub.s32 1, %s63
  %s66 = scalar_select 0, %s65, %s63
  loop: start=0, step=1, limit=4
  $region2: #{topview_vae_forward.1} parent=0 // loop_pre_header
    _
  $region3: #{topview_vae_forward.1} parent=0 // loop_header
    %s68 = sphi 0, %s72
    %p69 = scmp.ge.s32.totalorder %s68, 4
    %s78 = sphi 0, %s80
    %s81 = sphi 0, %s78
    %s82 = sphi 0, %s81
    %s98 = sphi 0, %s82
    %s104 = sphi 0, %s106
    %s107 = sphi 0, %s104
    %s108 = sphi 0, %s107
    %s124 = sphi 0, %s108
    %s128 = sphi 0, %s128
    %s130 = sphi 0, %s128
    %s131 = sphi 0, %s130
    %s145 = sphi 0, %s131
    %s149 = sphi 0, %s149
    %s151 = sphi 0, %s149
    %s152 = sphi 0, %s151
    %s166 = sphi 0, %s152
    %s170 = sphi 0, %s170
    %s172 = sphi 0, %s170
    %s173 = sphi 0, %s172
    %s187 = sphi 0, %s173
    %s191 = sphi 0, %s191
    %s193 = sphi 0, %s191
    %s194 = sphi 0, %s193
    %s208 = sphi 0, %s194
    %s212 = sphi 0, %s212
    %s214 = sphi 0, %s212
    %s215 = sphi 0, %s214
    %s229 = sphi 0, %s215
    %s233 = sphi 0, %s233
    %s235 = sphi 0, %s233
    %s236 = sphi 0, %s235
    %s250 = sphi 0, %s236
    %s254 = sphi 0, %s254
    %s256 = sphi 0, %s254
    %s257 = sphi 0, %s256
    %s271 = sphi 0, %s257
    %s275 = sphi 0, %s275
    %s277 = sphi 0, %s275
    %s278 = sphi 0, %s277
    %s292 = sphi 0, %s278
    %s296 = sphi 0, %s296
    %s298 = sphi 0, %s296
    %s299 = sphi 0, %s298
    %s313 = sphi 0, %s299
    %s317 = sphi 0, %s317
    %s319 = sphi 0, %s317
    %s320 = sphi 0, %s319
    %s334 = sphi 0, %s320
    %s338 = sphi 0, %s338
    %s340 = sphi 0, %s338
    %s341 = sphi 0, %s340
    %s355 = sphi 0, %s341
    %s359 = sphi 0, %s359
    %s361 = sphi 0, %s359
    %s362 = sphi 0, %s361
    %s376 = sphi 0, %s362
    %s380 = sphi 0, %s380
    %s382 = sphi 0, %s380
    %s383 = sphi 0, %s382
    %s397 = sphi 0, %s383
    %s401 = sphi 0, %s401
    %s403 = sphi 0, %s401
    %s404 = sphi 0, %s403
    %s418 = sphi 0, %s404
    %s422 = sphi 0, %s422
    %s424 = sphi 0, %s422
    %s425 = sphi 0, %s424
    %s439 = sphi 0, %s425
    %s443 = sphi 0, %s443
    %s445 = sphi 0, %s443
    %s446 = sphi 0, %s445
    %s460 = sphi 0, %s446
    %s464 = sphi 0, %s464
    %s466 = sphi 0, %s464
    %s467 = sphi 0, %s466
    %s481 = sphi 0, %s467
    %s485 = sphi 0, %s485
    %s487 = sphi 0, %s485
    %s488 = sphi 0, %s487
    %s502 = sphi 0, %s488
    %s506 = sphi 0, %s506
    %s508 = sphi 0, %s506
    %s509 = sphi 0, %s508
    %s523 = sphi 0, %s509
    %s527 = sphi 0, %s527
    %s529 = sphi 0, %s527
    %s530 = sphi 0, %s529
    %s544 = sphi 0, %s530
    %s548 = sphi 0, %s548
    %s550 = sphi 0, %s548
    %s551 = sphi 0, %s550
    %s565 = sphi 0, %s551
    %s569 = sphi 0, %s569
    %s571 = sphi 0, %s569
    %s572 = sphi 0, %s571
    %s586 = sphi 0, %s572
    %s590 = sphi 0, %s590
    %s592 = sphi 0, %s590
    %s593 = sphi 0, %s592
    %s607 = sphi 0, %s593
    %s611 = sphi 0, %s611
    %s613 = sphi 0, %s611
    %s614 = sphi 0, %s613
    %s628 = sphi 0, %s614
    %s632 = sphi 0, %s632
    %s634 = sphi 0, %s632
    %s635 = sphi 0, %s634
    %s649 = sphi 0, %s635
    %s653 = sphi 0, %s653
    %s655 = sphi 0, %s653
    %s656 = sphi 0, %s655
    %s670 = sphi 0, %s656
    %s674 = sphi 0, %s674
    %s676 = sphi 0, %s674
    %s677 = sphi 0, %s676
    %s691 = sphi 0, %s677
    %s697 = sphi 0, %s699
    %s700 = sphi 0, %s697
    %s701 = sphi 0, %s700
    %s717 = sphi 0, %s701
    %s723 = sphi 0, %s725
    %s726 = sphi 0, %s723
    %s727 = sphi 0, %s726
    %s743 = sphi 0, %s727
  $region4: #{topview_vae_forward.1} parent=0 // loop_header_branch
    %71 = sbr.rel (%p69) target = $region8
  $region5: #{topview_vae_forward.1} parent=0 // loop_body
    %s73 = ssub.s32 %s68, 1
    %s74 = ssub.s32 %s68, 2
    %s75 = sadd.s32 %s68, 1
    %s76 = ssub.s32 %s68, %s75
    %p77 = scmp.eq.s32.totalorder %s76, 0
    %s79 = sadd.s32 %s78, 1
    %s80 = scalar_select %p77, %s78, %s79
    %p83 = pneg %p77
    %p84 = scmp.eq.s32.totalorder %s68, 1
    %p85 = por %p83, %p84
    %p86 = scmp.ne.s32.totalorder %s78, %s81
    %p87 = scmp.eq.s32.totalorder %s68, 0
    %p88 = por %p86, %p87
    %p89 = scmp.ne.s32.totalorder %s78, %s81
    %p90 = scmp.eq.s32.totalorder %s73, 1
    %p91 = por %p89, %p90
    %p92 = scmp.ne.s32.totalorder %s81, %s82
    %p93 = scmp.eq.s32.totalorder %s73, 0
    %p94 = por %p92, %p93
    %p95 = scmp.ne.s32.totalorder %s81, %s82
    %p96 = scmp.eq.s32.totalorder %s74, 1
    %p97 = por %p95, %p96
    %p99 = scmp.ne.s32.totalorder %s82, %s98
    %p100 = scmp.eq.s32.totalorder %s74, 0
    %p101 = por %p99, %p100
    %s102 = ssub.s32 %s68, %s75
    %p103 = scmp.eq.s32.totalorder %s102, 0
    %s105 = sadd.s32 %s104, 1
    %s106 = scalar_select %p103, %s104, %s105
    %p109 = pneg %p103
    %p110 = scmp.eq.s32.totalorder %s68, 1
    %p111 = por %p109, %p110
    %p112 = scmp.ne.s32.totalorder %s104, %s107
    %p113 = scmp.eq.s32.totalorder %s68, 0
    %p114 = por %p112, %p113
    %p115 = scmp.ne.s32.totalorder %s104, %s107
    %p116 = scmp.eq.s32.totalorder %s73, 1
    %p117 = por %p115, %p116
    %p118 = scmp.ne.s32.totalorder %s107, %s108
    %p119 = scmp.eq.s32.totalorder %s73, 0
    %p120 = por %p118, %p119
    %p121 = scmp.ne.s32.totalorder %s107, %s108
    %p122 = scmp.eq.s32.totalorder %s74, 1
    %p123 = por %p121, %p122
    %p125 = scmp.ne.s32.totalorder %s108, %s124
    %p126 = scmp.eq.s32.totalorder %s74, 0
    %p127 = por %p125, %p126
    %s129 = sadd.s32 %s128, 1
    %p132 = scmp.eq.s32.totalorder %s68, 1
    %p133 = scmp.ne.s32.totalorder %s128, %s130
    %p134 = scmp.eq.s32.totalorder %s68, 0
    %p135 = por %p133, %p134
    %p136 = scmp.ne.s32.totalorder %s128, %s130
    %p137 = scmp.eq.s32.totalorder %s73, 1
    %p138 = por %p136, %p137
    %p139 = scmp.ne.s32.totalorder %s130, %s131
    %p140 = scmp.eq.s32.totalorder %s73, 0
    %p141 = por %p139, %p140
    %p142 = scmp.ne.s32.totalorder %s130, %s131
    %p143 = scmp.eq.s32.totalorder %s74, 1
    %p144 = por %p142, %p143
    %p146 = scmp.ne.s32.totalorder %s131, %s145
    %p147 = scmp.eq.s32.totalorder %s74, 0
    %p148 = por %p146, %p147
    %s150 = sadd.s32 %s149, 1
    %p153 = scmp.eq.s32.totalorder %s68, 1
    %p154 = scmp.ne.s32.totalorder %s149, %s151
    %p155 = scmp.eq.s32.totalorder %s68, 0
    %p156 = por %p154, %p155
    %p157 = scmp.ne.s32.totalorder %s149, %s151
    %p158 = scmp.eq.s32.totalorder %s73, 1
    %p159 = por %p157, %p158
    %p160 = scmp.ne.s32.totalorder %s151, %s152
    %p161 = scmp.eq.s32.totalorder %s73, 0
    %p162 = por %p160, %p161
    %p163 = scmp.ne.s32.totalorder %s151, %s152
    %p164 = scmp.eq.s32.totalorder %s74, 1
    %p165 = por %p163, %p164
    %p167 = scmp.ne.s32.totalorder %s152, %s166
    %p168 = scmp.eq.s32.totalorder %s74, 0
    %p169 = por %p167, %p168
    %s171 = sadd.s32 %s170, 1
    %p174 = scmp.eq.s32.totalorder %s68, 1
    %p175 = scmp.ne.s32.totalorder %s170, %s172
    %p176 = scmp.eq.s32.totalorder %s68, 0
    %p177 = por %p175, %p176
    %p178 = scmp.ne.s32.totalorder %s170, %s172
    %p179 = scmp.eq.s32.totalorder %s73, 1
    %p180 = por %p178, %p179
    %p181 = scmp.ne.s32.totalorder %s172, %s173
    %p182 = scmp.eq.s32.totalorder %s73, 0
    %p183 = por %p181, %p182
    %p184 = scmp.ne.s32.totalorder %s172, %s173
    %p185 = scmp.eq.s32.totalorder %s74, 1
    %p186 = por %p184, %p185
    %p188 = scmp.ne.s32.totalorder %s173, %s187
    %p189 = scmp.eq.s32.totalorder %s74, 0
    %p190 = por %p188, %p189
    %s192 = sadd.s32 %s191, 1
    %p195 = scmp.eq.s32.totalorder %s68, 1
    %p196 = scmp.ne.s32.totalorder %s191, %s193
    %p197 = scmp.eq.s32.totalorder %s68, 0
    %p198 = por %p196, %p197
    %p199 = scmp.ne.s32.totalorder %s191, %s193
    %p200 = scmp.eq.s32.totalorder %s73, 1
    %p201 = por %p199, %p200
    %p202 = scmp.ne.s32.totalorder %s193, %s194
    %p203 = scmp.eq.s32.totalorder %s73, 0
    %p204 = por %p202, %p203
    %p205 = scmp.ne.s32.totalorder %s193, %s194
    %p206 = scmp.eq.s32.totalorder %s74, 1
    %p207 = por %p205, %p206
    %p209 = scmp.ne.s32.totalorder %s194, %s208
    %p210 = scmp.eq.s32.totalorder %s74, 0
    %p211 = por %p209, %p210
    %s213 = sadd.s32 %s212, 1
    %p216 = scmp.eq.s32.totalorder %s68, 1
    %p217 = scmp.ne.s32.totalorder %s212, %s214
    %p218 = scmp.eq.s32.totalorder %s68, 0
    %p219 = por %p217, %p218
    %p220 = scmp.ne.s32.totalorder %s212, %s214
    %p221 = scmp.eq.s32.totalorder %s73, 1
    %p222 = por %p220, %p221
    %p223 = scmp.ne.s32.totalorder %s214, %s215
    %p224 = scmp.eq.s32.totalorder %s73, 0
    %p225 = por %p223, %p224
    %p226 = scmp.ne.s32.totalorder %s214, %s215
    %p227 = scmp.eq.s32.totalorder %s74, 1
    %p228 = por %p226, %p227
    %p230 = scmp.ne.s32.totalorder %s215, %s229
    %p231 = scmp.eq.s32.totalorder %s74, 0
    %p232 = por %p230, %p231
    %s234 = sadd.s32 %s233, 1
    %p237 = scmp.eq.s32.totalorder %s68, 1
    %p238 = scmp.ne.s32.totalorder %s233, %s235
    %p239 = scmp.eq.s32.totalorder %s68, 0
    %p240 = por %p238, %p239
    %p241 = scmp.ne.s32.totalorder %s233, %s235
    %p242 = scmp.eq.s32.totalorder %s73, 1
    %p243 = por %p241, %p242
    %p244 = scmp.ne.s32.totalorder %s235, %s236
    %p245 = scmp.eq.s32.totalorder %s73, 0
    %p246 = por %p244, %p245
    %p247 = scmp.ne.s32.totalorder %s235, %s236
    %p248 = scmp.eq.s32.totalorder %s74, 1
    %p249 = por %p247, %p248
    %p251 = scmp.ne.s32.totalorder %s236, %s250
    %p252 = scmp.eq.s32.totalorder %s74, 0
    %p253 = por %p251, %p252
    %s255 = sadd.s32 %s254, 1
    %p258 = scmp.eq.s32.totalorder %s68, 1
    %p259 = scmp.ne.s32.totalorder %s254, %s256
    %p260 = scmp.eq.s32.totalorder %s68, 0
    %p261 = por %p259, %p260
    %p262 = scmp.ne.s32.totalorder %s254, %s256
    %p263 = scmp.eq.s32.totalorder %s73, 1
    %p264 = por %p262, %p263
    %p265 = scmp.ne.s32.totalorder %s256, %s257
    %p266 = scmp.eq.s32.totalorder %s73, 0
    %p267 = por %p265, %p266
    %p268 = scmp.ne.s32.totalorder %s256, %s257
    %p269 = scmp.eq.s32.totalorder %s74, 1
    %p270 = por %p268, %p269
    %p272 = scmp.ne.s32.totalorder %s257, %s271
    %p273 = scmp.eq.s32.totalorder %s74, 0
    %p274 = por %p272, %p273
    %s276 = sadd.s32 %s275, 1
    %p279 = scmp.eq.s32.totalorder %s68, 1
    %p280 = scmp.ne.s32.totalorder %s275, %s277
    %p281 = scmp.eq.s32.totalorder %s68, 0
    %p282 = por %p280, %p281
    %p283 = scmp.ne.s32.totalorder %s275, %s277
    %p284 = scmp.eq.s32.totalorder %s73, 1
    %p285 = por %p283, %p284
    %p286 = scmp.ne.s32.totalorder %s277, %s278
    %p287 = scmp.eq.s32.totalorder %s73, 0
    %p288 = por %p286, %p287
    %p289 = scmp.ne.s32.totalorder %s277, %s278
    %p290 = scmp.eq.s32.totalorder %s74, 1
    %p291 = por %p289, %p290
    %p293 = scmp.ne.s32.totalorder %s278, %s292
    %p294 = scmp.eq.s32.totalorder %s74, 0
    %p295 = por %p293, %p294
    %s297 = sadd.s32 %s296, 1
    %p300 = scmp.eq.s32.totalorder %s68, 1
    %p301 = scmp.ne.s32.totalorder %s296, %s298
    %p302 = scmp.eq.s32.totalorder %s68, 0
    %p303 = por %p301, %p302
    %p304 = scmp.ne.s32.totalorder %s296, %s298
    %p305 = scmp.eq.s32.totalorder %s73, 1
    %p306 = por %p304, %p305
    %p307 = scmp.ne.s32.totalorder %s298, %s299
    %p308 = scmp.eq.s32.totalorder %s73, 0
    %p309 = por %p307, %p308
    %p310 = scmp.ne.s32.totalorder %s298, %s299
    %p311 = scmp.eq.s32.totalorder %s74, 1
    %p312 = por %p310, %p311
    %p314 = scmp.ne.s32.totalorder %s299, %s313
    %p315 = scmp.eq.s32.totalorder %s74, 0
    %p316 = por %p314, %p315
    %s318 = sadd.s32 %s317, 1
    %p321 = scmp.eq.s32.totalorder %s68, 1
    %p322 = scmp.ne.s32.totalorder %s317, %s319
    %p323 = scmp.eq.s32.totalorder %s68, 0
    %p324 = por %p322, %p323
    %p325 = scmp.ne.s32.totalorder %s317, %s319
    %p326 = scmp.eq.s32.totalorder %s73, 1
    %p327 = por %p325, %p326
    %p328 = scmp.ne.s32.totalorder %s319, %s320
    %p329 = scmp.eq.s32.totalorder %s73, 0
    %p330 = por %p328, %p329
    %p331 = scmp.ne.s32.totalorder %s319, %s320
    %p332 = scmp.eq.s32.totalorder %s74, 1
    %p333 = por %p331, %p332
    %p335 = scmp.ne.s32.totalorder %s320, %s334
    %p336 = scmp.eq.s32.totalorder %s74, 0
    %p337 = por %p335, %p336
    %s339 = sadd.s32 %s338, 1
    %p342 = scmp.eq.s32.totalorder %s68, 1
    %p343 = scmp.ne.s32.totalorder %s338, %s340
    %p344 = scmp.eq.s32.totalorder %s68, 0
    %p345 = por %p343, %p344
    %p346 = scmp.ne.s32.totalorder %s338, %s340
    %p347 = scmp.eq.s32.totalorder %s73, 1
    %p348 = por %p346, %p347
    %p349 = scmp.ne.s32.totalorder %s340, %s341
    %p350 = scmp.eq.s32.totalorder %s73, 0
    %p351 = por %p349, %p350
    %p352 = scmp.ne.s32.totalorder %s340, %s341
    %p353 = scmp.eq.s32.totalorder %s74, 1
    %p354 = por %p352, %p353
    %p356 = scmp.ne.s32.totalorder %s341, %s355
    %p357 = scmp.eq.s32.totalorder %s74, 0
    %p358 = por %p356, %p357
    %s360 = sadd.s32 %s359, 1
    %p363 = scmp.eq.s32.totalorder %s68, 1
    %p364 = scmp.ne.s32.totalorder %s359, %s361
    %p365 = scmp.eq.s32.totalorder %s68, 0
    %p366 = por %p364, %p365
    %p367 = scmp.ne.s32.totalorder %s359, %s361
    %p368 = scmp.eq.s32.totalorder %s73, 1
    %p369 = por %p367, %p368
    %p370 = scmp.ne.s32.totalorder %s361, %s362
    %p371 = scmp.eq.s32.totalorder %s73, 0
    %p372 = por %p370, %p371
    %p373 = scmp.ne.s32.totalorder %s361, %s362
    %p374 = scmp.eq.s32.totalorder %s74, 1
    %p375 = por %p373, %p374
    %p377 = scmp.ne.s32.totalorder %s362, %s376
    %p378 = scmp.eq.s32.totalorder %s74, 0
    %p379 = por %p377, %p378
    %s381 = sadd.s32 %s380, 1
    %p384 = scmp.eq.s32.totalorder %s68, 1
    %p385 = scmp.ne.s32.totalorder %s380, %s382
    %p386 = scmp.eq.s32.totalorder %s68, 0
    %p387 = por %p385, %p386
    %p388 = scmp.ne.s32.totalorder %s380, %s382
    %p389 = scmp.eq.s32.totalorder %s73, 1
    %p390 = por %p388, %p389
    %p391 = scmp.ne.s32.totalorder %s382, %s383
    %p392 = scmp.eq.s32.totalorder %s73, 0
    %p393 = por %p391, %p392
    %p394 = scmp.ne.s32.totalorder %s382, %s383
    %p395 = scmp.eq.s32.totalorder %s74, 1
    %p396 = por %p394, %p395
    %p398 = scmp.ne.s32.totalorder %s383, %s397
    %p399 = scmp.eq.s32.totalorder %s74, 0
    %p400 = por %p398, %p399
    %s402 = sadd.s32 %s401, 1
    %p405 = scmp.eq.s32.totalorder %s68, 1
    %p406 = scmp.ne.s32.totalorder %s401, %s403
    %p407 = scmp.eq.s32.totalorder %s68, 0
    %p408 = por %p406, %p407
    %p409 = scmp.ne.s32.totalorder %s401, %s403
    %p410 = scmp.eq.s32.totalorder %s73, 1
    %p411 = por %p409, %p410
    %p412 = scmp.ne.s32.totalorder %s403, %s404
    %p413 = scmp.eq.s32.totalorder %s73, 0
    %p414 = por %p412, %p413
    %p415 = scmp.ne.s32.totalorder %s403, %s404
    %p416 = scmp.eq.s32.totalorder %s74, 1
    %p417 = por %p415, %p416
    %p419 = scmp.ne.s32.totalorder %s404, %s418
    %p420 = scmp.eq.s32.totalorder %s74, 0
    %p421 = por %p419, %p420
    %s423 = sadd.s32 %s422, 1
    %p426 = scmp.eq.s32.totalorder %s68, 1
    %p427 = scmp.ne.s32.totalorder %s422, %s424
    %p428 = scmp.eq.s32.totalorder %s68, 0
    %p429 = por %p427, %p428
    %p430 = scmp.ne.s32.totalorder %s422, %s424
    %p431 = scmp.eq.s32.totalorder %s73, 1
    %p432 = por %p430, %p431
    %p433 = scmp.ne.s32.totalorder %s424, %s425
    %p434 = scmp.eq.s32.totalorder %s73, 0
    %p435 = por %p433, %p434
    %p436 = scmp.ne.s32.totalorder %s424, %s425
    %p437 = scmp.eq.s32.totalorder %s74, 1
    %p438 = por %p436, %p437
    %p440 = scmp.ne.s32.totalorder %s425, %s439
    %p441 = scmp.eq.s32.totalorder %s74, 0
    %p442 = por %p440, %p441
    %s444 = sadd.s32 %s443, 1
    %p447 = scmp.eq.s32.totalorder %s68, 1
    %p448 = scmp.ne.s32.totalorder %s443, %s445
    %p449 = scmp.eq.s32.totalorder %s68, 0
    %p450 = por %p448, %p449
    %p451 = scmp.ne.s32.totalorder %s443, %s445
    %p452 = scmp.eq.s32.totalorder %s73, 1
    %p453 = por %p451, %p452
    %p454 = scmp.ne.s32.totalorder %s445, %s446
    %p455 = scmp.eq.s32.totalorder %s73, 0
    %p456 = por %p454, %p455
    %p457 = scmp.ne.s32.totalorder %s445, %s446
    %p458 = scmp.eq.s32.totalorder %s74, 1
    %p459 = por %p457, %p458
    %p461 = scmp.ne.s32.totalorder %s446, %s460
    %p462 = scmp.eq.s32.totalorder %s74, 0
    %p463 = por %p461, %p462
    %s465 = sadd.s32 %s464, 1
    %p468 = scmp.eq.s32.totalorder %s68, 1
    %p469 = scmp.ne.s32.totalorder %s464, %s466
    %p470 = scmp.eq.s32.totalorder %s68, 0
    %p471 = por %p469, %p470
    %p472 = scmp.ne.s32.totalorder %s464, %s466
    %p473 = scmp.eq.s32.totalorder %s73, 1
    %p474 = por %p472, %p473
    %p475 = scmp.ne.s32.totalorder %s466, %s467
    %p476 = scmp.eq.s32.totalorder %s73, 0
    %p477 = por %p475, %p476
    %p478 = scmp.ne.s32.totalorder %s466, %s467
    %p479 = scmp.eq.s32.totalorder %s74, 1
    %p480 = por %p478, %p479
    %p482 = scmp.ne.s32.totalorder %s467, %s481
    %p483 = scmp.eq.s32.totalorder %s74, 0
    %p484 = por %p482, %p483
    %s486 = sadd.s32 %s485, 1
    %p489 = scmp.eq.s32.totalorder %s68, 1
    %p490 = scmp.ne.s32.totalorder %s485, %s487
    %p491 = scmp.eq.s32.totalorder %s68, 0
    %p492 = por %p490, %p491
    %p493 = scmp.ne.s32.totalorder %s485, %s487
    %p494 = scmp.eq.s32.totalorder %s73, 1
    %p495 = por %p493, %p494
    %p496 = scmp.ne.s32.totalorder %s487, %s488
    %p497 = scmp.eq.s32.totalorder %s73, 0
    %p498 = por %p496, %p497
    %p499 = scmp.ne.s32.totalorder %s487, %s488
    %p500 = scmp.eq.s32.totalorder %s74, 1
    %p501 = por %p499, %p500
    %p503 = scmp.ne.s32.totalorder %s488, %s502
    %p504 = scmp.eq.s32.totalorder %s74, 0
    %p505 = por %p503, %p504
    %s507 = sadd.s32 %s506, 1
    %p510 = scmp.eq.s32.totalorder %s68, 1
    %p511 = scmp.ne.s32.totalorder %s506, %s508
    %p512 = scmp.eq.s32.totalorder %s68, 0
    %p513 = por %p511, %p512
    %p514 = scmp.ne.s32.totalorder %s506, %s508
    %p515 = scmp.eq.s32.totalorder %s73, 1
    %p516 = por %p514, %p515
    %p517 = scmp.ne.s32.totalorder %s508, %s509
    %p518 = scmp.eq.s32.totalorder %s73, 0
    %p519 = por %p517, %p518
    %p520 = scmp.ne.s32.totalorder %s508, %s509
    %p521 = scmp.eq.s32.totalorder %s74, 1
    %p522 = por %p520, %p521
    %p524 = scmp.ne.s32.totalorder %s509, %s523
    %p525 = scmp.eq.s32.totalorder %s74, 0
    %p526 = por %p524, %p525
    %s528 = sadd.s32 %s527, 1
    %p531 = scmp.eq.s32.totalorder %s68, 1
    %p532 = scmp.ne.s32.totalorder %s527, %s529
    %p533 = scmp.eq.s32.totalorder %s68, 0
    %p534 = por %p532, %p533
    %p535 = scmp.ne.s32.totalorder %s527, %s529
    %p536 = scmp.eq.s32.totalorder %s73, 1
    %p537 = por %p535, %p536
    %p538 = scmp.ne.s32.totalorder %s529, %s530
    %p539 = scmp.eq.s32.totalorder %s73, 0
    %p540 = por %p538, %p539
    %p541 = scmp.ne.s32.totalorder %s529, %s530
    %p542 = scmp.eq.s32.totalorder %s74, 1
    %p543 = por %p541, %p542
    %p545 = scmp.ne.s32.totalorder %s530, %s544
    %p546 = scmp.eq.s32.totalorder %s74, 0
    %p547 = por %p545, %p546
    %s549 = sadd.s32 %s548, 1
    %p552 = scmp.eq.s32.totalorder %s68, 1
    %p553 = scmp.ne.s32.totalorder %s548, %s550
    %p554 = scmp.eq.s32.totalorder %s68, 0
    %p555 = por %p553, %p554
    %p556 = scmp.ne.s32.totalorder %s548, %s550
    %p557 = scmp.eq.s32.totalorder %s73, 1
    %p558 = por %p556, %p557
    %p559 = scmp.ne.s32.totalorder %s550, %s551
    %p560 = scmp.eq.s32.totalorder %s73, 0
    %p561 = por %p559, %p560
    %p562 = scmp.ne.s32.totalorder %s550, %s551
    %p563 = scmp.eq.s32.totalorder %s74, 1
    %p564 = por %p562, %p563
    %p566 = scmp.ne.s32.totalorder %s551, %s565
    %p567 = scmp.eq.s32.totalorder %s74, 0
    %p568 = por %p566, %p567
    %s570 = sadd.s32 %s569, 1
    %p573 = scmp.eq.s32.totalorder %s68, 1
    %p574 = scmp.ne.s32.totalorder %s569, %s571
    %p575 = scmp.eq.s32.totalorder %s68, 0
    %p576 = por %p574, %p575
    %p577 = scmp.ne.s32.totalorder %s569, %s571
    %p578 = scmp.eq.s32.totalorder %s73, 1
    %p579 = por %p577, %p578
    %p580 = scmp.ne.s32.totalorder %s571, %s572
    %p581 = scmp.eq.s32.totalorder %s73, 0
    %p582 = por %p580, %p581
    %p583 = scmp.ne.s32.totalorder %s571, %s572
    %p584 = scmp.eq.s32.totalorder %s74, 1
    %p585 = por %p583, %p584
    %p587 = scmp.ne.s32.totalorder %s572, %s586
    %p588 = scmp.eq.s32.totalorder %s74, 0
    %p589 = por %p587, %p588
    %s591 = sadd.s32 %s590, 1
    %p594 = scmp.eq.s32.totalorder %s68, 1
    %p595 = scmp.ne.s32.totalorder %s590, %s592
    %p596 = scmp.eq.s32.totalorder %s68, 0
    %p597 = por %p595, %p596
    %p598 = scmp.ne.s32.totalorder %s590, %s592
    %p599 = scmp.eq.s32.totalorder %s73, 1
    %p600 = por %p598, %p599
    %p601 = scmp.ne.s32.totalorder %s592, %s593
    %p602 = scmp.eq.s32.totalorder %s73, 0
    %p603 = por %p601, %p602
    %p604 = scmp.ne.s32.totalorder %s592, %s593
    %p605 = scmp.eq.s32.totalorder %s74, 1
    %p606 = por %p604, %p605
    %p608 = scmp.ne.s32.totalorder %s593, %s607
    %p609 = scmp.eq.s32.totalorder %s74, 0
    %p610 = por %p608, %p609
    %s612 = sadd.s32 %s611, 1
    %p615 = scmp.eq.s32.totalorder %s68, 1
    %p616 = scmp.ne.s32.totalorder %s611, %s613
    %p617 = scmp.eq.s32.totalorder %s68, 0
    %p618 = por %p616, %p617
    %p619 = scmp.ne.s32.totalorder %s611, %s613
    %p620 = scmp.eq.s32.totalorder %s73, 1
    %p621 = por %p619, %p620
    %p622 = scmp.ne.s32.totalorder %s613, %s614
    %p623 = scmp.eq.s32.totalorder %s73, 0
    %p624 = por %p622, %p623
    %p625 = scmp.ne.s32.totalorder %s613, %s614
    %p626 = scmp.eq.s32.totalorder %s74, 1
    %p627 = por %p625, %p626
    %p629 = scmp.ne.s32.totalorder %s614, %s628
    %p630 = scmp.eq.s32.totalorder %s74, 0
    %p631 = por %p629, %p630
    %s633 = sadd.s32 %s632, 1
    %p636 = scmp.eq.s32.totalorder %s68, 1
    %p637 = scmp.ne.s32.totalorder %s632, %s634
    %p638 = scmp.eq.s32.totalorder %s68, 0
    %p639 = por %p637, %p638
    %p640 = scmp.ne.s32.totalorder %s632, %s634
    %p641 = scmp.eq.s32.totalorder %s73, 1
    %p642 = por %p640, %p641
    %p643 = scmp.ne.s32.totalorder %s634, %s635
    %p644 = scmp.eq.s32.totalorder %s73, 0
    %p645 = por %p643, %p644
    %p646 = scmp.ne.s32.totalorder %s634, %s635
    %p647 = scmp.eq.s32.totalorder %s74, 1
    %p648 = por %p646, %p647
    %p650 = scmp.ne.s32.totalorder %s635, %s649
    %p651 = scmp.eq.s32.totalorder %s74, 0
    %p652 = por %p650, %p651
    %s654 = sadd.s32 %s653, 1
    %p657 = scmp.eq.s32.totalorder %s68, 1
    %p658 = scmp.ne.s32.totalorder %s653, %s655
    %p659 = scmp.eq.s32.totalorder %s68, 0
    %p660 = por %p658, %p659
    %p661 = scmp.ne.s32.totalorder %s653, %s655
    %p662 = scmp.eq.s32.totalorder %s73, 1
    %p663 = por %p661, %p662
    %p664 = scmp.ne.s32.totalorder %s655, %s656
    %p665 = scmp.eq.s32.totalorder %s73, 0
    %p666 = por %p664, %p665
    %p667 = scmp.ne.s32.totalorder %s655, %s656
    %p668 = scmp.eq.s32.totalorder %s74, 1
    %p669 = por %p667, %p668
    %p671 = scmp.ne.s32.totalorder %s656, %s670
    %p672 = scmp.eq.s32.totalorder %s74, 0
    %p673 = por %p671, %p672
    %s675 = sadd.s32 %s674, 1
    %p678 = scmp.eq.s32.totalorder %s68, 1
    %p679 = scmp.ne.s32.totalorder %s674, %s676
    %p680 = scmp.eq.s32.totalorder %s68, 0
    %p681 = por %p679, %p680
    %p682 = scmp.ne.s32.totalorder %s674, %s676
    %p683 = scmp.eq.s32.totalorder %s73, 1
    %p684 = por %p682, %p683
    %p685 = scmp.ne.s32.totalorder %s676, %s677
    %p686 = scmp.eq.s32.totalorder %s73, 0
    %p687 = por %p685, %p686
    %p688 = scmp.ne.s32.totalorder %s676, %s677
    %p689 = scmp.eq.s32.totalorder %s74, 1
    %p690 = por %p688, %p689
    %p692 = scmp.ne.s32.totalorder %s677, %s691
    %p693 = scmp.eq.s32.totalorder %s74, 0
    %p694 = por %p692, %p693
    %s695 = ssub.s32 %s68, %s75
    %p696 = scmp.eq.s32.totalorder %s695, 0
    %s698 = sadd.s32 %s697, 1
    %s699 = scalar_select %p696, %s697, %s698
    %p702 = pneg %p696
    %p703 = scmp.eq.s32.totalorder %s68, 1
    %p704 = por %p702, %p703
    %p705 = scmp.ne.s32.totalorder %s697, %s700
    %p706 = scmp.eq.s32.totalorder %s68, 0
    %p707 = por %p705, %p706
    %p708 = scmp.ne.s32.totalorder %s697, %s700
    %p709 = scmp.eq.s32.totalorder %s73, 1
    %p710 = por %p708, %p709
    %p711 = scmp.ne.s32.totalorder %s700, %s701
    %p712 = scmp.eq.s32.totalorder %s73, 0
    %p713 = por %p711, %p712
    %p714 = scmp.ne.s32.totalorder %s700, %s701
    %p715 = scmp.eq.s32.totalorder %s74, 1
    %p716 = por %p714, %p715
    %p718 = scmp.ne.s32.totalorder %s701, %s717
    %p719 = scmp.eq.s32.totalorder %s74, 0
    %p720 = por %p718, %p719
    %s721 = ssub.s32 %s68, %s75
    %p722 = scmp.eq.s32.totalorder %s721, 0
    %s724 = sadd.s32 %s723, 1
    %s725 = scalar_select %p722, %s723, %s724
    %p728 = pneg %p722
    %p729 = scmp.eq.s32.totalorder %s68, 1
    %p730 = por %p728, %p729
    %p731 = scmp.ne.s32.totalorder %s723, %s726
    %p732 = scmp.eq.s32.totalorder %s68, 0
    %p733 = por %p731, %p732
    %p734 = scmp.ne.s32.totalorder %s723, %s726
    %p735 = scmp.eq.s32.totalorder %s73, 1
    %p736 = por %p734, %p735
    %p737 = scmp.ne.s32.totalorder %s726, %s727
    %p738 = scmp.eq.s32.totalorder %s73, 0
    %p739 = por %p737, %p738
    %p740 = scmp.ne.s32.totalorder %s726, %s727
    %p741 = scmp.eq.s32.totalorder %s74, 1
    %p742 = por %p740, %p741
    %p744 = scmp.ne.s32.totalorder %s727, %s743
    %p745 = scmp.eq.s32.totalorder %s74, 0
    %p746 = por %p744, %p745
    %p747 = scmp.le.s32.totalorder 1, %s68
    %p748 = scmp.lt.s32.totalorder %s68, 3
    %p749 = pnand %p747, %p748
    %p750 = pneg %p749
    // Predicated region
    $region9: #{topview_vae_forward.1} parent=5 // pred_check
      _
    $region10: #{topview_vae_forward.1} parent=5 // pred_check_branch
      %752 = sbr.rel (%p749) target = $region12
    $region11: #{topview_vae_forward.1} parent=5 // pred_region
      %s753 = ssub.s32 %s68, 1
      // Predicated region
      $region13: #{topview_vae_forward.1} parent=11 // pred_check
        %p754 = pneg %p141
      $region14: #{topview_vae_forward.1} parent=11 // pred_check_branch
        %756 = sbr.rel (%p754) target = $region16
      $region15: #{topview_vae_forward.1} parent=11 // pred_region
        _
      $region16: #{topview_vae_forward.1} parent=11 // pred_fallthru
        _
      // Predicated region
      $region17: #{topview_vae_forward.1} parent=11 // pred_check
        %p757 = pneg %p162
      $region18: #{topview_vae_forward.1} parent=11 // pred_check_branch
        %759 = sbr.rel (%p757) target = $region20
      $region19: #{topview_vae_forward.1} parent=11 // pred_region
        _
      $region20: #{topview_vae_forward.1} parent=11 // pred_fallthru
        _
      // Predicated region
      $region21: #{topview_vae_forward.1} parent=11 // pred_check
        %p760 = pneg %p183
      $region22: #{topview_vae_forward.1} parent=11 // pred_check_branch
        %762 = sbr.rel (%p760) target = $region24
      $region23: #{topview_vae_forward.1} parent=11 // pred_region
        _
      $region24: #{topview_vae_forward.1} parent=11 // pred_fallthru
        _
      // Predicated region
      $region25: #{topview_vae_forward.1} parent=11 // pred_check
        %p763 = pneg %p204
      $region26: #{topview_vae_forward.1} parent=11 // pred_check_branch
        %765 = sbr.rel (%p763) target = $region28
      $region27: #{topview_vae_forward.1} parent=11 // pred_region
        _
      $region28: #{topview_vae_forward.1} parent=11 // pred_fallthru
        _
      // Predicated region
      $region29: #{topview_vae_forward.1} parent=11 // pred_check
        %p766 = pneg %p225
      $region30: #{topview_vae_forward.1} parent=11 // pred_check_branch
        %768 = sbr.rel (%p766) target = $region32
      $region31: #{topview_vae_forward.1} parent=11 // pred_region
        _
      $region32: #{topview_vae_forward.1} parent=11 // pred_fallthru
        _
      // Predicated region
      $region33: #{topview_vae_forward.1} parent=11 // pred_check
        %p769 = pneg %p246
      $region34: #{topview_vae_forward.1} parent=11 // pred_check_branch
        %771 = sbr.rel (%p769) target = $region36
      $region35: #{topview_vae_forward.1} parent=11 // pred_region
        _
      $region36: #{topview_vae_forward.1} parent=11 // pred_fallthru
        _
      // Predicated region
      $region37: #{topview_vae_forward.1} parent=11 // pred_check
        %p772 = pneg %p267
      $region38: #{topview_vae_forward.1} parent=11 // pred_check_branch
        %774 = sbr.rel (%p772) target = $region40
      $region39: #{topview_vae_forward.1} parent=11 // pred_region
        _
      $region40: #{topview_vae_forward.1} parent=11 // pred_fallthru
        _
      // Predicated region
      $region41: #{topview_vae_forward.1} parent=11 // pred_check
        %p775 = pneg %p288
      $region42: #{topview_vae_forward.1} parent=11 // pred_check_branch
        %777 = sbr.rel (%p775) target = $region44
      $region43: #{topview_vae_forward.1} parent=11 // pred_region
        _
      $region44: #{topview_vae_forward.1} parent=11 // pred_fallthru
        _
      // Predicated region
      $region45: #{topview_vae_forward.1} parent=11 // pred_check
        %p778 = pneg %p309
      $region46: #{topview_vae_forward.1} parent=11 // pred_check_branch
        %780 = sbr.rel (%p778) target = $region48
      $region47: #{topview_vae_forward.1} parent=11 // pred_region
        _
      $region48: #{topview_vae_forward.1} parent=11 // pred_fallthru
        _
      // Predicated region
      $region49: #{topview_vae_forward.1} parent=11 // pred_check
        %p781 = pneg %p330
      $region50: #{topview_vae_forward.1} parent=11 // pred_check_branch
        %783 = sbr.rel (%p781) target = $region52
      $region51: #{topview_vae_forward.1} parent=11 // pred_region
        _
      $region52: #{topview_vae_forward.1} parent=11 // pred_fallthru
        _
      // Predicated region
      $region53: #{topview_vae_forward.1} parent=11 // pred_check
        %p784 = pneg %p351
      $region54: #{topview_vae_forward.1} parent=11 // pred_check_branch
        %786 = sbr.rel (%p784) target = $region56
      $region55: #{topview_vae_forward.1} parent=11 // pred_region
        _
      $region56: #{topview_vae_forward.1} parent=11 // pred_fallthru
        _
      // Predicated region
      $region57: #{topview_vae_forward.1} parent=11 // pred_check
        %p787 = pneg %p372
      $region58: #{topview_vae_forward.1} parent=11 // pred_check_branch
        %789 = sbr.rel (%p787) target = $region60
      $region59: #{topview_vae_forward.1} parent=11 // pred_region
        _
      $region60: #{topview_vae_forward.1} parent=11 // pred_fallthru
        _
      // Predicated region
      $region61: #{topview_vae_forward.1} parent=11 // pred_check
        %p790 = pneg %p393
      $region62: #{topview_vae_forward.1} parent=11 // pred_check_branch
        %792 = sbr.rel (%p790) target = $region64
      $region63: #{topview_vae_forward.1} parent=11 // pred_region
        _
      $region64: #{topview_vae_forward.1} parent=11 // pred_fallthru
        _
      // Predicated region
      $region65: #{topview_vae_forward.1} parent=11 // pred_check
        %p793 = pneg %p414
      $region66: #{topview_vae_forward.1} parent=11 // pred_check_branch
        %795 = sbr.rel (%p793) target = $region68
      $region67: #{topview_vae_forward.1} parent=11 // pred_region
        _
      $region68: #{topview_vae_forward.1} parent=11 // pred_fallthru
        _
      // Predicated region
      $region69: #{topview_vae_forward.1} parent=11 // pred_check
        %p796 = pneg %p435
      $region70: #{topview_vae_forward.1} parent=11 // pred_check_branch
        %798 = sbr.rel (%p796) target = $region72
      $region71: #{topview_vae_forward.1} parent=11 // pred_region
        _
      $region72: #{topview_vae_forward.1} parent=11 // pred_fallthru
        _
      // Predicated region
      $region73: #{topview_vae_forward.1} parent=11 // pred_check
        %p799 = pneg %p456
      $region74: #{topview_vae_forward.1} parent=11 // pred_check_branch
        %801 = sbr.rel (%p799) target = $region76
      $region75: #{topview_vae_forward.1} parent=11 // pred_region
        _
      $region76: #{topview_vae_forward.1} parent=11 // pred_fallthru
        _
      // Predicated region
      $region77: #{topview_vae_forward.1} parent=11 // pred_check
        %p802 = pneg %p477
      $region78: #{topview_vae_forward.1} parent=11 // pred_check_branch
        %804 = sbr.rel (%p802) target = $region80
      $region79: #{topview_vae_forward.1} parent=11 // pred_region
        _
      $region80: #{topview_vae_forward.1} parent=11 // pred_fallthru
        _
      // Predicated region
      $region81: #{topview_vae_forward.1} parent=11 // pred_check
        %p805 = pneg %p498
      $region82: #{topview_vae_forward.1} parent=11 // pred_check_branch
        %807 = sbr.rel (%p805) target = $region84
      $region83: #{topview_vae_forward.1} parent=11 // pred_region
        _
      $region84: #{topview_vae_forward.1} parent=11 // pred_fallthru
        _
      // Predicated region
      $region85: #{topview_vae_forward.1} parent=11 // pred_check
        %p808 = pneg %p519
      $region86: #{topview_vae_forward.1} parent=11 // pred_check_branch
        %810 = sbr.rel (%p808) target = $region88
      $region87: #{topview_vae_forward.1} parent=11 // pred_region
        _
      $region88: #{topview_vae_forward.1} parent=11 // pred_fallthru
        _
      // Predicated region
      $region89: #{topview_vae_forward.1} parent=11 // pred_check
        %p811 = pneg %p540
      $region90: #{topview_vae_forward.1} parent=11 // pred_check_branch
        %813 = sbr.rel (%p811) target = $region92
      $region91: #{topview_vae_forward.1} parent=11 // pred_region
        _
      $region92: #{topview_vae_forward.1} parent=11 // pred_fallthru
        _
      // Predicated region
      $region93: #{topview_vae_forward.1} parent=11 // pred_check
        %p814 = pneg %p561
      $region94: #{topview_vae_forward.1} parent=11 // pred_check_branch
        %816 = sbr.rel (%p814) target = $region96
      $region95: #{topview_vae_forward.1} parent=11 // pred_region
        _
      $region96: #{topview_vae_forward.1} parent=11 // pred_fallthru
        _
      // Predicated region
      $region97: #{topview_vae_forward.1} parent=11 // pred_check
        %p817 = pneg %p582
      $region98: #{topview_vae_forward.1} parent=11 // pred_check_branch
        %819 = sbr.rel (%p817) target = $region100
      $region99: #{topview_vae_forward.1} parent=11 // pred_region
        _
      $region100: #{topview_vae_forward.1} parent=11 // pred_fallthru
        _
      // Predicated region
      $region101: #{topview_vae_forward.1} parent=11 // pred_check
        %p820 = pneg %p603
      $region102: #{topview_vae_forward.1} parent=11 // pred_check_branch
        %822 = sbr.rel (%p820) target = $region104
      $region103: #{topview_vae_forward.1} parent=11 // pred_region
        _
      $region104: #{topview_vae_forward.1} parent=11 // pred_fallthru
        _
      // Predicated region
      $region105: #{topview_vae_forward.1} parent=11 // pred_check
        %p823 = pneg %p624
      $region106: #{topview_vae_forward.1} parent=11 // pred_check_branch
        %825 = sbr.rel (%p823) target = $region108
      $region107: #{topview_vae_forward.1} parent=11 // pred_region
        _
      $region108: #{topview_vae_forward.1} parent=11 // pred_fallthru
        _
      // Predicated region
      $region109: #{topview_vae_forward.1} parent=11 // pred_check
        %p826 = pneg %p645
      $region110: #{topview_vae_forward.1} parent=11 // pred_check_branch
        %828 = sbr.rel (%p826) target = $region112
      $region111: #{topview_vae_forward.1} parent=11 // pred_region
        _
      $region112: #{topview_vae_forward.1} parent=11 // pred_fallthru
        _
      // Predicated region
      $region113: #{topview_vae_forward.1} parent=11 // pred_check
        %p829 = pneg %p666
      $region114: #{topview_vae_forward.1} parent=11 // pred_check_branch
        %831 = sbr.rel (%p829) target = $region116
      $region115: #{topview_vae_forward.1} parent=11 // pred_region
        _
      $region116: #{topview_vae_forward.1} parent=11 // pred_fallthru
        _
      // Predicated region
      $region117: #{topview_vae_forward.1} parent=11 // pred_check
        %p832 = pneg %p687
      $region118: #{topview_vae_forward.1} parent=11 // pred_check_branch
        %834 = sbr.rel (%p832) target = $region120
      $region119: #{topview_vae_forward.1} parent=11 // pred_region
        _
      $region120: #{topview_vae_forward.1} parent=11 // pred_fallthru
        _
    $region12: #{topview_vae_forward.1} parent=5 // pred_fallthru
      _
    %p835 = scmp.lt.s32.totalorder %s68, 2
    // Predicated region
    $region121: #{topview_vae_forward.1} parent=5 // pred_check
      %p836 = pneg %p835
    $region122: #{topview_vae_forward.1} parent=5 // pred_check_branch
      %838 = sbr.rel (%p836) target = $region124
    $region123: #{topview_vae_forward.1} parent=5 // pred_region
      // Predicated region
      $region125: #{topview_vae_forward.1} parent=123 // pred_check
        %p839 = pneg %p88
      $region126: #{topview_vae_forward.1} parent=123 // pred_check_branch
        %841 = sbr.rel (%p839) target = $region128
      $region127: #{topview_vae_forward.1} parent=123 // pred_region
        %p842 = scmp.lt.s32.totalorder %s68, 1
        %s843 = scalar_select %p842, %s68, 1
        %s844 = smul.addr %s843, 2
        %s845 = smul.addr %s844, 8
        %s846 = scalar_lea.vmem %s1, %s845
      $region128: #{topview_vae_forward.1} parent=123 // pred_fallthru
        _
      // Predicated region
      $region129: #{topview_vae_forward.1} parent=123 // pred_check
        %p847 = pneg %p114
      $region130: #{topview_vae_forward.1} parent=123 // pred_check_branch
        %849 = sbr.rel (%p847) target = $region132
      $region131: #{topview_vae_forward.1} parent=123 // pred_region
        %p850 = scmp.lt.s32.totalorder %s68, 1
        %s851 = scalar_select %p850, %s68, 1
        %s852 = smul.addr %s851, 8
        %s853 = scalar_lea.vmem %s3, %s852
      $region132: #{topview_vae_forward.1} parent=123 // pred_fallthru
        _
    $region124: #{topview_vae_forward.1} parent=5 // pred_fallthru
      _
    %p854 = scmp.le.s32.totalorder 1, %s68
    %p855 = scmp.lt.s32.totalorder %s68, 3
    %p856 = pnand %p854, %p855
    %p857 = pneg %p856
    // Predicated region
    $region133: #{topview_vae_forward.1} parent=5 // pred_check
      _
    $region134: #{topview_vae_forward.1} parent=5 // pred_check_branch
      %859 = sbr.rel (%p856) target = $region136
    $region135: #{topview_vae_forward.1} parent=5 // pred_region
      %s860 = ssub.s32 %s68, 1
      %p861 = scmp.lt.s32.totalorder %s73, 1
      %s862 = scalar_select %p861, %s73, 1
      %s863 = smul.addr %s862, 2
      %s864 = smul.addr %s863, 8
      %s865 = scalar_lea.vmem %s1, %s864
      %p866 = pneg %p94
      %p867 = pneg %p91
      %p868 = scmp.lt.s32.totalorder %s73, 1
      %s869 = scalar_select %p868, %s73, 1
      %s870 = smul.addr %s869, 8
      %s871 = scalar_lea.vmem %s3, %s870
      %p872 = pneg %p120
      %p873 = pneg %p117
      %p874 = pneg %p141
      %p875 = pneg %p138
      %p876 = pneg %p162
      %p877 = pneg %p159
      %p878 = pneg %p183
      %p879 = pneg %p180
      %p880 = pneg %p204
      %p881 = pneg %p201
      %p882 = pneg %p225
      %p883 = pneg %p222
      %p884 = pneg %p246
      %p885 = pneg %p243
      %p886 = pneg %p267
      %p887 = pneg %p264
      %p888 = pneg %p288
      %p889 = pneg %p285
      %p890 = pneg %p309
      %p891 = pneg %p306
      %p892 = pneg %p330
      %p893 = pneg %p327
      %p894 = pneg %p351
      %p895 = pneg %p348
      %p896 = pneg %p372
      %p897 = pneg %p369
      %p898 = pneg %p393
      %p899 = pneg %p390
      %p900 = pneg %p414
      %p901 = pneg %p411
      %p902 = pneg %p435
      %p903 = pneg %p432
      %p904 = pneg %p456
      %p905 = pneg %p453
      %p906 = pneg %p477
      %p907 = pneg %p474
      %p908 = pneg %p498
      %p909 = pneg %p495
      %p910 = pneg %p519
      %p911 = pneg %p516
      %p912 = pneg %p540
      %p913 = pneg %p537
      %p914 = pneg %p561
      %p915 = pneg %p558
      %p916 = pneg %p582
      %p917 = pneg %p579
      %p918 = pneg %p603
      %p919 = pneg %p600
      %p920 = pneg %p624
      %p921 = pneg %p621
      %p922 = pneg %p645
      %p923 = pneg %p642
      %p924 = pneg %p666
      %p925 = pneg %p663
      %p926 = pneg %p687
      %p927 = pneg %p684
      %p928 = pneg %p713
      %p929 = pneg %p710
      %p930 = scmp.lt.s32.totalorder %s73, 1
      %s931 = scalar_select %p930, %s73, 1
      %s932 = smul.addr %s931, 2
      %s933 = smul.addr %s932, 4
      %s934 = scalar_lea.vmem %s59, %s933
      %p935 = pneg %p739
      %p936 = pneg %p736
      %p937 = scmp.lt.s32.totalorder %s73, 1
      %s938 = scalar_select %p937, %s73, 1
      %s939 = smul.addr %s938, 2
      %s940 = smul.addr %s939, 8
      %s941 = scalar_lea.vmem %s61, %s940
      %p942 = scmp.lt.s32.totalorder %s73, 1
      %s943 = scalar_select %p942, %s73, 1
      %s944 = smul.addr %s943, 2
      %s945 = smul.addr %s944, 8
      %s946 = scalar_lea.vmem %s1, %s945
      %p947 = scmp.lt.s32.totalorder %s73, 1
      %s948 = scalar_select %p947, %s73, 1
      %s949 = smul.addr %s948, 8
      %s950 = scalar_lea.vmem %s3, %s949
      %p951 = scmp.lt.s32.totalorder %s73, 1
      %s952 = scalar_select %p951, %s73, 1
      %s953 = smul.addr %s952, 2
      %s954 = smul.addr %s953, 4
      %s955 = scalar_lea.vmem %s59, %s954
      %p956 = scmp.lt.s32.totalorder %s73, 1
      %s957 = scalar_select %p956, %s73, 1
      %s958 = smul.addr %s957, 2
      %s959 = smul.addr %s958, 8
      %s960 = scalar_lea.vmem %s61, %s959
      %v962 = vld [vmem:[%s946] sm:$0xff]
      %v963 = vld [vmem:[%s946 + $0x8] sm:$0xff]
      %v964 = vpack.c.bf16 %v962, %v962
      %v965 = vpack.c.bf16 %v963, %v963
      %v966 = vld [vmem:[%s5] sm:$0xf]
      %v967 = vld [vmem:[%s5 + $0x4] sm:$0xf]
      %v968 = vld [vmem:[%s5 + $0x8] sm:$0xf]
      %v969 = vld [vmem:[%s5 + $0xc] sm:$0xf]
      %v970 = vld [vmem:[%s5 + $0x10] sm:$0xf]
      %v971 = vld [vmem:[%s5 + $0x14] sm:$0xf]
      %v972 = vld [vmem:[%s5 + $0x18] sm:$0xf]
      %v973 = vld [vmem:[%s5 + $0x1c] sm:$0xf]
      %v974 = vld [vmem:[%s5 + $0x20] sm:$0xf]
      %v975 = vld [vmem:[%s5 + $0x24] sm:$0xf]
      %v976 = vld [vmem:[%s5 + $0x28] sm:$0xf]
      %v977 = vld [vmem:[%s5 + $0x2c] sm:$0xf]
      %v978 = vld [vmem:[%s5 + $0x30] sm:$0xf]
      %v979 = vld [vmem:[%s5 + $0x34] sm:$0xf]
      %v980 = vld [vmem:[%s5 + $0x38] sm:$0xf]
      %v981 = vld [vmem:[%s5 + $0x3c] sm:$0xf]
      %v982 = vld [vmem:[%s5 + $0x40] sm:$0xf]
      %v983 = vld [vmem:[%s5 + $0x44] sm:$0xf]
      %v984 = vld [vmem:[%s5 + $0x48] sm:$0xf]
      %v985 = vld [vmem:[%s5 + $0x4c] sm:$0xf]
      %v986 = vld [vmem:[%s5 + $0x50] sm:$0xf]
      %v987 = vld [vmem:[%s5 + $0x54] sm:$0xf]
      %v988 = vld [vmem:[%s5 + $0x58] sm:$0xf]
      %v989 = vld [vmem:[%s5 + $0x5c] sm:$0xf]
      %v990 = vld [vmem:[%s5 + $0x60] sm:$0xf]
      %v991 = vld [vmem:[%s5 + $0x64] sm:$0xf]
      %v992 = vld [vmem:[%s5 + $0x68] sm:$0xf]
      %v993 = vld [vmem:[%s5 + $0x6c] sm:$0xf]
      %v994 = vld [vmem:[%s5 + $0x70] sm:$0xf]
      %v995 = vld [vmem:[%s5 + $0x74] sm:$0xf]
      %v996 = vld [vmem:[%s5 + $0x78] sm:$0xf]
      %v997 = vld [vmem:[%s5 + $0x7c] sm:$0xf]
      %v1030 = vunpack.c.l.b16 %v966
      %v1031 = vunpack.c.l.b16 %v967
      %v1032 = vunpack.c.l.b16 %v968
      %v1033 = vunpack.c.l.b16 %v969
      %v1034 = vunpack.c.l.b16 %v970
      %v1035 = vunpack.c.l.b16 %v971
      %v1036 = vunpack.c.l.b16 %v972
      %v1037 = vunpack.c.l.b16 %v973
      %v1038 = vunpack.c.l.b16 %v974
      %v1039 = vunpack.c.l.b16 %v975
      %v1040 = vunpack.c.l.b16 %v976
      %v1041 = vunpack.c.l.b16 %v977
      %v1042 = vunpack.c.l.b16 %v978
      %v1043 = vunpack.c.l.b16 %v979
      %v1044 = vunpack.c.l.b16 %v980
      %v1045 = vunpack.c.l.b16 %v981
      %v1046 = vunpack.c.l.b16 %v982
      %v1047 = vunpack.c.l.b16 %v983
      %v1048 = vunpack.c.l.b16 %v984
      %v1049 = vunpack.c.l.b16 %v985
      %v1050 = vunpack.c.l.b16 %v986
      %v1051 = vunpack.c.l.b16 %v987
      %v1052 = vunpack.c.l.b16 %v988
      %v1053 = vunpack.c.l.b16 %v989
      %v1054 = vunpack.c.l.b16 %v990
      %v1055 = vunpack.c.l.b16 %v991
      %v1056 = vunpack.c.l.b16 %v992
      %v1057 = vunpack.c.l.b16 %v993
      %v1058 = vunpack.c.l.b16 %v994
      %v1059 = vunpack.c.l.b16 %v995
      %v1060 = vunpack.c.l.b16 %v996
      %v1061 = vunpack.c.l.b16 %v997
      %v1062 = vpack.c.b16 %v1031, %v1030
      %v1063 = vpack.c.b16 %v1033, %v1032
      %v1064 = vpack.c.b16 %v1035, %v1034
      %v1065 = vpack.c.b16 %v1037, %v1036
      %v1066 = vpack.c.b16 %v1039, %v1038
      %v1067 = vpack.c.b16 %v1041, %v1040
      %v1068 = vpack.c.b16 %v1043, %v1042
      %v1069 = vpack.c.b16 %v1045, %v1044
      %v1070 = vpack.c.b16 %v1047, %v1046
      %v1071 = vpack.c.b16 %v1049, %v1048
      %v1072 = vpack.c.b16 %v1051, %v1050
      %v1073 = vpack.c.b16 %v1053, %v1052
      %v1074 = vpack.c.b16 %v1055, %v1054
      %v1075 = vpack.c.b16 %v1057, %v1056
      %v1076 = vpack.c.b16 %v1059, %v1058
      %v1077 = vpack.c.b16 %v1061, %v1060
      %1094 = vmatprep.subr.bf16.mxu0 0
      %1095 = vmatpush1.bf16.msra.mxu0 %v1062
      %1096 = vmatprep.subr.bf16.mxu0 0
      %1097 = vmatpush1.bf16.msra.mxu0 %v1063
      %1098 = vmatprep.subr.bf16.mxu0 0
      %1099 = vmatpush1.bf16.msra.mxu0 %v1064
      %1100 = vmatprep.subr.bf16.mxu0 0
      %1101 = vmatpush1.bf16.msra.mxu0 %v1065
      %1102 = vmatprep.subr.bf16.mxu0 0
      %1103 = vmatpush1.bf16.msra.mxu0 %v1066
      %1104 = vmatprep.subr.bf16.mxu0 0
      %1105 = vmatpush1.bf16.msra.mxu0 %v1067
      %1106 = vmatprep.subr.bf16.mxu0 0
      %1107 = vmatpush1.bf16.msra.mxu0 %v1068
      %1108 = vmatprep.subr.bf16.mxu0 0
      %1109 = vmatpush1.bf16.msra.mxu0 %v1069
      %1110 = vmatprep.subr.bf16.mxu0 0
      %1111 = vmatpush1.bf16.msra.mxu0 %v1070
      %1112 = vmatprep.subr.bf16.mxu0 0
      %1113 = vmatpush1.bf16.msra.mxu0 %v1071
      %1114 = vmatprep.subr.bf16.mxu0 0
      %1115 = vmatpush1.bf16.msra.mxu0 %v1072
      %1116 = vmatprep.subr.bf16.mxu0 0
      %1117 = vmatpush1.bf16.msra.mxu0 %v1073
      %1118 = vmatprep.subr.bf16.mxu0 0
      %1119 = vmatpush1.bf16.msra.mxu0 %v1074
      %1120 = vmatprep.subr.bf16.mxu0 0
      %1121 = vmatpush1.bf16.msra.mxu0 %v1075
      %1122 = vmatprep.subr.bf16.mxu0 0
      %1123 = vmatpush1.bf16.msra.mxu0 %v1076
      %1124 = vmatprep.subr.bf16.mxu0 0
      %1125 = vmatpush1.bf16.msra.mxu0 %v1077
      %1126 = vmatprep.mubr.bf16.mxu0 %v965
      %1127 = vmatmul.mubr.bf16.gmra.mrb[0].mxu0 %v964
      %v1128 = vpop.f32.mrb[0].mxu0
      %v1129 = vadd.f32 0.0, %v1128
      %v1130 = vpop.f32.mrb[0].mxu0
      %v1131 = vpop.f32.mrb[0].mxu0
      %v1132 = vpop.f32.mrb[0].mxu0
      %1133 = vdwg.mxu0
      %vm1134 = vcmask 523264
      %1135 = vst.msk [vmem:[#allocation2] sm:$0xff] %vm1134, %v1129
      %s1136 = scalar_lea.vmem %s5, 128
      %v1137 = vld [vmem:[%s1136] sm:$0xf]
      %v1138 = vld [vmem:[%s1136 + $0x4] sm:$0xf]
      %v1139 = vld [vmem:[%s1136 + $0x8] sm:$0xf]
      %v1140 = vld [vmem:[%s1136 + $0xc] sm:$0xf]
      %v1141 = vld [vmem:[%s1136 + $0x10] sm:$0xf]
      %v1142 = vld [vmem:[%s1136 + $0x14] sm:$0xf]
      %v1143 = vld [vmem:[%s1136 + $0x18] sm:$0xf]
      %v1144 = vld [vmem:[%s1136 + $0x1c] sm:$0xf]
      %v1145 = vld [vmem:[%s1136 + $0x20] sm:$0xf]
      %v1146 = vld [vmem:[%s1136 + $0x24] sm:$0xf]
      %v1147 = vld [vmem:[%s1136 + $0x28] sm:$0xf]
      %v1148 = vld [vmem:[%s1136 + $0x2c] sm:$0xf]
      %v1149 = vld [vmem:[%s1136 + $0x30] sm:$0xf]
      %v1150 = vld [vmem:[%s1136 + $0x34] sm:$0xf]
      %v1151 = vld [vmem:[%s1136 + $0x38] sm:$0xf]
      %v1152 = vld [vmem:[%s1136 + $0x3c] sm:$0xf]
      %v1153 = vld [vmem:[%s1136 + $0x40] sm:$0xf]
      %v1154 = vld [vmem:[%s1136 + $0x44] sm:$0xf]
      %v1155 = vld [vmem:[%s1136 + $0x48] sm:$0xf]
      %v1156 = vld [vmem:[%s1136 + $0x4c] sm:$0xf]
      %v1157 = vld [vmem:[%s1136 + $0x50] sm:$0xf]
      %v1158 = vld [vmem:[%s1136 + $0x54] sm:$0xf]
      %v1159 = vld [vmem:[%s1136 + $0x58] sm:$0xf]
      %v1160 = vld [vmem:[%s1136 + $0x5c] sm:$0xf]
      %v1161 = vld [vmem:[%s1136 + $0x60] sm:$0xf]
      %v1162 = vld [vmem:[%s1136 + $0x64] sm:$0xf]
      %v1163 = vld [vmem:[%s1136 + $0x68] sm:$0xf]
      %v1164 = vld [vmem:[%s1136 + $0x6c] sm:$0xf]
      %v1165 = vld [vmem:[%s1136 + $0x70] sm:$0xf]
      %v1166 = vld [vmem:[%s1136 + $0x74] sm:$0xf]
      %v1167 = vld [vmem:[%s1136 + $0x78] sm:$0xf]
      %v1168 = vld [vmem:[%s1136 + $0x7c] sm:$0xf]
      %v1201 = vunpack.c.l.b16 %v1137
      %v1202 = vunpack.c.l.b16 %v1138
      %v1203 = vunpack.c.l.b16 %v1139
      %v1204 = vunpack.c.l.b16 %v1140
      %v1205 = vunpack.c.l.b16 %v1141
      %v1206 = vunpack.c.l.b16 %v1142
      %v1207 = vunpack.c.l.b16 %v1143
      %v1208 = vunpack.c.l.b16 %v1144
      %v1209 = vunpack.c.l.b16 %v1145
      %v1210 = vunpack.c.l.b16 %v1146
      %v1211 = vunpack.c.l.b16 %v1147
      %v1212 = vunpack.c.l.b16 %v1148
      %v1213 = vunpack.c.l.b16 %v1149
      %v1214 = vunpack.c.l.b16 %v1150
      %v1215 = vunpack.c.l.b16 %v1151
      %v1216 = vunpack.c.l.b16 %v1152
      %v1217 = vunpack.c.l.b16 %v1153
      %v1218 = vunpack.c.l.b16 %v1154
      %v1219 = vunpack.c.l.b16 %v1155
      %v1220 = vunpack.c.l.b16 %v1156
      %v1221 = vunpack.c.l.b16 %v1157
      %v1222 = vunpack.c.l.b16 %v1158
      %v1223 = vunpack.c.l.b16 %v1159
      %v1224 = vunpack.c.l.b16 %v1160
      %v1225 = vunpack.c.l.b16 %v1161
      %v1226 = vunpack.c.l.b16 %v1162
      %v1227 = vunpack.c.l.b16 %v1163
      %v1228 = vunpack.c.l.b16 %v1164
      %v1229 = vunpack.c.l.b16 %v1165
      %v1230 = vunpack.c.l.b16 %v1166
      %v1231 = vunpack.c.l.b16 %v1167
      %v1232 = vunpack.c.l.b16 %v1168
      %v1233 = vpack.c.b16 %v1202, %v1201
      %v1234 = vpack.c.b16 %v1204, %v1203
      %v1235 = vpack.c.b16 %v1206, %v1205
      %v1236 = vpack.c.b16 %v1208, %v1207
      %v1237 = vpack.c.b16 %v1210, %v1209
      %v1238 = vpack.c.b16 %v1212, %v1211
      %v1239 = vpack.c.b16 %v1214, %v1213
      %v1240 = vpack.c.b16 %v1216, %v1215
      %v1241 = vpack.c.b16 %v1218, %v1217
      %v1242 = vpack.c.b16 %v1220, %v1219
      %v1243 = vpack.c.b16 %v1222, %v1221
      %v1244 = vpack.c.b16 %v1224, %v1223
      %v1245 = vpack.c.b16 %v1226, %v1225
      %v1246 = vpack.c.b16 %v1228, %v1227
      %v1247 = vpack.c.b16 %v1230, %v1229
      %v1248 = vpack.c.b16 %v1232, %v1231
      %1265 = vmatprep.subr.bf16.mxu0 0
      %1266 = vmatpush1.bf16.msra.mxu0 %v1233
      %1267 = vmatprep.subr.bf16.mxu0 0
      %1268 = vmatpush1.bf16.msra.mxu0 %v1234
      %1269 = vmatprep.subr.bf16.mxu0 0
      %1270 = vmatpush1.bf16.msra.mxu0 %v1235
      %1271 = vmatprep.subr.bf16.mxu0 0
      %1272 = vmatpush1.bf16.msra.mxu0 %v1236
      %1273 = vmatprep.subr.bf16.mxu0 0
      %1274 = vmatpush1.bf16.msra.mxu0 %v1237
      %1275 = vmatprep.subr.bf16.mxu0 0
      %1276 = vmatpush1.bf16.msra.mxu0 %v1238
      %1277 = vmatprep.subr.bf16.mxu0 0
      %1278 = vmatpush1.bf16.msra.mxu0 %v1239
      %1279 = vmatprep.subr.bf16.mxu0 0
      %1280 = vmatpush1.bf16.msra.mxu0 %v1240
      %1281 = vmatprep.subr.bf16.mxu0 0
      %1282 = vmatpush1.bf16.msra.mxu0 %v1241
      %1283 = vmatprep.subr.bf16.mxu0 0
      %1284 = vmatpush1.bf16.msra.mxu0 %v1242
      %1285 = vmatprep.subr.bf16.mxu0 0
      %1286 = vmatpush1.bf16.msra.mxu0 %v1243
      %1287 = vmatprep.subr.bf16.mxu0 0
      %1288 = vmatpush1.bf16.msra.mxu0 %v1244
      %1289 = vmatprep.subr.bf16.mxu0 0
      %1290 = vmatpush1.bf16.msra.mxu0 %v1245
      %1291 = vmatprep.subr.bf16.mxu0 0
      %1292 = vmatpush1.bf16.msra.mxu0 %v1246
      %1293 = vmatprep.subr.bf16.mxu0 0
      %1294 = vmatpush1.bf16.msra.mxu0 %v1247
      %1295 = vmatprep.subr.bf16.mxu0 0
      %1296 = vmatpush1.bf16.msra.mxu0 %v1248
      %1297 = vmatprep.mubr.bf16.mxu0 %v965
      %1298 = vmatmul.mubr.bf16.gmra.mrb[0].mxu0 %v964
      %v1299 = vpop.f32.mrb[0].mxu0
      %v1300 = vadd.f32 0.0, %v1299
      %v1301 = vpop.f32.mrb[0].mxu0
      %v1302 = vpop.f32.mrb[0].mxu0
      %v1303 = vpop.f32.mrb[0].mxu0
      %1304 = vdwg.mxu0
      %1305 = vst.msk [vmem:[#allocation2 + $0x10] sm:$0xff] %vm1134, %v1300
      %s1306 = scalar_lea.vmem %s5, 256
      %v1307 = vld [vmem:[%s1306] sm:$0xf]
      %v1308 = vld [vmem:[%s1306 + $0x4] sm:$0xf]
      %v1309 = vld [vmem:[%s1306 + $0x8] sm:$0xf]
      %v1310 = vld [vmem:[%s1306 + $0xc] sm:$0xf]
      %v1311 = vld [vmem:[%s1306 + $0x10] sm:$0xf]
      %v1312 = vld [vmem:[%s1306 + $0x14] sm:$0xf]
      %v1313 = vld [vmem:[%s1306 + $0x18] sm:$0xf]
      %v1314 = vld [vmem:[%s1306 + $0x1c] sm:$0xf]
      %v1315 = vld [vmem:[%s1306 + $0x20] sm:$0xf]
      %v1316 = vld [vmem:[%s1306 + $0x24] sm:$0xf]
      %v1317 = vld [vmem:[%s1306 + $0x28] sm:$0xf]
      %v1318 = vld [vmem:[%s1306 + $0x2c] sm:$0xf]
      %v1319 = vld [vmem:[%s1306 + $0x30] sm:$0xf]
      %v1320 = vld [vmem:[%s1306 + $0x34] sm:$0xf]
      %v1321 = vld [vmem:[%s1306 + $0x38] sm:$0xf]
      %v1322 = vld [vmem:[%s1306 + $0x3c] sm:$0xf]
      %v1323 = vld [vmem:[%s1306 + $0x40] sm:$0xf]
      %v1324 = vld [vmem:[%s1306 + $0x44] sm:$0xf]
      %v1325 = vld [vmem:[%s1306 + $0x48] sm:$0xf]
      %v1326 = vld [vmem:[%s1306 + $0x4c] sm:$0xf]
      %v1327 = vld [vmem:[%s1306 + $0x50] sm:$0xf]
      %v1328 = vld [vmem:[%s1306 + $0x54] sm:$0xf]
      %v1329 = vld [vmem:[%s1306 + $0x58] sm:$0xf]
      %v1330 = vld [vmem:[%s1306 + $0x5c] sm:$0xf]
      %v1331 = vld [vmem:[%s1306 + $0x60] sm:$0xf]
      %v1332 = vld [vmem:[%s1306 + $0x64] sm:$0xf]
      %v1333 = vld [vmem:[%s1306 + $0x68] sm:$0xf]
      %v1334 = vld [vmem:[%s1306 + $0x6c] sm:$0xf]
      %v1335 = vld [vmem:[%s1306 + $0x70] sm:$0xf]
      %v1336 = vld [vmem:[%s1306 + $0x74] sm:$0xf]
      %v1337 = vld [vmem:[%s1306 + $0x78] sm:$0xf]
      %v1338 = vld [vmem:[%s1306 + $0x7c] sm:$0xf]
      %v1371 = vunpack.c.l.b16 %v1307
      %v1372 = vunpack.c.l.b16 %v1308
      %v1373 = vunpack.c.l.b16 %v1309
      %v1374 = vunpack.c.l.b16 %v1310
      %v1375 = vunpack.c.l.b16 %v1311
      %v1376 = vunpack.c.l.b16 %v1312
      %v1377 = vunpack.c.l.b16 %v1313
      %v1378 = vunpack.c.l.b16 %v1314
      %v1379 = vunpack.c.l.b16 %v1315
      %v1380 = vunpack.c.l.b16 %v1316
      %v1381 = vunpack.c.l.b16 %v1317
      %v1382 = vunpack.c.l.b16 %v1318
      %v1383 = vunpack.c.l.b16 %v1319
      %v1384 = vunpack.c.l.b16 %v1320
      %v1385 = vunpack.c.l.b16 %v1321
      %v1386 = vunpack.c.l.b16 %v1322
      %v1387 = vunpack.c.l.b16 %v1323
      %v1388 = vunpack.c.l.b16 %v1324
      %v1389 = vunpack.c.l.b16 %v1325
      %v1390 = vunpack.c.l.b16 %v1326
      %v1391 = vunpack.c.l.b16 %v1327
      %v1392 = vunpack.c.l.b16 %v1328
      %v1393 = vunpack.c.l.b16 %v1329
      %v1394 = vunpack.c.l.b16 %v1330
      %v1395 = vunpack.c.l.b16 %v1331
      %v1396 = vunpack.c.l.b16 %v1332
      %v1397 = vunpack.c.l.b16 %v1333
      %v1398 = vunpack.c.l.b16 %v1334
      %v1399 = vunpack.c.l.b16 %v1335
      %v1400 = vunpack.c.l.b16 %v1336
      %v1401 = vunpack.c.l.b16 %v1337
      %v1402 = vunpack.c.l.b16 %v1338
      %v1403 = vpack.c.b16 %v1372, %v1371
      %v1404 = vpack.c.b16 %v1374, %v1373
      %v1405 = vpack.c.b16 %v1376, %v1375
      %v1406 = vpack.c.b16 %v1378, %v1377
      %v1407 = vpack.c.b16 %v1380, %v1379
      %v1408 = vpack.c.b16 %v1382, %v1381
      %v1409 = vpack.c.b16 %v1384, %v1383
      %v1410 = vpack.c.b16 %v1386, %v1385
      %v1411 = vpack.c.b16 %v1388, %v1387
      %v1412 = vpack.c.b16 %v1390, %v1389
      %v1413 = vpack.c.b16 %v1392, %v1391
      %v1414 = vpack.c.b16 %v1394, %v1393
      %v1415 = vpack.c.b16 %v1396, %v1395
      %v1416 = vpack.c.b16 %v1398, %v1397
      %v1417 = vpack.c.b16 %v1400, %v1399
      %v1418 = vpack.c.b16 %v1402, %v1401
      %1435 = vmatprep.subr.bf16.mxu0 0
      %1436 = vmatpush1.bf16.msra.mxu0 %v1403
      %1437 = vmatprep.subr.bf16.mxu0 0
      %1438 = vmatpush1.bf16.msra.mxu0 %v1404
      %1439 = vmatprep.subr.bf16.mxu0 0
      %1440 = vmatpush1.bf16.msra.mxu0 %v1405
      %1441 = vmatprep.subr.bf16.mxu0 0
      %1442 = vmatpush1.bf16.msra.mxu0 %v1406
      %1443 = vmatprep.subr.bf16.mxu0 0
      %1444 = vmatpush1.bf16.msra.mxu0 %v1407
      %1445 = vmatprep.subr.bf16.mxu0 0
      %1446 = vmatpush1.bf16.msra.mxu0 %v1408
      %1447 = vmatprep.subr.bf16.mxu0 0
      %1448 = vmatpush1.bf16.msra.mxu0 %v1409
      %1449 = vmatprep.subr.bf16.mxu0 0
      %1450 = vmatpush1.bf16.msra.mxu0 %v1410
      %1451 = vmatprep.subr.bf16.mxu0 0
      %1452 = vmatpush1.bf16.msra.mxu0 %v1411
      %1453 = vmatprep.subr.bf16.mxu0 0
      %1454 = vmatpush1.bf16.msra.mxu0 %v1412
      %1455 = vmatprep.subr.bf16.mxu0 0
      %1456 = vmatpush1.bf16.msra.mxu0 %v1413
      %1457 = vmatprep.subr.bf16.mxu0 0
      %1458 = vmatpush1.bf16.msra.mxu0 %v1414
      %1459 = vmatprep.subr.bf16.mxu0 0
      %1460 = vmatpush1.bf16.msra.mxu0 %v1415
      %1461 = vmatprep.subr.bf16.mxu0 0
      %1462 = vmatpush1.bf16.msra.mxu0 %v1416
      %1463 = vmatprep.subr.bf16.mxu0 0
      %1464 = vmatpush1.bf16.msra.mxu0 %v1417
      %1465 = vmatprep.subr.bf16.mxu0 0
      %1466 = vmatpush1.bf16.msra.mxu0 %v1418
      %1467 = vmatprep.mubr.bf16.mxu0 %v965
      %1468 = vmatmul.mubr.bf16.gmra.mrb[0].mxu0 %v964
      %v1469 = vpop.f32.mrb[0].mxu0
      %v1470 = vadd.f32 0.0, %v1469
      %v1471 = vpop.f32.mrb[0].mxu0
      %v1472 = vpop.f32.mrb[0].mxu0
      %v1473 = vpop.f32.mrb[0].mxu0
      %1474 = vdwg.mxu0
      %1475 = vst.msk [vmem:[#allocation2 + $0x20] sm:$0xff] %vm1134, %v1470
      %s1476 = scalar_lea.vmem %s5, 384
      %v1477 = vld [vmem:[%s1476] sm:$0xf]
      %v1478 = vld [vmem:[%s1476 + $0x4] sm:$0xf]
      %v1479 = vld [vmem:[%s1476 + $0x8] sm:$0xf]
      %v1480 = vld [vmem:[%s1476 + $0xc] sm:$0xf]
      %v1481 = vld [vmem:[%s1476 + $0x10] sm:$0xf]
      %v1482 = vld [vmem:[%s1476 + $0x14] sm:$0xf]
      %v1483 = vld [vmem:[%s1476 + $0x18] sm:$0xf]
      %v1484 = vld [vmem:[%s1476 + $0x1c] sm:$0xf]
      %v1485 = vld [vmem:[%s1476 + $0x20] sm:$0xf]
      %v1486 = vld [vmem:[%s1476 + $0x24] sm:$0xf]
      %v1487 = vld [vmem:[%s1476 + $0x28] sm:$0xf]
      %v1488 = vld [vmem:[%s1476 + $0x2c] sm:$0xf]
      %v1489 = vld [vmem:[%s1476 + $0x30] sm:$0xf]
      %v1490 = vld [vmem:[%s1476 + $0x34] sm:$0xf]
      %v1491 = vld [vmem:[%s1476 + $0x38] sm:$0xf]
      %v1492 = vld [vmem:[%s1476 + $0x3c] sm:$0xf]
      %v1493 = vld [vmem:[%s1476 + $0x40] sm:$0xf]
      %v1494 = vld [vmem:[%s1476 + $0x44] sm:$0xf]
      %v1495 = vld [vmem:[%s1476 + $0x48] sm:$0xf]
      %v1496 = vld [vmem:[%s1476 + $0x4c] sm:$0xf]
      %v1497 = vld [vmem:[%s1476 + $0x50] sm:$0xf]
      %v1498 = vld [vmem:[%s1476 + $0x54] sm:$0xf]
      %v1499 = vld [vmem:[%s1476 + $0x58] sm:$0xf]
      %v1500 = vld [vmem:[%s1476 + $0x5c] sm:$0xf]
      %v1501 = vld [vmem:[%s1476 + $0x60] sm:$0xf]
      %v1502 = vld [vmem:[%s1476 + $0x64] sm:$0xf]
      %v1503 = vld [vmem:[%s1476 + $0x68] sm:$0xf]
      %v1504 = vld [vmem:[%s1476 + $0x6c] sm:$0xf]
      %v1505 = vld [vmem:[%s1476 + $0x70] sm:$0xf]
      %v1506 = vld [vmem:[%s1476 + $0x74] sm:$0xf]
      %v1507 = vld [vmem:[%s1476 + $0x78] sm:$0xf]
      %v1508 = vld [vmem:[%s1476 + $0x7c] sm:$0xf]
      %v1541 = vunpack.c.l.b16 %v1477
      %v1542 = vunpack.c.l.b16 %v1478
      %v1543 = vunpack.c.l.b16 %v1479
      %v1544 = vunpack.c.l.b16 %v1480
      %v1545 = vunpack.c.l.b16 %v1481
      %v1546 = vunpack.c.l.b16 %v1482
      %v1547 = vunpack.c.l.b16 %v1483
      %v1548 = vunpack.c.l.b16 %v1484
      %v1549 = vunpack.c.l.b16 %v1485
      %v1550 = vunpack.c.l.b16 %v1486
      %v1551 = vunpack.c.l.b16 %v1487
      %v1552 = vunpack.c.l.b16 %v1488
      %v1553 = vunpack.c.l.b16 %v1489
      %v1554 = vunpack.c.l.b16 %v1490
      %v1555 = vunpack.c.l.b16 %v1491
      %v1556 = vunpack.c.l.b16 %v1492
      %v1557 = vunpack.c.l.b16 %v1493
      %v1558 = vunpack.c.l.b16 %v1494
      %v1559 = vunpack.c.l.b16 %v1495
      %v1560 = vunpack.c.l.b16 %v1496
      %v1561 = vunpack.c.l.b16 %v1497
      %v1562 = vunpack.c.l.b16 %v1498
      %v1563 = vunpack.c.l.b16 %v1499
      %v1564 = vunpack.c.l.b16 %v1500
      %v1565 = vunpack.c.l.b16 %v1501
      %v1566 = vunpack.c.l.b16 %v1502
      %v1567 = vunpack.c.l.b16 %v1503
      %v1568 = vunpack.c.l.b16 %v1504
      %v1569 = vunpack.c.l.b16 %v1505
      %v1570 = vunpack.c.l.b16 %v1506
      %v1571 = vunpack.c.l.b16 %v1507
      %v1572 = vunpack.c.l.b16 %v1508
      %v1573 = vpack.c.b16 %v1542, %v1541
      %v1574 = vpack.c.b16 %v1544, %v1543
      %v1575 = vpack.c.b16 %v1546, %v1545
      %v1576 = vpack.c.b16 %v1548, %v1547
      %v1577 = vpack.c.b16 %v1550, %v1549
      %v1578 = vpack.c.b16 %v1552, %v1551
      %v1579 = vpack.c.b16 %v1554, %v1553
      %v1580 = vpack.c.b16 %v1556, %v1555
      %v1581 = vpack.c.b16 %v1558, %v1557
      %v1582 = vpack.c.b16 %v1560, %v1559
      %v1583 = vpack.c.b16 %v1562, %v1561
      %v1584 = vpack.c.b16 %v1564, %v1563
      %v1585 = vpack.c.b16 %v1566, %v1565
      %v1586 = vpack.c.b16 %v1568, %v1567
      %v1587 = vpack.c.b16 %v1570, %v1569
      %v1588 = vpack.c.b16 %v1572, %v1571
      %1605 = vmatprep.subr.bf16.mxu0 0
      %1606 = vmatpush1.bf16.msra.mxu0 %v1573
      %1607 = vmatprep.subr.bf16.mxu0 0
      %1608 = vmatpush1.bf16.msra.mxu0 %v1574
      %1609 = vmatprep.subr.bf16.mxu0 0
      %1610 = vmatpush1.bf16.msra.mxu0 %v1575
      %1611 = vmatprep.subr.bf16.mxu0 0
      %1612 = vmatpush1.bf16.msra.mxu0 %v1576
      %1613 = vmatprep.subr.bf16.mxu0 0
      %1614 = vmatpush1.bf16.msra.mxu0 %v1577
      %1615 = vmatprep.subr.bf16.mxu0 0
      %1616 = vmatpush1.bf16.msra.mxu0 %v1578
      %1617 = vmatprep.subr.bf16.mxu0 0
      %1618 = vmatpush1.bf16.msra.mxu0 %v1579
      %1619 = vmatprep.subr.bf16.mxu0 0
      %1620 = vmatpush1.bf16.msra.mxu0 %v1580
      %1621 = vmatprep.subr.bf16.mxu0 0
      %1622 = vmatpush1.bf16.msra.mxu0 %v1581
      %1623 = vmatprep.subr.bf16.mxu0 0
      %1624 = vmatpush1.bf16.msra.mxu0 %v1582
      %1625 = vmatprep.subr.bf16.mxu0 0
      %1626 = vmatpush1.bf16.msra.mxu0 %v1583
      %1627 = vmatprep.subr.bf16.mxu0 0
      %1628 = vmatpush1.bf16.msra.mxu0 %v1584
      %1629 = vmatprep.subr.bf16.mxu0 0
      %1630 = vmatpush1.bf16.msra.mxu0 %v1585
      %1631 = vmatprep.subr.bf16.mxu0 0
      %1632 = vmatpush1.bf16.msra.mxu0 %v1586
      %1633 = vmatprep.subr.bf16.mxu0 0
      %1634 = vmatpush1.bf16.msra.mxu0 %v1587
      %1635 = vmatprep.subr.bf16.mxu0 0
      %1636 = vmatpush1.bf16.msra.mxu0 %v1588
      %1637 = vmatprep.mubr.bf16.mxu0 %v965
      %1638 = vmatmul.mubr.bf16.gmra.mrb[0].mxu0 %v964
      %v1639 = vpop.f32.mrb[0].mxu0
      %v1640 = vadd.f32 0.0, %v1639
      %v1641 = vpop.f32.mrb[0].mxu0
      %v1642 = vpop.f32.mrb[0].mxu0
      %v1643 = vpop.f32.mrb[0].mxu0
      %1644 = vdwg.mxu0
      %1645 = vst.msk [vmem:[#allocation2 + $0x30] sm:$0xff] %vm1134, %v1640
      %s1646 = scalar_lea.vmem %s5, 512
      %v1647 = vld [vmem:[%s1646] sm:$0xf]
      %v1648 = vld [vmem:[%s1646 + $0x4] sm:$0xf]
      %v1649 = vld [vmem:[%s1646 + $0x8] sm:$0xf]
      %v1650 = vld [vmem:[%s1646 + $0xc] sm:$0xf]
      %v1651 = vld [vmem:[%s1646 + $0x10] sm:$0xf]
      %v1652 = vld [vmem:[%s1646 + $0x14] sm:$0xf]
      %v1653 = vld [vmem:[%s1646 + $0x18] sm:$0xf]
      %v1654 = vld [vmem:[%s1646 + $0x1c] sm:$0xf]
      %v1655 = vld [vmem:[%s1646 + $0x20] sm:$0xf]
      %v1656 = vld [vmem:[%s1646 + $0x24] sm:$0xf]
      %v1657 = vld [vmem:[%s1646 + $0x28] sm:$0xf]
      %v1658 = vld [vmem:[%s1646 + $0x2c] sm:$0xf]
      %v1659 = vld [vmem:[%s1646 + $0x30] sm:$0xf]
      %v1660 = vld [vmem:[%s1646 + $0x34] sm:$0xf]
      %v1661 = vld [vmem:[%s1646 + $0x38] sm:$0xf]
      %v1662 = vld [vmem:[%s1646 + $0x3c] sm:$0xf]
      %v1663 = vld [vmem:[%s1646 + $0x40] sm:$0xf]
      %v1664 = vld [vmem:[%s1646 + $0x44] sm:$0xf]
      %v1665 = vld [vmem:[%s1646 + $0x48] sm:$0xf]
      %v1666 = vld [vmem:[%s1646 + $0x4c] sm:$0xf]
      %v1667 = vld [vmem:[%s1646 + $0x50] sm:$0xf]
      %v1668 = vld [vmem:[%s1646 + $0x54] sm:$0xf]
      %v1669 = vld [vmem:[%s1646 + $0x58] sm:$0xf]
      %v1670 = vld [vmem:[%s1646 + $0x5c] sm:$0xf]
      %v1671 = vld [vmem:[%s1646 + $0x60] sm:$0xf]
      %v1672 = vld [vmem:[%s1646 + $0x64] sm:$0xf]
      %v1673 = vld [vmem:[%s1646 + $0x68] sm:$0xf]
      %v1674 = vld [vmem:[%s1646 + $0x6c] sm:$0xf]
      %v1675 = vld [vmem:[%s1646 + $0x70] sm:$0xf]
      %v1676 = vld [vmem:[%s1646 + $0x74] sm:$0xf]
      %v1677 = vld [vmem:[%s1646 + $0x78] sm:$0xf]
      %v1678 = vld [vmem:[%s1646 + $0x7c] sm:$0xf]
      %v1711 = vunpack.c.l.b16 %v1647
      %v1712 = vunpack.c.l.b16 %v1648
      %v1713 = vunpack.c.l.b16 %v1649
      %v1714 = vunpack.c.l.b16 %v1650
      %v1715 = vunpack.c.l.b16 %v1651
      %v1716 = vunpack.c.l.b16 %v1652
      %v1717 = vunpack.c.l.b16 %v1653
      %v1718 = vunpack.c.l.b16 %v1654
      %v1719 = vunpack.c.l.b16 %v1655
      %v1720 = vunpack.c.l.b16 %v1656
      %v1721 = vunpack.c.l.b16 %v1657
      %v1722 = vunpack.c.l.b16 %v1658
      %v1723 = vunpack.c.l.b16 %v1659
      %v1724 = vunpack.c.l.b16 %v1660
      %v1725 = vunpack.c.l.b16 %v1661
      %v1726 = vunpack.c.l.b16 %v1662
      %v1727 = vunpack.c.l.b16 %v1663
      %v1728 = vunpack.c.l.b16 %v1664
      %v1729 = vunpack.c.l.b16 %v1665
      %v1730 = vunpack.c.l.b16 %v1666
      %v1731 = vunpack.c.l.b16 %v1667
      %v1732 = vunpack.c.l.b16 %v1668
      %v1733 = vunpack.c.l.b16 %v1669
      %v1734 = vunpack.c.l.b16 %v1670
      %v1735 = vunpack.c.l.b16 %v1671
      %v1736 = vunpack.c.l.b16 %v1672
      %v1737 = vunpack.c.l.b16 %v1673
      %v1738 = vunpack.c.l.b16 %v1674
      %v1739 = vunpack.c.l.b16 %v1675
      %v1740 = vunpack.c.l.b16 %v1676
      %v1741 = vunpack.c.l.b16 %v1677
      %v1742 = vunpack.c.l.b16 %v1678
      %v1743 = vpack.c.b16 %v1712, %v1711
      %v1744 = vpack.c.b16 %v1714, %v1713
      %v1745 = vpack.c.b16 %v1716, %v1715
      %v1746 = vpack.c.b16 %v1718, %v1717
      %v1747 = vpack.c.b16 %v1720, %v1719
      %v1748 = vpack.c.b16 %v1722, %v1721
      %v1749 = vpack.c.b16 %v1724, %v1723
      %v1750 = vpack.c.b16 %v1726, %v1725
      %v1751 = vpack.c.b16 %v1728, %v1727
      %v1752 = vpack.c.b16 %v1730, %v1729
      %v1753 = vpack.c.b16 %v1732, %v1731
      %v1754 = vpack.c.b16 %v1734, %v1733
      %v1755 = vpack.c.b16 %v1736, %v1735
      %v1756 = vpack.c.b16 %v1738, %v1737
      %v1757 = vpack.c.b16 %v1740, %v1739
      %v1758 = vpack.c.b16 %v1742, %v1741
      %1775 = vmatprep.subr.bf16.mxu0 0
      %1776 = vmatpush1.bf16.msra.mxu0 %v1743
      %1777 = vmatprep.subr.bf16.mxu0 0
      %1778 = vmatpush1.bf16.msra.mxu0 %v1744
      %1779 = vmatprep.subr.bf16.mxu0 0
      %1780 = vmatpush1.bf16.msra.mxu0 %v1745
      %1781 = vmatprep.subr.bf16.mxu0 0
      %1782 = vmatpush1.bf16.msra.mxu0 %v1746
      %1783 = vmatprep.subr.bf16.mxu0 0
      %1784 = vmatpush1.bf16.msra.mxu0 %v1747
      %1785 = vmatprep.subr.bf16.mxu0 0
      %1786 = vmatpush1.bf16.msra.mxu0 %v1748
      %1787 = vmatprep.subr.bf16.mxu0 0
      %1788 = vmatpush1.bf16.msra.mxu0 %v1749
      %1789 = vmatprep.subr.bf16.mxu0 0
      %1790 = vmatpush1.bf16.msra.mxu0 %v1750
      %1791 = vmatprep.subr.bf16.mxu0 0
      %1792 = vmatpush1.bf16.msra.mxu0 %v1751
      %1793 = vmatprep.subr.bf16.mxu0 0
      %1794 = vmatpush1.bf16.msra.mxu0 %v1752
      %1795 = vmatprep.subr.bf16.mxu0 0
      %1796 = vmatpush1.bf16.msra.mxu0 %v1753
      %1797 = vmatprep.subr.bf16.mxu0 0
      %1798 = vmatpush1.bf16.msra.mxu0 %v1754
      %1799 = vmatprep.subr.bf16.mxu0 0
      %1800 = vmatpush1.bf16.msra.mxu0 %v1755
      %1801 = vmatprep.subr.bf16.mxu0 0
      %1802 = vmatpush1.bf16.msra.mxu0 %v1756
      %1803 = vmatprep.subr.bf16.mxu0 0
      %1804 = vmatpush1.bf16.msra.mxu0 %v1757
      %1805 = vmatprep.subr.bf16.mxu0 0
      %1806 = vmatpush1.bf16.msra.mxu0 %v1758
      %1807 = vmatprep.mubr.bf16.mxu0 %v965
      %1808 = vmatmul.mubr.bf16.gmra.mrb[0].mxu0 %v964
      %v1809 = vpop.f32.mrb[0].mxu0
      %v1810 = vadd.f32 0.0, %v1809
      %v1811 = vpop.f32.mrb[0].mxu0
      %v1812 = vpop.f32.mrb[0].mxu0
      %v1813 = vpop.f32.mrb[0].mxu0
      %1814 = vdwg.mxu0
      %1815 = vst.msk [vmem:[#allocation2 + $0x40] sm:$0xff] %vm1134, %v1810
      %s1816 = scalar_lea.vmem %s5, 640
      %v1817 = vld [vmem:[%s1816] sm:$0xf]
      %v1818 = vld [vmem:[%s1816 + $0x4] sm:$0xf]
      %v1819 = vld [vmem:[%s1816 + $0x8] sm:$0xf]
      %v1820 = vld [vmem:[%s1816 + $0xc] sm:$0xf]
      %v1821 = vld [vmem:[%s1816 + $0x10] sm:$0xf]
      %v1822 = vld [vmem:[%s1816 + $0x14] sm:$0xf]
      %v1823 = vld [vmem:[%s1816 + $0x18] sm:$0xf]
      %v1824 = vld [vmem:[%s1816 + $0x1c] sm:$0xf]
      %v1825 = vld [vmem:[%s1816 + $0x20] sm:$0xf]
      %v1826 = vld [vmem:[%s1816 + $0x24] sm:$0xf]
      %v1827 = vld [vmem:[%s1816 + $0x28] sm:$0xf]
      %v1828 = vld [vmem:[%s1816 + $0x2c] sm:$0xf]
      %v1829 = vld [vmem:[%s1816 + $0x30] sm:$0xf]
      %v1830 = vld [vmem:[%s1816 + $0x34] sm:$0xf]
      %v1831 = vld [vmem:[%s1816 + $0x38] sm:$0xf]
      %v1832 = vld [vmem:[%s1816 + $0x3c] sm:$0xf]
      %v1833 = vld [vmem:[%s1816 + $0x40] sm:$0xf]
      %v1834 = vld [vmem:[%s1816 + $0x44] sm:$0xf]
      %v1835 = vld [vmem:[%s1816 + $0x48] sm:$0xf]
      %v1836 = vld [vmem:[%s1816 + $0x4c] sm:$0xf]
      %v1837 = vld [vmem:[%s1816 + $0x50] sm:$0xf]
      %v1838 = vld [vmem:[%s1816 + $0x54] sm:$0xf]
      %v1839 = vld [vmem:[%s1816 + $0x58] sm:$0xf]
      %v1840 = vld [vmem:[%s1816 + $0x5c] sm:$0xf]
      %v1841 = vld [vmem:[%s1816 + $0x60] sm:$0xf]
      %v1842 = vld [vmem:[%s1816 + $0x64] sm:$0xf]
      %v1843 = vld [vmem:[%s1816 + $0x68] sm:$0xf]
      %v1844 = vld [vmem:[%s1816 + $0x6c] sm:$0xf]
      %v1845 = vld [vmem:[%s1816 + $0x70] sm:$0xf]
      %v1846 = vld [vmem:[%s1816 + $0x74] sm:$0xf]
      %v1847 = vld [vmem:[%s1816 + $0x78] sm:$0xf]
      %v1848 = vld [vmem:[%s1816 + $0x7c] sm:$0xf]
      %v1881 = vunpack.c.l.b16 %v1817
      %v1882 = vunpack.c.l.b16 %v1818
      %v1883 = vunpack.c.l.b16 %v1819
      %v1884 = vunpack.c.l.b16 %v1820
      %v1885 = vunpack.c.l.b16 %v1821
      %v1886 = vunpack.c.l.b16 %v1822
      %v1887 = vunpack.c.l.b16 %v1823
      %v1888 = vunpack.c.l.b16 %v1824
      %v1889 = vunpack.c.l.b16 %v1825
      %v1890 = vunpack.c.l.b16 %v1826
      %v1891 = vunpack.c.l.b16 %v1827
      %v1892 = vunpack.c.l.b16 %v1828
      %v1893 = vunpack.c.l.b16 %v1829
      %v1894 = vunpack.c.l.b16 %v1830
      %v1895 = vunpack.c.l.b16 %v1831
      %v1896 = vunpack.c.l.b16 %v1832
      %v1897 = vunpack.c.l.b16 %v1833
      %v1898 = vunpack.c.l.b16 %v1834
      %v1899 = vunpack.c.l.b16 %v1835
      %v1900 = vunpack.c.l.b16 %v1836
      %v1901 = vunpack.c.l.b16 %v1837
      %v1902 = vunpack.c.l.b16 %v1838
      %v1903 = vunpack.c.l.b16 %v1839
      %v1904 = vunpack.c.l.b16 %v1840
      %v1905 = vunpack.c.l.b16 %v1841
      %v1906 = vunpack.c.l.b16 %v1842
      %v1907 = vunpack.c.l.b16 %v1843
      %v1908 = vunpack.c.l.b16 %v1844
      %v1909 = vunpack.c.l.b16 %v1845
      %v1910 = vunpack.c.l.b16 %v1846
      %v1911 = vunpack.c.l.b16 %v1847
      %v1912 = vunpack.c.l.b16 %v1848
      %v1913 = vpack.c.b16 %v1882, %v1881
      %v1914 = vpack.c.b16 %v1884, %v1883
      %v1915 = vpack.c.b16 %v1886, %v1885
      %v1916 = vpack.c.b16 %v1888, %v1887
      %v1917 = vpack.c.b16 %v1890, %v1889
      %v1918 = vpack.c.b16 %v1892, %v1891
      %v1919 = vpack.c.b16 %v1894, %v1893
      %v1920 = vpack.c.b16 %v1896, %v1895
      %v1921 = vpack.c.b16 %v1898, %v1897
      %v1922 = vpack.c.b16 %v1900, %v1899
      %v1923 = vpack.c.b16 %v1902, %v1901
      %v1924 = vpack.c.b16 %v1904, %v1903
      %v1925 = vpack.c.b16 %v1906, %v1905
      %v1926 = vpack.c.b16 %v1908, %v1907
      %v1927 = vpack.c.b16 %v1910, %v1909
      %v1928 = vpack.c.b16 %v1912, %v1911
      %1945 = vmatprep.subr.bf16.mxu0 0
      %1946 = vmatpush1.bf16.msra.mxu0 %v1913
      %1947 = vmatprep.subr.bf16.mxu0 0
      %1948 = vmatpush1.bf16.msra.mxu0 %v1914
      %1949 = vmatprep.subr.bf16.mxu0 0
      %1950 = vmatpush1.bf16.msra.mxu0 %v1915
      %1951 = vmatprep.subr.bf16.mxu0 0
      %1952 = vmatpush1.bf16.msra.mxu0 %v1916
      %1953 = vmatprep.subr.bf16.mxu0 0
      %1954 = vmatpush1.bf16.msra.mxu0 %v1917
      %1955 = vmatprep.subr.bf16.mxu0 0
      %1956 = vmatpush1.bf16.msra.mxu0 %v1918
      %1957 = vmatprep.subr.bf16.mxu0 0
      %1958 = vmatpush1.bf16.msra.mxu0 %v1919
      %1959 = vmatprep.subr.bf16.mxu0 0
      %1960 = vmatpush1.bf16.msra.mxu0 %v1920
      %1961 = vmatprep.subr.bf16.mxu0 0
      %1962 = vmatpush1.bf16.msra.mxu0 %v1921
      %1963 = vmatprep.subr.bf16.mxu0 0
      %1964 = vmatpush1.bf16.msra.mxu0 %v1922
      %1965 = vmatprep.subr.bf16.mxu0 0
      %1966 = vmatpush1.bf16.msra.mxu0 %v1923
      %1967 = vmatprep.subr.bf16.mxu0 0
      %1968 = vmatpush1.bf16.msra.mxu0 %v1924
      %1969 = vmatprep.subr.bf16.mxu0 0
      %1970 = vmatpush1.bf16.msra.mxu0 %v1925
      %1971 = vmatprep.subr.bf16.mxu0 0
      %1972 = vmatpush1.bf16.msra.mxu0 %v1926
      %1973 = vmatprep.subr.bf16.mxu0 0
      %1974 = vmatpush1.bf16.msra.mxu0 %v1927
      %1975 = vmatprep.subr.bf16.mxu0 0
      %1976 = vmatpush1.bf16.msra.mxu0 %v1928
      %1977 = vmatprep.mubr.bf16.mxu0 %v965
      %1978 = vmatmul.mubr.bf16.gmra.mrb[0].mxu0 %v964
      %v1979 = vpop.f32.mrb[0].mxu0
      %v1980 = vadd.f32 0.0, %v1979
      %v1981 = vpop.f32.mrb[0].mxu0
      %v1982 = vpop.f32.mrb[0].mxu0
      %v1983 = vpop.f32.mrb[0].mxu0
      %1984 = vdwg.mxu0
      %1985 = vst.msk [vmem:[#allocation2 + $0x50] sm:$0xff] %vm1134, %v1980
      %s1986 = scalar_lea.vmem %s5, 768
      %v1987 = vld [vmem:[%s1986] sm:$0xf]
      %v1988 = vld [vmem:[%s1986 + $0x4] sm:$0xf]
      %v1989 = vld [vmem:[%s1986 + $0x8] sm:$0xf]
      %v1990 = vld [vmem:[%s1986 + $0xc] sm:$0xf]
      %v1991 = vld [vmem:[%s1986 + $0x10] sm:$0xf]
      %v1992 = vld [vmem:[%s1986 + $0x14] sm:$0xf]
      %v1993 = vld [vmem:[%s1986 + $0x18] sm:$0xf]
      %v1994 = vld [vmem:[%s1986 + $0x1c] sm:$0xf]
      %v1995 = vld [vmem:[%s1986 + $0x20] sm:$0xf]
      %v1996 = vld [vmem:[%s1986 + $0x24] sm:$0xf]
      %v1997 = vld [vmem:[%s1986 + $0x28] sm:$0xf]
      %v1998 = vld [vmem:[%s1986 + $0x2c] sm:$0xf]
      %v1999 = vld [vmem:[%s1986 + $0x30] sm:$0xf]
      %v2000 = vld [vmem:[%s1986 + $0x34] sm:$0xf]
      %v2001 = vld [vmem:[%s1986 + $0x38] sm:$0xf]
      %v2002 = vld [vmem:[%s1986 + $0x3c] sm:$0xf]
      %v2003 = vld [vmem:[%s1986 + $0x40] sm:$0xf]
      %v2004 = vld [vmem:[%s1986 + $0x44] sm:$0xf]
      %v2005 = vld [vmem:[%s1986 + $0x48] sm:$0xf]
      %v2006 = vld [vmem:[%s1986 + $0x4c] sm:$0xf]
      %v2007 = vld [vmem:[%s1986 + $0x50] sm:$0xf]
      %v2008 = vld [vmem:[%s1986 + $0x54] sm:$0xf]
      %v2009 = vld [vmem:[%s1986 + $0x58] sm:$0xf]
      %v2010 = vld [vmem:[%s1986 + $0x5c] sm:$0xf]
      %v2011 = vld [vmem:[%s1986 + $0x60] sm:$0xf]
      %v2012 = vld [vmem:[%s1986 + $0x64] sm:$0xf]
      %v2013 = vld [vmem:[%s1986 + $0x68] sm:$0xf]
      %v2014 = vld [vmem:[%s1986 + $0x6c] sm:$0xf]
      %v2015 = vld [vmem:[%s1986 + $0x70] sm:$0xf]
      %v2016 = vld [vmem:[%s1986 + $0x74] sm:$0xf]
      %v2017 = vld [vmem:[%s1986 + $0x78] sm:$0xf]
      %v2018 = vld [vmem:[%s1986 + $0x7c] sm:$0xf]
      %v2051 = vunpack.c.l.b16 %v1987
      %v2052 = vunpack.c.l.b16 %v1988
      %v2053 = vunpack.c.l.b16 %v1989
      %v2054 = vunpack.c.l.b16 %v1990
      %v2055 = vunpack.c.l.b16 %v1991
      %v2056 = vunpack.c.l.b16 %v1992
      %v2057 = vunpack.c.l.b16 %v1993
      %v2058 = vunpack.c.l.b16 %v1994
      %v2059 = vunpack.c.l.b16 %v1995
      %v2060 = vunpack.c.l.b16 %v1996
      %v2061 = vunpack.c.l.b16 %v1997
      %v2062 = vunpack.c.l.b16 %v1998
      %v2063 = vunpack.c.l.b16 %v1999
      %v2064 = vunpack.c.l.b16 %v2000
      %v2065 = vunpack.c.l.b16 %v2001
      %v2066 = vunpack.c.l.b16 %v2002
      %v2067 = vunpack.c.l.b16 %v2003
      %v2068 = vunpack.c.l.b16 %v2004
      %v2069 = vunpack.c.l.b16 %v2005
      %v2070 = vunpack.c.l.b16 %v2006
      %v2071 = vunpack.c.l.b16 %v2007
      %v2072 = vunpack.c.l.b16 %v2008
      %v2073 = vunpack.c.l.b16 %v2009
      %v2074 = vunpack.c.l.b16 %v2010
      %v2075 = vunpack.c.l.b16 %v2011
      %v2076 = vunpack.c.l.b16 %v2012
      %v2077 = vunpack.c.l.b16 %v2013
      %v2078 = vunpack.c.l.b16 %v2014
      %v2079 = vunpack.c.l.b16 %v2015
      %v2080 = vunpack.c.l.b16 %v2016
      %v2081 = vunpack.c.l.b16 %v2017
      %v2082 = vunpack.c.l.b16 %v2018
      %v2083 = vpack.c.b16 %v2052, %v2051
      %v2084 = vpack.c.b16 %v2054, %v2053
      %v2085 = vpack.c.b16 %v2056, %v2055
      %v2086 = vpack.c.b16 %v2058, %v2057
      %v2087 = vpack.c.b16 %v2060, %v2059
      %v2088 = vpack.c.b16 %v2062, %v2061
      %v2089 = vpack.c.b16 %v2064, %v2063
      %v2090 = vpack.c.b16 %v2066, %v2065
      %v2091 = vpack.c.b16 %v2068, %v2067
      %v2092 = vpack.c.b16 %v2070, %v2069
      %v2093 = vpack.c.b16 %v2072, %v2071
      %v2094 = vpack.c.b16 %v2074, %v2073
      %v2095 = vpack.c.b16 %v2076, %v2075
      %v2096 = vpack.c.b16 %v2078, %v2077
      %v2097 = vpack.c.b16 %v2080, %v2079
      %v2098 = vpack.c.b16 %v2082, %v2081
      %2115 = vmatprep.subr.bf16.mxu0 0
      %2116 = vmatpush1.bf16.msra.mxu0 %v2083
      %2117 = vmatprep.subr.bf16.mxu0 0
      %2118 = vmatpush1.bf16.msra.mxu0 %v2084
      %2119 = vmatprep.subr.bf16.mxu0 0
      %2120 = vmatpush1.bf16.msra.mxu0 %v2085
      %2121 = vmatprep.subr.bf16.mxu0 0
      %2122 = vmatpush1.bf16.msra.mxu0 %v2086
      %2123 = vmatprep.subr.bf16.mxu0 0
      %2124 = vmatpush1.bf16.msra.mxu0 %v2087
      %2125 = vmatprep.subr.bf16.mxu0 0
      %2126 = vmatpush1.bf16.msra.mxu0 %v2088
      %2127 = vmatprep.subr.bf16.mxu0 0
      %2128 = vmatpush1.bf16.msra.mxu0 %v2089
      %2129 = vmatprep.subr.bf16.mxu0 0
      %2130 = vmatpush1.bf16.msra.mxu0 %v2090
      %2131 = vmatprep.subr.bf16.mxu0 0
      %2132 = vmatpush1.bf16.msra.mxu0 %v2091
      %2133 = vmatprep.subr.bf16.mxu0 0
      %2134 = vmatpush1.bf16.msra.mxu0 %v2092
      %2135 = vmatprep.subr.bf16.mxu0 0
      %2136 = vmatpush1.bf16.msra.mxu0 %v2093
      %2137 = vmatprep.subr.bf16.mxu0 0
      %2138 = vmatpush1.bf16.msra.mxu0 %v2094
      %2139 = vmatprep.subr.bf16.mxu0 0
      %2140 = vmatpush1.bf16.msra.mxu0 %v2095
      %2141 = vmatprep.subr.bf16.mxu0 0
      %2142 = vmatpush1.bf16.msra.mxu0 %v2096
      %2143 = vmatprep.subr.bf16.mxu0 0
      %2144 = vmatpush1.bf16.msra.mxu0 %v2097
      %2145 = vmatprep.subr.bf16.mxu0 0
      %2146 = vmatpush1.bf16.msra.mxu0 %v2098
      %2147 = vmatprep.mubr.bf16.mxu0 %v965
      %2148 = vmatmul.mubr.bf16.gmra.mrb[0].mxu0 %v964
      %v2149 = vpop.f32.mrb[0].mxu0
      %v2150 = vadd.f32 0.0, %v2149
      %v2151 = vpop.f32.mrb[0].mxu0
      %v2152 = vpop.f32.mrb[0].mxu0
      %v2153 = vpop.f32.mrb[0].mxu0
      %2154 = vdwg.mxu0
      %2155 = vst.msk [vmem:[#allocation2 + $0x60] sm:$0xff] %vm1134, %v2150
      %s2156 = scalar_lea.vmem %s5, 896
      %v2157 = vld [vmem:[%s2156] sm:$0xf]
      %v2158 = vld [vmem:[%s2156 + $0x4] sm:$0xf]
      %v2159 = vld [vmem:[%s2156 + $0x8] sm:$0xf]
      %v2160 = vld [vmem:[%s2156 + $0xc] sm:$0xf]
      %v2161 = vld [vmem:[%s2156 + $0x10] sm:$0xf]
      %v2162 = vld [vmem:[%s2156 + $0x14] sm:$0xf]
      %v2163 = vld [vmem:[%s2156 + $0x18] sm:$0xf]
      %v2164 = vld [vmem:[%s2156 + $0x1c] sm:$0xf]
      %v2165 = vld [vmem:[%s2156 + $0x20] sm:$0xf]
      %v2166 = vld [vmem:[%s2156 + $0x24] sm:$0xf]
      %v2167 = vld [vmem:[%s2156 + $0x28] sm:$0xf]
      %v2168 = vld [vmem:[%s2156 + $0x2c] sm:$0xf]
      %v2169 = vld [vmem:[%s2156 + $0x30] sm:$0xf]
      %v2170 = vld [vmem:[%s2156 + $0x34] sm:$0xf]
      %v2171 = vld [vmem:[%s2156 + $0x38] sm:$0xf]
      %v2172 = vld [vmem:[%s2156 + $0x3c] sm:$0xf]
      %v2173 = vld [vmem:[%s2156 + $0x40] sm:$0xf]
      %v2174 = vld [vmem:[%s2156 + $0x44] sm:$0xf]
      %v2175 = vld [vmem:[%s2156 + $0x48] sm:$0xf]
      %v2176 = vld [vmem:[%s2156 + $0x4c] sm:$0xf]
      %v2177 = vld [vmem:[%s2156 + $0x50] sm:$0xf]
      %v2178 = vld [vmem:[%s2156 + $0x54] sm:$0xf]
      %v2179 = vld [vmem:[%s2156 + $0x58] sm:$0xf]
      %v2180 = vld [vmem:[%s2156 + $0x5c] sm:$0xf]
      %v2181 = vld [vmem:[%s2156 + $0x60] sm:$0xf]
      %v2182 = vld [vmem:[%s2156 + $0x64] sm:$0xf]
      %v2183 = vld [vmem:[%s2156 + $0x68] sm:$0xf]
      %v2184 = vld [vmem:[%s2156 + $0x6c] sm:$0xf]
      %v2185 = vld [vmem:[%s2156 + $0x70] sm:$0xf]
      %v2186 = vld [vmem:[%s2156 + $0x74] sm:$0xf]
      %v2187 = vld [vmem:[%s2156 + $0x78] sm:$0xf]
      %v2188 = vld [vmem:[%s2156 + $0x7c] sm:$0xf]
      %v2221 = vunpack.c.l.b16 %v2157
      %v2222 = vunpack.c.l.b16 %v2158
      %v2223 = vunpack.c.l.b16 %v2159
      %v2224 = vunpack.c.l.b16 %v2160
      %v2225 = vunpack.c.l.b16 %v2161
      %v2226 = vunpack.c.l.b16 %v2162
      %v2227 = vunpack.c.l.b16 %v2163
      %v2228 = vunpack.c.l.b16 %v2164
      %v2229 = vunpack.c.l.b16 %v2165
      %v2230 = vunpack.c.l.b16 %v2166
      %v2231 = vunpack.c.l.b16 %v2167
      %v2232 = vunpack.c.l.b16 %v2168
      %v2233 = vunpack.c.l.b16 %v2169
      %v2234 = vunpack.c.l.b16 %v2170
      %v2235 = vunpack.c.l.b16 %v2171
      %v2236 = vunpack.c.l.b16 %v2172
      %v2237 = vunpack.c.l.b16 %v2173
      %v2238 = vunpack.c.l.b16 %v2174
      %v2239 = vunpack.c.l.b16 %v2175
      %v2240 = vunpack.c.l.b16 %v2176
      %v2241 = vunpack.c.l.b16 %v2177
      %v2242 = vunpack.c.l.b16 %v2178
      %v2243 = vunpack.c.l.b16 %v2179
      %v2244 = vunpack.c.l.b16 %v2180
      %v2245 = vunpack.c.l.b16 %v2181
      %v2246 = vunpack.c.l.b16 %v2182
      %v2247 = vunpack.c.l.b16 %v2183
      %v2248 = vunpack.c.l.b16 %v2184
      %v2249 = vunpack.c.l.b16 %v2185
      %v2250 = vunpack.c.l.b16 %v2186
      %v2251 = vunpack.c.l.b16 %v2187
      %v2252 = vunpack.c.l.b16 %v2188
      %v2253 = vpack.c.b16 %v2222, %v2221
      %v2254 = vpack.c.b16 %v2224, %v2223
      %v2255 = vpack.c.b16 %v2226, %v2225
      %v2256 = vpack.c.b16 %v2228, %v2227
      %v2257 = vpack.c.b16 %v2230, %v2229
      %v2258 = vpack.c.b16 %v2232, %v2231
      %v2259 = vpack.c.b16 %v2234, %v2233
      %v2260 = vpack.c.b16 %v2236, %v2235
      %v2261 = vpack.c.b16 %v2238, %v2237
      %v2262 = vpack.c.b16 %v2240, %v2239
      %v2263 = vpack.c.b16 %v2242, %v2241
      %v2264 = vpack.c.b16 %v2244, %v2243
      %v2265 = vpack.c.b16 %v2246, %v2245
      %v2266 = vpack.c.b16 %v2248, %v2247
      %v2267 = vpack.c.b16 %v2250, %v2249
      %v2268 = vpack.c.b16 %v2252, %v2251
      %2285 = vmatprep.subr.bf16.mxu0 0
      %2286 = vmatpush1.bf16.msra.mxu0 %v2253
      %2287 = vmatprep.subr.bf16.mxu0 0
      %2288 = vmatpush1.bf16.msra.mxu0 %v2254
      %2289 = vmatprep.subr.bf16.mxu0 0
      %2290 = vmatpush1.bf16.msra.mxu0 %v2255
      %2291 = vmatprep.subr.bf16.mxu0 0
      %2292 = vmatpush1.bf16.msra.mxu0 %v2256
      %2293 = vmatprep.subr.bf16.mxu0 0
      %2294 = vmatpush1.bf16.msra.mxu0 %v2257
      %2295 = vmatprep.subr.bf16.mxu0 0
      %2296 = vmatpush1.bf16.msra.mxu0 %v2258
      %2297 = vmatprep.subr.bf16.mxu0 0
      %2298 = vmatpush1.bf16.msra.mxu0 %v2259
      %2299 = vmatprep.subr.bf16.mxu0 0
      %2300 = vmatpush1.bf16.msra.mxu0 %v2260
      %2301 = vmatprep.subr.bf16.mxu0 0
      %2302 = vmatpush1.bf16.msra.mxu0 %v2261
      %2303 = vmatprep.subr.bf16.mxu0 0
      %2304 = vmatpush1.bf16.msra.mxu0 %v2262
      %2305 = vmatprep.subr.bf16.mxu0 0
      %2306 = vmatpush1.bf16.msra.mxu0 %v2263
      %2307 = vmatprep.subr.bf16.mxu0 0
      %2308 = vmatpush1.bf16.msra.mxu0 %v2264
      %2309 = vmatprep.subr.bf16.mxu0 0
      %2310 = vmatpush1.bf16.msra.mxu0 %v2265
      %2311 = vmatprep.subr.bf16.mxu0 0
      %2312 = vmatpush1.bf16.msra.mxu0 %v2266
      %2313 = vmatprep.subr.bf16.mxu0 0
      %2314 = vmatpush1.bf16.msra.mxu0 %v2267
      %2315 = vmatprep.subr.bf16.mxu0 0
      %2316 = vmatpush1.bf16.msra.mxu0 %v2268
      %2317 = vmatprep.mubr.bf16.mxu0 %v965
      %2318 = vmatmul.mubr.bf16.gmra.mrb[0].mxu0 %v964
      %v2319 = vpop.f32.mrb[0].mxu0
      %v2320 = vadd.f32 0.0, %v2319
      %v2321 = vpop.f32.mrb[0].mxu0
      %v2322 = vpop.f32.mrb[0].mxu0
      %v2323 = vpop.f32.mrb[0].mxu0
      %2324 = vdwg.mxu0
      %2325 = vst.msk [vmem:[#allocation2 + $0x70] sm:$0xff] %vm1134, %v2320
      %s2326 = scalar_lea.vmem %s5, 1024
      %v2327 = vld [vmem:[%s2326] sm:$0xf]
      %v2328 = vld [vmem:[%s2326 + $0x4] sm:$0xf]
      %v2329 = vld [vmem:[%s2326 + $0x8] sm:$0xf]
      %v2330 = vld [vmem:[%s2326 + $0xc] sm:$0xf]
      %v2331 = vld [vmem:[%s2326 + $0x10] sm:$0xf]
      %v2332 = vld [vmem:[%s2326 + $0x14] sm:$0xf]
      %v2333 = vld [vmem:[%s2326 + $0x18] sm:$0xf]
      %v2334 = vld [vmem:[%s2326 + $0x1c] sm:$0xf]
      %v2335 = vld [vmem:[%s2326 + $0x20] sm:$0xf]
      %v2336 = vld [vmem:[%s2326 + $0x24] sm:$0xf]
      %v2337 = vld [vmem:[%s2326 + $0x28] sm:$0xf]
      %v2338 = vld [vmem:[%s2326 + $0x2c] sm:$0xf]
      %v2339 = vld [vmem:[%s2326 + $0x30] sm:$0xf]
      %v2340 = vld [vmem:[%s2326 + $0x34] sm:$0xf]
      %v2341 = vld [vmem:[%s2326 + $0x38] sm:$0xf]
      %v2342 = vld [vmem:[%s2326 + $0x3c] sm:$0xf]
      %v2343 = vld [vmem:[%s2326 + $0x40] sm:$0xf]
      %v2344 = vld [vmem:[%s2326 + $0x44] sm:$0xf]
      %v2345 = vld [vmem:[%s2326 + $0x48] sm:$0xf]
      %v2346 = vld [vmem:[%s2326 + $0x4c] sm:$0xf]
      %v2347 = vld [vmem:[%s2326 + $0x50] sm:$0xf]
      %v2348 = vld [vmem:[%s2326 + $0x54] sm:$0xf]
      %v2349 = vld [vmem:[%s2326 + $0x58] sm:$0xf]
      %v2350 = vld [vmem:[%s2326 + $0x5c] sm:$0xf]
      %v2351 = vld [vmem:[%s2326 + $0x60] sm:$0xf]
      %v2352 = vld [vmem:[%s2326 + $0x64] sm:$0xf]
      %v2353 = vld [vmem:[%s2326 + $0x68] sm:$0xf]
      %v2354 = vld [vmem:[%s2326 + $0x6c] sm:$0xf]
      %v2355 = vld [vmem:[%s2326 + $0x70] sm:$0xf]
      %v2356 = vld [vmem:[%s2326 + $0x74] sm:$0xf]
      %v2357 = vld [vmem:[%s2326 + $0x78] sm:$0xf]
      %v2358 = vld [vmem:[%s2326 + $0x7c] sm:$0xf]
      %v2391 = vunpack.c.l.b16 %v2327
      %v2392 = vunpack.c.l.b16 %v2328
      %v2393 = vunpack.c.l.b16 %v2329
      %v2394 = vunpack.c.l.b16 %v2330
      %v2395 = vunpack.c.l.b16 %v2331
      %v2396 = vunpack.c.l.b16 %v2332
      %v2397 = vunpack.c.l.b16 %v2333
      %v2398 = vunpack.c.l.b16 %v2334
      %v2399 = vunpack.c.l.b16 %v2335
      %v2400 = vunpack.c.l.b16 %v2336
      %v2401 = vunpack.c.l.b16 %v2337
      %v2402 = vunpack.c.l.b16 %v2338
      %v2403 = vunpack.c.l.b16 %v2339
      %v2404 = vunpack.c.l.b16 %v2340
      %v2405 = vunpack.c.l.b16 %v2341
      %v2406 = vunpack.c.l.b16 %v2342
      %v2407 = vunpack.c.l.b16 %v2343
      %v2408 = vunpack.c.l.b16 %v2344
      %v2409 = vunpack.c.l.b16 %v2345
      %v2410 = vunpack.c.l.b16 %v2346
      %v2411 = vunpack.c.l.b16 %v2347
      %v2412 = vunpack.c.l.b16 %v2348
      %v2413 = vunpack.c.l.b16 %v2349
      %v2414 = vunpack.c.l.b16 %v2350
      %v2415 = vunpack.c.l.b16 %v2351
      %v2416 = vunpack.c.l.b16 %v2352
      %v2417 = vunpack.c.l.b16 %v2353
      %v2418 = vunpack.c.l.b16 %v2354
      %v2419 = vunpack.c.l.b16 %v2355
      %v2420 = vunpack.c.l.b16 %v2356
      %v2421 = vunpack.c.l.b16 %v2357
      %v2422 = vunpack.c.l.b16 %v2358
      %v2423 = vpack.c.b16 %v2392, %v2391
      %v2424 = vpack.c.b16 %v2394, %v2393
      %v2425 = vpack.c.b16 %v2396, %v2395
      %v2426 = vpack.c.b16 %v2398, %v2397
      %v2427 = vpack.c.b16 %v2400, %v2399
      %v2428 = vpack.c.b16 %v2402, %v2401
      %v2429 = vpack.c.b16 %v2404, %v2403
      %v2430 = vpack.c.b16 %v2406, %v2405
      %v2431 = vpack.c.b16 %v2408, %v2407
      %v2432 = vpack.c.b16 %v2410, %v2409
      %v2433 = vpack.c.b16 %v2412, %v2411
      %v2434 = vpack.c.b16 %v2414, %v2413
      %v2435 = vpack.c.b16 %v2416, %v2415
      %v2436 = vpack.c.b16 %v2418, %v2417
      %v2437 = vpack.c.b16 %v2420, %v2419
      %v2438 = vpack.c.b16 %v2422, %v2421
      %2455 = vmatprep.subr.bf16.mxu0 0
      %2456 = vmatpush1.bf16.msra.mxu0 %v2423
      %2457 = vmatprep.subr.bf16.mxu0 0
      %2458 = vmatpush1.bf16.msra.mxu0 %v2424
      %2459 = vmatprep.subr.bf16.mxu0 0
      %2460 = vmatpush1.bf16.msra.mxu0 %v2425
      %2461 = vmatprep.subr.bf16.mxu0 0
      %2462 = vmatpush1.bf16.msra.mxu0 %v2426
      %2463 = vmatprep.subr.bf16.mxu0 0
      %2464 = vmatpush1.bf16.msra.mxu0 %v2427
      %2465 = vmatprep.subr.bf16.mxu0 0
      %2466 = vmatpush1.bf16.msra.mxu0 %v2428
      %2467 = vmatprep.subr.bf16.mxu0 0
      %2468 = vmatpush1.bf16.msra.mxu0 %v2429
      %2469 = vmatprep.subr.bf16.mxu0 0
      %2470 = vmatpush1.bf16.msra.mxu0 %v2430
      %2471 = vmatprep.subr.bf16.mxu0 0
      %2472 = vmatpush1.bf16.msra.mxu0 %v2431
      %2473 = vmatprep.subr.bf16.mxu0 0
      %2474 = vmatpush1.bf16.msra.mxu0 %v2432
      %2475 = vmatprep.subr.bf16.mxu0 0
      %2476 = vmatpush1.bf16.msra.mxu0 %v2433
      %2477 = vmatprep.subr.bf16.mxu0 0
      %2478 = vmatpush1.bf16.msra.mxu0 %v2434
      %2479 = vmatprep.subr.bf16.mxu0 0
      %2480 = vmatpush1.bf16.msra.mxu0 %v2435
      %2481 = vmatprep.subr.bf16.mxu0 0
      %2482 = vmatpush1.bf16.msra.mxu0 %v2436
      %2483 = vmatprep.subr.bf16.mxu0 0
      %2484 = vmatpush1.bf16.msra.mxu0 %v2437
      %2485 = vmatprep.subr.bf16.mxu0 0
      %2486 = vmatpush1.bf16.msra.mxu0 %v2438
      %2487 = vmatprep.mubr.bf16.mxu0 %v965
      %2488 = vmatmul.mubr.bf16.gmra.mrb[0].mxu0 %v964
      %v2489 = vpop.f32.mrb[0].mxu0
      %v2490 = vadd.f32 0.0, %v2489
      %v2491 = vpop.f32.mrb[0].mxu0
      %v2492 = vpop.f32.mrb[0].mxu0
      %v2493 = vpop.f32.mrb[0].mxu0
      %2494 = vdwg.mxu0
      %2495 = vst.msk [vmem:[#allocation2 + $0x80] sm:$0xff] %vm1134, %v2490
      %v2496 = vld [vmem:[#allocation2] sm:$0xff]
      %v2497 = vld [vmem:[#allocation2 + $0x10] sm:$0xff]
      %v2498 = vld [vmem:[#allocation2 + $0x20] sm:$0xff]
      %v2499 = vld [vmem:[#allocation2 + $0x30] sm:$0xff]
      %v2500 = vld [vmem:[#allocation2 + $0x40] sm:$0xff]
      %v2501 = vld [vmem:[#allocation2 + $0x50] sm:$0xff]
      %v2502 = vld [vmem:[#allocation2 + $0x60] sm:$0xff]
      %v2503 = vld [vmem:[#allocation2 + $0x70] sm:$0xff]
      %v2504 = vld [vmem:[#allocation2 + $0x80] sm:$0xff]
      %v2505 = vpack.c.bf16 %v2497, %v2496
      %v2506 = vpack.c.bf16 %v2499, %v2498
      %v2507 = vpack.c.bf16 %v2501, %v2500
      %v2508 = vpack.c.bf16 %v2503, %v2502
      %v2509 = vpack.c.bf16 %v2504, %v2504
      %v2510 = vld [vmem:[%s7] sm:$0xf]
      %v2511 = vld [vmem:[%s7 + $0x4] sm:$0xf]
      %v2512 = vld [vmem:[%s9] sm:$0xff]
      %v2513 = vld [vmem:[%s9 + $0x8] sm:$0xff]
      %2515 = vset.pattern.permute.xlu0 0
      %2516 = vperm.xlu0 %2515, %v2512
      %v2517 = vpop.permute.xlu0 %2516
      %2520 = vset.pattern.permute.xlu0 0
      %2521 = vperm.xlu0 %2520, %v2513
      %v2522 = vpop.permute.xlu0 %2521
      %v2526 = vunpack.c.l.b16 %v2510
      %v2527 = vunpack.c.l.b16 %v2511
      %v2528 = vpack.c.b16 %v2527, %v2526
      %vm2529 = vcmask 588800
      %v2531 = vsel %vm2529, %v2528, 0
      %vm2533 = vcmask 1043456
      %v2535 = vsel %vm2533, %v2509, 0
      %2537 = vmatprep.subr.bf16.mxu0 0
      %2538 = vmatpush1.bf16.msra.mxu0 %v2505
      %2539 = vmatprep.subr.bf16.mxu0 0
      %2540 = vmatpush1.bf16.msra.mxu0 %v2506
      %2541 = vmatprep.subr.bf16.mxu0 0
      %2542 = vmatpush1.bf16.msra.mxu0 %v2507
      %2543 = vmatprep.subr.bf16.mxu0 0
      %2544 = vmatpush1.bf16.msra.mxu0 %v2508
      %2545 = vmatprep.subr.bf16.mxu0 0
      %2546 = vmatpush1.bf16.msra.mxu0 %v2535
      %2547 = vmatprep.subr.bf16.mxu0 0
      %2548 = vmatpush1.bf16.msra.mxu0 0
      %2549 = vmatprep.subr.bf16.mxu0 0
      %2550 = vmatpush1.bf16.msra.mxu0 0
      %2551 = vmatprep.subr.bf16.mxu0 0
      %2552 = vmatpush1.bf16.msra.mxu0 0
      %2553 = vmatprep.subr.bf16.mxu0 0
      %2554 = vmatpush1.bf16.msra.mxu0 0
      %2555 = vmatprep.subr.bf16.mxu0 0
      %2556 = vmatpush1.bf16.msra.mxu0 0
      %2557 = vmatprep.subr.bf16.mxu0 0
      %2558 = vmatpush1.bf16.msra.mxu0 0
      %2559 = vmatprep.subr.bf16.mxu0 0
      %2560 = vmatpush1.bf16.msra.mxu0 0
      %2561 = vmatprep.subr.bf16.mxu0 0
      %2562 = vmatpush1.bf16.msra.mxu0 0
      %2563 = vmatprep.subr.bf16.mxu0 0
      %2564 = vmatpush1.bf16.msra.mxu0 0
      %2565 = vmatprep.subr.bf16.mxu0 0
      %2566 = vmatpush1.bf16.msra.mxu0 0
      %2567 = vmatprep.subr.bf16.mxu0 0
      %2568 = vmatpush1.bf16.msra.mxu0 0
      %2569 = vmatprep.mubr.bf16.mxu0 0
      %2570 = vmatmul.mubr.bf16.gmra.mrb[0].mxu0 %v2531
      %v2571 = vpop.f32.mrb[0].mxu0
      %v2572 = vadd.f32 %v2517, %v2571
      %v2573 = vpop.f32.mrb[0].mxu0
      %v2574 = vpop.f32.mrb[0].mxu0
      %v2575 = vadd.f32 %v2522, %v2574
      %v2576 = vpop.f32.mrb[0].mxu0
      %2577 = vdwg.mxu0
      %v2578 = vmax.f32 %v2572, 0.0
      %v2579 = vmax.f32 %v2575, 0.0
      %v2580 = vpack.c.bf16 %v2579, %v2578
      %v2581 = vld [vmem:[%s11] sm:$0xf]
      %v2582 = vld [vmem:[%s11 + $0x4] sm:$0xf]
      %v2583 = vld [vmem:[%s11 + $0x8] sm:$0xf]
      %v2584 = vld [vmem:[%s11 + $0xc] sm:$0xf]
      %v2585 = vld [vmem:[%s11 + $0x10] sm:$0xf]
      %v2586 = vld [vmem:[%s11 + $0x14] sm:$0xf]
      %v2587 = vld [vmem:[%s11 + $0x18] sm:$0xf]
      %v2588 = vld [vmem:[%s11 + $0x1c] sm:$0xf]
      %v2597 = vunpack.c.l.b16 %v2581
      %v2598 = vunpack.c.l.b16 %v2582
      %v2599 = vunpack.c.l.b16 %v2583
      %v2600 = vunpack.c.l.b16 %v2584
      %v2601 = vunpack.c.l.b16 %v2585
      %v2602 = vunpack.c.l.b16 %v2586
      %v2603 = vunpack.c.l.b16 %v2587
      %v2604 = vunpack.c.l.b16 %v2588
      %v2605 = vpack.c.b16 %v2598, %v2597
      %v2606 = vpack.c.b16 %v2600, %v2599
      %v2607 = vpack.c.b16 %v2602, %v2601
      %v2608 = vpack.c.b16 %v2604, %v2603
      %v2614 = vsel %vm1134, %v2580, 0
      %2616 = vmatprep.subr.bf16.mxu0 0
      %2617 = vmatpush1.bf16.msra.mxu0 %v2605
      %2618 = vmatprep.subr.bf16.mxu0 0
      %2619 = vmatpush1.bf16.msra.mxu0 %v2606
      %2620 = vmatprep.subr.bf16.mxu0 0
      %2621 = vmatpush1.bf16.msra.mxu0 %v2607
      %2622 = vmatprep.subr.bf16.mxu0 0
      %2623 = vmatpush1.bf16.msra.mxu0 %v2608
      %2624 = vmatprep.subr.bf16.mxu0 0
      %2625 = vmatpush1.bf16.msra.mxu0 0
      %2626 = vmatprep.subr.bf16.mxu0 0
      %2627 = vmatpush1.bf16.msra.mxu0 0
      %2628 = vmatprep.subr.bf16.mxu0 0
      %2629 = vmatpush1.bf16.msra.mxu0 0
      %2630 = vmatprep.subr.bf16.mxu0 0
      %2631 = vmatpush1.bf16.msra.mxu0 0
      %2632 = vmatprep.subr.bf16.mxu0 0
      %2633 = vmatpush1.bf16.msra.mxu0 0
      %2634 = vmatprep.subr.bf16.mxu0 0
      %2635 = vmatpush1.bf16.msra.mxu0 0
      %2636 = vmatprep.subr.bf16.mxu0 0
      %2637 = vmatpush1.bf16.msra.mxu0 0
      %2638 = vmatprep.subr.bf16.mxu0 0
      %2639 = vmatpush1.bf16.msra.mxu0 0
      %2640 = vmatprep.subr.bf16.mxu0 0
      %2641 = vmatpush1.bf16.msra.mxu0 0
      %2642 = vmatprep.subr.bf16.mxu0 0
      %2643 = vmatpush1.bf16.msra.mxu0 0
      %2644 = vmatprep.subr.bf16.mxu0 0
      %2645 = vmatpush1.bf16.msra.mxu0 0
      %2646 = vmatprep.subr.bf16.mxu0 0
      %2647 = vmatpush1.bf16.msra.mxu0 0
      %2648 = vmatprep.mubr.bf16.mxu0 0
      %2649 = vmatmul.mubr.bf16.gmra.mrb[0].mxu0 %v2614
      %v2650 = vpop.f32.mrb[0].mxu0
      %v2651 = vadd.f32 0.0, %v2650
      %v2652 = vpop.f32.mrb[0].mxu0
      %v2653 = vpop.f32.mrb[0].mxu0
      %v2654 = vadd.f32 0.0, %v2653
      %v2655 = vpop.f32.mrb[0].mxu0
      %2656 = vdwg.mxu0
      %vm2657 = vcmask 130048
      %2658 = vst.msk [vmem:[#allocation2] sm:$0xff] %vm2657, %v2651
      %2659 = vst.msk [vmem:[#allocation2 + $0x10] sm:$0xff] %vm2657, %v2654
      %s2660 = scalar_lea.vmem %s11, 32
      %v2661 = vld [vmem:[%s2660] sm:$0xf]
      %v2662 = vld [vmem:[%s2660 + $0x4] sm:$0xf]
      %v2663 = vld [vmem:[%s2660 + $0x8] sm:$0xf]
      %v2664 = vld [vmem:[%s2660 + $0xc] sm:$0xf]
      %v2665 = vld [vmem:[%s2660 + $0x10] sm:$0xf]
      %v2666 = vld [vmem:[%s2660 + $0x14] sm:$0xf]
      %v2667 = vld [vmem:[%s2660 + $0x18] sm:$0xf]
      %v2668 = vld [vmem:[%s2660 + $0x1c] sm:$0xf]
      %v2677 = vunpack.c.l.b16 %v2661
      %v2678 = vunpack.c.l.b16 %v2662
      %v2679 = vunpack.c.l.b16 %v2663
      %v2680 = vunpack.c.l.b16 %v2664
      %v2681 = vunpack.c.l.b16 %v2665
      %v2682 = vunpack.c.l.b16 %v2666
      %v2683 = vunpack.c.l.b16 %v2667
      %v2684 = vunpack.c.l.b16 %v2668
      %v2685 = vpack.c.b16 %v2678, %v2677
      %v2686 = vpack.c.b16 %v2680, %v2679
      %v2687 = vpack.c.b16 %v2682, %v2681
      %v2688 = vpack.c.b16 %v2684, %v2683
      %2693 = vmatprep.subr.bf16.mxu0 0
      %2694 = vmatpush1.bf16.msra.mxu0 %v2685
      %2695 = vmatprep.subr.bf16.mxu0 0
      %2696 = vmatpush1.bf16.msra.mxu0 %v2686
      %2697 = vmatprep.subr.bf16.mxu0 0
      %2698 = vmatpush1.bf16.msra.mxu0 %v2687
      %2699 = vmatprep.subr.bf16.mxu0 0
      %2700 = vmatpush1.bf16.msra.mxu0 %v2688
      %2701 = vmatprep.subr.bf16.mxu0 0
      %2702 = vmatpush1.bf16.msra.mxu0 0
      %2703 = vmatprep.subr.bf16.mxu0 0
      %2704 = vmatpush1.bf16.msra.mxu0 0
      %2705 = vmatprep.subr.bf16.mxu0 0
      %2706 = vmatpush1.bf16.msra.mxu0 0
      %2707 = vmatprep.subr.bf16.mxu0 0
      %2708 = vmatpush1.bf16.msra.mxu0 0
      %2709 = vmatprep.subr.bf16.mxu0 0
      %2710 = vmatpush1.bf16.msra.mxu0 0
      %2711 = vmatprep.subr.bf16.mxu0 0
      %2712 = vmatpush1.bf16.msra.mxu0 0
      %2713 = vmatprep.subr.bf16.mxu0 0
      %2714 = vmatpush1.bf16.msra.mxu0 0
      %2715 = vmatprep.subr.bf16.mxu0 0
      %2716 = vmatpush1.bf16.msra.mxu0 0
      %2717 = vmatprep.subr.bf16.mxu0 0
      %2718 = vmatpush1.bf16.msra.mxu0 0
      %2719 = vmatprep.subr.bf16.mxu0 0
      %2720 = vmatpush1.bf16.msra.mxu0 0
      %2721 = vmatprep.subr.bf16.mxu0 0
      %2722 = vmatpush1.bf16.msra.mxu0 0
      %2723 = vmatprep.subr.bf16.mxu0 0
      %2724 = vmatpush1.bf16.msra.mxu0 0
      %2725 = vmatprep.mubr.bf16.mxu0 0
      %2726 = vmatmul.mubr.bf16.gmra.mrb[0].mxu0 %v2614
      %v2727 = vpop.f32.mrb[0].mxu0
      %v2728 = vadd.f32 0.0, %v2727
      %v2729 = vpop.f32.mrb[0].mxu0
      %v2730 = vpop.f32.mrb[0].mxu0
      %v2731 = vadd.f32 0.0, %v2730
      %v2732 = vpop.f32.mrb[0].mxu0
      %2733 = vdwg.mxu0
      %2734 = vst.msk [vmem:[#allocation2 + $0x20] sm:$0xff] %vm2657, %v2728
      %2735 = vst.msk [vmem:[#allocation2 + $0x30] sm:$0xff] %vm2657, %v2731
      %s2736 = scalar_lea.vmem %s11, 64
      %v2737 = vld [vmem:[%s2736] sm:$0xf]
      %v2738 = vld [vmem:[%s2736 + $0x4] sm:$0xf]
      %v2739 = vld [vmem:[%s2736 + $0x8] sm:$0xf]
      %v2740 = vld [vmem:[%s2736 + $0xc] sm:$0xf]
      %v2741 = vld [vmem:[%s2736 + $0x10] sm:$0xf]
      %v2742 = vld [vmem:[%s2736 + $0x14] sm:$0xf]
      %v2743 = vld [vmem:[%s2736 + $0x18] sm:$0xf]
      %v2744 = vld [vmem:[%s2736 + $0x1c] sm:$0xf]
      %v2753 = vunpack.c.l.b16 %v2737
      %v2754 = vunpack.c.l.b16 %v2738
      %v2755 = vunpack.c.l.b16 %v2739
      %v2756 = vunpack.c.l.b16 %v2740
      %v2757 = vunpack.c.l.b16 %v2741
      %v2758 = vunpack.c.l.b16 %v2742
      %v2759 = vunpack.c.l.b16 %v2743
      %v2760 = vunpack.c.l.b16 %v2744
      %v2761 = vpack.c.b16 %v2754, %v2753
      %v2762 = vpack.c.b16 %v2756, %v2755
      %v2763 = vpack.c.b16 %v2758, %v2757
      %v2764 = vpack.c.b16 %v2760, %v2759
      %2769 = vmatprep.subr.bf16.mxu0 0
      %2770 = vmatpush1.bf16.msra.mxu0 %v2761
      %2771 = vmatprep.subr.bf16.mxu0 0
      %2772 = vmatpush1.bf16.msra.mxu0 %v2762
      %2773 = vmatprep.subr.bf16.mxu0 0
      %2774 = vmatpush1.bf16.msra.mxu0 %v2763
      %2775 = vmatprep.subr.bf16.mxu0 0
      %2776 = vmatpush1.bf16.msra.mxu0 %v2764
      %2777 = vmatprep.subr.bf16.mxu0 0
      %2778 = vmatpush1.bf16.msra.mxu0 0
      %2779 = vmatprep.subr.bf16.mxu0 0
      %2780 = vmatpush1.bf16.msra.mxu0 0
      %2781 = vmatprep.subr.bf16.mxu0 0
      %2782 = vmatpush1.bf16.msra.mxu0 0
      %2783 = vmatprep.subr.bf16.mxu0 0
      %2784 = vmatpush1.bf16.msra.mxu0 0
      %2785 = vmatprep.subr.bf16.mxu0 0
      %2786 = vmatpush1.bf16.msra.mxu0 0
      %2787 = vmatprep.subr.bf16.mxu0 0
      %2788 = vmatpush1.bf16.msra.mxu0 0
      %2789 = vmatprep.subr.bf16.mxu0 0
      %2790 = vmatpush1.bf16.msra.mxu0 0
      %2791 = vmatprep.subr.bf16.mxu0 0
      %2792 = vmatpush1.bf16.msra.mxu0 0
      %2793 = vmatprep.subr.bf16.mxu0 0
      %2794 = vmatpush1.bf16.msra.mxu0 0
      %2795 = vmatprep.subr.bf16.mxu0 0
      %2796 = vmatpush1.bf16.msra.mxu0 0
      %2797 = vmatprep.subr.bf16.mxu0 0
      %2798 = vmatpush1.bf16.msra.mxu0 0
      %2799 = vmatprep.subr.bf16.mxu0 0
      %2800 = vmatpush1.bf16.msra.mxu0 0
      %2801 = vmatprep.mubr.bf16.mxu0 0
      %2802 = vmatmul.mubr.bf16.gmra.mrb[0].mxu0 %v2614
      %v2803 = vpop.f32.mrb[0].mxu0
      %v2804 = vadd.f32 0.0, %v2803
      %v2805 = vpop.f32.mrb[0].mxu0
      %v2806 = vpop.f32.mrb[0].mxu0
      %v2807 = vadd.f32 0.0, %v2806
      %v2808 = vpop.f32.mrb[0].mxu0
      %2809 = vdwg.mxu0
      %2810 = vst.msk [vmem:[#allocation2 + $0x40] sm:$0xff] %vm2657, %v2804
      %2811 = vst.msk [vmem:[#allocation2 + $0x50] sm:$0xff] %vm2657, %v2807
      %s2812 = scalar_lea.vmem %s11, 96
      %v2813 = vld [vmem:[%s2812] sm:$0xf]
      %v2814 = vld [vmem:[%s2812 + $0x4] sm:$0xf]
      %v2815 = vld [vmem:[%s2812 + $0x8] sm:$0xf]
      %v2816 = vld [vmem:[%s2812 + $0xc] sm:$0xf]
      %v2817 = vld [vmem:[%s2812 + $0x10] sm:$0xf]
      %v2818 = vld [vmem:[%s2812 + $0x14] sm:$0xf]
      %v2819 = vld [vmem:[%s2812 + $0x18] sm:$0xf]
      %v2820 = vld [vmem:[%s2812 + $0x1c] sm:$0xf]
      %v2829 = vunpack.c.l.b16 %v2813
      %v2830 = vunpack.c.l.b16 %v2814
      %v2831 = vunpack.c.l.b16 %v2815
      %v2832 = vunpack.c.l.b16 %v2816
      %v2833 = vunpack.c.l.b16 %v2817
      %v2834 = vunpack.c.l.b16 %v2818
      %v2835 = vunpack.c.l.b16 %v2819
      %v2836 = vunpack.c.l.b16 %v2820
      %v2837 = vpack.c.b16 %v2830, %v2829
      %v2838 = vpack.c.b16 %v2832, %v2831
      %v2839 = vpack.c.b16 %v2834, %v2833
      %v2840 = vpack.c.b16 %v2836, %v2835
      %2845 = vmatprep.subr.bf16.mxu0 0
      %2846 = vmatpush1.bf16.msra.mxu0 %v2837
      %2847 = vmatprep.subr.bf16.mxu0 0
      %2848 = vmatpush1.bf16.msra.mxu0 %v2838
      %2849 = vmatprep.subr.bf16.mxu0 0
      %2850 = vmatpush1.bf16.msra.mxu0 %v2839
      %2851 = vmatprep.subr.bf16.mxu0 0
      %2852 = vmatpush1.bf16.msra.mxu0 %v2840
      %2853 = vmatprep.subr.bf16.mxu0 0
      %2854 = vmatpush1.bf16.msra.mxu0 0
      %2855 = vmatprep.subr.bf16.mxu0 0
      %2856 = vmatpush1.bf16.msra.mxu0 0
      %2857 = vmatprep.subr.bf16.mxu0 0
      %2858 = vmatpush1.bf16.msra.mxu0 0
      %2859 = vmatprep.subr.bf16.mxu0 0
      %2860 = vmatpush1.bf16.msra.mxu0 0
      %2861 = vmatprep.subr.bf16.mxu0 0
      %2862 = vmatpush1.bf16.msra.mxu0 0
      %2863 = vmatprep.subr.bf16.mxu0 0
      %2864 = vmatpush1.bf16.msra.mxu0 0
      %2865 = vmatprep.subr.bf16.mxu0 0
      %2866 = vmatpush1.bf16.msra.mxu0 0
      %2867 = vmatprep.subr.bf16.mxu0 0
      %2868 = vmatpush1.bf16.msra.mxu0 0
      %2869 = vmatprep.subr.bf16.mxu0 0
      %2870 = vmatpush1.bf16.msra.mxu0 0
      %2871 = vmatprep.subr.bf16.mxu0 0
      %2872 = vmatpush1.bf16.msra.mxu0 0
      %2873 = vmatprep.subr.bf16.mxu0 0
      %2874 = vmatpush1.bf16.msra.mxu0 0
      %2875 = vmatprep.subr.bf16.mxu0 0
      %2876 = vmatpush1.bf16.msra.mxu0 0
      %2877 = vmatprep.mubr.bf16.mxu0 0
      %2878 = vmatmul.mubr.bf16.gmra.mrb[0].mxu0 %v2614
      %v2879 = vpop.f32.mrb[0].mxu0
      %v2880 = vadd.f32 0.0, %v2879
      %v2881 = vpop.f32.mrb[0].mxu0
      %v2882 = vpop.f32.mrb[0].mxu0
      %v2883 = vadd.f32 0.0, %v2882
      %v2884 = vpop.f32.mrb[0].mxu0
      %2885 = vdwg.mxu0
      %2886 = vst.msk [vmem:[#allocation2 + $0x60] sm:$0xff] %vm2657, %v2880
      %2887 = vst.msk [vmem:[#allocation2 + $0x70] sm:$0xff] %vm2657, %v2883
      %s2888 = scalar_lea.vmem %s11, 128
      %v2889 = vld [vmem:[%s2888] sm:$0xf]
      %v2890 = vld [vmem:[%s2888 + $0x4] sm:$0xf]
      %v2891 = vld [vmem:[%s2888 + $0x8] sm:$0xf]
      %v2892 = vld [vmem:[%s2888 + $0xc] sm:$0xf]
      %v2893 = vld [vmem:[%s2888 + $0x10] sm:$0xf]
      %v2894 = vld [vmem:[%s2888 + $0x14] sm:$0xf]
      %v2895 = vld [vmem:[%s2888 + $0x18] sm:$0xf]
      %v2896 = vld [vmem:[%s2888 + $0x1c] sm:$0xf]
      %v2905 = vunpack.c.l.b16 %v2889
      %v2906 = vunpack.c.l.b16 %v2890
      %v2907 = vunpack.c.l.b16 %v2891
      %v2908 = vunpack.c.l.b16 %v2892
      %v2909 = vunpack.c.l.b16 %v2893
      %v2910 = vunpack.c.l.b16 %v2894
      %v2911 = vunpack.c.l.b16 %v2895
      %v2912 = vunpack.c.l.b16 %v2896
      %v2913 = vpack.c.b16 %v2906, %v2905
      %v2914 = vpack.c.b16 %v2908, %v2907
      %v2915 = vpack.c.b16 %v2910, %v2909
      %v2916 = vpack.c.b16 %v2912, %v2911
      %2921 = vmatprep.subr.bf16.mxu0 0
      %2922 = vmatpush1.bf16.msra.mxu0 %v2913
      %2923 = vmatprep.subr.bf16.mxu0 0
      %2924 = vmatpush1.bf16.msra.mxu0 %v2914
      %2925 = vmatprep.subr.bf16.mxu0 0
      %2926 = vmatpush1.bf16.msra.mxu0 %v2915
      %2927 = vmatprep.subr.bf16.mxu0 0
      %2928 = vmatpush1.bf16.msra.mxu0 %v2916
      %2929 = vmatprep.subr.bf16.mxu0 0
      %2930 = vmatpush1.bf16.msra.mxu0 0
      %2931 = vmatprep.subr.bf16.mxu0 0
      %2932 = vmatpush1.bf16.msra.mxu0 0
      %2933 = vmatprep.subr.bf16.mxu0 0
      %2934 = vmatpush1.bf16.msra.mxu0 0
      %2935 = vmatprep.subr.bf16.mxu0 0
      %2936 = vmatpush1.bf16.msra.mxu0 0
      %2937 = vmatprep.subr.bf16.mxu0 0
      %2938 = vmatpush1.bf16.msra.mxu0 0
      %2939 = vmatprep.subr.bf16.mxu0 0
      %2940 = vmatpush1.bf16.msra.mxu0 0
      %2941 = vmatprep.subr.bf16.mxu0 0
      %2942 = vmatpush1.bf16.msra.mxu0 0
      %2943 = vmatprep.subr.bf16.mxu0 0
      %2944 = vmatpush1.bf16.msra.mxu0 0
      %2945 = vmatprep.subr.bf16.mxu0 0
      %2946 = vmatpush1.bf16.msra.mxu0 0
      %2947 = vmatprep.subr.bf16.mxu0 0
      %2948 = vmatpush1.bf16.msra.mxu0 0
      %2949 = vmatprep.subr.bf16.mxu0 0
      %2950 = vmatpush1.bf16.msra.mxu0 0
      %2951 = vmatprep.subr.bf16.mxu0 0
      %2952 = vmatpush1.bf16.msra.mxu0 0
      %2953 = vmatprep.mubr.bf16.mxu0 0
      %2954 = vmatmul.mubr.bf16.gmra.mrb[0].mxu0 %v2614
      %v2955 = vpop.f32.mrb[0].mxu0
      %v2956 = vadd.f32 0.0, %v2955
      %v2957 = vpop.f32.mrb[0].mxu0
      %v2958 = vpop.f32.mrb[0].mxu0
      %v2959 = vadd.f32 0.0, %v2958
      %v2960 = vpop.f32.mrb[0].mxu0
      %2961 = vdwg.mxu0
      %2962 = vst.msk [vmem:[#allocation2 + $0x80] sm:$0xff] %vm2657, %v2956
      %2963 = vst.msk [vmem:[#allocation2 + $0x90] sm:$0xff] %vm2657, %v2959
      %s2964 = scalar_lea.vmem %s11, 160
      %v2965 = vld [vmem:[%s2964] sm:$0xf]
      %v2966 = vld [vmem:[%s2964 + $0x4] sm:$0xf]
      %v2967 = vld [vmem:[%s2964 + $0x8] sm:$0xf]
      %v2968 = vld [vmem:[%s2964 + $0xc] sm:$0xf]
      %v2969 = vld [vmem:[%s2964 + $0x10] sm:$0xf]
      %v2970 = vld [vmem:[%s2964 + $0x14] sm:$0xf]
      %v2971 = vld [vmem:[%s2964 + $0x18] sm:$0xf]
      %v2972 = vld [vmem:[%s2964 + $0x1c] sm:$0xf]
      %v2981 = vunpack.c.l.b16 %v2965
      %v2982 = vunpack.c.l.b16 %v2966
      %v2983 = vunpack.c.l.b16 %v2967
      %v2984 = vunpack.c.l.b16 %v2968
      %v2985 = vunpack.c.l.b16 %v2969
      %v2986 = vunpack.c.l.b16 %v2970
      %v2987 = vunpack.c.l.b16 %v2971
      %v2988 = vunpack.c.l.b16 %v2972
      %v2989 = vpack.c.b16 %v2982, %v2981
      %v2990 = vpack.c.b16 %v2984, %v2983
      %v2991 = vpack.c.b16 %v2986, %v2985
      %v2992 = vpack.c.b16 %v2988, %v2987
      %2997 = vmatprep.subr.bf16.mxu0 0
      %2998 = vmatpush1.bf16.msra.mxu0 %v2989
      %2999 = vmatprep.subr.bf16.mxu0 0
      %3000 = vmatpush1.bf16.msra.mxu0 %v2990
      %3001 = vmatprep.subr.bf16.mxu0 0
      %3002 = vmatpush1.bf16.msra.mxu0 %v2991
      %3003 = vmatprep.subr.bf16.mxu0 0
      %3004 = vmatpush1.bf16.msra.mxu0 %v2992
      %3005 = vmatprep.subr.bf16.mxu0 0
      %3006 = vmatpush1.bf16.msra.mxu0 0
      %3007 = vmatprep.subr.bf16.mxu0 0
      %3008 = vmatpush1.bf16.msra.mxu0 0
      %3009 = vmatprep.subr.bf16.mxu0 0
      %3010 = vmatpush1.bf16.msra.mxu0 0
      %3011 = vmatprep.subr.bf16.mxu0 0
      %3012 = vmatpush1.bf16.msra.mxu0 0
      %3013 = vmatprep.subr.bf16.mxu0 0
      %3014 = vmatpush1.bf16.msra.mxu0 0
      %3015 = vmatprep.subr.bf16.mxu0 0
      %3016 = vmatpush1.bf16.msra.mxu0 0
      %3017 = vmatprep.subr.bf16.mxu0 0
      %3018 = vmatpush1.bf16.msra.mxu0 0
      %3019 = vmatprep.subr.bf16.mxu0 0
      %3020 = vmatpush1.bf16.msra.mxu0 0
      %3021 = vmatprep.subr.bf16.mxu0 0
      %3022 = vmatpush1.bf16.msra.mxu0 0
      %3023 = vmatprep.subr.bf16.mxu0 0
      %3024 = vmatpush1.bf16.msra.mxu0 0
      %3025 = vmatprep.subr.bf16.mxu0 0
      %3026 = vmatpush1.bf16.msra.mxu0 0
      %3027 = vmatprep.subr.bf16.mxu0 0
      %3028 = vmatpush1.bf16.msra.mxu0 0
      %3029 = vmatprep.mubr.bf16.mxu0 0
      %3030 = vmatmul.mubr.bf16.gmra.mrb[0].mxu0 %v2614
      %v3031 = vpop.f32.mrb[0].mxu0
      %v3032 = vadd.f32 0.0, %v3031
      %v3033 = vpop.f32.mrb[0].mxu0
      %v3034 = vpop.f32.mrb[0].mxu0
      %v3035 = vadd.f32 0.0, %v3034
      %v3036 = vpop.f32.mrb[0].mxu0
      %3037 = vdwg.mxu0
      %3038 = vst.msk [vmem:[#allocation2 + $0xa0] sm:$0xff] %vm2657, %v3032
      %3039 = vst.msk [vmem:[#allocation2 + $0xb0] sm:$0xff] %vm2657, %v3035
      %s3040 = scalar_lea.vmem %s11, 192
      %v3041 = vld [vmem:[%s3040] sm:$0xf]
      %v3042 = vld [vmem:[%s3040 + $0x4] sm:$0xf]
      %v3043 = vld [vmem:[%s3040 + $0x8] sm:$0xf]
      %v3044 = vld [vmem:[%s3040 + $0xc] sm:$0xf]
      %v3045 = vld [vmem:[%s3040 + $0x10] sm:$0xf]
      %v3046 = vld [vmem:[%s3040 + $0x14] sm:$0xf]
      %v3047 = vld [vmem:[%s3040 + $0x18] sm:$0xf]
      %v3048 = vld [vmem:[%s3040 + $0x1c] sm:$0xf]
      %v3057 = vunpack.c.l.b16 %v3041
      %v3058 = vunpack.c.l.b16 %v3042
      %v3059 = vunpack.c.l.b16 %v3043
      %v3060 = vunpack.c.l.b16 %v3044
      %v3061 = vunpack.c.l.b16 %v3045
      %v3062 = vunpack.c.l.b16 %v3046
      %v3063 = vunpack.c.l.b16 %v3047
      %v3064 = vunpack.c.l.b16 %v3048
      %v3065 = vpack.c.b16 %v3058, %v3057
      %v3066 = vpack.c.b16 %v3060, %v3059
      %v3067 = vpack.c.b16 %v3062, %v3061
      %v3068 = vpack.c.b16 %v3064, %v3063
      %3073 = vmatprep.subr.bf16.mxu0 0
      %3074 = vmatpush1.bf16.msra.mxu0 %v3065
      %3075 = vmatprep.subr.bf16.mxu0 0
      %3076 = vmatpush1.bf16.msra.mxu0 %v3066
      %3077 = vmatprep.subr.bf16.mxu0 0
      %3078 = vmatpush1.bf16.msra.mxu0 %v3067
      %3079 = vmatprep.subr.bf16.mxu0 0
      %3080 = vmatpush1.bf16.msra.mxu0 %v3068
      %3081 = vmatprep.subr.bf16.mxu0 0
      %3082 = vmatpush1.bf16.msra.mxu0 0
      %3083 = vmatprep.subr.bf16.mxu0 0
      %3084 = vmatpush1.bf16.msra.mxu0 0
      %3085 = vmatprep.subr.bf16.mxu0 0
      %3086 = vmatpush1.bf16.msra.mxu0 0
      %3087 = vmatprep.subr.bf16.mxu0 0
      %3088 = vmatpush1.bf16.msra.mxu0 0
      %3089 = vmatprep.subr.bf16.mxu0 0
      %3090 = vmatpush1.bf16.msra.mxu0 0
      %3091 = vmatprep.subr.bf16.mxu0 0
      %3092 = vmatpush1.bf16.msra.mxu0 0
      %3093 = vmatprep.subr.bf16.mxu0 0
      %3094 = vmatpush1.bf16.msra.mxu0 0
      %3095 = vmatprep.subr.bf16.mxu0 0
      %3096 = vmatpush1.bf16.msra.mxu0 0
      %3097 = vmatprep.subr.bf16.mxu0 0
      %3098 = vmatpush1.bf16.msra.mxu0 0
      %3099 = vmatprep.subr.bf16.mxu0 0
      %3100 = vmatpush1.bf16.msra.mxu0 0
      %3101 = vmatprep.subr.bf16.mxu0 0
      %3102 = vmatpush1.bf16.msra.mxu0 0
      %3103 = vmatprep.subr.bf16.mxu0 0
      %3104 = vmatpush1.bf16.msra.mxu0 0
      %3105 = vmatprep.mubr.bf16.mxu0 0
      %3106 = vmatmul.mubr.bf16.gmra.mrb[0].mxu0 %v2614
      %v3107 = vpop.f32.mrb[0].mxu0
      %v3108 = vadd.f32 0.0, %v3107
      %v3109 = vpop.f32.mrb[0].mxu0
      %v3110 = vpop.f32.mrb[0].mxu0
      %v3111 = vadd.f32 0.0, %v3110
      %v3112 = vpop.f32.mrb[0].mxu0
      %3113 = vdwg.mxu0
      %3114 = vst.msk [vmem:[#allocation2 + $0xc0] sm:$0xff] %vm2657, %v3108
      %3115 = vst.msk [vmem:[#allocation2 + $0xd0] sm:$0xff] %vm2657, %v3111
      %s3116 = scalar_lea.vmem %s11, 224
      %v3117 = vld [vmem:[%s3116] sm:$0xf]
      %v3118 = vld [vmem:[%s3116 + $0x4] sm:$0xf]
      %v3119 = vld [vmem:[%s3116 + $0x8] sm:$0xf]
      %v3120 = vld [vmem:[%s3116 + $0xc] sm:$0xf]
      %v3121 = vld [vmem:[%s3116 + $0x10] sm:$0xf]
      %v3122 = vld [vmem:[%s3116 + $0x14] sm:$0xf]
      %v3123 = vld [vmem:[%s3116 + $0x18] sm:$0xf]
      %v3124 = vld [vmem:[%s3116 + $0x1c] sm:$0xf]
      %v3133 = vunpack.c.l.b16 %v3117
      %v3134 = vunpack.c.l.b16 %v3118
      %v3135 = vunpack.c.l.b16 %v3119
      %v3136 = vunpack.c.l.b16 %v3120
      %v3137 = vunpack.c.l.b16 %v3121
      %v3138 = vunpack.c.l.b16 %v3122
      %v3139 = vunpack.c.l.b16 %v3123
      %v3140 = vunpack.c.l.b16 %v3124
      %v3141 = vpack.c.b16 %v3134, %v3133
      %v3142 = vpack.c.b16 %v3136, %v3135
      %v3143 = vpack.c.b16 %v3138, %v3137
      %v3144 = vpack.c.b16 %v3140, %v3139
      %3149 = vmatprep.subr.bf16.mxu0 0
      %3150 = vmatpush1.bf16.msra.mxu0 %v3141
      %3151 = vmatprep.subr.bf16.mxu0 0
      %3152 = vmatpush1.bf16.msra.mxu0 %v3142
      %3153 = vmatprep.subr.bf16.mxu0 0
      %3154 = vmatpush1.bf16.msra.mxu0 %v3143
      %3155 = vmatprep.subr.bf16.mxu0 0
      %3156 = vmatpush1.bf16.msra.mxu0 %v3144
      %3157 = vmatprep.subr.bf16.mxu0 0
      %3158 = vmatpush1.bf16.msra.mxu0 0
      %3159 = vmatprep.subr.bf16.mxu0 0
      %3160 = vmatpush1.bf16.msra.mxu0 0
      %3161 = vmatprep.subr.bf16.mxu0 0
      %3162 = vmatpush1.bf16.msra.mxu0 0
      %3163 = vmatprep.subr.bf16.mxu0 0
      %3164 = vmatpush1.bf16.msra.mxu0 0
      %3165 = vmatprep.subr.bf16.mxu0 0
      %3166 = vmatpush1.bf16.msra.mxu0 0
      %3167 = vmatprep.subr.bf16.mxu0 0
      %3168 = vmatpush1.bf16.msra.mxu0 0
      %3169 = vmatprep.subr.bf16.mxu0 0
      %3170 = vmatpush1.bf16.msra.mxu0 0
      %3171 = vmatprep.subr.bf16.mxu0 0
      %3172 = vmatpush1.bf16.msra.mxu0 0
      %3173 = vmatprep.subr.bf16.mxu0 0
      %3174 = vmatpush1.bf16.msra.mxu0 0
      %3175 = vmatprep.subr.bf16.mxu0 0
      %3176 = vmatpush1.bf16.msra.mxu0 0
      %3177 = vmatprep.subr.bf16.mxu0 0
      %3178 = vmatpush1.bf16.msra.mxu0 0
      %3179 = vmatprep.subr.bf16.mxu0 0
      %3180 = vmatpush1.bf16.msra.mxu0 0
      %3181 = vmatprep.mubr.bf16.mxu0 0
      %3182 = vmatmul.mubr.bf16.gmra.mrb[0].mxu0 %v2614
      %v3183 = vpop.f32.mrb[0].mxu0
      %v3184 = vadd.f32 0.0, %v3183
      %v3185 = vpop.f32.mrb[0].mxu0
      %v3186 = vpop.f32.mrb[0].mxu0
      %v3187 = vadd.f32 0.0, %v3186
      %v3188 = vpop.f32.mrb[0].mxu0
      %3189 = vdwg.mxu0
      %3190 = vst.msk [vmem:[#allocation2 + $0xe0] sm:$0xff] %vm2657, %v3184
      %3191 = vst.msk [vmem:[#allocation2 + $0xf0] sm:$0xff] %vm2657, %v3187
      %s3192 = scalar_lea.vmem %s11, 256
      %v3193 = vld [vmem:[%s3192] sm:$0xf]
      %v3194 = vld [vmem:[%s3192 + $0x4] sm:$0xf]
      %v3195 = vld [vmem:[%s3192 + $0x8] sm:$0xf]
      %v3196 = vld [vmem:[%s3192 + $0xc] sm:$0xf]
      %v3197 = vld [vmem:[%s3192 + $0x10] sm:$0xf]
      %v3198 = vld [vmem:[%s3192 + $0x14] sm:$0xf]
      %v3199 = vld [vmem:[%s3192 + $0x18] sm:$0xf]
      %v3200 = vld [vmem:[%s3192 + $0x1c] sm:$0xf]
      %v3209 = vunpack.c.l.b16 %v3193
      %v3210 = vunpack.c.l.b16 %v3194
      %v3211 = vunpack.c.l.b16 %v3195
      %v3212 = vunpack.c.l.b16 %v3196
      %v3213 = vunpack.c.l.b16 %v3197
      %v3214 = vunpack.c.l.b16 %v3198
      %v3215 = vunpack.c.l.b16 %v3199
      %v3216 = vunpack.c.l.b16 %v3200
      %v3217 = vpack.c.b16 %v3210, %v3209
      %v3218 = vpack.c.b16 %v3212, %v3211
      %v3219 = vpack.c.b16 %v3214, %v3213
      %v3220 = vpack.c.b16 %v3216, %v3215
      %3225 = vmatprep.subr.bf16.mxu0 0
      %3226 = vmatpush1.bf16.msra.mxu0 %v3217
      %3227 = vmatprep.subr.bf16.mxu0 0
      %3228 = vmatpush1.bf16.msra.mxu0 %v3218
      %3229 = vmatprep.subr.bf16.mxu0 0
      %3230 = vmatpush1.bf16.msra.mxu0 %v3219
      %3231 = vmatprep.subr.bf16.mxu0 0
      %3232 = vmatpush1.bf16.msra.mxu0 %v3220
      %3233 = vmatprep.subr.bf16.mxu0 0
      %3234 = vmatpush1.bf16.msra.mxu0 0
      %3235 = vmatprep.subr.bf16.mxu0 0
      %3236 = vmatpush1.bf16.msra.mxu0 0
      %3237 = vmatprep.subr.bf16.mxu0 0
      %3238 = vmatpush1.bf16.msra.mxu0 0
      %3239 = vmatprep.subr.bf16.mxu0 0
      %3240 = vmatpush1.bf16.msra.mxu0 0
      %3241 = vmatprep.subr.bf16.mxu0 0
      %3242 = vmatpush1.bf16.msra.mxu0 0
      %3243 = vmatprep.subr.bf16.mxu0 0
      %3244 = vmatpush1.bf16.msra.mxu0 0
      %3245 = vmatprep.subr.bf16.mxu0 0
      %3246 = vmatpush1.bf16.msra.mxu0 0
      %3247 = vmatprep.subr.bf16.mxu0 0
      %3248 = vmatpush1.bf16.msra.mxu0 0
      %3249 = vmatprep.subr.bf16.mxu0 0
      %3250 = vmatpush1.bf16.msra.mxu0 0
      %3251 = vmatprep.subr.bf16.mxu0 0
      %3252 = vmatpush1.bf16.msra.mxu0 0
      %3253 = vmatprep.subr.bf16.mxu0 0
      %3254 = vmatpush1.bf16.msra.mxu0 0
      %3255 = vmatprep.subr.bf16.mxu0 0
      %3256 = vmatpush1.bf16.msra.mxu0 0
      %3257 = vmatprep.mubr.bf16.mxu0 0
      %3258 = vmatmul.mubr.bf16.gmra.mrb[0].mxu0 %v2614
      %v3259 = vpop.f32.mrb[0].mxu0
      %v3260 = vadd.f32 0.0, %v3259
      %v3261 = vpop.f32.mrb[0].mxu0
      %v3262 = vpop.f32.mrb[0].mxu0
      %v3263 = vadd.f32 0.0, %v3262
      %v3264 = vpop.f32.mrb[0].mxu0
      %3265 = vdwg.mxu0
      %3266 = vst.msk [vmem:[#allocation2 + $0x100] sm:$0xff] %vm2657, %v3260
      %3267 = vst.msk [vmem:[#allocation2 + $0x110] sm:$0xff] %vm2657, %v3263
      %v3268 = vld [vmem:[#allocation2] sm:$0xff]
      %v3269 = vld [vmem:[#allocation2 + $0x10] sm:$0xff]
      %v3270 = vld [vmem:[#allocation2 + $0x20] sm:$0xff]
      %v3271 = vld [vmem:[#allocation2 + $0x30] sm:$0xff]
      %v3272 = vld [vmem:[#allocation2 + $0x40] sm:$0xff]
      %v3273 = vld [vmem:[#allocation2 + $0x50] sm:$0xff]
      %v3274 = vld [vmem:[#allocation2 + $0x60] sm:$0xff]
      %v3275 = vld [vmem:[#allocation2 + $0x70] sm:$0xff]
      %v3276 = vld [vmem:[#allocation2 + $0x80] sm:$0xff]
      %v3277 = vld [vmem:[#allocation2 + $0x90] sm:$0xff]
      %v3278 = vld [vmem:[#allocation2 + $0xa0] sm:$0xff]
      %v3279 = vld [vmem:[#allocation2 + $0xb0] sm:$0xff]
      %v3280 = vld [vmem:[#allocation2 + $0xc0] sm:$0xff]
      %v3281 = vld [vmem:[#allocation2 + $0xd0] sm:$0xff]
      %v3282 = vld [vmem:[#allocation2 + $0xe0] sm:$0xff]
      %v3283 = vld [vmem:[#allocation2 + $0xf0] sm:$0xff]
      %v3284 = vld [vmem:[#allocation2 + $0x100] sm:$0xff]
      %v3285 = vld [vmem:[#allocation2 + $0x110] sm:$0xff]
      %v3286 = vpack.c.bf16 %v3269, %v3268
      %v3287 = vpack.c.bf16 %v3271, %v3270
      %v3288 = vpack.c.bf16 %v3273, %v3272
      %v3289 = vpack.c.bf16 %v3275, %v3274
      %v3290 = vpack.c.bf16 %v3277, %v3276
      %v3291 = vpack.c.bf16 %v3279, %v3278
      %v3292 = vpack.c.bf16 %v3281, %v3280
      %v3293 = vpack.c.bf16 %v3283, %v3282
      %v3294 = vpack.c.bf16 %v3285, %v3284
      %v3295 = vld [vmem:[%s13] sm:$0xff]
      %v3296 = vld [vmem:[%s13 + $0x8] sm:$0xff]
      %v3297 = vld [vmem:[%s15] sm:$0xff]
      %v3298 = vld [vmem:[%s15 + $0x8] sm:$0xff]
      %3300 = vset.pattern.permute.xlu0 0
      %3301 = vperm.xlu0 %3300, %v3297
      %v3302 = vpop.permute.xlu0 %3301
      %3305 = vset.pattern.permute.xlu0 0
      %3306 = vperm.xlu0 %3305, %v3298
      %v3307 = vpop.permute.xlu0 %3306
      %v3311 = vunpack.c.l.b16 %v3295
      %v3312 = vunpack.c.h.b16 %v3295
      %v3313 = vunpack.c.l.b16 %v3296
      %v3314 = vunpack.c.h.b16 %v3296
      %v3315 = vpack.c.b16 %v3313, %v3311
      %v3316 = vpack.c.b16 %v3314, %v3312
      %v3319 = vsel %vm2657, %v3316, 0
      %3321 = vmatprep.subr.bf16.mxu0 0
      %3322 = vmatpush1.bf16.msra.mxu0 %v3286
      %3323 = vmatprep.subr.bf16.mxu0 0
      %3324 = vmatpush1.bf16.msra.mxu0 %v3287
      %3325 = vmatprep.subr.bf16.mxu0 0
      %3326 = vmatpush1.bf16.msra.mxu0 %v3288
      %3327 = vmatprep.subr.bf16.mxu0 0
      %3328 = vmatpush1.bf16.msra.mxu0 %v3289
      %3329 = vmatprep.subr.bf16.mxu0 0
      %3330 = vmatpush1.bf16.msra.mxu0 %v3290
      %3331 = vmatprep.subr.bf16.mxu0 0
      %3332 = vmatpush1.bf16.msra.mxu0 %v3291
      %3333 = vmatprep.subr.bf16.mxu0 0
      %3334 = vmatpush1.bf16.msra.mxu0 %v3292
      %3335 = vmatprep.subr.bf16.mxu0 0
      %3336 = vmatpush1.bf16.msra.mxu0 %v3293
      %3337 = vmatprep.subr.bf16.mxu0 0
      %3338 = vmatpush1.bf16.msra.mxu0 %v3294
      %3339 = vmatprep.subr.bf16.mxu0 0
      %3340 = vmatpush1.bf16.msra.mxu0 0
      %3341 = vmatprep.subr.bf16.mxu0 0
      %3342 = vmatpush1.bf16.msra.mxu0 0
      %3343 = vmatprep.subr.bf16.mxu0 0
      %3344 = vmatpush1.bf16.msra.mxu0 0
      %3345 = vmatprep.subr.bf16.mxu0 0
      %3346 = vmatpush1.bf16.msra.mxu0 0
      %3347 = vmatprep.subr.bf16.mxu0 0
      %3348 = vmatpush1.bf16.msra.mxu0 0
      %3349 = vmatprep.subr.bf16.mxu0 0
      %3350 = vmatpush1.bf16.msra.mxu0 0
      %3351 = vmatprep.subr.bf16.mxu0 0
      %3352 = vmatpush1.bf16.msra.mxu0 0
      %3353 = vmatprep.mubr.bf16.mxu0 %v3319
      %3354 = vmatmul.mubr.bf16.gmra.mrb[0].mxu0 %v3315
      %v3355 = vpop.f32.mrb[0].mxu0
      %v3356 = vadd.f32 %v3302, %v3355
      %v3357 = vpop.f32.mrb[0].mxu0
      %v3358 = vpop.f32.mrb[0].mxu0
      %v3359 = vadd.f32 %v3307, %v3358
      %v3360 = vpop.f32.mrb[0].mxu0
      %3361 = vdwg.mxu0
      %v3362 = vmax.f32 %v3356, 0.0
      %v3363 = vmax.f32 %v3359, 0.0
      %v3364 = vpack.c.bf16 %v3363, %v3362
      %v3365 = vld [vmem:[%s17] sm:$0xf]
      %v3366 = vld [vmem:[%s17 + $0x4] sm:$0xf]
      %v3369 = vunpack.c.l.b16 %v3365
      %v3370 = vunpack.c.l.b16 %v3366
      %v3371 = vpack.c.b16 %v3370, %v3369
      %v3374 = vsel %vm2657, %v3364, 0
      %3376 = vmatprep.subr.bf16.mxu0 0
      %3377 = vmatpush1.bf16.msra.mxu0 %v3371
      %3378 = vmatprep.subr.bf16.mxu0 0
      %3379 = vmatpush1.bf16.msra.mxu0 0
      %3380 = vmatprep.subr.bf16.mxu0 0
      %3381 = vmatpush1.bf16.msra.mxu0 0
      %3382 = vmatprep.subr.bf16.mxu0 0
      %3383 = vmatpush1.bf16.msra.mxu0 0
      %3384 = vmatprep.subr.bf16.mxu0 0
      %3385 = vmatpush1.bf16.msra.mxu0 0
      %3386 = vmatprep.subr.bf16.mxu0 0
      %3387 = vmatpush1.bf16.msra.mxu0 0
      %3388 = vmatprep.subr.bf16.mxu0 0
      %3389 = vmatpush1.bf16.msra.mxu0 0
      %3390 = vmatprep.subr.bf16.mxu0 0
      %3391 = vmatpush1.bf16.msra.mxu0 0
      %3392 = vmatprep.subr.bf16.mxu0 0
      %3393 = vmatpush1.bf16.msra.mxu0 0
      %3394 = vmatprep.subr.bf16.mxu0 0
      %3395 = vmatpush1.bf16.msra.mxu0 0
      %3396 = vmatprep.subr.bf16.mxu0 0
      %3397 = vmatpush1.bf16.msra.mxu0 0
      %3398 = vmatprep.subr.bf16.mxu0 0
      %3399 = vmatpush1.bf16.msra.mxu0 0
      %3400 = vmatprep.subr.bf16.mxu0 0
      %3401 = vmatpush1.bf16.msra.mxu0 0
      %3402 = vmatprep.subr.bf16.mxu0 0
      %3403 = vmatpush1.bf16.msra.mxu0 0
      %3404 = vmatprep.subr.bf16.mxu0 0
      %3405 = vmatpush1.bf16.msra.mxu0 0
      %3406 = vmatprep.subr.bf16.mxu0 0
      %3407 = vmatpush1.bf16.msra.mxu0 0
      %3408 = vmatprep.mubr.bf16.mxu0 0
      %3409 = vmatmul.mubr.bf16.gmra.mrb[0].mxu0 %v3374
      %v3410 = vpop.f32.mrb[0].mxu0
      %v3411 = vadd.f32 0.0, %v3410
      %v3412 = vpop.f32.mrb[0].mxu0
      %v3413 = vpop.f32.mrb[0].mxu0
      %v3414 = vadd.f32 0.0, %v3413
      %v3415 = vpop.f32.mrb[0].mxu0
      %3416 = vdwg.mxu0
      %vm3417 = vcmask 31744
      %3418 = vst.msk [vmem:[#allocation2] sm:$0xff] %vm3417, %v3411
      %3419 = vst.msk [vmem:[#allocation2 + $0x10] sm:$0xff] %vm3417, %v3414
      %s3420 = scalar_lea.vmem %s17, 8
      %v3421 = vld [vmem:[%s3420] sm:$0xf]
      %v3422 = vld [vmem:[%s3420 + $0x4] sm:$0xf]
      %v3425 = vunpack.c.l.b16 %v3421
      %v3426 = vunpack.c.l.b16 %v3422
      %v3427 = vpack.c.b16 %v3426, %v3425
      %3429 = vmatprep.subr.bf16.mxu0 0
      %3430 = vmatpush1.bf16.msra.mxu0 %v3427
      %3431 = vmatprep.subr.bf16.mxu0 0
      %3432 = vmatpush1.bf16.msra.mxu0 0
      %3433 = vmatprep.subr.bf16.mxu0 0
      %3434 = vmatpush1.bf16.msra.mxu0 0
      %3435 = vmatprep.subr.bf16.mxu0 0
      %3436 = vmatpush1.bf16.msra.mxu0 0
      %3437 = vmatprep.subr.bf16.mxu0 0
      %3438 = vmatpush1.bf16.msra.mxu0 0
      %3439 = vmatprep.subr.bf16.mxu0 0
      %3440 = vmatpush1.bf16.msra.mxu0 0
      %3441 = vmatprep.subr.bf16.mxu0 0
      %3442 = vmatpush1.bf16.msra.mxu0 0
      %3443 = vmatprep.subr.bf16.mxu0 0
      %3444 = vmatpush1.bf16.msra.mxu0 0
      %3445 = vmatprep.subr.bf16.mxu0 0
      %3446 = vmatpush1.bf16.msra.mxu0 0
      %3447 = vmatprep.subr.bf16.mxu0 0
      %3448 = vmatpush1.bf16.msra.mxu0 0
      %3449 = vmatprep.subr.bf16.mxu0 0
      %3450 = vmatpush1.bf16.msra.mxu0 0
      %3451 = vmatprep.subr.bf16.mxu0 0
      %3452 = vmatpush1.bf16.msra.mxu0 0
      %3453 = vmatprep.subr.bf16.mxu0 0
      %3454 = vmatpush1.bf16.msra.mxu0 0
      %3455 = vmatprep.subr.bf16.mxu0 0
      %3456 = vmatpush1.bf16.msra.mxu0 0
      %3457 = vmatprep.subr.bf16.mxu0 0
      %3458 = vmatpush1.bf16.msra.mxu0 0
      %3459 = vmatprep.subr.bf16.mxu0 0
      %3460 = vmatpush1.bf16.msra.mxu0 0
      %3461 = vmatprep.mubr.bf16.mxu0 0
      %3462 = vmatmul.mubr.bf16.gmra.mrb[0].mxu0 %v3374
      %v3463 = vpop.f32.mrb[0].mxu0
      %v3464 = vadd.f32 0.0, %v3463
      %v3465 = vpop.f32.mrb[0].mxu0
      %v3466 = vpop.f32.mrb[0].mxu0
      %v3467 = vadd.f32 0.0, %v3466
      %v3468 = vpop.f32.mrb[0].mxu0
      %3469 = vdwg.mxu0
      %3470 = vst.msk [vmem:[#allocation2 + $0x20] sm:$0xff] %vm3417, %v3464
      %3471 = vst.msk [vmem:[#allocation2 + $0x30] sm:$0xff] %vm3417, %v3467
      %s3472 = scalar_lea.vmem %s17, 16
      %v3473 = vld [vmem:[%s3472] sm:$0xf]
      %v3474 = vld [vmem:[%s3472 + $0x4] sm:$0xf]
      %v3477 = vunpack.c.l.b16 %v3473
      %v3478 = vunpack.c.l.b16 %v3474
      %v3479 = vpack.c.b16 %v3478, %v3477
      %3481 = vmatprep.subr.bf16.mxu0 0
      %3482 = vmatpush1.bf16.msra.mxu0 %v3479
      %3483 = vmatprep.subr.bf16.mxu0 0
      %3484 = vmatpush1.bf16.msra.mxu0 0
      %3485 = vmatprep.subr.bf16.mxu0 0
      %3486 = vmatpush1.bf16.msra.mxu0 0
      %3487 = vmatprep.subr.bf16.mxu0 0
      %3488 = vmatpush1.bf16.msra.mxu0 0
      %3489 = vmatprep.subr.bf16.mxu0 0
      %3490 = vmatpush1.bf16.msra.mxu0 0
      %3491 = vmatprep.subr.bf16.mxu0 0
      %3492 = vmatpush1.bf16.msra.mxu0 0
      %3493 = vmatprep.subr.bf16.mxu0 0
      %3494 = vmatpush1.bf16.msra.mxu0 0
      %3495 = vmatprep.subr.bf16.mxu0 0
      %3496 = vmatpush1.bf16.msra.mxu0 0
      %3497 = vmatprep.subr.bf16.mxu0 0
      %3498 = vmatpush1.bf16.msra.mxu0 0
      %3499 = vmatprep.subr.bf16.mxu0 0
      %3500 = vmatpush1.bf16.msra.mxu0 0
      %3501 = vmatprep.subr.bf16.mxu0 0
      %3502 = vmatpush1.bf16.msra.mxu0 0
      %3503 = vmatprep.subr.bf16.mxu0 0
      %3504 = vmatpush1.bf16.msra.mxu0 0
      %3505 = vmatprep.subr.bf16.mxu0 0
      %3506 = vmatpush1.bf16.msra.mxu0 0
      %3507 = vmatprep.subr.bf16.mxu0 0
      %3508 = vmatpush1.bf16.msra.mxu0 0
      %3509 = vmatprep.subr.bf16.mxu0 0
      %3510 = vmatpush1.bf16.msra.mxu0 0
      %3511 = vmatprep.subr.bf16.mxu0 0
      %3512 = vmatpush1.bf16.msra.mxu0 0
      %3513 = vmatprep.mubr.bf16.mxu0 0
      %3514 = vmatmul.mubr.bf16.gmra.mrb[0].mxu0 %v3374
      %v3515 = vpop.f32.mrb[0].mxu0
      %v3516 = vadd.f32 0.0, %v3515
      %v3517 = vpop.f32.mrb[0].mxu0
      %v3518 = vpop.f32.mrb[0].mxu0
      %v3519 = vadd.f32 0.0, %v3518
      %v3520 = vpop.f32.mrb[0].mxu0
      %3521 = vdwg.mxu0
      %3522 = vst.msk [vmem:[#allocation2 + $0x40] sm:$0xff] %vm3417, %v3516
      %3523 = vst.msk [vmem:[#allocation2 + $0x50] sm:$0xff] %vm3417, %v3519
      %s3524 = scalar_lea.vmem %s17, 24
      %v3525 = vld [vmem:[%s3524] sm:$0xf]
      %v3526 = vld [vmem:[%s3524 + $0x4] sm:$0xf]
      %v3529 = vunpack.c.l.b16 %v3525
      %v3530 = vunpack.c.l.b16 %v3526
      %v3531 = vpack.c.b16 %v3530, %v3529
      %3533 = vmatprep.subr.bf16.mxu0 0
      %3534 = vmatpush1.bf16.msra.mxu0 %v3531
      %3535 = vmatprep.subr.bf16.mxu0 0
      %3536 = vmatpush1.bf16.msra.mxu0 0
      %3537 = vmatprep.subr.bf16.mxu0 0
      %3538 = vmatpush1.bf16.msra.mxu0 0
      %3539 = vmatprep.subr.bf16.mxu0 0
      %3540 = vmatpush1.bf16.msra.mxu0 0
      %3541 = vmatprep.subr.bf16.mxu0 0
      %3542 = vmatpush1.bf16.msra.mxu0 0
      %3543 = vmatprep.subr.bf16.mxu0 0
      %3544 = vmatpush1.bf16.msra.mxu0 0
      %3545 = vmatprep.subr.bf16.mxu0 0
      %3546 = vmatpush1.bf16.msra.mxu0 0
      %3547 = vmatprep.subr.bf16.mxu0 0
      %3548 = vmatpush1.bf16.msra.mxu0 0
      %3549 = vmatprep.subr.bf16.mxu0 0
      %3550 = vmatpush1.bf16.msra.mxu0 0
      %3551 = vmatprep.subr.bf16.mxu0 0
      %3552 = vmatpush1.bf16.msra.mxu0 0
      %3553 = vmatprep.subr.bf16.mxu0 0
      %3554 = vmatpush1.bf16.msra.mxu0 0
      %3555 = vmatprep.subr.bf16.mxu0 0
      %3556 = vmatpush1.bf16.msra.mxu0 0
      %3557 = vmatprep.subr.bf16.mxu0 0
      %3558 = vmatpush1.bf16.msra.mxu0 0
      %3559 = vmatprep.subr.bf16.mxu0 0
      %3560 = vmatpush1.bf16.msra.mxu0 0
      %3561 = vmatprep.subr.bf16.mxu0 0
      %3562 = vmatpush1.bf16.msra.mxu0 0
      %3563 = vmatprep.subr.bf16.mxu0 0
      %3564 = vmatpush1.bf16.msra.mxu0 0
      %3565 = vmatprep.mubr.bf16.mxu0 0
      %3566 = vmatmul.mubr.bf16.gmra.mrb[0].mxu0 %v3374
      %v3567 = vpop.f32.mrb[0].mxu0
      %v3568 = vadd.f32 0.0, %v3567
      %v3569 = vpop.f32.mrb[0].mxu0
      %v3570 = vpop.f32.mrb[0].mxu0
      %v3571 = vadd.f32 0.0, %v3570
      %v3572 = vpop.f32.mrb[0].mxu0
      %3573 = vdwg.mxu0
      %3574 = vst.msk [vmem:[#allocation2 + $0x60] sm:$0xff] %vm3417, %v3568
      %3575 = vst.msk [vmem:[#allocation2 + $0x70] sm:$0xff] %vm3417, %v3571
      %s3576 = scalar_lea.vmem %s17, 32
      %v3577 = vld [vmem:[%s3576] sm:$0xf]
      %v3578 = vld [vmem:[%s3576 + $0x4] sm:$0xf]
      %v3581 = vunpack.c.l.b16 %v3577
      %v3582 = vunpack.c.l.b16 %v3578
      %v3583 = vpack.c.b16 %v3582, %v3581
      %3585 = vmatprep.subr.bf16.mxu0 0
      %3586 = vmatpush1.bf16.msra.mxu0 %v3583
      %3587 = vmatprep.subr.bf16.mxu0 0
      %3588 = vmatpush1.bf16.msra.mxu0 0
      %3589 = vmatprep.subr.bf16.mxu0 0
      %3590 = vmatpush1.bf16.msra.mxu0 0
      %3591 = vmatprep.subr.bf16.mxu0 0
      %3592 = vmatpush1.bf16.msra.mxu0 0
      %3593 = vmatprep.subr.bf16.mxu0 0
      %3594 = vmatpush1.bf16.msra.mxu0 0
      %3595 = vmatprep.subr.bf16.mxu0 0
      %3596 = vmatpush1.bf16.msra.mxu0 0
      %3597 = vmatprep.subr.bf16.mxu0 0
      %3598 = vmatpush1.bf16.msra.mxu0 0
      %3599 = vmatprep.subr.bf16.mxu0 0
      %3600 = vmatpush1.bf16.msra.mxu0 0
      %3601 = vmatprep.subr.bf16.mxu0 0
      %3602 = vmatpush1.bf16.msra.mxu0 0
      %3603 = vmatprep.subr.bf16.mxu0 0
      %3604 = vmatpush1.bf16.msra.mxu0 0
      %3605 = vmatprep.subr.bf16.mxu0 0
      %3606 = vmatpush1.bf16.msra.mxu0 0
      %3607 = vmatprep.subr.bf16.mxu0 0
      %3608 = vmatpush1.bf16.msra.mxu0 0
      %3609 = vmatprep.subr.bf16.mxu0 0
      %3610 = vmatpush1.bf16.msra.mxu0 0
      %3611 = vmatprep.subr.bf16.mxu0 0
      %3612 = vmatpush1.bf16.msra.mxu0 0
      %3613 = vmatprep.subr.bf16.mxu0 0
      %3614 = vmatpush1.bf16.msra.mxu0 0
      %3615 = vmatprep.subr.bf16.mxu0 0
      %3616 = vmatpush1.bf16.msra.mxu0 0
      %3617 = vmatprep.mubr.bf16.mxu0 0
      %3618 = vmatmul.mubr.bf16.gmra.mrb[0].mxu0 %v3374
      %v3619 = vpop.f32.mrb[0].mxu0
      %v3620 = vadd.f32 0.0, %v3619
      %v3621 = vpop.f32.mrb[0].mxu0
      %v3622 = vpop.f32.mrb[0].mxu0
      %v3623 = vadd.f32 0.0, %v3622
      %v3624 = vpop.f32.mrb[0].mxu0
      %3625 = vdwg.mxu0
      %3626 = vst.msk [vmem:[#allocation2 + $0x80] sm:$0xff] %vm3417, %v3620
      %3627 = vst.msk [vmem:[#allocation2 + $0x90] sm:$0xff] %vm3417, %v3623
      %s3628 = scalar_lea.vmem %s17, 40
      %v3629 = vld [vmem:[%s3628] sm:$0xf]
      %v3630 = vld [vmem:[%s3628 + $0x4] sm:$0xf]
      %v3633 = vunpack.c.l.b16 %v3629
      %v3634 = vunpack.c.l.b16 %v3630
      %v3635 = vpack.c.b16 %v3634, %v3633
      %3637 = vmatprep.subr.bf16.mxu0 0
      %3638 = vmatpush1.bf16.msra.mxu0 %v3635
      %3639 = vmatprep.subr.bf16.mxu0 0
      %3640 = vmatpush1.bf16.msra.mxu0 0
      %3641 = vmatprep.subr.bf16.mxu0 0
      %3642 = vmatpush1.bf16.msra.mxu0 0
      %3643 = vmatprep.subr.bf16.mxu0 0
      %3644 = vmatpush1.bf16.msra.mxu0 0
      %3645 = vmatprep.subr.bf16.mxu0 0
      %3646 = vmatpush1.bf16.msra.mxu0 0
      %3647 = vmatprep.subr.bf16.mxu0 0
      %3648 = vmatpush1.bf16.msra.mxu0 0
      %3649 = vmatprep.subr.bf16.mxu0 0
      %3650 = vmatpush1.bf16.msra.mxu0 0
      %3651 = vmatprep.subr.bf16.mxu0 0
      %3652 = vmatpush1.bf16.msra.mxu0 0
      %3653 = vmatprep.subr.bf16.mxu0 0
      %3654 = vmatpush1.bf16.msra.mxu0 0
      %3655 = vmatprep.subr.bf16.mxu0 0
      %3656 = vmatpush1.bf16.msra.mxu0 0
      %3657 = vmatprep.subr.bf16.mxu0 0
      %3658 = vmatpush1.bf16.msra.mxu0 0
      %3659 = vmatprep.subr.bf16.mxu0 0
      %3660 = vmatpush1.bf16.msra.mxu0 0
      %3661 = vmatprep.subr.bf16.mxu0 0
      %3662 = vmatpush1.bf16.msra.mxu0 0
      %3663 = vmatprep.subr.bf16.mxu0 0
      %3664 = vmatpush1.bf16.msra.mxu0 0
      %3665 = vmatprep.subr.bf16.mxu0 0
      %3666 = vmatpush1.bf16.msra.mxu0 0
      %3667 = vmatprep.subr.bf16.mxu0 0
      %3668 = vmatpush1.bf16.msra.mxu0 0
      %3669 = vmatprep.mubr.bf16.mxu0 0
      %3670 = vmatmul.mubr.bf16.gmra.mrb[0].mxu0 %v3374
      %v3671 = vpop.f32.mrb[0].mxu0
      %v3672 = vadd.f32 0.0, %v3671
      %v3673 = vpop.f32.mrb[0].mxu0
      %v3674 = vpop.f32.mrb[0].mxu0
      %v3675 = vadd.f32 0.0, %v3674
      %v3676 = vpop.f32.mrb[0].mxu0
      %3677 = vdwg.mxu0
      %3678 = vst.msk [vmem:[#allocation2 + $0xa0] sm:$0xff] %vm3417, %v3672
      %3679 = vst.msk [vmem:[#allocation2 + $0xb0] sm:$0xff] %vm3417, %v3675
      %s3680 = scalar_lea.vmem %s17, 48
      %v3681 = vld [vmem:[%s3680] sm:$0xf]
      %v3682 = vld [vmem:[%s3680 + $0x4] sm:$0xf]
      %v3685 = vunpack.c.l.b16 %v3681
      %v3686 = vunpack.c.l.b16 %v3682
      %v3687 = vpack.c.b16 %v3686, %v3685
      %3689 = vmatprep.subr.bf16.mxu0 0
      %3690 = vmatpush1.bf16.msra.mxu0 %v3687
      %3691 = vmatprep.subr.bf16.mxu0 0
      %3692 = vmatpush1.bf16.msra.mxu0 0
      %3693 = vmatprep.subr.bf16.mxu0 0
      %3694 = vmatpush1.bf16.msra.mxu0 0
      %3695 = vmatprep.subr.bf16.mxu0 0
      %3696 = vmatpush1.bf16.msra.mxu0 0
      %3697 = vmatprep.subr.bf16.mxu0 0
      %3698 = vmatpush1.bf16.msra.mxu0 0
      %3699 = vmatprep.subr.bf16.mxu0 0
      %3700 = vmatpush1.bf16.msra.mxu0 0
      %3701 = vmatprep.subr.bf16.mxu0 0
      %3702 = vmatpush1.bf16.msra.mxu0 0
      %3703 = vmatprep.subr.bf16.mxu0 0
      %3704 = vmatpush1.bf16.msra.mxu0 0
      %3705 = vmatprep.subr.bf16.mxu0 0
      %3706 = vmatpush1.bf16.msra.mxu0 0
      %3707 = vmatprep.subr.bf16.mxu0 0
      %3708 = vmatpush1.bf16.msra.mxu0 0
      %3709 = vmatprep.subr.bf16.mxu0 0
      %3710 = vmatpush1.bf16.msra.mxu0 0
      %3711 = vmatprep.subr.bf16.mxu0 0
      %3712 = vmatpush1.bf16.msra.mxu0 0
      %3713 = vmatprep.subr.bf16.mxu0 0
      %3714 = vmatpush1.bf16.msra.mxu0 0
      %3715 = vmatprep.subr.bf16.mxu0 0
      %3716 = vmatpush1.bf16.msra.mxu0 0
      %3717 = vmatprep.subr.bf16.mxu0 0
      %3718 = vmatpush1.bf16.msra.mxu0 0
      %3719 = vmatprep.subr.bf16.mxu0 0
      %3720 = vmatpush1.bf16.msra.mxu0 0
      %3721 = vmatprep.mubr.bf16.mxu0 0
      %3722 = vmatmul.mubr.bf16.gmra.mrb[0].mxu0 %v3374
      %v3723 = vpop.f32.mrb[0].mxu0
      %v3724 = vadd.f32 0.0, %v3723
      %v3725 = vpop.f32.mrb[0].mxu0
      %v3726 = vpop.f32.mrb[0].mxu0
      %v3727 = vadd.f32 0.0, %v3726
      %v3728 = vpop.f32.mrb[0].mxu0
      %3729 = vdwg.mxu0
      %3730 = vst.msk [vmem:[#allocation2 + $0xc0] sm:$0xff] %vm3417, %v3724
      %3731 = vst.msk [vmem:[#allocation2 + $0xd0] sm:$0xff] %vm3417, %v3727
      %s3732 = scalar_lea.vmem %s17, 56
      %v3733 = vld [vmem:[%s3732] sm:$0xf]
      %v3734 = vld [vmem:[%s3732 + $0x4] sm:$0xf]
      %v3737 = vunpack.c.l.b16 %v3733
      %v3738 = vunpack.c.l.b16 %v3734
      %v3739 = vpack.c.b16 %v3738, %v3737
      %3741 = vmatprep.subr.bf16.mxu0 0
      %3742 = vmatpush1.bf16.msra.mxu0 %v3739
      %3743 = vmatprep.subr.bf16.mxu0 0
      %3744 = vmatpush1.bf16.msra.mxu0 0
      %3745 = vmatprep.subr.bf16.mxu0 0
      %3746 = vmatpush1.bf16.msra.mxu0 0
      %3747 = vmatprep.subr.bf16.mxu0 0
      %3748 = vmatpush1.bf16.msra.mxu0 0
      %3749 = vmatprep.subr.bf16.mxu0 0
      %3750 = vmatpush1.bf16.msra.mxu0 0
      %3751 = vmatprep.subr.bf16.mxu0 0
      %3752 = vmatpush1.bf16.msra.mxu0 0
      %3753 = vmatprep.subr.bf16.mxu0 0
      %3754 = vmatpush1.bf16.msra.mxu0 0
      %3755 = vmatprep.subr.bf16.mxu0 0
      %3756 = vmatpush1.bf16.msra.mxu0 0
      %3757 = vmatprep.subr.bf16.mxu0 0
      %3758 = vmatpush1.bf16.msra.mxu0 0
      %3759 = vmatprep.subr.bf16.mxu0 0
      %3760 = vmatpush1.bf16.msra.mxu0 0
      %3761 = vmatprep.subr.bf16.mxu0 0
      %3762 = vmatpush1.bf16.msra.mxu0 0
      %3763 = vmatprep.subr.bf16.mxu0 0
      %3764 = vmatpush1.bf16.msra.mxu0 0
      %3765 = vmatprep.subr.bf16.mxu0 0
      %3766 = vmatpush1.bf16.msra.mxu0 0
      %3767 = vmatprep.subr.bf16.mxu0 0
      %3768 = vmatpush1.bf16.msra.mxu0 0
      %3769 = vmatprep.subr.bf16.mxu0 0
      %3770 = vmatpush1.bf16.msra.mxu0 0
      %3771 = vmatprep.subr.bf16.mxu0 0
      %3772 = vmatpush1.bf16.msra.mxu0 0
      %3773 = vmatprep.mubr.bf16.mxu0 0
      %3774 = vmatmul.mubr.bf16.gmra.mrb[0].mxu0 %v3374
      %v3775 = vpop.f32.mrb[0].mxu0
      %v3776 = vadd.f32 0.0, %v3775
      %v3777 = vpop.f32.mrb[0].mxu0
      %v3778 = vpop.f32.mrb[0].mxu0
      %v3779 = vadd.f32 0.0, %v3778
      %v3780 = vpop.f32.mrb[0].mxu0
      %3781 = vdwg.mxu0
      %3782 = vst.msk [vmem:[#allocation2 + $0xe0] sm:$0xff] %vm3417, %v3776
      %3783 = vst.msk [vmem:[#allocation2 + $0xf0] sm:$0xff] %vm3417, %v3779
      %s3784 = scalar_lea.vmem %s17, 64
      %v3785 = vld [vmem:[%s3784] sm:$0xf]
      %v3786 = vld [vmem:[%s3784 + $0x4] sm:$0xf]
      %v3789 = vunpack.c.l.b16 %v3785
      %v3790 = vunpack.c.l.b16 %v3786
      %v3791 = vpack.c.b16 %v3790, %v3789
      %3793 = vmatprep.subr.bf16.mxu0 0
      %3794 = vmatpush1.bf16.msra.mxu0 %v3791
      %3795 = vmatprep.subr.bf16.mxu0 0
      %3796 = vmatpush1.bf16.msra.mxu0 0
      %3797 = vmatprep.subr.bf16.mxu0 0
      %3798 = vmatpush1.bf16.msra.mxu0 0
      %3799 = vmatprep.subr.bf16.mxu0 0
      %3800 = vmatpush1.bf16.msra.mxu0 0
      %3801 = vmatprep.subr.bf16.mxu0 0
      %3802 = vmatpush1.bf16.msra.mxu0 0
      %3803 = vmatprep.subr.bf16.mxu0 0
      %3804 = vmatpush1.bf16.msra.mxu0 0
      %3805 = vmatprep.subr.bf16.mxu0 0
      %3806 = vmatpush1.bf16.msra.mxu0 0
      %3807 = vmatprep.subr.bf16.mxu0 0
      %3808 = vmatpush1.bf16.msra.mxu0 0
      %3809 = vmatprep.subr.bf16.mxu0 0
      %3810 = vmatpush1.bf16.msra.mxu0 0
      %3811 = vmatprep.subr.bf16.mxu0 0
      %3812 = vmatpush1.bf16.msra.mxu0 0
      %3813 = vmatprep.subr.bf16.mxu0 0
      %3814 = vmatpush1.bf16.msra.mxu0 0
      %3815 = vmatprep.subr.bf16.mxu0 0
      %3816 = vmatpush1.bf16.msra.mxu0 0
      %3817 = vmatprep.subr.bf16.mxu0 0
      %3818 = vmatpush1.bf16.msra.mxu0 0
      %3819 = vmatprep.subr.bf16.mxu0 0
      %3820 = vmatpush1.bf16.msra.mxu0 0
      %3821 = vmatprep.subr.bf16.mxu0 0
      %3822 = vmatpush1.bf16.msra.mxu0 0
      %3823 = vmatprep.subr.bf16.mxu0 0
      %3824 = vmatpush1.bf16.msra.mxu0 0
      %3825 = vmatprep.mubr.bf16.mxu0 0
      %3826 = vmatmul.mubr.bf16.gmra.mrb[0].mxu0 %v3374
      %v3827 = vpop.f32.mrb[0].mxu0
      %v3828 = vadd.f32 0.0, %v3827
      %v3829 = vpop.f32.mrb[0].mxu0
      %v3830 = vpop.f32.mrb[0].mxu0
      %v3831 = vadd.f32 0.0, %v3830
      %v3832 = vpop.f32.mrb[0].mxu0
      %3833 = vdwg.mxu0
      %3834 = vst.msk [vmem:[#allocation2 + $0x100] sm:$0xff] %vm3417, %v3828
      %3835 = vst.msk [vmem:[#allocation2 + $0x110] sm:$0xff] %vm3417, %v3831
      %v3836 = vld [vmem:[#allocation2] sm:$0xff]
      %v3837 = vld [vmem:[#allocation2 + $0x10] sm:$0xff]
      %v3838 = vld [vmem:[#allocation2 + $0x20] sm:$0xff]
      %v3839 = vld [vmem:[#allocation2 + $0x30] sm:$0xff]
      %v3840 = vld [vmem:[#allocation2 + $0x40] sm:$0xff]
      %v3841 = vld [vmem:[#allocation2 + $0x50] sm:$0xff]
      %v3842 = vld [vmem:[#allocation2 + $0x60] sm:$0xff]
      %v3843 = vld [vmem:[#allocation2 + $0x70] sm:$0xff]
      %v3844 = vld [vmem:[#allocation2 + $0x80] sm:$0xff]
      %v3845 = vld [vmem:[#allocation2 + $0x90] sm:$0xff]
      %v3846 = vld [vmem:[#allocation2 + $0xa0] sm:$0xff]
      %v3847 = vld [vmem:[#allocation2 + $0xb0] sm:$0xff]
      %v3848 = vld [vmem:[#allocation2 + $0xc0] sm:$0xff]
      %v3849 = vld [vmem:[#allocation2 + $0xd0] sm:$0xff]
      %v3850 = vld [vmem:[#allocation2 + $0xe0] sm:$0xff]
      %v3851 = vld [vmem:[#allocation2 + $0xf0] sm:$0xff]
      %v3852 = vld [vmem:[#allocation2 + $0x100] sm:$0xff]
      %v3853 = vld [vmem:[#allocation2 + $0x110] sm:$0xff]
      %v3854 = vpack.c.bf16 %v3837, %v3836
      %v3855 = vpack.c.bf16 %v3839, %v3838
      %v3856 = vpack.c.bf16 %v3841, %v3840
      %v3857 = vpack.c.bf16 %v3843, %v3842
      %v3858 = vpack.c.bf16 %v3845, %v3844
      %v3859 = vpack.c.bf16 %v3847, %v3846
      %v3860 = vpack.c.bf16 %v3849, %v3848
      %v3861 = vpack.c.bf16 %v3851, %v3850
      %v3862 = vpack.c.bf16 %v3853, %v3852
      %v3863 = vld [vmem:[%s19] sm:$0xff]
      %v3864 = vld [vmem:[%s19 + $0x8] sm:$0xff]
      %v3865 = vld [vmem:[%s21] sm:$0xff]
      %v3866 = vld [vmem:[%s21 + $0x8] sm:$0xff]
      %3868 = vset.pattern.permute.xlu0 0
      %3869 = vperm.xlu0 %3868, %v3865
      %v3870 = vpop.permute.xlu0 %3869
      %3873 = vset.pattern.permute.xlu0 0
      %3874 = vperm.xlu0 %3873, %v3866
      %v3875 = vpop.permute.xlu0 %3874
      %v3879 = vunpack.c.l.b16 %v3863
      %v3880 = vunpack.c.h.b16 %v3863
      %v3881 = vunpack.c.l.b16 %v3864
      %v3882 = vunpack.c.h.b16 %v3864
      %v3883 = vpack.c.b16 %v3881, %v3879
      %v3884 = vpack.c.b16 %v3882, %v3880
      %v3887 = vsel %vm2657, %v3884, 0
      %3889 = vmatprep.subr.bf16.mxu0 0
      %3890 = vmatpush1.bf16.msra.mxu0 %v3854
      %3891 = vmatprep.subr.bf16.mxu0 0
      %3892 = vmatpush1.bf16.msra.mxu0 %v3855
      %3893 = vmatprep.subr.bf16.mxu0 0
      %3894 = vmatpush1.bf16.msra.mxu0 %v3856
      %3895 = vmatprep.subr.bf16.mxu0 0
      %3896 = vmatpush1.bf16.msra.mxu0 %v3857
      %3897 = vmatprep.subr.bf16.mxu0 0
      %3898 = vmatpush1.bf16.msra.mxu0 %v3858
      %3899 = vmatprep.subr.bf16.mxu0 0
      %3900 = vmatpush1.bf16.msra.mxu0 %v3859
      %3901 = vmatprep.subr.bf16.mxu0 0
      %3902 = vmatpush1.bf16.msra.mxu0 %v3860
      %3903 = vmatprep.subr.bf16.mxu0 0
      %3904 = vmatpush1.bf16.msra.mxu0 %v3861
      %3905 = vmatprep.subr.bf16.mxu0 0
      %3906 = vmatpush1.bf16.msra.mxu0 %v3862
      %3907 = vmatprep.subr.bf16.mxu0 0
      %3908 = vmatpush1.bf16.msra.mxu0 0
      %3909 = vmatprep.subr.bf16.mxu0 0
      %3910 = vmatpush1.bf16.msra.mxu0 0
      %3911 = vmatprep.subr.bf16.mxu0 0
      %3912 = vmatpush1.bf16.msra.mxu0 0
      %3913 = vmatprep.subr.bf16.mxu0 0
      %3914 = vmatpush1.bf16.msra.mxu0 0
      %3915 = vmatprep.subr.bf16.mxu0 0
      %3916 = vmatpush1.bf16.msra.mxu0 0
      %3917 = vmatprep.subr.bf16.mxu0 0
      %3918 = vmatpush1.bf16.msra.mxu0 0
      %3919 = vmatprep.subr.bf16.mxu0 0
      %3920 = vmatpush1.bf16.msra.mxu0 0
      %3921 = vmatprep.mubr.bf16.mxu0 %v3887
      %3922 = vmatmul.mubr.bf16.gmra.mrb[0].mxu0 %v3883
      %v3923 = vpop.f32.mrb[0].mxu0
      %v3924 = vadd.f32 %v3870, %v3923
      %v3925 = vpop.f32.mrb[0].mxu0
      %v3926 = vpop.f32.mrb[0].mxu0
      %v3927 = vadd.f32 %v3875, %v3926
      %v3928 = vpop.f32.mrb[0].mxu0
      %3929 = vdwg.mxu0
      %v3930 = vmax.f32 %v3924, 0.0
      %v3931 = vmax.f32 %v3927, 0.0
      %v3932 = vld [vmem:[%s25] sm:$0xff]
      %v3933 = vld [vmem:[%s25 + $0x8] sm:$0xff]
      %v3934 = vld [vmem:[%s25 + $0x10] sm:$0xff]
      %v3935 = vld [vmem:[%s25 + $0x18] sm:$0xff]
      %v3936 = vld [vmem:[%s23] sm:$0xff]
      %v3937 = vld [vmem:[%s23 + $0x8] sm:$0xff]
      %v3938 = vld [vmem:[%s23 + $0x10] sm:$0xff]
      %v3939 = vld [vmem:[%s23 + $0x18] sm:$0xff]
      %v3941 = vsel %vm2657, %v3936, 0
      %v3944 = vsel %vm2657, %v3937, 0
      %v3947 = vsel %vm2657, %v3938, 0
      %v3950 = vsel %vm2657, %v3939, 0
      %3952 = vmatprep.subr.mxu0 0.0
      %3953 = vmatpush1.msra.mxu0 %v3930
      %3954 = vmatprep.subr.mxu0 0.0
      %3955 = vmatpush1.msra.mxu0 %v3931
      %3956 = vmatprep.subr.mxu0 0.0
      %3957 = vmatpush1.msra.mxu0 0.0
      %3958 = vmatprep.subr.mxu0 0.0
      %3959 = vmatpush1.msra.mxu0 0.0
      %3960 = vmatprep.subr.mxu0 0.0
      %3961 = vmatpush1.msra.mxu0 0.0
      %3962 = vmatprep.subr.mxu0 0.0
      %3963 = vmatpush1.msra.mxu0 0.0
      %3964 = vmatprep.subr.mxu0 0.0
      %3965 = vmatpush1.msra.mxu0 0.0
      %3966 = vmatprep.subr.mxu0 0.0
      %3967 = vmatpush1.msra.mxu0 0.0
      %3968 = vmatprep.subr.mxu0 0.0
      %3969 = vmatpush1.msra.mxu0 0.0
      %3970 = vmatprep.subr.mxu0 0.0
      %3971 = vmatpush1.msra.mxu0 0.0
      %3972 = vmatprep.subr.mxu0 0.0
      %3973 = vmatpush1.msra.mxu0 0.0
      %3974 = vmatprep.subr.mxu0 0.0
      %3975 = vmatpush1.msra.mxu0 0.0
      %3976 = vmatprep.subr.mxu0 0.0
      %3977 = vmatpush1.msra.mxu0 0.0
      %3978 = vmatprep.subr.mxu0 0.0
      %3979 = vmatpush1.msra.mxu0 0.0
      %3980 = vmatprep.subr.mxu0 0.0
      %3981 = vmatpush1.msra.mxu0 0.0
      %3982 = vmatprep.subr.mxu0 0.0
      %3983 = vmatpush1.msra.mxu0 0.0
      %3984 = vmatprep.subr.mxu0 0.0
      %3985 = vmatpush1.msra.mxu0 0.0
      %3986 = vmatprep.subr.mxu0 0.0
      %3987 = vmatpush1.msra.mxu0 0.0
      %3988 = vmatprep.subr.mxu0 0.0
      %3989 = vmatpush1.msra.mxu0 0.0
      %3990 = vmatprep.subr.mxu0 0.0
      %3991 = vmatpush1.msra.mxu0 0.0
      %3992 = vmatprep.subr.mxu0 0.0
      %3993 = vmatpush1.msra.mxu0 0.0
      %3994 = vmatprep.subr.mxu0 0.0
      %3995 = vmatpush1.msra.mxu0 0.0
      %3996 = vmatprep.subr.mxu0 0.0
      %3997 = vmatpush1.msra.mxu0 0.0
      %3998 = vmatprep.subr.mxu0 0.0
      %3999 = vmatpush1.msra.mxu0 0.0
      %4000 = vmatprep.subr.mxu0 0.0
      %4001 = vmatpush1.msra.mxu0 0.0
      %4002 = vmatprep.subr.mxu0 0.0
      %4003 = vmatpush1.msra.mxu0 0.0
      %4004 = vmatprep.subr.mxu0 0.0
      %4005 = vmatpush1.msra.mxu0 0.0
      %4006 = vmatprep.subr.mxu0 0.0
      %4007 = vmatpush1.msra.mxu0 0.0
      %4008 = vmatprep.subr.mxu0 0.0
      %4009 = vmatpush1.msra.mxu0 0.0
      %4010 = vmatprep.subr.mxu0 0.0
      %4011 = vmatpush1.msra.mxu0 0.0
      %4012 = vmatprep.subr.mxu0 0.0
      %4013 = vmatpush1.msra.mxu0 0.0
      %4014 = vmatprep.subr.mxu0 0.0
      %4015 = vmatpush1.msra.mxu0 0.0
      %4016 = vmatprep.mubr.f32.mxu0 0.0
      %4017 = vmatmul.mubr.f32.gmra.mrb[0].mxu0 %v3941
      %v4018 = vpop.f32.mrb[0].mxu0
      %v4019 = vadd.f32 0.0, %v4018
      %v4020 = vpop.f32.mrb[0].mxu0
      %4021 = vmatprep.mubr.f32.mxu0 0.0
      %4022 = vmatmul.mubr.f32.gmra.mrb[0].mxu0 %v3944
      %v4023 = vpop.f32.mrb[0].mxu0
      %v4024 = vadd.f32 0.0, %v4023
      %v4025 = vpop.f32.mrb[0].mxu0
      %4026 = vmatprep.mubr.f32.mxu0 0.0
      %4027 = vmatmul.mubr.f32.gmra.mrb[0].mxu0 %v3947
      %v4028 = vpop.f32.mrb[0].mxu0
      %v4029 = vadd.f32 0.0, %v4028
      %v4030 = vpop.f32.mrb[0].mxu0
      %4031 = vmatprep.mubr.f32.mxu0 0.0
      %4032 = vmatmul.mubr.f32.gmra.mrb[0].mxu0 %v3950
      %v4033 = vpop.f32.mrb[0].mxu0
      %v4034 = vadd.f32 0.0, %v4033
      %v4035 = vpop.f32.mrb[0].mxu0
      %4036 = vdwg.mxu0
      %v4037 = vadd.f32 %v3932, %v4019
      %v4038 = vadd.f32 %v3933, %v4024
      %v4039 = vadd.f32 %v3934, %v4029
      %v4040 = vadd.f32 %v3935, %v4034
      %s4041 = scalar_lea.vmem %s23, 32
      %v4042 = vld [vmem:[%s4041] sm:$0xff]
      %v4043 = vld [vmem:[%s4041 + $0x8] sm:$0xff]
      %v4044 = vld [vmem:[%s4041 + $0x10] sm:$0xff]
      %v4045 = vld [vmem:[%s4041 + $0x18] sm:$0xff]
      %4048 = vrot.lane.b32.xlu0 %v3930, 127
      %v4049 = vpop.permute.xlu0 %4048
      %4050 = vrot.lane.b32.xlu0 %v3931, 127
      %v4051 = vpop.permute.xlu0 %4050
      %v4055 = vsel %vm2657, %v4042, 0
      %v4058 = vsel %vm2657, %v4043, 0
      %v4061 = vsel %vm2657, %v4044, 0
      %v4064 = vsel %vm2657, %v4045, 0
      %4066 = vmatprep.subr.mxu0 0.0
      %4067 = vmatpush1.msra.mxu0 %v4049
      %4068 = vmatprep.subr.mxu0 0.0
      %4069 = vmatpush1.msra.mxu0 %v4051
      %4070 = vmatprep.subr.mxu0 0.0
      %4071 = vmatpush1.msra.mxu0 0.0
      %4072 = vmatprep.subr.mxu0 0.0
      %4073 = vmatpush1.msra.mxu0 0.0
      %4074 = vmatprep.subr.mxu0 0.0
      %4075 = vmatpush1.msra.mxu0 0.0
      %4076 = vmatprep.subr.mxu0 0.0
      %4077 = vmatpush1.msra.mxu0 0.0
      %4078 = vmatprep.subr.mxu0 0.0
      %4079 = vmatpush1.msra.mxu0 0.0
      %4080 = vmatprep.subr.mxu0 0.0
      %4081 = vmatpush1.msra.mxu0 0.0
      %4082 = vmatprep.subr.mxu0 0.0
      %4083 = vmatpush1.msra.mxu0 0.0
      %4084 = vmatprep.subr.mxu0 0.0
      %4085 = vmatpush1.msra.mxu0 0.0
      %4086 = vmatprep.subr.mxu0 0.0
      %4087 = vmatpush1.msra.mxu0 0.0
      %4088 = vmatprep.subr.mxu0 0.0
      %4089 = vmatpush1.msra.mxu0 0.0
      %4090 = vmatprep.subr.mxu0 0.0
      %4091 = vmatpush1.msra.mxu0 0.0
      %4092 = vmatprep.subr.mxu0 0.0
      %4093 = vmatpush1.msra.mxu0 0.0
      %4094 = vmatprep.subr.mxu0 0.0
      %4095 = vmatpush1.msra.mxu0 0.0
      %4096 = vmatprep.subr.mxu0 0.0
      %4097 = vmatpush1.msra.mxu0 0.0
      %4098 = vmatprep.subr.mxu0 0.0
      %4099 = vmatpush1.msra.mxu0 0.0
      %4100 = vmatprep.subr.mxu0 0.0
      %4101 = vmatpush1.msra.mxu0 0.0
      %4102 = vmatprep.subr.mxu0 0.0
      %4103 = vmatpush1.msra.mxu0 0.0
      %4104 = vmatprep.subr.mxu0 0.0
      %4105 = vmatpush1.msra.mxu0 0.0
      %4106 = vmatprep.subr.mxu0 0.0
      %4107 = vmatpush1.msra.mxu0 0.0
      %4108 = vmatprep.subr.mxu0 0.0
      %4109 = vmatpush1.msra.mxu0 0.0
      %4110 = vmatprep.subr.mxu0 0.0
      %4111 = vmatpush1.msra.mxu0 0.0
      %4112 = vmatprep.subr.mxu0 0.0
      %4113 = vmatpush1.msra.mxu0 0.0
      %4114 = vmatprep.subr.mxu0 0.0
      %4115 = vmatpush1.msra.mxu0 0.0
      %4116 = vmatprep.subr.mxu0 0.0
      %4117 = vmatpush1.msra.mxu0 0.0
      %4118 = vmatprep.subr.mxu0 0.0
      %4119 = vmatpush1.msra.mxu0 0.0
      %4120 = vmatprep.subr.mxu0 0.0
      %4121 = vmatpush1.msra.mxu0 0.0
      %4122 = vmatprep.subr.mxu0 0.0
      %4123 = vmatpush1.msra.mxu0 0.0
      %4124 = vmatprep.subr.mxu0 0.0
      %4125 = vmatpush1.msra.mxu0 0.0
      %4126 = vmatprep.subr.mxu0 0.0
      %4127 = vmatpush1.msra.mxu0 0.0
      %4128 = vmatprep.subr.mxu0 0.0
      %4129 = vmatpush1.msra.mxu0 0.0
      %4130 = vmatprep.mubr.f32.mxu0 0.0
      %4131 = vmatmul.mubr.f32.gmra.mrb[0].mxu0 %v4055
      %v4132 = vpop.f32.mrb[0].mxu0
      %v4133 = vadd.f32 0.0, %v4132
      %v4134 = vpop.f32.mrb[0].mxu0
      %4135 = vmatprep.mubr.f32.mxu0 0.0
      %4136 = vmatmul.mubr.f32.gmra.mrb[0].mxu0 %v4058
      %v4137 = vpop.f32.mrb[0].mxu0
      %v4138 = vadd.f32 0.0, %v4137
      %v4139 = vpop.f32.mrb[0].mxu0
      %4140 = vmatprep.mubr.f32.mxu0 0.0
      %4141 = vmatmul.mubr.f32.gmra.mrb[0].mxu0 %v4061
      %v4142 = vpop.f32.mrb[0].mxu0
      %v4143 = vadd.f32 0.0, %v4142
      %v4144 = vpop.f32.mrb[0].mxu0
      %4145 = vmatprep.mubr.f32.mxu0 0.0
      %4146 = vmatmul.mubr.f32.gmra.mrb[0].mxu0 %v4064
      %v4147 = vpop.f32.mrb[0].mxu0
      %v4148 = vadd.f32 0.0, %v4147
      %v4149 = vpop.f32.mrb[0].mxu0
      %4150 = vdwg.mxu0
      %v4151 = vadd.f32 %v4037, %v4133
      %v4152 = vadd.f32 %v4038, %v4138
      %v4153 = vadd.f32 %v4039, %v4143
      %v4154 = vadd.f32 %v4040, %v4148
      %s4155 = scalar_lea.vmem %s23, 64
      %v4156 = vld [vmem:[%s4155] sm:$0xff]
      %v4157 = vld [vmem:[%s4155 + $0x8] sm:$0xff]
      %v4158 = vld [vmem:[%s4155 + $0x10] sm:$0xff]
      %v4159 = vld [vmem:[%s4155 + $0x18] sm:$0xff]
      %4160 = vrot.lane.b32.xlu0 %v3930, 126
      %v4161 = vpop.permute.xlu0 %4160
      %4162 = vrot.lane.b32.xlu0 %v3931, 126
      %v4163 = vpop.permute.xlu0 %4162
      %v4167 = vsel %vm2657, %v4156, 0
      %v4170 = vsel %vm2657, %v4157, 0
      %v4173 = vsel %vm2657, %v4158, 0
      %v4176 = vsel %vm2657, %v4159, 0
      %4178 = vmatprep.subr.mxu0 0.0
      %4179 = vmatpush1.msra.mxu0 %v4161
      %4180 = vmatprep.subr.mxu0 0.0
      %4181 = vmatpush1.msra.mxu0 %v4163
      %4182 = vmatprep.subr.mxu0 0.0
      %4183 = vmatpush1.msra.mxu0 0.0
      %4184 = vmatprep.subr.mxu0 0.0
      %4185 = vmatpush1.msra.mxu0 0.0
      %4186 = vmatprep.subr.mxu0 0.0
      %4187 = vmatpush1.msra.mxu0 0.0
      %4188 = vmatprep.subr.mxu0 0.0
      %4189 = vmatpush1.msra.mxu0 0.0
      %4190 = vmatprep.subr.mxu0 0.0
      %4191 = vmatpush1.msra.mxu0 0.0
      %4192 = vmatprep.subr.mxu0 0.0
      %4193 = vmatpush1.msra.mxu0 0.0
      %4194 = vmatprep.subr.mxu0 0.0
      %4195 = vmatpush1.msra.mxu0 0.0
      %4196 = vmatprep.subr.mxu0 0.0
      %4197 = vmatpush1.msra.mxu0 0.0
      %4198 = vmatprep.subr.mxu0 0.0
      %4199 = vmatpush1.msra.mxu0 0.0
      %4200 = vmatprep.subr.mxu0 0.0
      %4201 = vmatpush1.msra.mxu0 0.0
      %4202 = vmatprep.subr.mxu0 0.0
      %4203 = vmatpush1.msra.mxu0 0.0
      %4204 = vmatprep.subr.mxu0 0.0
      %4205 = vmatpush1.msra.mxu0 0.0
      %4206 = vmatprep.subr.mxu0 0.0
      %4207 = vmatpush1.msra.mxu0 0.0
      %4208 = vmatprep.subr.mxu0 0.0
      %4209 = vmatpush1.msra.mxu0 0.0
      %4210 = vmatprep.subr.mxu0 0.0
      %4211 = vmatpush1.msra.mxu0 0.0
      %4212 = vmatprep.subr.mxu0 0.0
      %4213 = vmatpush1.msra.mxu0 0.0
      %4214 = vmatprep.subr.mxu0 0.0
      %4215 = vmatpush1.msra.mxu0 0.0
      %4216 = vmatprep.subr.mxu0 0.0
      %4217 = vmatpush1.msra.mxu0 0.0
      %4218 = vmatprep.subr.mxu0 0.0
      %4219 = vmatpush1.msra.mxu0 0.0
      %4220 = vmatprep.subr.mxu0 0.0
      %4221 = vmatpush1.msra.mxu0 0.0
      %4222 = vmatprep.subr.mxu0 0.0
      %4223 = vmatpush1.msra.mxu0 0.0
      %4224 = vmatprep.subr.mxu0 0.0
      %4225 = vmatpush1.msra.mxu0 0.0
      %4226 = vmatprep.subr.mxu0 0.0
      %4227 = vmatpush1.msra.mxu0 0.0
      %4228 = vmatprep.subr.mxu0 0.0
      %4229 = vmatpush1.msra.mxu0 0.0
      %4230 = vmatprep.subr.mxu0 0.0
      %4231 = vmatpush1.msra.mxu0 0.0
      %4232 = vmatprep.subr.mxu0 0.0
      %4233 = vmatpush1.msra.mxu0 0.0
      %4234 = vmatprep.subr.mxu0 0.0
      %4235 = vmatpush1.msra.mxu0 0.0
      %4236 = vmatprep.subr.mxu0 0.0
      %4237 = vmatpush1.msra.mxu0 0.0
      %4238 = vmatprep.subr.mxu0 0.0
      %4239 = vmatpush1.msra.mxu0 0.0
      %4240 = vmatprep.subr.mxu0 0.0
      %4241 = vmatpush1.msra.mxu0 0.0
      %4242 = vmatprep.mubr.f32.mxu0 0.0
      %4243 = vmatmul.mubr.f32.gmra.mrb[0].mxu0 %v4167
      %v4244 = vpop.f32.mrb[0].mxu0
      %v4245 = vadd.f32 0.0, %v4244
      %v4246 = vpop.f32.mrb[0].mxu0
      %4247 = vmatprep.mubr.f32.mxu0 0.0
      %4248 = vmatmul.mubr.f32.gmra.mrb[0].mxu0 %v4170
      %v4249 = vpop.f32.mrb[0].mxu0
      %v4250 = vadd.f32 0.0, %v4249
      %v4251 = vpop.f32.mrb[0].mxu0
      %4252 = vmatprep.mubr.f32.mxu0 0.0
      %4253 = vmatmul.mubr.f32.gmra.mrb[0].mxu0 %v4173
      %v4254 = vpop.f32.mrb[0].mxu0
      %v4255 = vadd.f32 0.0, %v4254
      %v4256 = vpop.f32.mrb[0].mxu0
      %4257 = vmatprep.mubr.f32.mxu0 0.0
      %4258 = vmatmul.mubr.f32.gmra.mrb[0].mxu0 %v4176
      %v4259 = vpop.f32.mrb[0].mxu0
      %v4260 = vadd.f32 0.0, %v4259
      %v4261 = vpop.f32.mrb[0].mxu0
      %4262 = vdwg.mxu0
      %v4263 = vadd.f32 %v4151, %v4245
      %v4264 = vadd.f32 %v4152, %v4250
      %v4265 = vadd.f32 %v4153, %v4255
      %v4266 = vadd.f32 %v4154, %v4260
      %s4267 = scalar_lea.vmem %s23, 96
      %v4268 = vld [vmem:[%s4267] sm:$0xff]
      %v4269 = vld [vmem:[%s4267 + $0x8] sm:$0xff]
      %v4270 = vld [vmem:[%s4267 + $0x10] sm:$0xff]
      %v4271 = vld [vmem:[%s4267 + $0x18] sm:$0xff]
      %4272 = vrot.lane.b32.xlu0 %v3930, 125
      %v4273 = vpop.permute.xlu0 %4272
      %4274 = vrot.lane.b32.xlu0 %v3931, 125
      %v4275 = vpop.permute.xlu0 %4274
      %v4279 = vsel %vm2657, %v4268, 0
      %v4282 = vsel %vm2657, %v4269, 0
      %v4285 = vsel %vm2657, %v4270, 0
      %v4288 = vsel %vm2657, %v4271, 0
      %4290 = vmatprep.subr.mxu0 0.0
      %4291 = vmatpush1.msra.mxu0 %v4273
      %4292 = vmatprep.subr.mxu0 0.0
      %4293 = vmatpush1.msra.mxu0 %v4275
      %4294 = vmatprep.subr.mxu0 0.0
      %4295 = vmatpush1.msra.mxu0 0.0
      %4296 = vmatprep.subr.mxu0 0.0
      %4297 = vmatpush1.msra.mxu0 0.0
      %4298 = vmatprep.subr.mxu0 0.0
      %4299 = vmatpush1.msra.mxu0 0.0
      %4300 = vmatprep.subr.mxu0 0.0
      %4301 = vmatpush1.msra.mxu0 0.0
      %4302 = vmatprep.subr.mxu0 0.0
      %4303 = vmatpush1.msra.mxu0 0.0
      %4304 = vmatprep.subr.mxu0 0.0
      %4305 = vmatpush1.msra.mxu0 0.0
      %4306 = vmatprep.subr.mxu0 0.0
      %4307 = vmatpush1.msra.mxu0 0.0
      %4308 = vmatprep.subr.mxu0 0.0
      %4309 = vmatpush1.msra.mxu0 0.0
      %4310 = vmatprep.subr.mxu0 0.0
      %4311 = vmatpush1.msra.mxu0 0.0
      %4312 = vmatprep.subr.mxu0 0.0
      %4313 = vmatpush1.msra.mxu0 0.0
      %4314 = vmatprep.subr.mxu0 0.0
      %4315 = vmatpush1.msra.mxu0 0.0
      %4316 = vmatprep.subr.mxu0 0.0
      %4317 = vmatpush1.msra.mxu0 0.0
      %4318 = vmatprep.subr.mxu0 0.0
      %4319 = vmatpush1.msra.mxu0 0.0
      %4320 = vmatprep.subr.mxu0 0.0
      %4321 = vmatpush1.msra.mxu0 0.0
      %4322 = vmatprep.subr.mxu0 0.0
      %4323 = vmatpush1.msra.mxu0 0.0
      %4324 = vmatprep.subr.mxu0 0.0
      %4325 = vmatpush1.msra.mxu0 0.0
      %4326 = vmatprep.subr.mxu0 0.0
      %4327 = vmatpush1.msra.mxu0 0.0
      %4328 = vmatprep.subr.mxu0 0.0
      %4329 = vmatpush1.msra.mxu0 0.0
      %4330 = vmatprep.subr.mxu0 0.0
      %4331 = vmatpush1.msra.mxu0 0.0
      %4332 = vmatprep.subr.mxu0 0.0
      %4333 = vmatpush1.msra.mxu0 0.0
      %4334 = vmatprep.subr.mxu0 0.0
      %4335 = vmatpush1.msra.mxu0 0.0
      %4336 = vmatprep.subr.mxu0 0.0
      %4337 = vmatpush1.msra.mxu0 0.0
      %4338 = vmatprep.subr.mxu0 0.0
      %4339 = vmatpush1.msra.mxu0 0.0
      %4340 = vmatprep.subr.mxu0 0.0
      %4341 = vmatpush1.msra.mxu0 0.0
      %4342 = vmatprep.subr.mxu0 0.0
      %4343 = vmatpush1.msra.mxu0 0.0
      %4344 = vmatprep.subr.mxu0 0.0
      %4345 = vmatpush1.msra.mxu0 0.0
      %4346 = vmatprep.subr.mxu0 0.0
      %4347 = vmatpush1.msra.mxu0 0.0
      %4348 = vmatprep.subr.mxu0 0.0
      %4349 = vmatpush1.msra.mxu0 0.0
      %4350 = vmatprep.subr.mxu0 0.0
      %4351 = vmatpush1.msra.mxu0 0.0
      %4352 = vmatprep.subr.mxu0 0.0
      %4353 = vmatpush1.msra.mxu0 0.0
      %4354 = vmatprep.mubr.f32.mxu0 0.0
      %4355 = vmatmul.mubr.f32.gmra.mrb[0].mxu0 %v4279
      %v4356 = vpop.f32.mrb[0].mxu0
      %v4357 = vadd.f32 0.0, %v4356
      %v4358 = vpop.f32.mrb[0].mxu0
      %4359 = vmatprep.mubr.f32.mxu0 0.0
      %4360 = vmatmul.mubr.f32.gmra.mrb[0].mxu0 %v4282
      %v4361 = vpop.f32.mrb[0].mxu0
      %v4362 = vadd.f32 0.0, %v4361
      %v4363 = vpop.f32.mrb[0].mxu0
      %4364 = vmatprep.mubr.f32.mxu0 0.0
      %4365 = vmatmul.mubr.f32.gmra.mrb[0].mxu0 %v4285
      %v4366 = vpop.f32.mrb[0].mxu0
      %v4367 = vadd.f32 0.0, %v4366
      %v4368 = vpop.f32.mrb[0].mxu0
      %4369 = vmatprep.mubr.f32.mxu0 0.0
      %4370 = vmatmul.mubr.f32.gmra.mrb[0].mxu0 %v4288
      %v4371 = vpop.f32.mrb[0].mxu0
      %v4372 = vadd.f32 0.0, %v4371
      %v4373 = vpop.f32.mrb[0].mxu0
      %4374 = vdwg.mxu0
      %v4375 = vadd.f32 %v4263, %v4357
      %v4376 = vadd.f32 %v4264, %v4362
      %v4377 = vadd.f32 %v4265, %v4367
      %v4378 = vadd.f32 %v4266, %v4372
      %v4379 = vmax.f32 %v4375, 0.0
      %v4380 = vmax.f32 %v4376, 0.0
      %v4381 = vmax.f32 %v4377, 0.0
      %v4382 = vmax.f32 %v4378, 0.0
      %v4383 = vld [vmem:[%s27] sm:$0xff]
      %v4384 = vld [vmem:[%s27 + $0x8] sm:$0xff]
      %v4385 = vld [vmem:[%s29] sm:$0xff]
      %v4386 = vld [vmem:[%s29 + $0x8] sm:$0xff]
      %vm4387 = vcmask 261120
      %v4389 = vsel %vm4387, %v4383, 0
      %v4392 = vsel %vm4387, %v4384, 0
      %4394 = vmatprep.subr.mxu0 0.0
      %4395 = vmatpush1.msra.mxu0 %v4379
      %4396 = vmatprep.subr.mxu0 0.0
      %4397 = vmatpush1.msra.mxu0 %v4380
      %4398 = vmatprep.subr.mxu0 0.0
      %4399 = vmatpush1.msra.mxu0 %v4381
      %4400 = vmatprep.subr.mxu0 0.0
      %4401 = vmatpush1.msra.mxu0 %v4382
      %4402 = vmatprep.subr.mxu0 0.0
      %4403 = vmatpush1.msra.mxu0 0.0
      %4404 = vmatprep.subr.mxu0 0.0
      %4405 = vmatpush1.msra.mxu0 0.0
      %4406 = vmatprep.subr.mxu0 0.0
      %4407 = vmatpush1.msra.mxu0 0.0
      %4408 = vmatprep.subr.mxu0 0.0
      %4409 = vmatpush1.msra.mxu0 0.0
      %4410 = vmatprep.subr.mxu0 0.0
      %4411 = vmatpush1.msra.mxu0 0.0
      %4412 = vmatprep.subr.mxu0 0.0
      %4413 = vmatpush1.msra.mxu0 0.0
      %4414 = vmatprep.subr.mxu0 0.0
      %4415 = vmatpush1.msra.mxu0 0.0
      %4416 = vmatprep.subr.mxu0 0.0
      %4417 = vmatpush1.msra.mxu0 0.0
      %4418 = vmatprep.subr.mxu0 0.0
      %4419 = vmatpush1.msra.mxu0 0.0
      %4420 = vmatprep.subr.mxu0 0.0
      %4421 = vmatpush1.msra.mxu0 0.0
      %4422 = vmatprep.subr.mxu0 0.0
      %4423 = vmatpush1.msra.mxu0 0.0
      %4424 = vmatprep.subr.mxu0 0.0
      %4425 = vmatpush1.msra.mxu0 0.0
      %4426 = vmatprep.subr.mxu0 0.0
      %4427 = vmatpush1.msra.mxu0 0.0
      %4428 = vmatprep.subr.mxu0 0.0
      %4429 = vmatpush1.msra.mxu0 0.0
      %4430 = vmatprep.subr.mxu0 0.0
      %4431 = vmatpush1.msra.mxu0 0.0
      %4432 = vmatprep.subr.mxu0 0.0
      %4433 = vmatpush1.msra.mxu0 0.0
      %4434 = vmatprep.subr.mxu0 0.0
      %4435 = vmatpush1.msra.mxu0 0.0
      %4436 = vmatprep.subr.mxu0 0.0
      %4437 = vmatpush1.msra.mxu0 0.0
      %4438 = vmatprep.subr.mxu0 0.0
      %4439 = vmatpush1.msra.mxu0 0.0
      %4440 = vmatprep.subr.mxu0 0.0
      %4441 = vmatpush1.msra.mxu0 0.0
      %4442 = vmatprep.subr.mxu0 0.0
      %4443 = vmatpush1.msra.mxu0 0.0
      %4444 = vmatprep.subr.mxu0 0.0
      %4445 = vmatpush1.msra.mxu0 0.0
      %4446 = vmatprep.subr.mxu0 0.0
      %4447 = vmatpush1.msra.mxu0 0.0
      %4448 = vmatprep.subr.mxu0 0.0
      %4449 = vmatpush1.msra.mxu0 0.0
      %4450 = vmatprep.subr.mxu0 0.0
      %4451 = vmatpush1.msra.mxu0 0.0
      %4452 = vmatprep.subr.mxu0 0.0
      %4453 = vmatpush1.msra.mxu0 0.0
      %4454 = vmatprep.subr.mxu0 0.0
      %4455 = vmatpush1.msra.mxu0 0.0
      %4456 = vmatprep.subr.mxu0 0.0
      %4457 = vmatpush1.msra.mxu0 0.0
      %4458 = vmatprep.mubr.f32.mxu0 0.0
      %4459 = vmatmul.mubr.f32.gmra.mrb[0].mxu0 %v4389
      %v4460 = vpop.f32.mrb[0].mxu0
      %v4461 = vadd.f32 %v4385, %v4460
      %v4462 = vpop.f32.mrb[0].mxu0
      %4463 = vmatprep.mubr.f32.mxu0 0.0
      %4464 = vmatmul.mubr.f32.gmra.mrb[0].mxu0 %v4392
      %v4465 = vpop.f32.mrb[0].mxu0
      %v4466 = vadd.f32 %v4386, %v4465
      %v4467 = vpop.f32.mrb[0].mxu0
      %4468 = vdwg.mxu0
      %v4469 = vld [vmem:[%s950] sm:$0xff]
      %v4470 = vmul.f32 %v4466, 0.5
      %v4471 = vmul.f32 %v4470, 1.442695
      %v4472 = vpow.pop %v4471
      %v4473 = vmul.f32 %v4469, %v4472
      %v4474 = vadd.f32 %v4461, %v4473
      %v4475 = vld [vmem:[%s31] sm:$0xff]
      %v4476 = vld [vmem:[%s31 + $0x8] sm:$0xff]
      %v4477 = vld [vmem:[%s31 + $0x10] sm:$0xff]
      %v4478 = vld [vmem:[%s31 + $0x18] sm:$0xff]
      %v4479 = vld [vmem:[%s33] sm:$0xff]
      %v4480 = vld [vmem:[%s33 + $0x8] sm:$0xff]
      %v4481 = vld [vmem:[%s33 + $0x10] sm:$0xff]
      %v4482 = vld [vmem:[%s33 + $0x18] sm:$0xff]
      %vm4483 = vcmask 64512
      %v4485 = vsel %vm4483, %v4475, 0
      %v4488 = vsel %vm4483, %v4476, 0
      %v4491 = vsel %vm4483, %v4477, 0
      %v4494 = vsel %vm4483, %v4478, 0
      %4496 = vmatprep.subr.mxu0 0.0
      %4497 = vmatpush1.msra.mxu0 %v4474
      %4498 = vmatprep.subr.mxu0 0.0
      %4499 = vmatpush1.msra.mxu0 0.0
      %4500 = vmatprep.subr.mxu0 0.0
      %4501 = vmatpush1.msra.mxu0 0.0
      %4502 = vmatprep.subr.mxu0 0.0
      %4503 = vmatpush1.msra.mxu0 0.0
      %4504 = vmatprep.subr.mxu0 0.0
      %4505 = vmatpush1.msra.mxu0 0.0
      %4506 = vmatprep.subr.mxu0 0.0
      %4507 = vmatpush1.msra.mxu0 0.0
      %4508 = vmatprep.subr.mxu0 0.0
      %4509 = vmatpush1.msra.mxu0 0.0
      %4510 = vmatprep.subr.mxu0 0.0
      %4511 = vmatpush1.msra.mxu0 0.0
      %4512 = vmatprep.subr.mxu0 0.0
      %4513 = vmatpush1.msra.mxu0 0.0
      %4514 = vmatprep.subr.mxu0 0.0
      %4515 = vmatpush1.msra.mxu0 0.0
      %4516 = vmatprep.subr.mxu0 0.0
      %4517 = vmatpush1.msra.mxu0 0.0
      %4518 = vmatprep.subr.mxu0 0.0
      %4519 = vmatpush1.msra.mxu0 0.0
      %4520 = vmatprep.subr.mxu0 0.0
      %4521 = vmatpush1.msra.mxu0 0.0
      %4522 = vmatprep.subr.mxu0 0.0
      %4523 = vmatpush1.msra.mxu0 0.0
      %4524 = vmatprep.subr.mxu0 0.0
      %4525 = vmatpush1.msra.mxu0 0.0
      %4526 = vmatprep.subr.mxu0 0.0
      %4527 = vmatpush1.msra.mxu0 0.0
      %4528 = vmatprep.subr.mxu0 0.0
      %4529 = vmatpush1.msra.mxu0 0.0
      %4530 = vmatprep.subr.mxu0 0.0
      %4531 = vmatpush1.msra.mxu0 0.0
      %4532 = vmatprep.subr.mxu0 0.0
      %4533 = vmatpush1.msra.mxu0 0.0
      %4534 = vmatprep.subr.mxu0 0.0
      %4535 = vmatpush1.msra.mxu0 0.0
      %4536 = vmatprep.subr.mxu0 0.0
      %4537 = vmatpush1.msra.mxu0 0.0
      %4538 = vmatprep.subr.mxu0 0.0
      %4539 = vmatpush1.msra.mxu0 0.0
      %4540 = vmatprep.subr.mxu0 0.0
      %4541 = vmatpush1.msra.mxu0 0.0
      %4542 = vmatprep.subr.mxu0 0.0
      %4543 = vmatpush1.msra.mxu0 0.0
      %4544 = vmatprep.subr.mxu0 0.0
      %4545 = vmatpush1.msra.mxu0 0.0
      %4546 = vmatprep.subr.mxu0 0.0
      %4547 = vmatpush1.msra.mxu0 0.0
      %4548 = vmatprep.subr.mxu0 0.0
      %4549 = vmatpush1.msra.mxu0 0.0
      %4550 = vmatprep.subr.mxu0 0.0
      %4551 = vmatpush1.msra.mxu0 0.0
      %4552 = vmatprep.subr.mxu0 0.0
      %4553 = vmatpush1.msra.mxu0 0.0
      %4554 = vmatprep.subr.mxu0 0.0
      %4555 = vmatpush1.msra.mxu0 0.0
      %4556 = vmatprep.subr.mxu0 0.0
      %4557 = vmatpush1.msra.mxu0 0.0
      %4558 = vmatprep.subr.mxu0 0.0
      %4559 = vmatpush1.msra.mxu0 0.0
      %4560 = vmatprep.mubr.f32.mxu0 0.0
      %4561 = vmatmul.mubr.f32.gmra.mrb[0].mxu0 %v4485
      %v4562 = vpop.f32.mrb[0].mxu0
      %v4563 = vadd.f32 %v4479, %v4562
      %v4564 = vpop.f32.mrb[0].mxu0
      %4565 = vmatprep.mubr.f32.mxu0 0.0
      %4566 = vmatmul.mubr.f32.gmra.mrb[0].mxu0 %v4488
      %v4567 = vpop.f32.mrb[0].mxu0
      %v4568 = vadd.f32 %v4480, %v4567
      %v4569 = vpop.f32.mrb[0].mxu0
      %4570 = vmatprep.mubr.f32.mxu0 0.0
      %4571 = vmatmul.mubr.f32.gmra.mrb[0].mxu0 %v4491
      %v4572 = vpop.f32.mrb[0].mxu0
      %v4573 = vadd.f32 %v4481, %v4572
      %v4574 = vpop.f32.mrb[0].mxu0
      %4575 = vmatprep.mubr.f32.mxu0 0.0
      %4576 = vmatmul.mubr.f32.gmra.mrb[0].mxu0 %v4494
      %v4577 = vpop.f32.mrb[0].mxu0
      %v4578 = vadd.f32 %v4482, %v4577
      %v4579 = vpop.f32.mrb[0].mxu0
      %4580 = vdwg.mxu0
      %v4581 = vmax.f32 %v4563, 0.0
      %v4582 = vmax.f32 %v4568, 0.0
      %v4583 = vmax.f32 %v4573, 0.0
      %v4584 = vmax.f32 %v4578, 0.0
      %v4585 = vld [vmem:[%s35] sm:$0xff]
      %v4586 = vld [vmem:[%s35 + $0x8] sm:$0xff]
      %v4587 = vld [vmem:[%s37] sm:$0xff]
      %v4588 = vld [vmem:[%s37 + $0x8] sm:$0xff]
      %v4590 = vsel %vm4387, %v4585, 0
      %v4593 = vsel %vm4387, %v4586, 0
      %4595 = vmatprep.subr.mxu0 0.0
      %4596 = vmatpush1.msra.mxu0 %v4581
      %4597 = vmatprep.subr.mxu0 0.0
      %4598 = vmatpush1.msra.mxu0 %v4582
      %4599 = vmatprep.subr.mxu0 0.0
      %4600 = vmatpush1.msra.mxu0 %v4583
      %4601 = vmatprep.subr.mxu0 0.0
      %4602 = vmatpush1.msra.mxu0 %v4584
      %4603 = vmatprep.subr.mxu0 0.0
      %4604 = vmatpush1.msra.mxu0 0.0
      %4605 = vmatprep.subr.mxu0 0.0
      %4606 = vmatpush1.msra.mxu0 0.0
      %4607 = vmatprep.subr.mxu0 0.0
      %4608 = vmatpush1.msra.mxu0 0.0
      %4609 = vmatprep.subr.mxu0 0.0
      %4610 = vmatpush1.msra.mxu0 0.0
      %4611 = vmatprep.subr.mxu0 0.0
      %4612 = vmatpush1.msra.mxu0 0.0
      %4613 = vmatprep.subr.mxu0 0.0
      %4614 = vmatpush1.msra.mxu0 0.0
      %4615 = vmatprep.subr.mxu0 0.0
      %4616 = vmatpush1.msra.mxu0 0.0
      %4617 = vmatprep.subr.mxu0 0.0
      %4618 = vmatpush1.msra.mxu0 0.0
      %4619 = vmatprep.subr.mxu0 0.0
      %4620 = vmatpush1.msra.mxu0 0.0
      %4621 = vmatprep.subr.mxu0 0.0
      %4622 = vmatpush1.msra.mxu0 0.0
      %4623 = vmatprep.subr.mxu0 0.0
      %4624 = vmatpush1.msra.mxu0 0.0
      %4625 = vmatprep.subr.mxu0 0.0
      %4626 = vmatpush1.msra.mxu0 0.0
      %4627 = vmatprep.subr.mxu0 0.0
      %4628 = vmatpush1.msra.mxu0 0.0
      %4629 = vmatprep.subr.mxu0 0.0
      %4630 = vmatpush1.msra.mxu0 0.0
      %4631 = vmatprep.subr.mxu0 0.0
      %4632 = vmatpush1.msra.mxu0 0.0
      %4633 = vmatprep.subr.mxu0 0.0
      %4634 = vmatpush1.msra.mxu0 0.0
      %4635 = vmatprep.subr.mxu0 0.0
      %4636 = vmatpush1.msra.mxu0 0.0
      %4637 = vmatprep.subr.mxu0 0.0
      %4638 = vmatpush1.msra.mxu0 0.0
      %4639 = vmatprep.subr.mxu0 0.0
      %4640 = vmatpush1.msra.mxu0 0.0
      %4641 = vmatprep.subr.mxu0 0.0
      %4642 = vmatpush1.msra.mxu0 0.0
      %4643 = vmatprep.subr.mxu0 0.0
      %4644 = vmatpush1.msra.mxu0 0.0
      %4645 = vmatprep.subr.mxu0 0.0
      %4646 = vmatpush1.msra.mxu0 0.0
      %4647 = vmatprep.subr.mxu0 0.0
      %4648 = vmatpush1.msra.mxu0 0.0
      %4649 = vmatprep.subr.mxu0 0.0
      %4650 = vmatpush1.msra.mxu0 0.0
      %4651 = vmatprep.subr.mxu0 0.0
      %4652 = vmatpush1.msra.mxu0 0.0
      %4653 = vmatprep.subr.mxu0 0.0
      %4654 = vmatpush1.msra.mxu0 0.0
      %4655 = vmatprep.subr.mxu0 0.0
      %4656 = vmatpush1.msra.mxu0 0.0
      %4657 = vmatprep.subr.mxu0 0.0
      %4658 = vmatpush1.msra.mxu0 0.0
      %4659 = vmatprep.mubr.f32.mxu0 0.0
      %4660 = vmatmul.mubr.f32.gmra.mrb[0].mxu0 %v4590
      %v4661 = vpop.f32.mrb[0].mxu0
      %v4662 = vadd.f32 %v4587, %v4661
      %v4663 = vpop.f32.mrb[0].mxu0
      %4664 = vmatprep.mubr.f32.mxu0 0.0
      %4665 = vmatmul.mubr.f32.gmra.mrb[0].mxu0 %v4593
      %v4666 = vpop.f32.mrb[0].mxu0
      %v4667 = vadd.f32 %v4588, %v4666
      %v4668 = vpop.f32.mrb[0].mxu0
      %4669 = vdwg.mxu0
      %v4670 = vmax.f32 %v4662, 0.0
      %v4671 = vmax.f32 %v4667, 0.0
      %v4672 = vld [vmem:[%s39] sm:$0x1]
      %4674 = vset.pattern.permute.xlu0 0
      %4675 = vperm.xlu0 %4674, %v4670
      %v4676 = vpop.permute.xlu0 %4675
      %4679 = vset.pattern.permute.xlu0 0
      %4680 = vperm.xlu0 %4679, %v4671
      %v4681 = vpop.permute.xlu0 %4680
      %v4683 = vlaneseq
      %v4684 = vshrl.u32 %v4683, 7
      %v4685 = vsub.s32 0, %v4684
      %v4686 = vrot.slane %v4672, %v4685
      %v4687 = vmul.f32 %v4676, %v4686
      %v4688 = vmul.f32 %v4681, %v4686
      %s4689 = scalar_lea.vmem %s35, 16
      %v4690 = vld [vmem:[%s4689] sm:$0xff]
      %v4691 = vld [vmem:[%s4689 + $0x8] sm:$0xff]
      %s4692 = scalar_lea.vmem %s37, 16
      %v4693 = vld [vmem:[%s4692] sm:$0xff]
      %v4694 = vld [vmem:[%s4692 + $0x8] sm:$0xff]
      %v4696 = vsel %vm4387, %v4690, 0
      %v4699 = vsel %vm4387, %v4691, 0
      %4701 = vmatprep.subr.mxu0 0.0
      %4702 = vmatpush1.msra.mxu0 %v4581
      %4703 = vmatprep.subr.mxu0 0.0
      %4704 = vmatpush1.msra.mxu0 %v4582
      %4705 = vmatprep.subr.mxu0 0.0
      %4706 = vmatpush1.msra.mxu0 %v4583
      %4707 = vmatprep.subr.mxu0 0.0
      %4708 = vmatpush1.msra.mxu0 %v4584
      %4709 = vmatprep.subr.mxu0 0.0
      %4710 = vmatpush1.msra.mxu0 0.0
      %4711 = vmatprep.subr.mxu0 0.0
      %4712 = vmatpush1.msra.mxu0 0.0
      %4713 = vmatprep.subr.mxu0 0.0
      %4714 = vmatpush1.msra.mxu0 0.0
      %4715 = vmatprep.subr.mxu0 0.0
      %4716 = vmatpush1.msra.mxu0 0.0
      %4717 = vmatprep.subr.mxu0 0.0
      %4718 = vmatpush1.msra.mxu0 0.0
      %4719 = vmatprep.subr.mxu0 0.0
      %4720 = vmatpush1.msra.mxu0 0.0
      %4721 = vmatprep.subr.mxu0 0.0
      %4722 = vmatpush1.msra.mxu0 0.0
      %4723 = vmatprep.subr.mxu0 0.0
      %4724 = vmatpush1.msra.mxu0 0.0
      %4725 = vmatprep.subr.mxu0 0.0
      %4726 = vmatpush1.msra.mxu0 0.0
      %4727 = vmatprep.subr.mxu0 0.0
      %4728 = vmatpush1.msra.mxu0 0.0
      %4729 = vmatprep.subr.mxu0 0.0
      %4730 = vmatpush1.msra.mxu0 0.0
      %4731 = vmatprep.subr.mxu0 0.0
      %4732 = vmatpush1.msra.mxu0 0.0
      %4733 = vmatprep.subr.mxu0 0.0
      %4734 = vmatpush1.msra.mxu0 0.0
      %4735 = vmatprep.subr.mxu0 0.0
      %4736 = vmatpush1.msra.mxu0 0.0
      %4737 = vmatprep.subr.mxu0 0.0
      %4738 = vmatpush1.msra.mxu0 0.0
      %4739 = vmatprep.subr.mxu0 0.0
      %4740 = vmatpush1.msra.mxu0 0.0
      %4741 = vmatprep.subr.mxu0 0.0
      %4742 = vmatpush1.msra.mxu0 0.0
      %4743 = vmatprep.subr.mxu0 0.0
      %4744 = vmatpush1.msra.mxu0 0.0
      %4745 = vmatprep.subr.mxu0 0.0
      %4746 = vmatpush1.msra.mxu0 0.0
      %4747 = vmatprep.subr.mxu0 0.0
      %4748 = vmatpush1.msra.mxu0 0.0
      %4749 = vmatprep.subr.mxu0 0.0
      %4750 = vmatpush1.msra.mxu0 0.0
      %4751 = vmatprep.subr.mxu0 0.0
      %4752 = vmatpush1.msra.mxu0 0.0
      %4753 = vmatprep.subr.mxu0 0.0
      %4754 = vmatpush1.msra.mxu0 0.0
      %4755 = vmatprep.subr.mxu0 0.0
      %4756 = vmatpush1.msra.mxu0 0.0
      %4757 = vmatprep.subr.mxu0 0.0
      %4758 = vmatpush1.msra.mxu0 0.0
      %4759 = vmatprep.subr.mxu0 0.0
      %4760 = vmatpush1.msra.mxu0 0.0
      %4761 = vmatprep.subr.mxu0 0.0
      %4762 = vmatpush1.msra.mxu0 0.0
      %4763 = vmatprep.subr.mxu0 0.0
      %4764 = vmatpush1.msra.mxu0 0.0
      %4765 = vmatprep.mubr.f32.mxu0 0.0
      %4766 = vmatmul.mubr.f32.gmra.mrb[0].mxu0 %v4696
      %v4767 = vpop.f32.mrb[0].mxu0
      %v4768 = vadd.f32 %v4693, %v4767
      %v4769 = vpop.f32.mrb[0].mxu0
      %4770 = vmatprep.mubr.f32.mxu0 0.0
      %4771 = vmatmul.mubr.f32.gmra.mrb[0].mxu0 %v4699
      %v4772 = vpop.f32.mrb[0].mxu0
      %v4773 = vadd.f32 %v4694, %v4772
      %v4774 = vpop.f32.mrb[0].mxu0
      %4775 = vdwg.mxu0
      %v4776 = vmax.f32 %v4768, 0.0
      %v4777 = vmax.f32 %v4773, 0.0
      %v4778 = vld [vmem:[%s39 + $0x1] sm:$0x1]
      %4780 = vset.pattern.permute.xlu0 0
      %4781 = vperm.xlu0 %4780, %v4776
      %v4782 = vpop.permute.xlu0 %4781
      %4785 = vset.pattern.permute.xlu0 0
      %4786 = vperm.xlu0 %4785, %v4777
      %v4787 = vpop.permute.xlu0 %4786
      %v4789 = vlaneseq
      %v4790 = vshrl.u32 %v4789, 7
      %v4791 = vsub.s32 0, %v4790
      %v4792 = vrot.slane %v4778, %v4791
      %v4793 = vmul.f32 %v4782, %v4792
      %v4794 = vmul.f32 %v4787, %v4792
      %v4795 = vadd.f32 %v4687, %v4793
      %v4796 = vadd.f32 %v4688, %v4794
      %s4797 = scalar_lea.vmem %s35, 32
      %v4798 = vld [vmem:[%s4797] sm:$0xff]
      %v4799 = vld [vmem:[%s4797 + $0x8] sm:$0xff]
      %s4800 = scalar_lea.vmem %s37, 32
      %v4801 = vld [vmem:[%s4800] sm:$0xff]
      %v4802 = vld [vmem:[%s4800 + $0x8] sm:$0xff]
      %v4804 = vsel %vm4387, %v4798, 0
      %v4807 = vsel %vm4387, %v4799, 0
      %4809 = vmatprep.subr.mxu0 0.0
      %4810 = vmatpush1.msra.mxu0 %v4581
      %4811 = vmatprep.subr.mxu0 0.0
      %4812 = vmatpush1.msra.mxu0 %v4582
      %4813 = vmatprep.subr.mxu0 0.0
      %4814 = vmatpush1.msra.mxu0 %v4583
      %4815 = vmatprep.subr.mxu0 0.0
      %4816 = vmatpush1.msra.mxu0 %v4584
      %4817 = vmatprep.subr.mxu0 0.0
      %4818 = vmatpush1.msra.mxu0 0.0
      %4819 = vmatprep.subr.mxu0 0.0
      %4820 = vmatpush1.msra.mxu0 0.0
      %4821 = vmatprep.subr.mxu0 0.0
      %4822 = vmatpush1.msra.mxu0 0.0
      %4823 = vmatprep.subr.mxu0 0.0
      %4824 = vmatpush1.msra.mxu0 0.0
      %4825 = vmatprep.subr.mxu0 0.0
      %4826 = vmatpush1.msra.mxu0 0.0
      %4827 = vmatprep.subr.mxu0 0.0
      %4828 = vmatpush1.msra.mxu0 0.0
      %4829 = vmatprep.subr.mxu0 0.0
      %4830 = vmatpush1.msra.mxu0 0.0
      %4831 = vmatprep.subr.mxu0 0.0
      %4832 = vmatpush1.msra.mxu0 0.0
      %4833 = vmatprep.subr.mxu0 0.0
      %4834 = vmatpush1.msra.mxu0 0.0
      %4835 = vmatprep.subr.mxu0 0.0
      %4836 = vmatpush1.msra.mxu0 0.0
      %4837 = vmatprep.subr.mxu0 0.0
      %4838 = vmatpush1.msra.mxu0 0.0
      %4839 = vmatprep.subr.mxu0 0.0
      %4840 = vmatpush1.msra.mxu0 0.0
      %4841 = vmatprep.subr.mxu0 0.0
      %4842 = vmatpush1.msra.mxu0 0.0
      %4843 = vmatprep.subr.mxu0 0.0
      %4844 = vmatpush1.msra.mxu0 0.0
      %4845 = vmatprep.subr.mxu0 0.0
      %4846 = vmatpush1.msra.mxu0 0.0
      %4847 = vmatprep.subr.mxu0 0.0
      %4848 = vmatpush1.msra.mxu0 0.0
      %4849 = vmatprep.subr.mxu0 0.0
      %4850 = vmatpush1.msra.mxu0 0.0
      %4851 = vmatprep.subr.mxu0 0.0
      %4852 = vmatpush1.msra.mxu0 0.0
      %4853 = vmatprep.subr.mxu0 0.0
      %4854 = vmatpush1.msra.mxu0 0.0
      %4855 = vmatprep.subr.mxu0 0.0
      %4856 = vmatpush1.msra.mxu0 0.0
      %4857 = vmatprep.subr.mxu0 0.0
      %4858 = vmatpush1.msra.mxu0 0.0
      %4859 = vmatprep.subr.mxu0 0.0
      %4860 = vmatpush1.msra.mxu0 0.0
      %4861 = vmatprep.subr.mxu0 0.0
      %4862 = vmatpush1.msra.mxu0 0.0
      %4863 = vmatprep.subr.mxu0 0.0
      %4864 = vmatpush1.msra.mxu0 0.0
      %4865 = vmatprep.subr.mxu0 0.0
      %4866 = vmatpush1.msra.mxu0 0.0
      %4867 = vmatprep.subr.mxu0 0.0
      %4868 = vmatpush1.msra.mxu0 0.0
      %4869 = vmatprep.subr.mxu0 0.0
      %4870 = vmatpush1.msra.mxu0 0.0
      %4871 = vmatprep.subr.mxu0 0.0
      %4872 = vmatpush1.msra.mxu0 0.0
      %4873 = vmatprep.mubr.f32.mxu0 0.0
      %4874 = vmatmul.mubr.f32.gmra.mrb[0].mxu0 %v4804
      %v4875 = vpop.f32.mrb[0].mxu0
      %v4876 = vadd.f32 %v4801, %v4875
      %v4877 = vpop.f32.mrb[0].mxu0
      %4878 = vmatprep.mubr.f32.mxu0 0.0
      %4879 = vmatmul.mubr.f32.gmra.mrb[0].mxu0 %v4807
      %v4880 = vpop.f32.mrb[0].mxu0
      %v4881 = vadd.f32 %v4802, %v4880
      %v4882 = vpop.f32.mrb[0].mxu0
      %4883 = vdwg.mxu0
      %v4884 = vmax.f32 %v4876, 0.0
      %v4885 = vmax.f32 %v4881, 0.0
      %v4886 = vld [vmem:[%s39 + $0x2] sm:$0x1]
      %4888 = vset.pattern.permute.xlu0 0
      %4889 = vperm.xlu0 %4888, %v4884
      %v4890 = vpop.permute.xlu0 %4889
      %4893 = vset.pattern.permute.xlu0 0
      %4894 = vperm.xlu0 %4893, %v4885
      %v4895 = vpop.permute.xlu0 %4894
      %v4897 = vlaneseq
      %v4898 = vshrl.u32 %v4897, 7
      %v4899 = vsub.s32 0, %v4898
      %v4900 = vrot.slane %v4886, %v4899
      %v4901 = vmul.f32 %v4890, %v4900
      %v4902 = vmul.f32 %v4895, %v4900
      %v4903 = vadd.f32 %v4795, %v4901
      %v4904 = vadd.f32 %v4796, %v4902
      %s4905 = scalar_lea.vmem %s35, 48
      %v4906 = vld [vmem:[%s4905] sm:$0xff]
      %v4907 = vld [vmem:[%s4905 + $0x8] sm:$0xff]
      %s4908 = scalar_lea.vmem %s37, 48
      %v4909 = vld [vmem:[%s4908] sm:$0xff]
      %v4910 = vld [vmem:[%s4908 + $0x8] sm:$0xff]
      %v4912 = vsel %vm4387, %v4906, 0
      %v4915 = vsel %vm4387, %v4907, 0
      %4917 = vmatprep.subr.mxu0 0.0
      %4918 = vmatpush1.msra.mxu0 %v4581
      %4919 = vmatprep.subr.mxu0 0.0
      %4920 = vmatpush1.msra.mxu0 %v4582
      %4921 = vmatprep.subr.mxu0 0.0
      %4922 = vmatpush1.msra.mxu0 %v4583
      %4923 = vmatprep.subr.mxu0 0.0
      %4924 = vmatpush1.msra.mxu0 %v4584
      %4925 = vmatprep.subr.mxu0 0.0
      %4926 = vmatpush1.msra.mxu0 0.0
      %4927 = vmatprep.subr.mxu0 0.0
      %4928 = vmatpush1.msra.mxu0 0.0
      %4929 = vmatprep.subr.mxu0 0.0
      %4930 = vmatpush1.msra.mxu0 0.0
      %4931 = vmatprep.subr.mxu0 0.0
      %4932 = vmatpush1.msra.mxu0 0.0
      %4933 = vmatprep.subr.mxu0 0.0
      %4934 = vmatpush1.msra.mxu0 0.0
      %4935 = vmatprep.subr.mxu0 0.0
      %4936 = vmatpush1.msra.mxu0 0.0
      %4937 = vmatprep.subr.mxu0 0.0
      %4938 = vmatpush1.msra.mxu0 0.0
      %4939 = vmatprep.subr.mxu0 0.0
      %4940 = vmatpush1.msra.mxu0 0.0
      %4941 = vmatprep.subr.mxu0 0.0
      %4942 = vmatpush1.msra.mxu0 0.0
      %4943 = vmatprep.subr.mxu0 0.0
      %4944 = vmatpush1.msra.mxu0 0.0
      %4945 = vmatprep.subr.mxu0 0.0
      %4946 = vmatpush1.msra.mxu0 0.0
      %4947 = vmatprep.subr.mxu0 0.0
      %4948 = vmatpush1.msra.mxu0 0.0
      %4949 = vmatprep.subr.mxu0 0.0
      %4950 = vmatpush1.msra.mxu0 0.0
      %4951 = vmatprep.subr.mxu0 0.0
      %4952 = vmatpush1.msra.mxu0 0.0
      %4953 = vmatprep.subr.mxu0 0.0
      %4954 = vmatpush1.msra.mxu0 0.0
      %4955 = vmatprep.subr.mxu0 0.0
      %4956 = vmatpush1.msra.mxu0 0.0
      %4957 = vmatprep.subr.mxu0 0.0
      %4958 = vmatpush1.msra.mxu0 0.0
      %4959 = vmatprep.subr.mxu0 0.0
      %4960 = vmatpush1.msra.mxu0 0.0
      %4961 = vmatprep.subr.mxu0 0.0
      %4962 = vmatpush1.msra.mxu0 0.0
      %4963 = vmatprep.subr.mxu0 0.0
      %4964 = vmatpush1.msra.mxu0 0.0
      %4965 = vmatprep.subr.mxu0 0.0
      %4966 = vmatpush1.msra.mxu0 0.0
      %4967 = vmatprep.subr.mxu0 0.0
      %4968 = vmatpush1.msra.mxu0 0.0
      %4969 = vmatprep.subr.mxu0 0.0
      %4970 = vmatpush1.msra.mxu0 0.0
      %4971 = vmatprep.subr.mxu0 0.0
      %4972 = vmatpush1.msra.mxu0 0.0
      %4973 = vmatprep.subr.mxu0 0.0
      %4974 = vmatpush1.msra.mxu0 0.0
      %4975 = vmatprep.subr.mxu0 0.0
      %4976 = vmatpush1.msra.mxu0 0.0
      %4977 = vmatprep.subr.mxu0 0.0
      %4978 = vmatpush1.msra.mxu0 0.0
      %4979 = vmatprep.subr.mxu0 0.0
      %4980 = vmatpush1.msra.mxu0 0.0
      %4981 = vmatprep.mubr.f32.mxu0 0.0
      %4982 = vmatmul.mubr.f32.gmra.mrb[0].mxu0 %v4912
      %v4983 = vpop.f32.mrb[0].mxu0
      %v4984 = vadd.f32 %v4909, %v4983
      %v4985 = vpop.f32.mrb[0].mxu0
      %4986 = vmatprep.mubr.f32.mxu0 0.0
      %4987 = vmatmul.mubr.f32.gmra.mrb[0].mxu0 %v4915
      %v4988 = vpop.f32.mrb[0].mxu0
      %v4989 = vadd.f32 %v4910, %v4988
      %v4990 = vpop.f32.mrb[0].mxu0
      %4991 = vdwg.mxu0
      %v4992 = vmax.f32 %v4984, 0.0
      %v4993 = vmax.f32 %v4989, 0.0
      %v4994 = vld [vmem:[%s39 + $0x3] sm:$0x1]
      %4996 = vset.pattern.permute.xlu0 0
      %4997 = vperm.xlu0 %4996, %v4992
      %v4998 = vpop.permute.xlu0 %4997
      %5001 = vset.pattern.permute.xlu0 0
      %5002 = vperm.xlu0 %5001, %v4993
      %v5003 = vpop.permute.xlu0 %5002
      %v5005 = vlaneseq
      %v5006 = vshrl.u32 %v5005, 7
      %v5007 = vsub.s32 0, %v5006
      %v5008 = vrot.slane %v4994, %v5007
      %v5009 = vmul.f32 %v4998, %v5008
      %v5010 = vmul.f32 %v5003, %v5008
      %v5011 = vadd.f32 %v4903, %v5009
      %v5012 = vadd.f32 %v4904, %v5010
      %v5013 = vpack.c.bf16 %v5012, %v5011
      %v5014 = vld [vmem:[%s41] sm:$0x3]
      %v5016 = vsel %vm3417, %v5013, 0
      %vm5018 = vcmask 1041408
      %v5020 = vsel %vm5018, %v5014, 0
      %5022 = vmatprep.subr.bf16.mxu0 0
      %5023 = vmatpush1.bf16.msra.mxu0 %v5020
      %5024 = vmatprep.subr.bf16.mxu0 0
      %5025 = vmatpush1.bf16.msra.mxu0 0
      %5026 = vmatprep.subr.bf16.mxu0 0
      %5027 = vmatpush1.bf16.msra.mxu0 0
      %5028 = vmatprep.subr.bf16.mxu0 0
      %5029 = vmatpush1.bf16.msra.mxu0 0
      %5030 = vmatprep.subr.bf16.mxu0 0
      %5031 = vmatpush1.bf16.msra.mxu0 0
      %5032 = vmatprep.subr.bf16.mxu0 0
      %5033 = vmatpush1.bf16.msra.mxu0 0
      %5034 = vmatprep.subr.bf16.mxu0 0
      %5035 = vmatpush1.bf16.msra.mxu0 0
      %5036 = vmatprep.subr.bf16.mxu0 0
      %5037 = vmatpush1.bf16.msra.mxu0 0
      %5038 = vmatprep.subr.bf16.mxu0 0
      %5039 = vmatpush1.bf16.msra.mxu0 0
      %5040 = vmatprep.subr.bf16.mxu0 0
      %5041 = vmatpush1.bf16.msra.mxu0 0
      %5042 = vmatprep.subr.bf16.mxu0 0
      %5043 = vmatpush1.bf16.msra.mxu0 0
      %5044 = vmatprep.subr.bf16.mxu0 0
      %5045 = vmatpush1.bf16.msra.mxu0 0
      %5046 = vmatprep.subr.bf16.mxu0 0
      %5047 = vmatpush1.bf16.msra.mxu0 0
      %5048 = vmatprep.subr.bf16.mxu0 0
      %5049 = vmatpush1.bf16.msra.mxu0 0
      %5050 = vmatprep.subr.bf16.mxu0 0
      %5051 = vmatpush1.bf16.msra.mxu0 0
      %5052 = vmatprep.subr.bf16.mxu0 0
      %5053 = vmatpush1.bf16.msra.mxu0 0
      %5054 = vmatprep.mubr.bf16.mxu0 0
      %5055 = vmatmul.mubr.bf16.gmra.mrb[0].mxu0 %v5016
      %v5056 = vpop.f32.mrb[0].mxu0
      %v5057 = vadd.f32 0.0, %v5056
      %v5058 = vpop.f32.mrb[0].mxu0
      %v5059 = vpop.f32.mrb[0].mxu0
      %v5060 = vadd.f32 0.0, %v5059
      %v5061 = vpop.f32.mrb[0].mxu0
      %5062 = vdwg.mxu0
      %5063 = vst.msk [vmem:[#allocation2] sm:$0xff] %vm2657, %v5057
      %5064 = vst.msk [vmem:[#allocation2 + $0x10] sm:$0xff] %vm2657, %v5060
      %s5065 = scalar_lea.vmem %s41, 2
      %v5066 = vld [vmem:[%s5065] sm:$0x3]
      %v5068 = vsel %vm5018, %v5066, 0
      %5070 = vmatprep.subr.bf16.mxu0 0
      %5071 = vmatpush1.bf16.msra.mxu0 %v5068
      %5072 = vmatprep.subr.bf16.mxu0 0
      %5073 = vmatpush1.bf16.msra.mxu0 0
      %5074 = vmatprep.subr.bf16.mxu0 0
      %5075 = vmatpush1.bf16.msra.mxu0 0
      %5076 = vmatprep.subr.bf16.mxu0 0
      %5077 = vmatpush1.bf16.msra.mxu0 0
      %5078 = vmatprep.subr.bf16.mxu0 0
      %5079 = vmatpush1.bf16.msra.mxu0 0
      %5080 = vmatprep.subr.bf16.mxu0 0
      %5081 = vmatpush1.bf16.msra.mxu0 0
      %5082 = vmatprep.subr.bf16.mxu0 0
      %5083 = vmatpush1.bf16.msra.mxu0 0
      %5084 = vmatprep.subr.bf16.mxu0 0
      %5085 = vmatpush1.bf16.msra.mxu0 0
      %5086 = vmatprep.subr.bf16.mxu0 0
      %5087 = vmatpush1.bf16.msra.mxu0 0
      %5088 = vmatprep.subr.bf16.mxu0 0
      %5089 = vmatpush1.bf16.msra.mxu0 0
      %5090 = vmatprep.subr.bf16.mxu0 0
      %5091 = vmatpush1.bf16.msra.mxu0 0
      %5092 = vmatprep.subr.bf16.mxu0 0
      %5093 = vmatpush1.bf16.msra.mxu0 0
      %5094 = vmatprep.subr.bf16.mxu0 0
      %5095 = vmatpush1.bf16.msra.mxu0 0
      %5096 = vmatprep.subr.bf16.mxu0 0
      %5097 = vmatpush1.bf16.msra.mxu0 0
      %5098 = vmatprep.subr.bf16.mxu0 0
      %5099 = vmatpush1.bf16.msra.mxu0 0
      %5100 = vmatprep.subr.bf16.mxu0 0
      %5101 = vmatpush1.bf16.msra.mxu0 0
      %5102 = vmatprep.mubr.bf16.mxu0 0
      %5103 = vmatmul.mubr.bf16.gmra.mrb[0].mxu0 %v5016
      %v5104 = vpop.f32.mrb[0].mxu0
      %v5105 = vadd.f32 0.0, %v5104
      %v5106 = vpop.f32.mrb[0].mxu0
      %v5107 = vpop.f32.mrb[0].mxu0
      %v5108 = vadd.f32 0.0, %v5107
      %v5109 = vpop.f32.mrb[0].mxu0
      %5110 = vdwg.mxu0
      %5111 = vst.msk [vmem:[#allocation2 + $0x20] sm:$0xff] %vm2657, %v5105
      %5112 = vst.msk [vmem:[#allocation2 + $0x30] sm:$0xff] %vm2657, %v5108
      %s5113 = scalar_lea.vmem %s41, 4
      %v5114 = vld [vmem:[%s5113] sm:$0x3]
      %v5116 = vsel %vm5018, %v5114, 0
      %5118 = vmatprep.subr.bf16.mxu0 0
      %5119 = vmatpush1.bf16.msra.mxu0 %v5116
      %5120 = vmatprep.subr.bf16.mxu0 0
      %5121 = vmatpush1.bf16.msra.mxu0 0
      %5122 = vmatprep.subr.bf16.mxu0 0
      %5123 = vmatpush1.bf16.msra.mxu0 0
      %5124 = vmatprep.subr.bf16.mxu0 0
      %5125 = vmatpush1.bf16.msra.mxu0 0
      %5126 = vmatprep.subr.bf16.mxu0 0
      %5127 = vmatpush1.bf16.msra.mxu0 0
      %5128 = vmatprep.subr.bf16.mxu0 0
      %5129 = vmatpush1.bf16.msra.mxu0 0
      %5130 = vmatprep.subr.bf16.mxu0 0
      %5131 = vmatpush1.bf16.msra.mxu0 0
      %5132 = vmatprep.subr.bf16.mxu0 0
      %5133 = vmatpush1.bf16.msra.mxu0 0
      %5134 = vmatprep.subr.bf16.mxu0 0
      %5135 = vmatpush1.bf16.msra.mxu0 0
      %5136 = vmatprep.subr.bf16.mxu0 0
      %5137 = vmatpush1.bf16.msra.mxu0 0
      %5138 = vmatprep.subr.bf16.mxu0 0
      %5139 = vmatpush1.bf16.msra.mxu0 0
      %5140 = vmatprep.subr.bf16.mxu0 0
      %5141 = vmatpush1.bf16.msra.mxu0 0
      %5142 = vmatprep.subr.bf16.mxu0 0
      %5143 = vmatpush1.bf16.msra.mxu0 0
      %5144 = vmatprep.subr.bf16.mxu0 0
      %5145 = vmatpush1.bf16.msra.mxu0 0
      %5146 = vmatprep.subr.bf16.mxu0 0
      %5147 = vmatpush1.bf16.msra.mxu0 0
      %5148 = vmatprep.subr.bf16.mxu0 0
      %5149 = vmatpush1.bf16.msra.mxu0 0
      %5150 = vmatprep.mubr.bf16.mxu0 0
      %5151 = vmatmul.mubr.bf16.gmra.mrb[0].mxu0 %v5016
      %v5152 = vpop.f32.mrb[0].mxu0
      %v5153 = vadd.f32 0.0, %v5152
      %v5154 = vpop.f32.mrb[0].mxu0
      %v5155 = vpop.f32.mrb[0].mxu0
      %v5156 = vadd.f32 0.0, %v5155
      %v5157 = vpop.f32.mrb[0].mxu0
      %5158 = vdwg.mxu0
      %5159 = vst.msk [vmem:[#allocation2 + $0x40] sm:$0xff] %vm2657, %v5153
      %5160 = vst.msk [vmem:[#allocation2 + $0x50] sm:$0xff] %vm2657, %v5156
      %s5161 = scalar_lea.vmem %s41, 6
      %v5162 = vld [vmem:[%s5161] sm:$0x3]
      %v5164 = vsel %vm5018, %v5162, 0
      %5166 = vmatprep.subr.bf16.mxu0 0
      %5167 = vmatpush1.bf16.msra.mxu0 %v5164
      %5168 = vmatprep.subr.bf16.mxu0 0
      %5169 = vmatpush1.bf16.msra.mxu0 0
      %5170 = vmatprep.subr.bf16.mxu0 0
      %5171 = vmatpush1.bf16.msra.mxu0 0
      %5172 = vmatprep.subr.bf16.mxu0 0
      %5173 = vmatpush1.bf16.msra.mxu0 0
      %5174 = vmatprep.subr.bf16.mxu0 0
      %5175 = vmatpush1.bf16.msra.mxu0 0
      %5176 = vmatprep.subr.bf16.mxu0 0
      %5177 = vmatpush1.bf16.msra.mxu0 0
      %5178 = vmatprep.subr.bf16.mxu0 0
      %5179 = vmatpush1.bf16.msra.mxu0 0
      %5180 = vmatprep.subr.bf16.mxu0 0
      %5181 = vmatpush1.bf16.msra.mxu0 0
      %5182 = vmatprep.subr.bf16.mxu0 0
      %5183 = vmatpush1.bf16.msra.mxu0 0
      %5184 = vmatprep.subr.bf16.mxu0 0
      %5185 = vmatpush1.bf16.msra.mxu0 0
      %5186 = vmatprep.subr.bf16.mxu0 0
      %5187 = vmatpush1.bf16.msra.mxu0 0
      %5188 = vmatprep.subr.bf16.mxu0 0
      %5189 = vmatpush1.bf16.msra.mxu0 0
      %5190 = vmatprep.subr.bf16.mxu0 0
      %5191 = vmatpush1.bf16.msra.mxu0 0
      %5192 = vmatprep.subr.bf16.mxu0 0
      %5193 = vmatpush1.bf16.msra.mxu0 0
      %5194 = vmatprep.subr.bf16.mxu0 0
      %5195 = vmatpush1.bf16.msra.mxu0 0
      %5196 = vmatprep.subr.bf16.mxu0 0
      %5197 = vmatpush1.bf16.msra.mxu0 0
      %5198 = vmatprep.mubr.bf16.mxu0 0
      %5199 = vmatmul.mubr.bf16.gmra.mrb[0].mxu0 %v5016
      %v5200 = vpop.f32.mrb[0].mxu0
      %v5201 = vadd.f32 0.0, %v5200
      %v5202 = vpop.f32.mrb[0].mxu0
      %v5203 = vpop.f32.mrb[0].mxu0
      %v5204 = vadd.f32 0.0, %v5203
      %v5205 = vpop.f32.mrb[0].mxu0
      %5206 = vdwg.mxu0
      %5207 = vst.msk [vmem:[#allocation2 + $0x60] sm:$0xff] %vm2657, %v5201
      %5208 = vst.msk [vmem:[#allocation2 + $0x70] sm:$0xff] %vm2657, %v5204
      %s5209 = scalar_lea.vmem %s41, 8
      %v5210 = vld [vmem:[%s5209] sm:$0x3]
      %v5212 = vsel %vm5018, %v5210, 0
      %5214 = vmatprep.subr.bf16.mxu0 0
      %5215 = vmatpush1.bf16.msra.mxu0 %v5212
      %5216 = vmatprep.subr.bf16.mxu0 0
      %5217 = vmatpush1.bf16.msra.mxu0 0
      %5218 = vmatprep.subr.bf16.mxu0 0
      %5219 = vmatpush1.bf16.msra.mxu0 0
      %5220 = vmatprep.subr.bf16.mxu0 0
      %5221 = vmatpush1.bf16.msra.mxu0 0
      %5222 = vmatprep.subr.bf16.mxu0 0
      %5223 = vmatpush1.bf16.msra.mxu0 0
      %5224 = vmatprep.subr.bf16.mxu0 0
      %5225 = vmatpush1.bf16.msra.mxu0 0
      %5226 = vmatprep.subr.bf16.mxu0 0
      %5227 = vmatpush1.bf16.msra.mxu0 0
      %5228 = vmatprep.subr.bf16.mxu0 0
      %5229 = vmatpush1.bf16.msra.mxu0 0
      %5230 = vmatprep.subr.bf16.mxu0 0
      %5231 = vmatpush1.bf16.msra.mxu0 0
      %5232 = vmatprep.subr.bf16.mxu0 0
      %5233 = vmatpush1.bf16.msra.mxu0 0
      %5234 = vmatprep.subr.bf16.mxu0 0
      %5235 = vmatpush1.bf16.msra.mxu0 0
      %5236 = vmatprep.subr.bf16.mxu0 0
      %5237 = vmatpush1.bf16.msra.mxu0 0
      %5238 = vmatprep.subr.bf16.mxu0 0
      %5239 = vmatpush1.bf16.msra.mxu0 0
      %5240 = vmatprep.subr.bf16.mxu0 0
      %5241 = vmatpush1.bf16.msra.mxu0 0
      %5242 = vmatprep.subr.bf16.mxu0 0
      %5243 = vmatpush1.bf16.msra.mxu0 0
      %5244 = vmatprep.subr.bf16.mxu0 0
      %5245 = vmatpush1.bf16.msra.mxu0 0
      %5246 = vmatprep.mubr.bf16.mxu0 0
      %5247 = vmatmul.mubr.bf16.gmra.mrb[0].mxu0 %v5016
      %v5248 = vpop.f32.mrb[0].mxu0
      %v5249 = vadd.f32 0.0, %v5248
      %v5250 = vpop.f32.mrb[0].mxu0
      %v5251 = vpop.f32.mrb[0].mxu0
      %v5252 = vadd.f32 0.0, %v5251
      %v5253 = vpop.f32.mrb[0].mxu0
      %5254 = vdwg.mxu0
      %5255 = vst.msk [vmem:[#allocation2 + $0x80] sm:$0xff] %vm2657, %v5249
      %5256 = vst.msk [vmem:[#allocation2 + $0x90] sm:$0xff] %vm2657, %v5252
      %s5257 = scalar_lea.vmem %s41, 10
      %v5258 = vld [vmem:[%s5257] sm:$0x3]
      %v5260 = vsel %vm5018, %v5258, 0
      %5262 = vmatprep.subr.bf16.mxu0 0
      %5263 = vmatpush1.bf16.msra.mxu0 %v5260
      %5264 = vmatprep.subr.bf16.mxu0 0
      %5265 = vmatpush1.bf16.msra.mxu0 0
      %5266 = vmatprep.subr.bf16.mxu0 0
      %5267 = vmatpush1.bf16.msra.mxu0 0
      %5268 = vmatprep.subr.bf16.mxu0 0
      %5269 = vmatpush1.bf16.msra.mxu0 0
      %5270 = vmatprep.subr.bf16.mxu0 0
      %5271 = vmatpush1.bf16.msra.mxu0 0
      %5272 = vmatprep.subr.bf16.mxu0 0
      %5273 = vmatpush1.bf16.msra.mxu0 0
      %5274 = vmatprep.subr.bf16.mxu0 0
      %5275 = vmatpush1.bf16.msra.mxu0 0
      %5276 = vmatprep.subr.bf16.mxu0 0
      %5277 = vmatpush1.bf16.msra.mxu0 0
      %5278 = vmatprep.subr.bf16.mxu0 0
      %5279 = vmatpush1.bf16.msra.mxu0 0
      %5280 = vmatprep.subr.bf16.mxu0 0
      %5281 = vmatpush1.bf16.msra.mxu0 0
      %5282 = vmatprep.subr.bf16.mxu0 0
      %5283 = vmatpush1.bf16.msra.mxu0 0
      %5284 = vmatprep.subr.bf16.mxu0 0
      %5285 = vmatpush1.bf16.msra.mxu0 0
      %5286 = vmatprep.subr.bf16.mxu0 0
      %5287 = vmatpush1.bf16.msra.mxu0 0
      %5288 = vmatprep.subr.bf16.mxu0 0
      %5289 = vmatpush1.bf16.msra.mxu0 0
      %5290 = vmatprep.subr.bf16.mxu0 0
      %5291 = vmatpush1.bf16.msra.mxu0 0
      %5292 = vmatprep.subr.bf16.mxu0 0
      %5293 = vmatpush1.bf16.msra.mxu0 0
      %5294 = vmatprep.mubr.bf16.mxu0 0
      %5295 = vmatmul.mubr.bf16.gmra.mrb[0].mxu0 %v5016
      %v5296 = vpop.f32.mrb[0].mxu0
      %v5297 = vadd.f32 0.0, %v5296
      %v5298 = vpop.f32.mrb[0].mxu0
      %v5299 = vpop.f32.mrb[0].mxu0
      %v5300 = vadd.f32 0.0, %v5299
      %v5301 = vpop.f32.mrb[0].mxu0
      %5302 = vdwg.mxu0
      %5303 = vst.msk [vmem:[#allocation2 + $0xa0] sm:$0xff] %vm2657, %v5297
      %5304 = vst.msk [vmem:[#allocation2 + $0xb0] sm:$0xff] %vm2657, %v5300
      %s5305 = scalar_lea.vmem %s41, 12
      %v5306 = vld [vmem:[%s5305] sm:$0x3]
      %v5308 = vsel %vm5018, %v5306, 0
      %5310 = vmatprep.subr.bf16.mxu0 0
      %5311 = vmatpush1.bf16.msra.mxu0 %v5308
      %5312 = vmatprep.subr.bf16.mxu0 0
      %5313 = vmatpush1.bf16.msra.mxu0 0
      %5314 = vmatprep.subr.bf16.mxu0 0
      %5315 = vmatpush1.bf16.msra.mxu0 0
      %5316 = vmatprep.subr.bf16.mxu0 0
      %5317 = vmatpush1.bf16.msra.mxu0 0
      %5318 = vmatprep.subr.bf16.mxu0 0
      %5319 = vmatpush1.bf16.msra.mxu0 0
      %5320 = vmatprep.subr.bf16.mxu0 0
      %5321 = vmatpush1.bf16.msra.mxu0 0
      %5322 = vmatprep.subr.bf16.mxu0 0
      %5323 = vmatpush1.bf16.msra.mxu0 0
      %5324 = vmatprep.subr.bf16.mxu0 0
      %5325 = vmatpush1.bf16.msra.mxu0 0
      %5326 = vmatprep.subr.bf16.mxu0 0
      %5327 = vmatpush1.bf16.msra.mxu0 0
      %5328 = vmatprep.subr.bf16.mxu0 0
      %5329 = vmatpush1.bf16.msra.mxu0 0
      %5330 = vmatprep.subr.bf16.mxu0 0
      %5331 = vmatpush1.bf16.msra.mxu0 0
      %5332 = vmatprep.subr.bf16.mxu0 0
      %5333 = vmatpush1.bf16.msra.mxu0 0
      %5334 = vmatprep.subr.bf16.mxu0 0
      %5335 = vmatpush1.bf16.msra.mxu0 0
      %5336 = vmatprep.subr.bf16.mxu0 0
      %5337 = vmatpush1.bf16.msra.mxu0 0
      %5338 = vmatprep.subr.bf16.mxu0 0
      %5339 = vmatpush1.bf16.msra.mxu0 0
      %5340 = vmatprep.subr.bf16.mxu0 0
      %5341 = vmatpush1.bf16.msra.mxu0 0
      %5342 = vmatprep.mubr.bf16.mxu0 0
      %5343 = vmatmul.mubr.bf16.gmra.mrb[0].mxu0 %v5016
      %v5344 = vpop.f32.mrb[0].mxu0
      %v5345 = vadd.f32 0.0, %v5344
      %v5346 = vpop.f32.mrb[0].mxu0
      %v5347 = vpop.f32.mrb[0].mxu0
      %v5348 = vadd.f32 0.0, %v5347
      %v5349 = vpop.f32.mrb[0].mxu0
      %5350 = vdwg.mxu0
      %5351 = vst.msk [vmem:[#allocation2 + $0xc0] sm:$0xff] %vm2657, %v5345
      %5352 = vst.msk [vmem:[#allocation2 + $0xd0] sm:$0xff] %vm2657, %v5348
      %s5353 = scalar_lea.vmem %s41, 14
      %v5354 = vld [vmem:[%s5353] sm:$0x3]
      %v5356 = vsel %vm5018, %v5354, 0
      %5358 = vmatprep.subr.bf16.mxu0 0
      %5359 = vmatpush1.bf16.msra.mxu0 %v5356
      %5360 = vmatprep.subr.bf16.mxu0 0
      %5361 = vmatpush1.bf16.msra.mxu0 0
      %5362 = vmatprep.subr.bf16.mxu0 0
      %5363 = vmatpush1.bf16.msra.mxu0 0
      %5364 = vmatprep.subr.bf16.mxu0 0
      %5365 = vmatpush1.bf16.msra.mxu0 0
      %5366 = vmatprep.subr.bf16.mxu0 0
      %5367 = vmatpush1.bf16.msra.mxu0 0
      %5368 = vmatprep.subr.bf16.mxu0 0
      %5369 = vmatpush1.bf16.msra.mxu0 0
      %5370 = vmatprep.subr.bf16.mxu0 0
      %5371 = vmatpush1.bf16.msra.mxu0 0
      %5372 = vmatprep.subr.bf16.mxu0 0
      %5373 = vmatpush1.bf16.msra.mxu0 0
      %5374 = vmatprep.subr.bf16.mxu0 0
      %5375 = vmatpush1.bf16.msra.mxu0 0
      %5376 = vmatprep.subr.bf16.mxu0 0
      %5377 = vmatpush1.bf16.msra.mxu0 0
      %5378 = vmatprep.subr.bf16.mxu0 0
      %5379 = vmatpush1.bf16.msra.mxu0 0
      %5380 = vmatprep.subr.bf16.mxu0 0
      %5381 = vmatpush1.bf16.msra.mxu0 0
      %5382 = vmatprep.subr.bf16.mxu0 0
      %5383 = vmatpush1.bf16.msra.mxu0 0
      %5384 = vmatprep.subr.bf16.mxu0 0
      %5385 = vmatpush1.bf16.msra.mxu0 0
      %5386 = vmatprep.subr.bf16.mxu0 0
      %5387 = vmatpush1.bf16.msra.mxu0 0
      %5388 = vmatprep.subr.bf16.mxu0 0
      %5389 = vmatpush1.bf16.msra.mxu0 0
      %5390 = vmatprep.mubr.bf16.mxu0 0
      %5391 = vmatmul.mubr.bf16.gmra.mrb[0].mxu0 %v5016
      %v5392 = vpop.f32.mrb[0].mxu0
      %v5393 = vadd.f32 0.0, %v5392
      %v5394 = vpop.f32.mrb[0].mxu0
      %v5395 = vpop.f32.mrb[0].mxu0
      %v5396 = vadd.f32 0.0, %v5395
      %v5397 = vpop.f32.mrb[0].mxu0
      %5398 = vdwg.mxu0
      %5399 = vst.msk [vmem:[#allocation2 + $0xe0] sm:$0xff] %vm2657, %v5393
      %5400 = vst.msk [vmem:[#allocation2 + $0xf0] sm:$0xff] %vm2657, %v5396
      %s5401 = scalar_lea.vmem %s41, 16
      %v5402 = vld [vmem:[%s5401] sm:$0x3]
      %v5404 = vsel %vm5018, %v5402, 0
      %5406 = vmatprep.subr.bf16.mxu0 0
      %5407 = vmatpush1.bf16.msra.mxu0 %v5404
      %5408 = vmatprep.subr.bf16.mxu0 0
      %5409 = vmatpush1.bf16.msra.mxu0 0
      %5410 = vmatprep.subr.bf16.mxu0 0
      %5411 = vmatpush1.bf16.msra.mxu0 0
      %5412 = vmatprep.subr.bf16.mxu0 0
      %5413 = vmatpush1.bf16.msra.mxu0 0
      %5414 = vmatprep.subr.bf16.mxu0 0
      %5415 = vmatpush1.bf16.msra.mxu0 0
      %5416 = vmatprep.subr.bf16.mxu0 0
      %5417 = vmatpush1.bf16.msra.mxu0 0
      %5418 = vmatprep.subr.bf16.mxu0 0
      %5419 = vmatpush1.bf16.msra.mxu0 0
      %5420 = vmatprep.subr.bf16.mxu0 0
      %5421 = vmatpush1.bf16.msra.mxu0 0
      %5422 = vmatprep.subr.bf16.mxu0 0
      %5423 = vmatpush1.bf16.msra.mxu0 0
      %5424 = vmatprep.subr.bf16.mxu0 0
      %5425 = vmatpush1.bf16.msra.mxu0 0
      %5426 = vmatprep.subr.bf16.mxu0 0
      %5427 = vmatpush1.bf16.msra.mxu0 0
      %5428 = vmatprep.subr.bf16.mxu0 0
      %5429 = vmatpush1.bf16.msra.mxu0 0
      %5430 = vmatprep.subr.bf16.mxu0 0
      %5431 = vmatpush1.bf16.msra.mxu0 0
      %5432 = vmatprep.subr.bf16.mxu0 0
      %5433 = vmatpush1.bf16.msra.mxu0 0
      %5434 = vmatprep.subr.bf16.mxu0 0
      %5435 = vmatpush1.bf16.msra.mxu0 0
      %5436 = vmatprep.subr.bf16.mxu0 0
      %5437 = vmatpush1.bf16.msra.mxu0 0
      %5438 = vmatprep.mubr.bf16.mxu0 0
      %5439 = vmatmul.mubr.bf16.gmra.mrb[0].mxu0 %v5016
      %v5440 = vpop.f32.mrb[0].mxu0
      %v5441 = vadd.f32 0.0, %v5440
      %v5442 = vpop.f32.mrb[0].mxu0
      %v5443 = vpop.f32.mrb[0].mxu0
      %v5444 = vadd.f32 0.0, %v5443
      %v5445 = vpop.f32.mrb[0].mxu0
      %5446 = vdwg.mxu0
      %5447 = vst.msk [vmem:[#allocation2 + $0x100] sm:$0xff] %vm2657, %v5441
      %5448 = vst.msk [vmem:[#allocation2 + $0x110] sm:$0xff] %vm2657, %v5444
      %v5449 = vld [vmem:[#allocation2] sm:$0xff]
      %v5450 = vld [vmem:[#allocation2 + $0x10] sm:$0xff]
      %v5451 = vld [vmem:[#allocation2 + $0x20] sm:$0xff]
      %v5452 = vld [vmem:[#allocation2 + $0x30] sm:$0xff]
      %v5453 = vld [vmem:[#allocation2 + $0x40] sm:$0xff]
      %v5454 = vld [vmem:[#allocation2 + $0x50] sm:$0xff]
      %v5455 = vld [vmem:[#allocation2 + $0x60] sm:$0xff]
      %v5456 = vld [vmem:[#allocation2 + $0x70] sm:$0xff]
      %v5457 = vld [vmem:[#allocation2 + $0x80] sm:$0xff]
      %v5458 = vld [vmem:[#allocation2 + $0x90] sm:$0xff]
      %v5459 = vld [vmem:[#allocation2 + $0xa0] sm:$0xff]
      %v5460 = vld [vmem:[#allocation2 + $0xb0] sm:$0xff]
      %v5461 = vld [vmem:[#allocation2 + $0xc0] sm:$0xff]
      %v5462 = vld [vmem:[#allocation2 + $0xd0] sm:$0xff]
      %v5463 = vld [vmem:[#allocation2 + $0xe0] sm:$0xff]
      %v5464 = vld [vmem:[#allocation2 + $0xf0] sm:$0xff]
      %v5465 = vld [vmem:[#allocation2 + $0x100] sm:$0xff]
      %v5466 = vld [vmem:[#allocation2 + $0x110] sm:$0xff]
      %v5467 = vpack.c.bf16 %v5450, %v5449
      %v5468 = vpack.c.bf16 %v5452, %v5451
      %v5469 = vpack.c.bf16 %v5454, %v5453
      %v5470 = vpack.c.bf16 %v5456, %v5455
      %v5471 = vpack.c.bf16 %v5458, %v5457
      %v5472 = vpack.c.bf16 %v5460, %v5459
      %v5473 = vpack.c.bf16 %v5462, %v5461
      %v5474 = vpack.c.bf16 %v5464, %v5463
      %v5475 = vpack.c.bf16 %v5466, %v5465
      %v5476 = vld [vmem:[%s43] sm:$0xff]
      %v5477 = vld [vmem:[%s43 + $0x8] sm:$0xff]
      %v5478 = vld [vmem:[%s45] sm:$0xff]
      %v5479 = vld [vmem:[%s45 + $0x8] sm:$0xff]
      %5481 = vset.pattern.permute.xlu0 0
      %5482 = vperm.xlu0 %5481, %v5478
      %v5483 = vpop.permute.xlu0 %5482
      %5486 = vset.pattern.permute.xlu0 0
      %5487 = vperm.xlu0 %5486, %v5479
      %v5488 = vpop.permute.xlu0 %5487
      %v5492 = vunpack.c.l.b16 %v5476
      %v5493 = vunpack.c.h.b16 %v5476
      %v5494 = vunpack.c.l.b16 %v5477
      %v5495 = vunpack.c.h.b16 %v5477
      %v5496 = vpack.c.b16 %v5494, %v5492
      %v5497 = vpack.c.b16 %v5495, %v5493
      %v5500 = vsel %vm2657, %v5497, 0
      %5502 = vmatprep.subr.bf16.mxu0 0
      %5503 = vmatpush1.bf16.msra.mxu0 %v5467
      %5504 = vmatprep.subr.bf16.mxu0 0
      %5505 = vmatpush1.bf16.msra.mxu0 %v5468
      %5506 = vmatprep.subr.bf16.mxu0 0
      %5507 = vmatpush1.bf16.msra.mxu0 %v5469
      %5508 = vmatprep.subr.bf16.mxu0 0
      %5509 = vmatpush1.bf16.msra.mxu0 %v5470
      %5510 = vmatprep.subr.bf16.mxu0 0
      %5511 = vmatpush1.bf16.msra.mxu0 %v5471
      %5512 = vmatprep.subr.bf16.mxu0 0
      %5513 = vmatpush1.bf16.msra.mxu0 %v5472
      %5514 = vmatprep.subr.bf16.mxu0 0
      %5515 = vmatpush1.bf16.msra.mxu0 %v5473
      %5516 = vmatprep.subr.bf16.mxu0 0
      %5517 = vmatpush1.bf16.msra.mxu0 %v5474
      %5518 = vmatprep.subr.bf16.mxu0 0
      %5519 = vmatpush1.bf16.msra.mxu0 %v5475
      %5520 = vmatprep.subr.bf16.mxu0 0
      %5521 = vmatpush1.bf16.msra.mxu0 0
      %5522 = vmatprep.subr.bf16.mxu0 0
      %5523 = vmatpush1.bf16.msra.mxu0 0
      %5524 = vmatprep.subr.bf16.mxu0 0
      %5525 = vmatpush1.bf16.msra.mxu0 0
      %5526 = vmatprep.subr.bf16.mxu0 0
      %5527 = vmatpush1.bf16.msra.mxu0 0
      %5528 = vmatprep.subr.bf16.mxu0 0
      %5529 = vmatpush1.bf16.msra.mxu0 0
      %5530 = vmatprep.subr.bf16.mxu0 0
      %5531 = vmatpush1.bf16.msra.mxu0 0
      %5532 = vmatprep.subr.bf16.mxu0 0
      %5533 = vmatpush1.bf16.msra.mxu0 0
      %5534 = vmatprep.mubr.bf16.mxu0 %v5500
      %5535 = vmatmul.mubr.bf16.gmra.mrb[0].mxu0 %v5496
      %v5536 = vpop.f32.mrb[0].mxu0
      %v5537 = vadd.f32 %v5483, %v5536
      %v5538 = vpop.f32.mrb[0].mxu0
      %v5539 = vpop.f32.mrb[0].mxu0
      %v5540 = vadd.f32 %v5488, %v5539
      %v5541 = vpop.f32.mrb[0].mxu0
      %5542 = vdwg.mxu0
      %vm5543 = vcmp.ge.f32.partialorder %v5537, 0.0
      %vm5544 = vcmp.ge.f32.partialorder %v5540, 0.0
      %v5545 = vmul.f32 %v5537, 0.01
      %v5546 = vmul.f32 %v5540, 0.01
      %v5547 = vsel %vm5543, %v5537, %v5545
      %v5548 = vsel %vm5544, %v5540, %v5546
      %v5549 = vpack.c.bf16 %v5548, %v5547
      %v5550 = vld [vmem:[%s47] sm:$0xf]
      %v5551 = vld [vmem:[%s47 + $0x4] sm:$0xf]
      %v5554 = vunpack.c.l.b16 %v5550
      %v5555 = vunpack.c.l.b16 %v5551
      %v5556 = vpack.c.b16 %v5555, %v5554
      %v5559 = vsel %vm2657, %v5549, 0
      %5561 = vmatprep.subr.bf16.mxu0 0
      %5562 = vmatpush1.bf16.msra.mxu0 %v5556
      %5563 = vmatprep.subr.bf16.mxu0 0
      %5564 = vmatpush1.bf16.msra.mxu0 0
      %5565 = vmatprep.subr.bf16.mxu0 0
      %5566 = vmatpush1.bf16.msra.mxu0 0
      %5567 = vmatprep.subr.bf16.mxu0 0
      %5568 = vmatpush1.bf16.msra.mxu0 0
      %5569 = vmatprep.subr.bf16.mxu0 0
      %5570 = vmatpush1.bf16.msra.mxu0 0
      %5571 = vmatprep.subr.bf16.mxu0 0
      %5572 = vmatpush1.bf16.msra.mxu0 0
      %5573 = vmatprep.subr.bf16.mxu0 0
      %5574 = vmatpush1.bf16.msra.mxu0 0
      %5575 = vmatprep.subr.bf16.mxu0 0
      %5576 = vmatpush1.bf16.msra.mxu0 0
      %5577 = vmatprep.subr.bf16.mxu0 0
      %5578 = vmatpush1.bf16.msra.mxu0 0
      %5579 = vmatprep.subr.bf16.mxu0 0
      %5580 = vmatpush1.bf16.msra.mxu0 0
      %5581 = vmatprep.subr.bf16.mxu0 0
      %5582 = vmatpush1.bf16.msra.mxu0 0
      %5583 = vmatprep.subr.bf16.mxu0 0
      %5584 = vmatpush1.bf16.msra.mxu0 0
      %5585 = vmatprep.subr.bf16.mxu0 0
      %5586 = vmatpush1.bf16.msra.mxu0 0
      %5587 = vmatprep.subr.bf16.mxu0 0
      %5588 = vmatpush1.bf16.msra.mxu0 0
      %5589 = vmatprep.subr.bf16.mxu0 0
      %5590 = vmatpush1.bf16.msra.mxu0 0
      %5591 = vmatprep.subr.bf16.mxu0 0
      %5592 = vmatpush1.bf16.msra.mxu0 0
      %5593 = vmatprep.mubr.bf16.mxu0 0
      %5594 = vmatmul.mubr.bf16.gmra.mrb[0].mxu0 %v5559
      %v5595 = vpop.f32.mrb[0].mxu0
      %v5596 = vadd.f32 0.0, %v5595
      %v5597 = vpop.f32.mrb[0].mxu0
      %v5598 = vpop.f32.mrb[0].mxu0
      %v5599 = vadd.f32 0.0, %v5598
      %v5600 = vpop.f32.mrb[0].mxu0
      %5601 = vdwg.mxu0
      %5602 = vst.msk [vmem:[#allocation2] sm:$0xff] %vm1134, %v5596
      %5603 = vst.msk [vmem:[#allocation2 + $0x10] sm:$0xff] %vm1134, %v5599
      %s5604 = scalar_lea.vmem %s47, 8
      %v5605 = vld [vmem:[%s5604] sm:$0xf]
      %v5606 = vld [vmem:[%s5604 + $0x4] sm:$0xf]
      %v5609 = vunpack.c.l.b16 %v5605
      %v5610 = vunpack.c.l.b16 %v5606
      %v5611 = vpack.c.b16 %v5610, %v5609
      %5613 = vmatprep.subr.bf16.mxu0 0
      %5614 = vmatpush1.bf16.msra.mxu0 %v5611
      %5615 = vmatprep.subr.bf16.mxu0 0
      %5616 = vmatpush1.bf16.msra.mxu0 0
      %5617 = vmatprep.subr.bf16.mxu0 0
      %5618 = vmatpush1.bf16.msra.mxu0 0
      %5619 = vmatprep.subr.bf16.mxu0 0
      %5620 = vmatpush1.bf16.msra.mxu0 0
      %5621 = vmatprep.subr.bf16.mxu0 0
      %5622 = vmatpush1.bf16.msra.mxu0 0
      %5623 = vmatprep.subr.bf16.mxu0 0
      %5624 = vmatpush1.bf16.msra.mxu0 0
      %5625 = vmatprep.subr.bf16.mxu0 0
      %5626 = vmatpush1.bf16.msra.mxu0 0
      %5627 = vmatprep.subr.bf16.mxu0 0
      %5628 = vmatpush1.bf16.msra.mxu0 0
      %5629 = vmatprep.subr.bf16.mxu0 0
      %5630 = vmatpush1.bf16.msra.mxu0 0
      %5631 = vmatprep.subr.bf16.mxu0 0
      %5632 = vmatpush1.bf16.msra.mxu0 0
      %5633 = vmatprep.subr.bf16.mxu0 0
      %5634 = vmatpush1.bf16.msra.mxu0 0
      %5635 = vmatprep.subr.bf16.mxu0 0
      %5636 = vmatpush1.bf16.msra.mxu0 0
      %5637 = vmatprep.subr.bf16.mxu0 0
      %5638 = vmatpush1.bf16.msra.mxu0 0
      %5639 = vmatprep.subr.bf16.mxu0 0
      %5640 = vmatpush1.bf16.msra.mxu0 0
      %5641 = vmatprep.subr.bf16.mxu0 0
      %5642 = vmatpush1.bf16.msra.mxu0 0
      %5643 = vmatprep.subr.bf16.mxu0 0
      %5644 = vmatpush1.bf16.msra.mxu0 0
      %5645 = vmatprep.mubr.bf16.mxu0 0
      %5646 = vmatmul.mubr.bf16.gmra.mrb[0].mxu0 %v5559
      %v5647 = vpop.f32.mrb[0].mxu0
      %v5648 = vadd.f32 0.0, %v5647
      %v5649 = vpop.f32.mrb[0].mxu0
      %v5650 = vpop.f32.mrb[0].mxu0
      %v5651 = vadd.f32 0.0, %v5650
      %v5652 = vpop.f32.mrb[0].mxu0
      %5653 = vdwg.mxu0
      %5654 = vst.msk [vmem:[#allocation2 + $0x20] sm:$0xff] %vm1134, %v5648
      %5655 = vst.msk [vmem:[#allocation2 + $0x30] sm:$0xff] %vm1134, %v5651
      %s5656 = scalar_lea.vmem %s47, 16
      %v5657 = vld [vmem:[%s5656] sm:$0xf]
      %v5658 = vld [vmem:[%s5656 + $0x4] sm:$0xf]
      %v5661 = vunpack.c.l.b16 %v5657
      %v5662 = vunpack.c.l.b16 %v5658
      %v5663 = vpack.c.b16 %v5662, %v5661
      %5665 = vmatprep.subr.bf16.mxu0 0
      %5666 = vmatpush1.bf16.msra.mxu0 %v5663
      %5667 = vmatprep.subr.bf16.mxu0 0
      %5668 = vmatpush1.bf16.msra.mxu0 0
      %5669 = vmatprep.subr.bf16.mxu0 0
      %5670 = vmatpush1.bf16.msra.mxu0 0
      %5671 = vmatprep.subr.bf16.mxu0 0
      %5672 = vmatpush1.bf16.msra.mxu0 0
      %5673 = vmatprep.subr.bf16.mxu0 0
      %5674 = vmatpush1.bf16.msra.mxu0 0
      %5675 = vmatprep.subr.bf16.mxu0 0
      %5676 = vmatpush1.bf16.msra.mxu0 0
      %5677 = vmatprep.subr.bf16.mxu0 0
      %5678 = vmatpush1.bf16.msra.mxu0 0
      %5679 = vmatprep.subr.bf16.mxu0 0
      %5680 = vmatpush1.bf16.msra.mxu0 0
      %5681 = vmatprep.subr.bf16.mxu0 0
      %5682 = vmatpush1.bf16.msra.mxu0 0
      %5683 = vmatprep.subr.bf16.mxu0 0
      %5684 = vmatpush1.bf16.msra.mxu0 0
      %5685 = vmatprep.subr.bf16.mxu0 0
      %5686 = vmatpush1.bf16.msra.mxu0 0
      %5687 = vmatprep.subr.bf16.mxu0 0
      %5688 = vmatpush1.bf16.msra.mxu0 0
      %5689 = vmatprep.subr.bf16.mxu0 0
      %5690 = vmatpush1.bf16.msra.mxu0 0
      %5691 = vmatprep.subr.bf16.mxu0 0
      %5692 = vmatpush1.bf16.msra.mxu0 0
      %5693 = vmatprep.subr.bf16.mxu0 0
      %5694 = vmatpush1.bf16.msra.mxu0 0
      %5695 = vmatprep.subr.bf16.mxu0 0
      %5696 = vmatpush1.bf16.msra.mxu0 0
      %5697 = vmatprep.mubr.bf16.mxu0 0
      %5698 = vmatmul.mubr.bf16.gmra.mrb[0].mxu0 %v5559
      %v5699 = vpop.f32.mrb[0].mxu0
      %v5700 = vadd.f32 0.0, %v5699
      %v5701 = vpop.f32.mrb[0].mxu0
      %v5702 = vpop.f32.mrb[0].mxu0
      %v5703 = vadd.f32 0.0, %v5702
      %v5704 = vpop.f32.mrb[0].mxu0
      %5705 = vdwg.mxu0
      %5706 = vst.msk [vmem:[#allocation2 + $0x40] sm:$0xff] %vm1134, %v5700
      %5707 = vst.msk [vmem:[#allocation2 + $0x50] sm:$0xff] %vm1134, %v5703
      %s5708 = scalar_lea.vmem %s47, 24
      %v5709 = vld [vmem:[%s5708] sm:$0xf]
      %v5710 = vld [vmem:[%s5708 + $0x4] sm:$0xf]
      %v5713 = vunpack.c.l.b16 %v5709
      %v5714 = vunpack.c.l.b16 %v5710
      %v5715 = vpack.c.b16 %v5714, %v5713
      %5717 = vmatprep.subr.bf16.mxu0 0
      %5718 = vmatpush1.bf16.msra.mxu0 %v5715
      %5719 = vmatprep.subr.bf16.mxu0 0
      %5720 = vmatpush1.bf16.msra.mxu0 0
      %5721 = vmatprep.subr.bf16.mxu0 0
      %5722 = vmatpush1.bf16.msra.mxu0 0
      %5723 = vmatprep.subr.bf16.mxu0 0
      %5724 = vmatpush1.bf16.msra.mxu0 0
      %5725 = vmatprep.subr.bf16.mxu0 0
      %5726 = vmatpush1.bf16.msra.mxu0 0
      %5727 = vmatprep.subr.bf16.mxu0 0
      %5728 = vmatpush1.bf16.msra.mxu0 0
      %5729 = vmatprep.subr.bf16.mxu0 0
      %5730 = vmatpush1.bf16.msra.mxu0 0
      %5731 = vmatprep.subr.bf16.mxu0 0
      %5732 = vmatpush1.bf16.msra.mxu0 0
      %5733 = vmatprep.subr.bf16.mxu0 0
      %5734 = vmatpush1.bf16.msra.mxu0 0
      %5735 = vmatprep.subr.bf16.mxu0 0
      %5736 = vmatpush1.bf16.msra.mxu0 0
      %5737 = vmatprep.subr.bf16.mxu0 0
      %5738 = vmatpush1.bf16.msra.mxu0 0
      %5739 = vmatprep.subr.bf16.mxu0 0
      %5740 = vmatpush1.bf16.msra.mxu0 0
      %5741 = vmatprep.subr.bf16.mxu0 0
      %5742 = vmatpush1.bf16.msra.mxu0 0
      %5743 = vmatprep.subr.bf16.mxu0 0
      %5744 = vmatpush1.bf16.msra.mxu0 0
      %5745 = vmatprep.subr.bf16.mxu0 0
      %5746 = vmatpush1.bf16.msra.mxu0 0
      %5747 = vmatprep.subr.bf16.mxu0 0
      %5748 = vmatpush1.bf16.msra.mxu0 0
      %5749 = vmatprep.mubr.bf16.mxu0 0
      %5750 = vmatmul.mubr.bf16.gmra.mrb[0].mxu0 %v5559
      %v5751 = vpop.f32.mrb[0].mxu0
      %v5752 = vadd.f32 0.0, %v5751
      %v5753 = vpop.f32.mrb[0].mxu0
      %v5754 = vpop.f32.mrb[0].mxu0
      %v5755 = vadd.f32 0.0, %v5754
      %v5756 = vpop.f32.mrb[0].mxu0
      %5757 = vdwg.mxu0
      %5758 = vst.msk [vmem:[#allocation2 + $0x60] sm:$0xff] %vm1134, %v5752
      %5759 = vst.msk [vmem:[#allocation2 + $0x70] sm:$0xff] %vm1134, %v5755
      %s5760 = scalar_lea.vmem %s47, 32
      %v5761 = vld [vmem:[%s5760] sm:$0xf]
      %v5762 = vld [vmem:[%s5760 + $0x4] sm:$0xf]
      %v5765 = vunpack.c.l.b16 %v5761
      %v5766 = vunpack.c.l.b16 %v5762
      %v5767 = vpack.c.b16 %v5766, %v5765
      %5769 = vmatprep.subr.bf16.mxu0 0
      %5770 = vmatpush1.bf16.msra.mxu0 %v5767
      %5771 = vmatprep.subr.bf16.mxu0 0
      %5772 = vmatpush1.bf16.msra.mxu0 0
      %5773 = vmatprep.subr.bf16.mxu0 0
      %5774 = vmatpush1.bf16.msra.mxu0 0
      %5775 = vmatprep.subr.bf16.mxu0 0
      %5776 = vmatpush1.bf16.msra.mxu0 0
      %5777 = vmatprep.subr.bf16.mxu0 0
      %5778 = vmatpush1.bf16.msra.mxu0 0
      %5779 = vmatprep.subr.bf16.mxu0 0
      %5780 = vmatpush1.bf16.msra.mxu0 0
      %5781 = vmatprep.subr.bf16.mxu0 0
      %5782 = vmatpush1.bf16.msra.mxu0 0
      %5783 = vmatprep.subr.bf16.mxu0 0
      %5784 = vmatpush1.bf16.msra.mxu0 0
      %5785 = vmatprep.subr.bf16.mxu0 0
      %5786 = vmatpush1.bf16.msra.mxu0 0
      %5787 = vmatprep.subr.bf16.mxu0 0
      %5788 = vmatpush1.bf16.msra.mxu0 0
      %5789 = vmatprep.subr.bf16.mxu0 0
      %5790 = vmatpush1.bf16.msra.mxu0 0
      %5791 = vmatprep.subr.bf16.mxu0 0
      %5792 = vmatpush1.bf16.msra.mxu0 0
      %5793 = vmatprep.subr.bf16.mxu0 0
      %5794 = vmatpush1.bf16.msra.mxu0 0
      %5795 = vmatprep.subr.bf16.mxu0 0
      %5796 = vmatpush1.bf16.msra.mxu0 0
      %5797 = vmatprep.subr.bf16.mxu0 0
      %5798 = vmatpush1.bf16.msra.mxu0 0
      %5799 = vmatprep.subr.bf16.mxu0 0
      %5800 = vmatpush1.bf16.msra.mxu0 0
      %5801 = vmatprep.mubr.bf16.mxu0 0
      %5802 = vmatmul.mubr.bf16.gmra.mrb[0].mxu0 %v5559
      %v5803 = vpop.f32.mrb[0].mxu0
      %v5804 = vadd.f32 0.0, %v5803
      %v5805 = vpop.f32.mrb[0].mxu0
      %v5806 = vpop.f32.mrb[0].mxu0
      %v5807 = vadd.f32 0.0, %v5806
      %v5808 = vpop.f32.mrb[0].mxu0
      %5809 = vdwg.mxu0
      %5810 = vst.msk [vmem:[#allocation2 + $0x80] sm:$0xff] %vm1134, %v5804
      %5811 = vst.msk [vmem:[#allocation2 + $0x90] sm:$0xff] %vm1134, %v5807
      %s5812 = scalar_lea.vmem %s47, 40
      %v5813 = vld [vmem:[%s5812] sm:$0xf]
      %v5814 = vld [vmem:[%s5812 + $0x4] sm:$0xf]
      %v5817 = vunpack.c.l.b16 %v5813
      %v5818 = vunpack.c.l.b16 %v5814
      %v5819 = vpack.c.b16 %v5818, %v5817
      %5821 = vmatprep.subr.bf16.mxu0 0
      %5822 = vmatpush1.bf16.msra.mxu0 %v5819
      %5823 = vmatprep.subr.bf16.mxu0 0
      %5824 = vmatpush1.bf16.msra.mxu0 0
      %5825 = vmatprep.subr.bf16.mxu0 0
      %5826 = vmatpush1.bf16.msra.mxu0 0
      %5827 = vmatprep.subr.bf16.mxu0 0
      %5828 = vmatpush1.bf16.msra.mxu0 0
      %5829 = vmatprep.subr.bf16.mxu0 0
      %5830 = vmatpush1.bf16.msra.mxu0 0
      %5831 = vmatprep.subr.bf16.mxu0 0
      %5832 = vmatpush1.bf16.msra.mxu0 0
      %5833 = vmatprep.subr.bf16.mxu0 0
      %5834 = vmatpush1.bf16.msra.mxu0 0
      %5835 = vmatprep.subr.bf16.mxu0 0
      %5836 = vmatpush1.bf16.msra.mxu0 0
      %5837 = vmatprep.subr.bf16.mxu0 0
      %5838 = vmatpush1.bf16.msra.mxu0 0
      %5839 = vmatprep.subr.bf16.mxu0 0
      %5840 = vmatpush1.bf16.msra.mxu0 0
      %5841 = vmatprep.subr.bf16.mxu0 0
      %5842 = vmatpush1.bf16.msra.mxu0 0
      %5843 = vmatprep.subr.bf16.mxu0 0
      %5844 = vmatpush1.bf16.msra.mxu0 0
      %5845 = vmatprep.subr.bf16.mxu0 0
      %5846 = vmatpush1.bf16.msra.mxu0 0
      %5847 = vmatprep.subr.bf16.mxu0 0
      %5848 = vmatpush1.bf16.msra.mxu0 0
      %5849 = vmatprep.subr.bf16.mxu0 0
      %5850 = vmatpush1.bf16.msra.mxu0 0
      %5851 = vmatprep.subr.bf16.mxu0 0
      %5852 = vmatpush1.bf16.msra.mxu0 0
      %5853 = vmatprep.mubr.bf16.mxu0 0
      %5854 = vmatmul.mubr.bf16.gmra.mrb[0].mxu0 %v5559
      %v5855 = vpop.f32.mrb[0].mxu0
      %v5856 = vadd.f32 0.0, %v5855
      %v5857 = vpop.f32.mrb[0].mxu0
      %v5858 = vpop.f32.mrb[0].mxu0
      %v5859 = vadd.f32 0.0, %v5858
      %v5860 = vpop.f32.mrb[0].mxu0
      %5861 = vdwg.mxu0
      %5862 = vst.msk [vmem:[#allocation2 + $0xa0] sm:$0xff] %vm1134, %v5856
      %5863 = vst.msk [vmem:[#allocation2 + $0xb0] sm:$0xff] %vm1134, %v5859
      %s5864 = scalar_lea.vmem %s47, 48
      %v5865 = vld [vmem:[%s5864] sm:$0xf]
      %v5866 = vld [vmem:[%s5864 + $0x4] sm:$0xf]
      %v5869 = vunpack.c.l.b16 %v5865
      %v5870 = vunpack.c.l.b16 %v5866
      %v5871 = vpack.c.b16 %v5870, %v5869
      %5873 = vmatprep.subr.bf16.mxu0 0
      %5874 = vmatpush1.bf16.msra.mxu0 %v5871
      %5875 = vmatprep.subr.bf16.mxu0 0
      %5876 = vmatpush1.bf16.msra.mxu0 0
      %5877 = vmatprep.subr.bf16.mxu0 0
      %5878 = vmatpush1.bf16.msra.mxu0 0
      %5879 = vmatprep.subr.bf16.mxu0 0
      %5880 = vmatpush1.bf16.msra.mxu0 0
      %5881 = vmatprep.subr.bf16.mxu0 0
      %5882 = vmatpush1.bf16.msra.mxu0 0
      %5883 = vmatprep.subr.bf16.mxu0 0
      %5884 = vmatpush1.bf16.msra.mxu0 0
      %5885 = vmatprep.subr.bf16.mxu0 0
      %5886 = vmatpush1.bf16.msra.mxu0 0
      %5887 = vmatprep.subr.bf16.mxu0 0
      %5888 = vmatpush1.bf16.msra.mxu0 0
      %5889 = vmatprep.subr.bf16.mxu0 0
      %5890 = vmatpush1.bf16.msra.mxu0 0
      %5891 = vmatprep.subr.bf16.mxu0 0
      %5892 = vmatpush1.bf16.msra.mxu0 0
      %5893 = vmatprep.subr.bf16.mxu0 0
      %5894 = vmatpush1.bf16.msra.mxu0 0
      %5895 = vmatprep.subr.bf16.mxu0 0
      %5896 = vmatpush1.bf16.msra.mxu0 0
      %5897 = vmatprep.subr.bf16.mxu0 0
      %5898 = vmatpush1.bf16.msra.mxu0 0
      %5899 = vmatprep.subr.bf16.mxu0 0
      %5900 = vmatpush1.bf16.msra.mxu0 0
      %5901 = vmatprep.subr.bf16.mxu0 0
      %5902 = vmatpush1.bf16.msra.mxu0 0
      %5903 = vmatprep.subr.bf16.mxu0 0
      %5904 = vmatpush1.bf16.msra.mxu0 0
      %5905 = vmatprep.mubr.bf16.mxu0 0
      %5906 = vmatmul.mubr.bf16.gmra.mrb[0].mxu0 %v5559
      %v5907 = vpop.f32.mrb[0].mxu0
      %v5908 = vadd.f32 0.0, %v5907
      %v5909 = vpop.f32.mrb[0].mxu0
      %v5910 = vpop.f32.mrb[0].mxu0
      %v5911 = vadd.f32 0.0, %v5910
      %v5912 = vpop.f32.mrb[0].mxu0
      %5913 = vdwg.mxu0
      %5914 = vst.msk [vmem:[#allocation2 + $0xc0] sm:$0xff] %vm1134, %v5908
      %5915 = vst.msk [vmem:[#allocation2 + $0xd0] sm:$0xff] %vm1134, %v5911
      %s5916 = scalar_lea.vmem %s47, 56
      %v5917 = vld [vmem:[%s5916] sm:$0xf]
      %v5918 = vld [vmem:[%s5916 + $0x4] sm:$0xf]
      %v5921 = vunpack.c.l.b16 %v5917
      %v5922 = vunpack.c.l.b16 %v5918
      %v5923 = vpack.c.b16 %v5922, %v5921
      %5925 = vmatprep.subr.bf16.mxu0 0
      %5926 = vmatpush1.bf16.msra.mxu0 %v5923
      %5927 = vmatprep.subr.bf16.mxu0 0
      %5928 = vmatpush1.bf16.msra.mxu0 0
      %5929 = vmatprep.subr.bf16.mxu0 0
      %5930 = vmatpush1.bf16.msra.mxu0 0
      %5931 = vmatprep.subr.bf16.mxu0 0
      %5932 = vmatpush1.bf16.msra.mxu0 0
      %5933 = vmatprep.subr.bf16.mxu0 0
      %5934 = vmatpush1.bf16.msra.mxu0 0
      %5935 = vmatprep.subr.bf16.mxu0 0
      %5936 = vmatpush1.bf16.msra.mxu0 0
      %5937 = vmatprep.subr.bf16.mxu0 0
      %5938 = vmatpush1.bf16.msra.mxu0 0
      %5939 = vmatprep.subr.bf16.mxu0 0
      %5940 = vmatpush1.bf16.msra.mxu0 0
      %5941 = vmatprep.subr.bf16.mxu0 0
      %5942 = vmatpush1.bf16.msra.mxu0 0
      %5943 = vmatprep.subr.bf16.mxu0 0
      %5944 = vmatpush1.bf16.msra.mxu0 0
      %5945 = vmatprep.subr.bf16.mxu0 0
      %5946 = vmatpush1.bf16.msra.mxu0 0
      %5947 = vmatprep.subr.bf16.mxu0 0
      %5948 = vmatpush1.bf16.msra.mxu0 0
      %5949 = vmatprep.subr.bf16.mxu0 0
      %5950 = vmatpush1.bf16.msra.mxu0 0
      %5951 = vmatprep.subr.bf16.mxu0 0
      %5952 = vmatpush1.bf16.msra.mxu0 0
      %5953 = vmatprep.subr.bf16.mxu0 0
      %5954 = vmatpush1.bf16.msra.mxu0 0
      %5955 = vmatprep.subr.bf16.mxu0 0
      %5956 = vmatpush1.bf16.msra.mxu0 0
      %5957 = vmatprep.mubr.bf16.mxu0 0
      %5958 = vmatmul.mubr.bf16.gmra.mrb[0].mxu0 %v5559
      %v5959 = vpop.f32.mrb[0].mxu0
      %v5960 = vadd.f32 0.0, %v5959
      %v5961 = vpop.f32.mrb[0].mxu0
      %v5962 = vpop.f32.mrb[0].mxu0
      %v5963 = vadd.f32 0.0, %v5962
      %v5964 = vpop.f32.mrb[0].mxu0
      %5965 = vdwg.mxu0
      %5966 = vst.msk [vmem:[#allocation2 + $0xe0] sm:$0xff] %vm1134, %v5960
      %5967 = vst.msk [vmem:[#allocation2 + $0xf0] sm:$0xff] %vm1134, %v5963
      %s5968 = scalar_lea.vmem %s47, 64
      %v5969 = vld [vmem:[%s5968] sm:$0xf]
      %v5970 = vld [vmem:[%s5968 + $0x4] sm:$0xf]
      %v5973 = vunpack.c.l.b16 %v5969
      %v5974 = vunpack.c.l.b16 %v5970
      %v5975 = vpack.c.b16 %v5974, %v5973
      %5977 = vmatprep.subr.bf16.mxu0 0
      %5978 = vmatpush1.bf16.msra.mxu0 %v5975
      %5979 = vmatprep.subr.bf16.mxu0 0
      %5980 = vmatpush1.bf16.msra.mxu0 0
      %5981 = vmatprep.subr.bf16.mxu0 0
      %5982 = vmatpush1.bf16.msra.mxu0 0
      %5983 = vmatprep.subr.bf16.mxu0 0
      %5984 = vmatpush1.bf16.msra.mxu0 0
      %5985 = vmatprep.subr.bf16.mxu0 0
      %5986 = vmatpush1.bf16.msra.mxu0 0
      %5987 = vmatprep.subr.bf16.mxu0 0
      %5988 = vmatpush1.bf16.msra.mxu0 0
      %5989 = vmatprep.subr.bf16.mxu0 0
      %5990 = vmatpush1.bf16.msra.mxu0 0
      %5991 = vmatprep.subr.bf16.mxu0 0
      %5992 = vmatpush1.bf16.msra.mxu0 0
      %5993 = vmatprep.subr.bf16.mxu0 0
      %5994 = vmatpush1.bf16.msra.mxu0 0
      %5995 = vmatprep.subr.bf16.mxu0 0
      %5996 = vmatpush1.bf16.msra.mxu0 0
      %5997 = vmatprep.subr.bf16.mxu0 0
      %5998 = vmatpush1.bf16.msra.mxu0 0
      %5999 = vmatprep.subr.bf16.mxu0 0
      %6000 = vmatpush1.bf16.msra.mxu0 0
      %6001 = vmatprep.subr.bf16.mxu0 0
      %6002 = vmatpush1.bf16.msra.mxu0 0
      %6003 = vmatprep.subr.bf16.mxu0 0
      %6004 = vmatpush1.bf16.msra.mxu0 0
      %6005 = vmatprep.subr.bf16.mxu0 0
      %6006 = vmatpush1.bf16.msra.mxu0 0
      %6007 = vmatprep.subr.bf16.mxu0 0
      %6008 = vmatpush1.bf16.msra.mxu0 0
      %6009 = vmatprep.mubr.bf16.mxu0 0
      %6010 = vmatmul.mubr.bf16.gmra.mrb[0].mxu0 %v5559
      %v6011 = vpop.f32.mrb[0].mxu0
      %v6012 = vadd.f32 0.0, %v6011
      %v6013 = vpop.f32.mrb[0].mxu0
      %v6014 = vpop.f32.mrb[0].mxu0
      %v6015 = vadd.f32 0.0, %v6014
      %v6016 = vpop.f32.mrb[0].mxu0
      %6017 = vdwg.mxu0
      %6018 = vst.msk [vmem:[#allocation2 + $0x100] sm:$0xff] %vm1134, %v6012
      %6019 = vst.msk [vmem:[#allocation2 + $0x110] sm:$0xff] %vm1134, %v6015
      %v6020 = vld [vmem:[#allocation2] sm:$0xff]
      %v6021 = vld [vmem:[#allocation2 + $0x10] sm:$0xff]
      %v6022 = vld [vmem:[#allocation2 + $0x20] sm:$0xff]
      %v6023 = vld [vmem:[#allocation2 + $0x30] sm:$0xff]
      %v6024 = vld [vmem:[#allocation2 + $0x40] sm:$0xff]
      %v6025 = vld [vmem:[#allocation2 + $0x50] sm:$0xff]
      %v6026 = vld [vmem:[#allocation2 + $0x60] sm:$0xff]
      %v6027 = vld [vmem:[#allocation2 + $0x70] sm:$0xff]
      %v6028 = vld [vmem:[#allocation2 + $0x80] sm:$0xff]
      %v6029 = vld [vmem:[#allocation2 + $0x90] sm:$0xff]
      %v6030 = vld [vmem:[#allocation2 + $0xa0] sm:$0xff]
      %v6031 = vld [vmem:[#allocation2 + $0xb0] sm:$0xff]
      %v6032 = vld [vmem:[#allocation2 + $0xc0] sm:$0xff]
      %v6033 = vld [vmem:[#allocation2 + $0xd0] sm:$0xff]
      %v6034 = vld [vmem:[#allocation2 + $0xe0] sm:$0xff]
      %v6035 = vld [vmem:[#allocation2 + $0xf0] sm:$0xff]
      %v6036 = vld [vmem:[#allocation2 + $0x100] sm:$0xff]
      %v6037 = vld [vmem:[#allocation2 + $0x110] sm:$0xff]
      %v6038 = vpack.c.bf16 %v6021, %v6020
      %v6039 = vpack.c.bf16 %v6023, %v6022
      %v6040 = vpack.c.bf16 %v6025, %v6024
      %v6041 = vpack.c.bf16 %v6027, %v6026
      %v6042 = vpack.c.bf16 %v6029, %v6028
      %v6043 = vpack.c.bf16 %v6031, %v6030
      %v6044 = vpack.c.bf16 %v6033, %v6032
      %v6045 = vpack.c.bf16 %v6035, %v6034
      %v6046 = vpack.c.bf16 %v6037, %v6036
      %v6047 = vld [vmem:[%s49] sm:$0xff]
      %v6048 = vld [vmem:[%s49 + $0x8] sm:$0xff]
      %v6049 = vld [vmem:[%s51] sm:$0xff]
      %v6050 = vld [vmem:[%s51 + $0x8] sm:$0xff]
      %6052 = vset.pattern.permute.xlu0 0
      %6053 = vperm.xlu0 %6052, %v6049
      %v6054 = vpop.permute.xlu0 %6053
      %6057 = vset.pattern.permute.xlu0 0
      %6058 = vperm.xlu0 %6057, %v6050
      %v6059 = vpop.permute.xlu0 %6058
      %v6063 = vunpack.c.l.b16 %v6047
      %v6064 = vunpack.c.h.b16 %v6047
      %v6065 = vunpack.c.l.b16 %v6048
      %v6066 = vunpack.c.h.b16 %v6048
      %v6067 = vpack.c.b16 %v6065, %v6063
      %v6068 = vpack.c.b16 %v6066, %v6064
      %v6071 = vsel %vm2657, %v6068, 0
      %6073 = vmatprep.subr.bf16.mxu0 0
      %6074 = vmatpush1.bf16.msra.mxu0 %v6038
      %6075 = vmatprep.subr.bf16.mxu0 0
      %6076 = vmatpush1.bf16.msra.mxu0 %v6039
      %6077 = vmatprep.subr.bf16.mxu0 0
      %6078 = vmatpush1.bf16.msra.mxu0 %v6040
      %6079 = vmatprep.subr.bf16.mxu0 0
      %6080 = vmatpush1.bf16.msra.mxu0 %v6041
      %6081 = vmatprep.subr.bf16.mxu0 0
      %6082 = vmatpush1.bf16.msra.mxu0 %v6042
      %6083 = vmatprep.subr.bf16.mxu0 0
      %6084 = vmatpush1.bf16.msra.mxu0 %v6043
      %6085 = vmatprep.subr.bf16.mxu0 0
      %6086 = vmatpush1.bf16.msra.mxu0 %v6044
      %6087 = vmatprep.subr.bf16.mxu0 0
      %6088 = vmatpush1.bf16.msra.mxu0 %v6045
      %6089 = vmatprep.subr.bf16.mxu0 0
      %6090 = vmatpush1.bf16.msra.mxu0 %v6046
      %6091 = vmatprep.subr.bf16.mxu0 0
      %6092 = vmatpush1.bf16.msra.mxu0 0
      %6093 = vmatprep.subr.bf16.mxu0 0
      %6094 = vmatpush1.bf16.msra.mxu0 0
      %6095 = vmatprep.subr.bf16.mxu0 0
      %6096 = vmatpush1.bf16.msra.mxu0 0
      %6097 = vmatprep.subr.bf16.mxu0 0
      %6098 = vmatpush1.bf16.msra.mxu0 0
      %6099 = vmatprep.subr.bf16.mxu0 0
      %6100 = vmatpush1.bf16.msra.mxu0 0
      %6101 = vmatprep.subr.bf16.mxu0 0
      %6102 = vmatpush1.bf16.msra.mxu0 0
      %6103 = vmatprep.subr.bf16.mxu0 0
      %6104 = vmatpush1.bf16.msra.mxu0 0
      %6105 = vmatprep.mubr.bf16.mxu0 %v6071
      %6106 = vmatmul.mubr.bf16.gmra.mrb[0].mxu0 %v6067
      %v6107 = vpop.f32.mrb[0].mxu0
      %v6108 = vadd.f32 %v6054, %v6107
      %v6109 = vpop.f32.mrb[0].mxu0
      %v6110 = vpop.f32.mrb[0].mxu0
      %v6111 = vadd.f32 %v6059, %v6110
      %v6112 = vpop.f32.mrb[0].mxu0
      %6113 = vdwg.mxu0
      %vm6114 = vcmp.ge.f32.partialorder %v6108, 0.0
      %vm6115 = vcmp.ge.f32.partialorder %v6111, 0.0
      %v6116 = vmul.f32 %v6108, 0.01
      %v6117 = vmul.f32 %v6111, 0.01
      %v6118 = vsel %vm6114, %v6108, %v6116
      %v6119 = vsel %vm6115, %v6111, %v6117
      %v6120 = vpack.c.bf16 %v6119, %v6118
      %v6121 = vld [vmem:[%s53] sm:$0xff]
      %v6122 = vld [vmem:[%s53 + $0x8] sm:$0xff]
      %v6123 = vld [vmem:[%s53 + $0x10] sm:$0xff]
      %v6124 = vld [vmem:[%s53 + $0x18] sm:$0xff]
      %v6125 = vld [vmem:[%s53 + $0x20] sm:$0xff]
      %v6126 = vld [vmem:[%s53 + $0x28] sm:$0xff]
      %v6127 = vld [vmem:[%s53 + $0x30] sm:$0xff]
      %v6128 = vld [vmem:[%s53 + $0x38] sm:$0xff]
      %v6137 = vunpack.c.l.b16 %v6121
      %v6138 = vunpack.c.h.b16 %v6121
      %v6139 = vunpack.c.l.b16 %v6122
      %v6140 = vunpack.c.h.b16 %v6122
      %v6141 = vunpack.c.l.b16 %v6123
      %v6142 = vunpack.c.h.b16 %v6123
      %v6143 = vunpack.c.l.b16 %v6124
      %v6144 = vunpack.c.h.b16 %v6124
      %v6145 = vunpack.c.l.b16 %v6125
      %v6146 = vunpack.c.h.b16 %v6125
      %v6147 = vunpack.c.l.b16 %v6126
      %v6148 = vunpack.c.h.b16 %v6126
      %v6149 = vunpack.c.l.b16 %v6127
      %v6150 = vunpack.c.h.b16 %v6127
      %v6151 = vunpack.c.l.b16 %v6128
      %v6152 = vunpack.c.h.b16 %v6128
      %v6153 = vpack.c.b16 %v6139, %v6137
      %v6154 = vpack.c.b16 %v6140, %v6138
      %v6155 = vpack.c.b16 %v6143, %v6141
      %v6156 = vpack.c.b16 %v6144, %v6142
      %v6157 = vpack.c.b16 %v6147, %v6145
      %v6158 = vpack.c.b16 %v6148, %v6146
      %v6159 = vpack.c.b16 %v6151, %v6149
      %v6160 = vpack.c.b16 %v6152, %v6150
      %v6170 = vsel %vm1134, %v6120, 0
      %6172 = vmatprep.subr.bf16.mxu0 %v6154
      %6173 = vmatpush1.bf16.msra.mxu0 %v6153
      %6174 = vmatprep.subr.bf16.mxu0 %v6156
      %6175 = vmatpush1.bf16.msra.mxu0 %v6155
      %6176 = vmatprep.subr.bf16.mxu0 %v6158
      %6177 = vmatpush1.bf16.msra.mxu0 %v6157
      %6178 = vmatprep.subr.bf16.mxu0 %v6160
      %6179 = vmatpush1.bf16.msra.mxu0 %v6159
      %6180 = vmatprep.subr.bf16.mxu0 0
      %6181 = vmatpush1.bf16.msra.mxu0 0
      %6182 = vmatprep.subr.bf16.mxu0 0
      %6183 = vmatpush1.bf16.msra.mxu0 0
      %6184 = vmatprep.subr.bf16.mxu0 0
      %6185 = vmatpush1.bf16.msra.mxu0 0
      %6186 = vmatprep.subr.bf16.mxu0 0
      %6187 = vmatpush1.bf16.msra.mxu0 0
      %6188 = vmatprep.subr.bf16.mxu0 0
      %6189 = vmatpush1.bf16.msra.mxu0 0
      %6190 = vmatprep.subr.bf16.mxu0 0
      %6191 = vmatpush1.bf16.msra.mxu0 0
      %6192 = vmatprep.subr.bf16.mxu0 0
      %6193 = vmatpush1.bf16.msra.mxu0 0
      %6194 = vmatprep.subr.bf16.mxu0 0
      %6195 = vmatpush1.bf16.msra.mxu0 0
      %6196 = vmatprep.subr.bf16.mxu0 0
      %6197 = vmatpush1.bf16.msra.mxu0 0
      %6198 = vmatprep.subr.bf16.mxu0 0
      %6199 = vmatpush1.bf16.msra.mxu0 0
      %6200 = vmatprep.subr.bf16.mxu0 0
      %6201 = vmatpush1.bf16.msra.mxu0 0
      %6202 = vmatprep.subr.bf16.mxu0 0
      %6203 = vmatpush1.bf16.msra.mxu0 0
      %6204 = vmatprep.mubr.bf16.mxu0 0
      %6205 = vmatmul.mubr.bf16.gmra.mrb[0].mxu0 %v6170
      %v6206 = vpop.f32.mrb[0].mxu0
      %v6207 = vadd.f32 0.0, %v6206
      %v6208 = vpop.f32.mrb[0].mxu0
      %v6209 = vadd.f32 0.0, %v6208
      %v6210 = vpop.f32.mrb[0].mxu0
      %v6211 = vadd.f32 0.0, %v6210
      %v6212 = vpop.f32.mrb[0].mxu0
      %v6213 = vadd.f32 0.0, %v6212
      %6214 = vdwg.mxu0
      %6215 = vst [vmem:[#allocation2] sm:$0xff] %v6207
      %6216 = vst [vmem:[#allocation2 + $0x8] sm:$0xff] %v6209
      %6217 = vst [vmem:[#allocation2 + $0x10] sm:$0xff] %v6211
      %6218 = vst [vmem:[#allocation2 + $0x18] sm:$0xff] %v6213
      %s6219 = scalar_lea.vmem %s53, 64
      %v6220 = vld [vmem:[%s6219] sm:$0xff]
      %v6221 = vld [vmem:[%s6219 + $0x8] sm:$0xff]
      %v6222 = vld [vmem:[%s6219 + $0x10] sm:$0xff]
      %v6223 = vld [vmem:[%s6219 + $0x18] sm:$0xff]
      %v6224 = vld [vmem:[%s6219 + $0x20] sm:$0xff]
      %v6225 = vld [vmem:[%s6219 + $0x28] sm:$0xff]
      %v6226 = vld [vmem:[%s6219 + $0x30] sm:$0xff]
      %v6227 = vld [vmem:[%s6219 + $0x38] sm:$0xff]
      %v6236 = vunpack.c.l.b16 %v6220
      %v6237 = vunpack.c.h.b16 %v6220
      %v6238 = vunpack.c.l.b16 %v6221
      %v6239 = vunpack.c.h.b16 %v6221
      %v6240 = vunpack.c.l.b16 %v6222
      %v6241 = vunpack.c.h.b16 %v6222
      %v6242 = vunpack.c.l.b16 %v6223
      %v6243 = vunpack.c.h.b16 %v6223
      %v6244 = vunpack.c.l.b16 %v6224
      %v6245 = vunpack.c.h.b16 %v6224
      %v6246 = vunpack.c.l.b16 %v6225
      %v6247 = vunpack.c.h.b16 %v6225
      %v6248 = vunpack.c.l.b16 %v6226
      %v6249 = vunpack.c.h.b16 %v6226
      %v6250 = vunpack.c.l.b16 %v6227
      %v6251 = vunpack.c.h.b16 %v6227
      %v6252 = vpack.c.b16 %v6238, %v6236
      %v6253 = vpack.c.b16 %v6239, %v6237
      %v6254 = vpack.c.b16 %v6242, %v6240
      %v6255 = vpack.c.b16 %v6243, %v6241
      %v6256 = vpack.c.b16 %v6246, %v6244
      %v6257 = vpack.c.b16 %v6247, %v6245
      %v6258 = vpack.c.b16 %v6250, %v6248
      %v6259 = vpack.c.b16 %v6251, %v6249
      %6268 = vmatprep.subr.bf16.mxu0 %v6253
      %6269 = vmatpush1.bf16.msra.mxu0 %v6252
      %6270 = vmatprep.subr.bf16.mxu0 %v6255
      %6271 = vmatpush1.bf16.msra.mxu0 %v6254
      %6272 = vmatprep.subr.bf16.mxu0 %v6257
      %6273 = vmatpush1.bf16.msra.mxu0 %v6256
      %6274 = vmatprep.subr.bf16.mxu0 %v6259
      %6275 = vmatpush1.bf16.msra.mxu0 %v6258
      %6276 = vmatprep.subr.bf16.mxu0 0
      %6277 = vmatpush1.bf16.msra.mxu0 0
      %6278 = vmatprep.subr.bf16.mxu0 0
      %6279 = vmatpush1.bf16.msra.mxu0 0
      %6280 = vmatprep.subr.bf16.mxu0 0
      %6281 = vmatpush1.bf16.msra.mxu0 0
      %6282 = vmatprep.subr.bf16.mxu0 0
      %6283 = vmatpush1.bf16.msra.mxu0 0
      %6284 = vmatprep.subr.bf16.mxu0 0
      %6285 = vmatpush1.bf16.msra.mxu0 0
      %6286 = vmatprep.subr.bf16.mxu0 0
      %6287 = vmatpush1.bf16.msra.mxu0 0
      %6288 = vmatprep.subr.bf16.mxu0 0
      %6289 = vmatpush1.bf16.msra.mxu0 0
      %6290 = vmatprep.subr.bf16.mxu0 0
      %6291 = vmatpush1.bf16.msra.mxu0 0
      %6292 = vmatprep.subr.bf16.mxu0 0
      %6293 = vmatpush1.bf16.msra.mxu0 0
      %6294 = vmatprep.subr.bf16.mxu0 0
      %6295 = vmatpush1.bf16.msra.mxu0 0
      %6296 = vmatprep.subr.bf16.mxu0 0
      %6297 = vmatpush1.bf16.msra.mxu0 0
      %6298 = vmatprep.subr.bf16.mxu0 0
      %6299 = vmatpush1.bf16.msra.mxu0 0
      %6300 = vmatprep.mubr.bf16.mxu0 0
      %6301 = vmatmul.mubr.bf16.gmra.mrb[0].mxu0 %v6170
      %v6302 = vpop.f32.mrb[0].mxu0
      %v6303 = vadd.f32 0.0, %v6302
      %v6304 = vpop.f32.mrb[0].mxu0
      %v6305 = vadd.f32 0.0, %v6304
      %v6306 = vpop.f32.mrb[0].mxu0
      %v6307 = vadd.f32 0.0, %v6306
      %v6308 = vpop.f32.mrb[0].mxu0
      %v6309 = vadd.f32 0.0, %v6308
      %6310 = vdwg.mxu0
      %6311 = vst [vmem:[#allocation2 + $0x20] sm:$0xff] %v6303
      %6312 = vst [vmem:[#allocation2 + $0x28] sm:$0xff] %v6305
      %6313 = vst [vmem:[#allocation2 + $0x30] sm:$0xff] %v6307
      %6314 = vst [vmem:[#allocation2 + $0x38] sm:$0xff] %v6309
      %s6315 = scalar_lea.vmem %s53, 128
      %v6316 = vld [vmem:[%s6315] sm:$0xff]
      %v6317 = vld [vmem:[%s6315 + $0x8] sm:$0xff]
      %v6318 = vld [vmem:[%s6315 + $0x10] sm:$0xff]
      %v6319 = vld [vmem:[%s6315 + $0x18] sm:$0xff]
      %v6320 = vld [vmem:[%s6315 + $0x20] sm:$0xff]
      %v6321 = vld [vmem:[%s6315 + $0x28] sm:$0xff]
      %v6322 = vld [vmem:[%s6315 + $0x30] sm:$0xff]
      %v6323 = vld [vmem:[%s6315 + $0x38] sm:$0xff]
      %v6332 = vunpack.c.l.b16 %v6316
      %v6333 = vunpack.c.h.b16 %v6316
      %v6334 = vunpack.c.l.b16 %v6317
      %v6335 = vunpack.c.h.b16 %v6317
      %v6336 = vunpack.c.l.b16 %v6318
      %v6337 = vunpack.c.h.b16 %v6318
      %v6338 = vunpack.c.l.b16 %v6319
      %v6339 = vunpack.c.h.b16 %v6319
      %v6340 = vunpack.c.l.b16 %v6320
      %v6341 = vunpack.c.h.b16 %v6320
      %v6342 = vunpack.c.l.b16 %v6321
      %v6343 = vunpack.c.h.b16 %v6321
      %v6344 = vunpack.c.l.b16 %v6322
      %v6345 = vunpack.c.h.b16 %v6322
      %v6346 = vunpack.c.l.b16 %v6323
      %v6347 = vunpack.c.h.b16 %v6323
      %v6348 = vpack.c.b16 %v6334, %v6332
      %v6349 = vpack.c.b16 %v6335, %v6333
      %v6350 = vpack.c.b16 %v6338, %v6336
      %v6351 = vpack.c.b16 %v6339, %v6337
      %v6352 = vpack.c.b16 %v6342, %v6340
      %v6353 = vpack.c.b16 %v6343, %v6341
      %v6354 = vpack.c.b16 %v6346, %v6344
      %v6355 = vpack.c.b16 %v6347, %v6345
      %6364 = vmatprep.subr.bf16.mxu0 %v6349
      %6365 = vmatpush1.bf16.msra.mxu0 %v6348
      %6366 = vmatprep.subr.bf16.mxu0 %v6351
      %6367 = vmatpush1.bf16.msra.mxu0 %v6350
      %6368 = vmatprep.subr.bf16.mxu0 %v6353
      %6369 = vmatpush1.bf16.msra.mxu0 %v6352
      %6370 = vmatprep.subr.bf16.mxu0 %v6355
      %6371 = vmatpush1.bf16.msra.mxu0 %v6354
      %6372 = vmatprep.subr.bf16.mxu0 0
      %6373 = vmatpush1.bf16.msra.mxu0 0
      %6374 = vmatprep.subr.bf16.mxu0 0
      %6375 = vmatpush1.bf16.msra.mxu0 0
      %6376 = vmatprep.subr.bf16.mxu0 0
      %6377 = vmatpush1.bf16.msra.mxu0 0
      %6378 = vmatprep.subr.bf16.mxu0 0
      %6379 = vmatpush1.bf16.msra.mxu0 0
      %6380 = vmatprep.subr.bf16.mxu0 0
      %6381 = vmatpush1.bf16.msra.mxu0 0
      %6382 = vmatprep.subr.bf16.mxu0 0
      %6383 = vmatpush1.bf16.msra.mxu0 0
      %6384 = vmatprep.subr.bf16.mxu0 0
      %6385 = vmatpush1.bf16.msra.mxu0 0
      %6386 = vmatprep.subr.bf16.mxu0 0
      %6387 = vmatpush1.bf16.msra.mxu0 0
      %6388 = vmatprep.subr.bf16.mxu0 0
      %6389 = vmatpush1.bf16.msra.mxu0 0
      %6390 = vmatprep.subr.bf16.mxu0 0
      %6391 = vmatpush1.bf16.msra.mxu0 0
      %6392 = vmatprep.subr.bf16.mxu0 0
      %6393 = vmatpush1.bf16.msra.mxu0 0
      %6394 = vmatprep.subr.bf16.mxu0 0
      %6395 = vmatpush1.bf16.msra.mxu0 0
      %6396 = vmatprep.mubr.bf16.mxu0 0
      %6397 = vmatmul.mubr.bf16.gmra.mrb[0].mxu0 %v6170
      %v6398 = vpop.f32.mrb[0].mxu0
      %v6399 = vadd.f32 0.0, %v6398
      %v6400 = vpop.f32.mrb[0].mxu0
      %v6401 = vadd.f32 0.0, %v6400
      %v6402 = vpop.f32.mrb[0].mxu0
      %v6403 = vadd.f32 0.0, %v6402
      %v6404 = vpop.f32.mrb[0].mxu0
      %v6405 = vadd.f32 0.0, %v6404
      %6406 = vdwg.mxu0
      %6407 = vst [vmem:[#allocation2 + $0x40] sm:$0xff] %v6399
      %6408 = vst [vmem:[#allocation2 + $0x48] sm:$0xff] %v6401
      %6409 = vst [vmem:[#allocation2 + $0x50] sm:$0xff] %v6403
      %6410 = vst [vmem:[#allocation2 + $0x58] sm:$0xff] %v6405
      %s6411 = scalar_lea.vmem %s53, 192
      %v6412 = vld [vmem:[%s6411] sm:$0xff]
      %v6413 = vld [vmem:[%s6411 + $0x8] sm:$0xff]
      %v6414 = vld [vmem:[%s6411 + $0x10] sm:$0xff]
      %v6415 = vld [vmem:[%s6411 + $0x18] sm:$0xff]
      %v6416 = vld [vmem:[%s6411 + $0x20] sm:$0xff]
      %v6417 = vld [vmem:[%s6411 + $0x28] sm:$0xff]
      %v6418 = vld [vmem:[%s6411 + $0x30] sm:$0xff]
      %v6419 = vld [vmem:[%s6411 + $0x38] sm:$0xff]
      %v6428 = vunpack.c.l.b16 %v6412
      %v6429 = vunpack.c.h.b16 %v6412
      %v6430 = vunpack.c.l.b16 %v6413
      %v6431 = vunpack.c.h.b16 %v6413
      %v6432 = vunpack.c.l.b16 %v6414
      %v6433 = vunpack.c.h.b16 %v6414
      %v6434 = vunpack.c.l.b16 %v6415
      %v6435 = vunpack.c.h.b16 %v6415
      %v6436 = vunpack.c.l.b16 %v6416
      %v6437 = vunpack.c.h.b16 %v6416
      %v6438 = vunpack.c.l.b16 %v6417
      %v6439 = vunpack.c.h.b16 %v6417
      %v6440 = vunpack.c.l.b16 %v6418
      %v6441 = vunpack.c.h.b16 %v6418
      %v6442 = vunpack.c.l.b16 %v6419
      %v6443 = vunpack.c.h.b16 %v6419
      %v6444 = vpack.c.b16 %v6430, %v6428
      %v6445 = vpack.c.b16 %v6431, %v6429
      %v6446 = vpack.c.b16 %v6434, %v6432
      %v6447 = vpack.c.b16 %v6435, %v6433
      %v6448 = vpack.c.b16 %v6438, %v6436
      %v6449 = vpack.c.b16 %v6439, %v6437
      %v6450 = vpack.c.b16 %v6442, %v6440
      %v6451 = vpack.c.b16 %v6443, %v6441
      %6460 = vmatprep.subr.bf16.mxu0 %v6445
      %6461 = vmatpush1.bf16.msra.mxu0 %v6444
      %6462 = vmatprep.subr.bf16.mxu0 %v6447
      %6463 = vmatpush1.bf16.msra.mxu0 %v6446
      %6464 = vmatprep.subr.bf16.mxu0 %v6449
      %6465 = vmatpush1.bf16.msra.mxu0 %v6448
      %6466 = vmatprep.subr.bf16.mxu0 %v6451
      %6467 = vmatpush1.bf16.msra.mxu0 %v6450
      %6468 = vmatprep.subr.bf16.mxu0 0
      %6469 = vmatpush1.bf16.msra.mxu0 0
      %6470 = vmatprep.subr.bf16.mxu0 0
      %6471 = vmatpush1.bf16.msra.mxu0 0
      %6472 = vmatprep.subr.bf16.mxu0 0
      %6473 = vmatpush1.bf16.msra.mxu0 0
      %6474 = vmatprep.subr.bf16.mxu0 0
      %6475 = vmatpush1.bf16.msra.mxu0 0
      %6476 = vmatprep.subr.bf16.mxu0 0
      %6477 = vmatpush1.bf16.msra.mxu0 0
      %6478 = vmatprep.subr.bf16.mxu0 0
      %6479 = vmatpush1.bf16.msra.mxu0 0
      %6480 = vmatprep.subr.bf16.mxu0 0
      %6481 = vmatpush1.bf16.msra.mxu0 0
      %6482 = vmatprep.subr.bf16.mxu0 0
      %6483 = vmatpush1.bf16.msra.mxu0 0
      %6484 = vmatprep.subr.bf16.mxu0 0
      %6485 = vmatpush1.bf16.msra.mxu0 0
      %6486 = vmatprep.subr.bf16.mxu0 0
      %6487 = vmatpush1.bf16.msra.mxu0 0
      %6488 = vmatprep.subr.bf16.mxu0 0
      %6489 = vmatpush1.bf16.msra.mxu0 0
      %6490 = vmatprep.subr.bf16.mxu0 0
      %6491 = vmatpush1.bf16.msra.mxu0 0
      %6492 = vmatprep.mubr.bf16.mxu0 0
      %6493 = vmatmul.mubr.bf16.gmra.mrb[0].mxu0 %v6170
      %v6494 = vpop.f32.mrb[0].mxu0
      %v6495 = vadd.f32 0.0, %v6494
      %v6496 = vpop.f32.mrb[0].mxu0
      %v6497 = vadd.f32 0.0, %v6496
      %v6498 = vpop.f32.mrb[0].mxu0
      %v6499 = vadd.f32 0.0, %v6498
      %v6500 = vpop.f32.mrb[0].mxu0
      %v6501 = vadd.f32 0.0, %v6500
      %6502 = vdwg.mxu0
      %6503 = vst [vmem:[#allocation2 + $0x60] sm:$0xff] %v6495
      %6504 = vst [vmem:[#allocation2 + $0x68] sm:$0xff] %v6497
      %6505 = vst [vmem:[#allocation2 + $0x70] sm:$0xff] %v6499
      %6506 = vst [vmem:[#allocation2 + $0x78] sm:$0xff] %v6501
      %s6507 = scalar_lea.vmem %s53, 256
      %v6508 = vld [vmem:[%s6507] sm:$0xff]
      %v6509 = vld [vmem:[%s6507 + $0x8] sm:$0xff]
      %v6510 = vld [vmem:[%s6507 + $0x10] sm:$0xff]
      %v6511 = vld [vmem:[%s6507 + $0x18] sm:$0xff]
      %v6512 = vld [vmem:[%s6507 + $0x20] sm:$0xff]
      %v6513 = vld [vmem:[%s6507 + $0x28] sm:$0xff]
      %v6514 = vld [vmem:[%s6507 + $0x30] sm:$0xff]
      %v6515 = vld [vmem:[%s6507 + $0x38] sm:$0xff]
      %v6524 = vunpack.c.l.b16 %v6508
      %v6525 = vunpack.c.h.b16 %v6508
      %v6526 = vunpack.c.l.b16 %v6509
      %v6527 = vunpack.c.h.b16 %v6509
      %v6528 = vunpack.c.l.b16 %v6510
      %v6529 = vunpack.c.h.b16 %v6510
      %v6530 = vunpack.c.l.b16 %v6511
      %v6531 = vunpack.c.h.b16 %v6511
      %v6532 = vunpack.c.l.b16 %v6512
      %v6533 = vunpack.c.h.b16 %v6512
      %v6534 = vunpack.c.l.b16 %v6513
      %v6535 = vunpack.c.h.b16 %v6513
      %v6536 = vunpack.c.l.b16 %v6514
      %v6537 = vunpack.c.h.b16 %v6514
      %v6538 = vunpack.c.l.b16 %v6515
      %v6539 = vunpack.c.h.b16 %v6515
      %v6540 = vpack.c.b16 %v6526, %v6524
      %v6541 = vpack.c.b16 %v6527, %v6525
      %v6542 = vpack.c.b16 %v6530, %v6528
      %v6543 = vpack.c.b16 %v6531, %v6529
      %v6544 = vpack.c.b16 %v6534, %v6532
      %v6545 = vpack.c.b16 %v6535, %v6533
      %v6546 = vpack.c.b16 %v6538, %v6536
      %v6547 = vpack.c.b16 %v6539, %v6537
      %6556 = vmatprep.subr.bf16.mxu0 %v6541
      %6557 = vmatpush1.bf16.msra.mxu0 %v6540
      %6558 = vmatprep.subr.bf16.mxu0 %v6543
      %6559 = vmatpush1.bf16.msra.mxu0 %v6542
      %6560 = vmatprep.subr.bf16.mxu0 %v6545
      %6561 = vmatpush1.bf16.msra.mxu0 %v6544
      %6562 = vmatprep.subr.bf16.mxu0 %v6547
      %6563 = vmatpush1.bf16.msra.mxu0 %v6546
      %6564 = vmatprep.subr.bf16.mxu0 0
      %6565 = vmatpush1.bf16.msra.mxu0 0
      %6566 = vmatprep.subr.bf16.mxu0 0
      %6567 = vmatpush1.bf16.msra.mxu0 0
      %6568 = vmatprep.subr.bf16.mxu0 0
      %6569 = vmatpush1.bf16.msra.mxu0 0
      %6570 = vmatprep.subr.bf16.mxu0 0
      %6571 = vmatpush1.bf16.msra.mxu0 0
      %6572 = vmatprep.subr.bf16.mxu0 0
      %6573 = vmatpush1.bf16.msra.mxu0 0
      %6574 = vmatprep.subr.bf16.mxu0 0
      %6575 = vmatpush1.bf16.msra.mxu0 0
      %6576 = vmatprep.subr.bf16.mxu0 0
      %6577 = vmatpush1.bf16.msra.mxu0 0
      %6578 = vmatprep.subr.bf16.mxu0 0
      %6579 = vmatpush1.bf16.msra.mxu0 0
      %6580 = vmatprep.subr.bf16.mxu0 0
      %6581 = vmatpush1.bf16.msra.mxu0 0
      %6582 = vmatprep.subr.bf16.mxu0 0
      %6583 = vmatpush1.bf16.msra.mxu0 0
      %6584 = vmatprep.subr.bf16.mxu0 0
      %6585 = vmatpush1.bf16.msra.mxu0 0
      %6586 = vmatprep.subr.bf16.mxu0 0
      %6587 = vmatpush1.bf16.msra.mxu0 0
      %6588 = vmatprep.mubr.bf16.mxu0 0
      %6589 = vmatmul.mubr.bf16.gmra.mrb[0].mxu0 %v6170
      %v6590 = vpop.f32.mrb[0].mxu0
      %v6591 = vadd.f32 0.0, %v6590
      %v6592 = vpop.f32.mrb[0].mxu0
      %v6593 = vadd.f32 0.0, %v6592
      %v6594 = vpop.f32.mrb[0].mxu0
      %v6595 = vadd.f32 0.0, %v6594
      %v6596 = vpop.f32.mrb[0].mxu0
      %v6597 = vadd.f32 0.0, %v6596
      %6598 = vdwg.mxu0
      %6599 = vst [vmem:[#allocation2 + $0x80] sm:$0xff] %v6591
      %6600 = vst [vmem:[#allocation2 + $0x88] sm:$0xff] %v6593
      %6601 = vst [vmem:[#allocation2 + $0x90] sm:$0xff] %v6595
      %6602 = vst [vmem:[#allocation2 + $0x98] sm:$0xff] %v6597
      %s6603 = scalar_lea.vmem %s53, 320
      %v6604 = vld [vmem:[%s6603] sm:$0xff]
      %v6605 = vld [vmem:[%s6603 + $0x8] sm:$0xff]
      %v6606 = vld [vmem:[%s6603 + $0x10] sm:$0xff]
      %v6607 = vld [vmem:[%s6603 + $0x18] sm:$0xff]
      %v6608 = vld [vmem:[%s6603 + $0x20] sm:$0xff]
      %v6609 = vld [vmem:[%s6603 + $0x28] sm:$0xff]
      %v6610 = vld [vmem:[%s6603 + $0x30] sm:$0xff]
      %v6611 = vld [vmem:[%s6603 + $0x38] sm:$0xff]
      %v6620 = vunpack.c.l.b16 %v6604
      %v6621 = vunpack.c.h.b16 %v6604
      %v6622 = vunpack.c.l.b16 %v6605
      %v6623 = vunpack.c.h.b16 %v6605
      %v6624 = vunpack.c.l.b16 %v6606
      %v6625 = vunpack.c.h.b16 %v6606
      %v6626 = vunpack.c.l.b16 %v6607
      %v6627 = vunpack.c.h.b16 %v6607
      %v6628 = vunpack.c.l.b16 %v6608
      %v6629 = vunpack.c.h.b16 %v6608
      %v6630 = vunpack.c.l.b16 %v6609
      %v6631 = vunpack.c.h.b16 %v6609
      %v6632 = vunpack.c.l.b16 %v6610
      %v6633 = vunpack.c.h.b16 %v6610
      %v6634 = vunpack.c.l.b16 %v6611
      %v6635 = vunpack.c.h.b16 %v6611
      %v6636 = vpack.c.b16 %v6622, %v6620
      %v6637 = vpack.c.b16 %v6623, %v6621
      %v6638 = vpack.c.b16 %v6626, %v6624
      %v6639 = vpack.c.b16 %v6627, %v6625
      %v6640 = vpack.c.b16 %v6630, %v6628
      %v6641 = vpack.c.b16 %v6631, %v6629
      %v6642 = vpack.c.b16 %v6634, %v6632
      %v6643 = vpack.c.b16 %v6635, %v6633
      %6652 = vmatprep.subr.bf16.mxu0 %v6637
      %6653 = vmatpush1.bf16.msra.mxu0 %v6636
      %6654 = vmatprep.subr.bf16.mxu0 %v6639
      %6655 = vmatpush1.bf16.msra.mxu0 %v6638
      %6656 = vmatprep.subr.bf16.mxu0 %v6641
      %6657 = vmatpush1.bf16.msra.mxu0 %v6640
      %6658 = vmatprep.subr.bf16.mxu0 %v6643
      %6659 = vmatpush1.bf16.msra.mxu0 %v6642
      %6660 = vmatprep.subr.bf16.mxu0 0
      %6661 = vmatpush1.bf16.msra.mxu0 0
      %6662 = vmatprep.subr.bf16.mxu0 0
      %6663 = vmatpush1.bf16.msra.mxu0 0
      %6664 = vmatprep.subr.bf16.mxu0 0
      %6665 = vmatpush1.bf16.msra.mxu0 0
      %6666 = vmatprep.subr.bf16.mxu0 0
      %6667 = vmatpush1.bf16.msra.mxu0 0
      %6668 = vmatprep.subr.bf16.mxu0 0
      %6669 = vmatpush1.bf16.msra.mxu0 0
      %6670 = vmatprep.subr.bf16.mxu0 0
      %6671 = vmatpush1.bf16.msra.mxu0 0
      %6672 = vmatprep.subr.bf16.mxu0 0
      %6673 = vmatpush1.bf16.msra.mxu0 0
      %6674 = vmatprep.subr.bf16.mxu0 0
      %6675 = vmatpush1.bf16.msra.mxu0 0
      %6676 = vmatprep.subr.bf16.mxu0 0
      %6677 = vmatpush1.bf16.msra.mxu0 0
      %6678 = vmatprep.subr.bf16.mxu0 0
      %6679 = vmatpush1.bf16.msra.mxu0 0
      %6680 = vmatprep.subr.bf16.mxu0 0
      %6681 = vmatpush1.bf16.msra.mxu0 0
      %6682 = vmatprep.subr.bf16.mxu0 0
      %6683 = vmatpush1.bf16.msra.mxu0 0
      %6684 = vmatprep.mubr.bf16.mxu0 0
      %6685 = vmatmul.mubr.bf16.gmra.mrb[0].mxu0 %v6170
      %v6686 = vpop.f32.mrb[0].mxu0
      %v6687 = vadd.f32 0.0, %v6686
      %v6688 = vpop.f32.mrb[0].mxu0
      %v6689 = vadd.f32 0.0, %v6688
      %v6690 = vpop.f32.mrb[0].mxu0
      %v6691 = vadd.f32 0.0, %v6690
      %v6692 = vpop.f32.mrb[0].mxu0
      %v6693 = vadd.f32 0.0, %v6692
      %6694 = vdwg.mxu0
      %6695 = vst [vmem:[#allocation2 + $0xa0] sm:$0xff] %v6687
      %6696 = vst [vmem:[#allocation2 + $0xa8] sm:$0xff] %v6689
      %6697 = vst [vmem:[#allocation2 + $0xb0] sm:$0xff] %v6691
      %6698 = vst [vmem:[#allocation2 + $0xb8] sm:$0xff] %v6693
      %s6699 = scalar_lea.vmem %s53, 384
      %v6700 = vld [vmem:[%s6699] sm:$0xff]
      %v6701 = vld [vmem:[%s6699 + $0x8] sm:$0xff]
      %v6702 = vld [vmem:[%s6699 + $0x10] sm:$0xff]
      %v6703 = vld [vmem:[%s6699 + $0x18] sm:$0xff]
      %v6704 = vld [vmem:[%s6699 + $0x20] sm:$0xff]
      %v6705 = vld [vmem:[%s6699 + $0x28] sm:$0xff]
      %v6706 = vld [vmem:[%s6699 + $0x30] sm:$0xff]
      %v6707 = vld [vmem:[%s6699 + $0x38] sm:$0xff]
      %v6716 = vunpack.c.l.b16 %v6700
      %v6717 = vunpack.c.h.b16 %v6700
      %v6718 = vunpack.c.l.b16 %v6701
      %v6719 = vunpack.c.h.b16 %v6701
      %v6720 = vunpack.c.l.b16 %v6702
      %v6721 = vunpack.c.h.b16 %v6702
      %v6722 = vunpack.c.l.b16 %v6703
      %v6723 = vunpack.c.h.b16 %v6703
      %v6724 = vunpack.c.l.b16 %v6704
      %v6725 = vunpack.c.h.b16 %v6704
      %v6726 = vunpack.c.l.b16 %v6705
      %v6727 = vunpack.c.h.b16 %v6705
      %v6728 = vunpack.c.l.b16 %v6706
      %v6729 = vunpack.c.h.b16 %v6706
      %v6730 = vunpack.c.l.b16 %v6707
      %v6731 = vunpack.c.h.b16 %v6707
      %v6732 = vpack.c.b16 %v6718, %v6716
      %v6733 = vpack.c.b16 %v6719, %v6717
      %v6734 = vpack.c.b16 %v6722, %v6720
      %v6735 = vpack.c.b16 %v6723, %v6721
      %v6736 = vpack.c.b16 %v6726, %v6724
      %v6737 = vpack.c.b16 %v6727, %v6725
      %v6738 = vpack.c.b16 %v6730, %v6728
      %v6739 = vpack.c.b16 %v6731, %v6729
      %6748 = vmatprep.subr.bf16.mxu0 %v6733
      %6749 = vmatpush1.bf16.msra.mxu0 %v6732
      %6750 = vmatprep.subr.bf16.mxu0 %v6735
      %6751 = vmatpush1.bf16.msra.mxu0 %v6734
      %6752 = vmatprep.subr.bf16.mxu0 %v6737
      %6753 = vmatpush1.bf16.msra.mxu0 %v6736
      %6754 = vmatprep.subr.bf16.mxu0 %v6739
      %6755 = vmatpush1.bf16.msra.mxu0 %v6738
      %6756 = vmatprep.subr.bf16.mxu0 0
      %6757 = vmatpush1.bf16.msra.mxu0 0
      %6758 = vmatprep.subr.bf16.mxu0 0
      %6759 = vmatpush1.bf16.msra.mxu0 0
      %6760 = vmatprep.subr.bf16.mxu0 0
      %6761 = vmatpush1.bf16.msra.mxu0 0
      %6762 = vmatprep.subr.bf16.mxu0 0
      %6763 = vmatpush1.bf16.msra.mxu0 0
      %6764 = vmatprep.subr.bf16.mxu0 0
      %6765 = vmatpush1.bf16.msra.mxu0 0
      %6766 = vmatprep.subr.bf16.mxu0 0
      %6767 = vmatpush1.bf16.msra.mxu0 0
      %6768 = vmatprep.subr.bf16.mxu0 0
      %6769 = vmatpush1.bf16.msra.mxu0 0
      %6770 = vmatprep.subr.bf16.mxu0 0
      %6771 = vmatpush1.bf16.msra.mxu0 0
      %6772 = vmatprep.subr.bf16.mxu0 0
      %6773 = vmatpush1.bf16.msra.mxu0 0
      %6774 = vmatprep.subr.bf16.mxu0 0
      %6775 = vmatpush1.bf16.msra.mxu0 0
      %6776 = vmatprep.subr.bf16.mxu0 0
      %6777 = vmatpush1.bf16.msra.mxu0 0
      %6778 = vmatprep.subr.bf16.mxu0 0
      %6779 = vmatpush1.bf16.msra.mxu0 0
      %6780 = vmatprep.mubr.bf16.mxu0 0
      %6781 = vmatmul.mubr.bf16.gmra.mrb[0].mxu0 %v6170
      %v6782 = vpop.f32.mrb[0].mxu0
      %v6783 = vadd.f32 0.0, %v6782
      %v6784 = vpop.f32.mrb[0].mxu0
      %v6785 = vadd.f32 0.0, %v6784
      %v6786 = vpop.f32.mrb[0].mxu0
      %v6787 = vadd.f32 0.0, %v6786
      %v6788 = vpop.f32.mrb[0].mxu0
      %v6789 = vadd.f32 0.0, %v6788
      %6790 = vdwg.mxu0
      %6791 = vst [vmem:[#allocation2 + $0xc0] sm:$0xff] %v6783
      %6792 = vst [vmem:[#allocation2 + $0xc8] sm:$0xff] %v6785
      %6793 = vst [vmem:[#allocation2 + $0xd0] sm:$0xff] %v6787
      %6794 = vst [vmem:[#allocation2 + $0xd8] sm:$0xff] %v6789
      %s6795 = scalar_lea.vmem %s53, 448
      %v6796 = vld [vmem:[%s6795] sm:$0xff]
      %v6797 = vld [vmem:[%s6795 + $0x8] sm:$0xff]
      %v6798 = vld [vmem:[%s6795 + $0x10] sm:$0xff]
      %v6799 = vld [vmem:[%s6795 + $0x18] sm:$0xff]
      %v6800 = vld [vmem:[%s6795 + $0x20] sm:$0xff]
      %v6801 = vld [vmem:[%s6795 + $0x28] sm:$0xff]
      %v6802 = vld [vmem:[%s6795 + $0x30] sm:$0xff]
      %v6803 = vld [vmem:[%s6795 + $0x38] sm:$0xff]
      %v6812 = vunpack.c.l.b16 %v6796
      %v6813 = vunpack.c.h.b16 %v6796
      %v6814 = vunpack.c.l.b16 %v6797
      %v6815 = vunpack.c.h.b16 %v6797
      %v6816 = vunpack.c.l.b16 %v6798
      %v6817 = vunpack.c.h.b16 %v6798
      %v6818 = vunpack.c.l.b16 %v6799
      %v6819 = vunpack.c.h.b16 %v6799
      %v6820 = vunpack.c.l.b16 %v6800
      %v6821 = vunpack.c.h.b16 %v6800
      %v6822 = vunpack.c.l.b16 %v6801
      %v6823 = vunpack.c.h.b16 %v6801
      %v6824 = vunpack.c.l.b16 %v6802
      %v6825 = vunpack.c.h.b16 %v6802
      %v6826 = vunpack.c.l.b16 %v6803
      %v6827 = vunpack.c.h.b16 %v6803
      %v6828 = vpack.c.b16 %v6814, %v6812
      %v6829 = vpack.c.b16 %v6815, %v6813
      %v6830 = vpack.c.b16 %v6818, %v6816
      %v6831 = vpack.c.b16 %v6819, %v6817
      %v6832 = vpack.c.b16 %v6822, %v6820
      %v6833 = vpack.c.b16 %v6823, %v6821
      %v6834 = vpack.c.b16 %v6826, %v6824
      %v6835 = vpack.c.b16 %v6827, %v6825
      %6844 = vmatprep.subr.bf16.mxu0 %v6829
      %6845 = vmatpush1.bf16.msra.mxu0 %v6828
      %6846 = vmatprep.subr.bf16.mxu0 %v6831
      %6847 = vmatpush1.bf16.msra.mxu0 %v6830
      %6848 = vmatprep.subr.bf16.mxu0 %v6833
      %6849 = vmatpush1.bf16.msra.mxu0 %v6832
      %6850 = vmatprep.subr.bf16.mxu0 %v6835
      %6851 = vmatpush1.bf16.msra.mxu0 %v6834
      %6852 = vmatprep.subr.bf16.mxu0 0
      %6853 = vmatpush1.bf16.msra.mxu0 0
      %6854 = vmatprep.subr.bf16.mxu0 0
      %6855 = vmatpush1.bf16.msra.mxu0 0
      %6856 = vmatprep.subr.bf16.mxu0 0
      %6857 = vmatpush1.bf16.msra.mxu0 0
      %6858 = vmatprep.subr.bf16.mxu0 0
      %6859 = vmatpush1.bf16.msra.mxu0 0
      %6860 = vmatprep.subr.bf16.mxu0 0
      %6861 = vmatpush1.bf16.msra.mxu0 0
      %6862 = vmatprep.subr.bf16.mxu0 0
      %6863 = vmatpush1.bf16.msra.mxu0 0
      %6864 = vmatprep.subr.bf16.mxu0 0
      %6865 = vmatpush1.bf16.msra.mxu0 0
      %6866 = vmatprep.subr.bf16.mxu0 0
      %6867 = vmatpush1.bf16.msra.mxu0 0
      %6868 = vmatprep.subr.bf16.mxu0 0
      %6869 = vmatpush1.bf16.msra.mxu0 0
      %6870 = vmatprep.subr.bf16.mxu0 0
      %6871 = vmatpush1.bf16.msra.mxu0 0
      %6872 = vmatprep.subr.bf16.mxu0 0
      %6873 = vmatpush1.bf16.msra.mxu0 0
      %6874 = vmatprep.subr.bf16.mxu0 0
      %6875 = vmatpush1.bf16.msra.mxu0 0
      %6876 = vmatprep.mubr.bf16.mxu0 0
      %6877 = vmatmul.mubr.bf16.gmra.mrb[0].mxu0 %v6170
      %v6878 = vpop.f32.mrb[0].mxu0
      %v6879 = vadd.f32 0.0, %v6878
      %v6880 = vpop.f32.mrb[0].mxu0
      %v6881 = vadd.f32 0.0, %v6880
      %v6882 = vpop.f32.mrb[0].mxu0
      %v6883 = vadd.f32 0.0, %v6882
      %v6884 = vpop.f32.mrb[0].mxu0
      %v6885 = vadd.f32 0.0, %v6884
      %6886 = vdwg.mxu0
      %6887 = vst [vmem:[#allocation2 + $0xe0] sm:$0xff] %v6879
      %6888 = vst [vmem:[#allocation2 + $0xe8] sm:$0xff] %v6881
      %6889 = vst [vmem:[#allocation2 + $0xf0] sm:$0xff] %v6883
      %6890 = vst [vmem:[#allocation2 + $0xf8] sm:$0xff] %v6885
      %s6891 = scalar_lea.vmem %s53, 512
      %v6892 = vld [vmem:[%s6891] sm:$0xff]
      %v6893 = vld [vmem:[%s6891 + $0x8] sm:$0xff]
      %v6894 = vld [vmem:[%s6891 + $0x10] sm:$0xff]
      %v6895 = vld [vmem:[%s6891 + $0x18] sm:$0xff]
      %v6896 = vld [vmem:[%s6891 + $0x20] sm:$0xff]
      %v6897 = vld [vmem:[%s6891 + $0x28] sm:$0xff]
      %v6898 = vld [vmem:[%s6891 + $0x30] sm:$0xff]
      %v6899 = vld [vmem:[%s6891 + $0x38] sm:$0xff]
      %v6908 = vunpack.c.l.b16 %v6892
      %v6909 = vunpack.c.h.b16 %v6892
      %v6910 = vunpack.c.l.b16 %v6893
      %v6911 = vunpack.c.h.b16 %v6893
      %v6912 = vunpack.c.l.b16 %v6894
      %v6913 = vunpack.c.h.b16 %v6894
      %v6914 = vunpack.c.l.b16 %v6895
      %v6915 = vunpack.c.h.b16 %v6895
      %v6916 = vunpack.c.l.b16 %v6896
      %v6917 = vunpack.c.h.b16 %v6896
      %v6918 = vunpack.c.l.b16 %v6897
      %v6919 = vunpack.c.h.b16 %v6897
      %v6920 = vunpack.c.l.b16 %v6898
      %v6921 = vunpack.c.h.b16 %v6898
      %v6922 = vunpack.c.l.b16 %v6899
      %v6923 = vunpack.c.h.b16 %v6899
      %v6924 = vpack.c.b16 %v6910, %v6908
      %v6925 = vpack.c.b16 %v6911, %v6909
      %v6926 = vpack.c.b16 %v6914, %v6912
      %v6927 = vpack.c.b16 %v6915, %v6913
      %v6928 = vpack.c.b16 %v6918, %v6916
      %v6929 = vpack.c.b16 %v6919, %v6917
      %v6930 = vpack.c.b16 %v6922, %v6920
      %v6931 = vpack.c.b16 %v6923, %v6921
      %6940 = vmatprep.subr.bf16.mxu0 %v6925
      %6941 = vmatpush1.bf16.msra.mxu0 %v6924
      %6942 = vmatprep.subr.bf16.mxu0 %v6927
      %6943 = vmatpush1.bf16.msra.mxu0 %v6926
      %6944 = vmatprep.subr.bf16.mxu0 %v6929
      %6945 = vmatpush1.bf16.msra.mxu0 %v6928
      %6946 = vmatprep.subr.bf16.mxu0 %v6931
      %6947 = vmatpush1.bf16.msra.mxu0 %v6930
      %6948 = vmatprep.subr.bf16.mxu0 0
      %6949 = vmatpush1.bf16.msra.mxu0 0
      %6950 = vmatprep.subr.bf16.mxu0 0
      %6951 = vmatpush1.bf16.msra.mxu0 0
      %6952 = vmatprep.subr.bf16.mxu0 0
      %6953 = vmatpush1.bf16.msra.mxu0 0
      %6954 = vmatprep.subr.bf16.mxu0 0
      %6955 = vmatpush1.bf16.msra.mxu0 0
      %6956 = vmatprep.subr.bf16.mxu0 0
      %6957 = vmatpush1.bf16.msra.mxu0 0
      %6958 = vmatprep.subr.bf16.mxu0 0
      %6959 = vmatpush1.bf16.msra.mxu0 0
      %6960 = vmatprep.subr.bf16.mxu0 0
      %6961 = vmatpush1.bf16.msra.mxu0 0
      %6962 = vmatprep.subr.bf16.mxu0 0
      %6963 = vmatpush1.bf16.msra.mxu0 0
      %6964 = vmatprep.subr.bf16.mxu0 0
      %6965 = vmatpush1.bf16.msra.mxu0 0
      %6966 = vmatprep.subr.bf16.mxu0 0
      %6967 = vmatpush1.bf16.msra.mxu0 0
      %6968 = vmatprep.subr.bf16.mxu0 0
      %6969 = vmatpush1.bf16.msra.mxu0 0
      %6970 = vmatprep.subr.bf16.mxu0 0
      %6971 = vmatpush1.bf16.msra.mxu0 0
      %6972 = vmatprep.mubr.bf16.mxu0 0
      %6973 = vmatmul.mubr.bf16.gmra.mrb[0].mxu0 %v6170
      %v6974 = vpop.f32.mrb[0].mxu0
      %v6975 = vadd.f32 0.0, %v6974
      %v6976 = vpop.f32.mrb[0].mxu0
      %v6977 = vadd.f32 0.0, %v6976
      %v6978 = vpop.f32.mrb[0].mxu0
      %v6979 = vadd.f32 0.0, %v6978
      %v6980 = vpop.f32.mrb[0].mxu0
      %v6981 = vadd.f32 0.0, %v6980
      %6982 = vdwg.mxu0
      %6983 = vst [vmem:[#allocation2 + $0x100] sm:$0xff] %v6975
      %6984 = vst [vmem:[#allocation2 + $0x108] sm:$0xff] %v6977
      %6985 = vst [vmem:[#allocation2 + $0x110] sm:$0xff] %v6979
      %6986 = vst [vmem:[#allocation2 + $0x118] sm:$0xff] %v6981
      %v6987 = vld [vmem:[#allocation2] sm:$0xff]
      %v6988 = vld [vmem:[#allocation2 + $0x8] sm:$0xff]
      %v6989 = vld [vmem:[#allocation2 + $0x10] sm:$0xff]
      %v6990 = vld [vmem:[#allocation2 + $0x18] sm:$0xff]
      %v6991 = vld [vmem:[#allocation2 + $0x20] sm:$0xff]
      %v6992 = vld [vmem:[#allocation2 + $0x28] sm:$0xff]
      %v6993 = vld [vmem:[#allocation2 + $0x30] sm:$0xff]
      %v6994 = vld [vmem:[#allocation2 + $0x38] sm:$0xff]
      %v6995 = vld [vmem:[#allocation2 + $0x40] sm:$0xff]
      %v6996 = vld [vmem:[#allocation2 + $0x48] sm:$0xff]
      %v6997 = vld [vmem:[#allocation2 + $0x50] sm:$0xff]
      %v6998 = vld [vmem:[#allocation2 + $0x58] sm:$0xff]
      %v6999 = vld [vmem:[#allocation2 + $0x60] sm:$0xff]
      %v7000 = vld [vmem:[#allocation2 + $0x68] sm:$0xff]
      %v7001 = vld [vmem:[#allocation2 + $0x70] sm:$0xff]
      %v7002 = vld [vmem:[#allocation2 + $0x78] sm:$0xff]
      %v7003 = vld [vmem:[#allocation2 + $0x80] sm:$0xff]
      %v7004 = vld [vmem:[#allocation2 + $0x88] sm:$0xff]
      %v7005 = vld [vmem:[#allocation2 + $0x90] sm:$0xff]
      %v7006 = vld [vmem:[#allocation2 + $0x98] sm:$0xff]
      %v7007 = vld [vmem:[#allocation2 + $0xa0] sm:$0xff]
      %v7008 = vld [vmem:[#allocation2 + $0xa8] sm:$0xff]
      %v7009 = vld [vmem:[#allocation2 + $0xb0] sm:$0xff]
      %v7010 = vld [vmem:[#allocation2 + $0xb8] sm:$0xff]
      %v7011 = vld [vmem:[#allocation2 + $0xc0] sm:$0xff]
      %v7012 = vld [vmem:[#allocation2 + $0xc8] sm:$0xff]
      %v7013 = vld [vmem:[#allocation2 + $0xd0] sm:$0xff]
      %v7014 = vld [vmem:[#allocation2 + $0xd8] sm:$0xff]
      %v7015 = vld [vmem:[#allocation2 + $0xe0] sm:$0xff]
      %v7016 = vld [vmem:[#allocation2 + $0xe8] sm:$0xff]
      %v7017 = vld [vmem:[#allocation2 + $0xf0] sm:$0xff]
      %v7018 = vld [vmem:[#allocation2 + $0xf8] sm:$0xff]
      %v7019 = vld [vmem:[#allocation2 + $0x100] sm:$0xff]
      %v7020 = vld [vmem:[#allocation2 + $0x108] sm:$0xff]
      %v7021 = vld [vmem:[#allocation2 + $0x110] sm:$0xff]
      %v7022 = vld [vmem:[#allocation2 + $0x118] sm:$0xff]
      %v7023 = vpack.c.bf16 %v6989, %v6987
      %v7024 = vpack.c.bf16 %v6990, %v6988
      %v7025 = vpack.c.bf16 %v6993, %v6991
      %v7026 = vpack.c.bf16 %v6994, %v6992
      %v7027 = vpack.c.bf16 %v6997, %v6995
      %v7028 = vpack.c.bf16 %v6998, %v6996
      %v7029 = vpack.c.bf16 %v7001, %v6999
      %v7030 = vpack.c.bf16 %v7002, %v7000
      %v7031 = vpack.c.bf16 %v7005, %v7003
      %v7032 = vpack.c.bf16 %v7006, %v7004
      %v7033 = vpack.c.bf16 %v7009, %v7007
      %v7034 = vpack.c.bf16 %v7010, %v7008
      %v7035 = vpack.c.bf16 %v7013, %v7011
      %v7036 = vpack.c.bf16 %v7014, %v7012
      %v7037 = vpack.c.bf16 %v7017, %v7015
      %v7038 = vpack.c.bf16 %v7018, %v7016
      %v7039 = vpack.c.bf16 %v7021, %v7019
      %v7040 = vpack.c.bf16 %v7022, %v7020
      %v7041 = vld [vmem:[%s55] sm:$0xf]
      %v7042 = vld [vmem:[%s57] sm:$0x7]
      %7044 = vset.pattern.permute.xlu0 0
      %7045 = vperm.xlu0 %7044, %v7042
      %v7046 = vpop.permute.xlu0 %7045
      %v7050 = vunpack.c.l.s4 1983009808
      %v7051 = vunpack.c.0.s8 %v7050
      %v7052 = vlaneseq
      %v7053 = vshrl.u32 %v7052, 7
      %v7054 = vsub.s32 %v7051, %v7053
      %v7055 = vrot.slane %v7041, %v7054
      %v7056 = vcombine.high %v7055, %v7055
      %v7059 = vsel %vm2657, %v7056, 0
      %7061 = vmatprep.subr.bf16.mxu0 %v7024
      %7062 = vmatpush1.bf16.msra.mxu0 %v7023
      %7063 = vmatprep.subr.bf16.mxu0 %v7026
      %7064 = vmatpush1.bf16.msra.mxu0 %v7025
      %7065 = vmatprep.subr.bf16.mxu0 %v7028
      %7066 = vmatpush1.bf16.msra.mxu0 %v7027
      %7067 = vmatprep.subr.bf16.mxu0 %v7030
      %7068 = vmatpush1.bf16.msra.mxu0 %v7029
      %7069 = vmatprep.subr.bf16.mxu0 %v7032
      %7070 = vmatpush1.bf16.msra.mxu0 %v7031
      %7071 = vmatprep.subr.bf16.mxu0 %v7034
      %7072 = vmatpush1.bf16.msra.mxu0 %v7033
      %7073 = vmatprep.subr.bf16.mxu0 %v7036
      %7074 = vmatpush1.bf16.msra.mxu0 %v7035
      %7075 = vmatprep.subr.bf16.mxu0 %v7038
      %7076 = vmatpush1.bf16.msra.mxu0 %v7037
      %7077 = vmatprep.subr.bf16.mxu0 %v7040
      %7078 = vmatpush1.bf16.msra.mxu0 %v7039
      %7079 = vmatprep.subr.bf16.mxu0 0
      %7080 = vmatpush1.bf16.msra.mxu0 0
      %7081 = vmatprep.subr.bf16.mxu0 0
      %7082 = vmatpush1.bf16.msra.mxu0 0
      %7083 = vmatprep.subr.bf16.mxu0 0
      %7084 = vmatpush1.bf16.msra.mxu0 0
      %7085 = vmatprep.subr.bf16.mxu0 0
      %7086 = vmatpush1.bf16.msra.mxu0 0
      %7087 = vmatprep.subr.bf16.mxu0 0
      %7088 = vmatpush1.bf16.msra.mxu0 0
      %7089 = vmatprep.subr.bf16.mxu0 0
      %7090 = vmatpush1.bf16.msra.mxu0 0
      %7091 = vmatprep.subr.bf16.mxu0 0
      %7092 = vmatpush1.bf16.msra.mxu0 0
      %7093 = vmatprep.mubr.bf16.mxu0 %v7059
      %7094 = vmatmul.mubr.bf16.gmra.mrb[0].mxu0 %v7055
      %v7095 = vpop.f32.mrb[0].mxu0
      %v7096 = vadd.f32 %v7046, %v7095
      %v7097 = vpop.f32.mrb[0].mxu0
      %v7098 = vadd.f32 %v7046, %v7097
      %v7099 = vpop.f32.mrb[0].mxu0
      %v7100 = vpop.f32.mrb[0].mxu0
      %7101 = vdwg.mxu0
      %v7102 = vmul.f32 %v7096, 0.5
      %v7103 = vmul.f32 %v7098, 0.5
      %v7104 = vtanh.pop %v7102
      %v7105 = vtanh.pop %v7103
      %v7106 = vadd.f32 %v7104, 1.0
      %v7107 = vadd.f32 %v7105, 1.0
      %v7108 = vmul.f32 %v7106, 0.5
      %v7109 = vmul.f32 %v7107, 0.5
      %v7112 = vcombine.low %v7108, %v7109
      %7114 = vst [vmem:[%s955] sm:$0x77] %v7112
      %vm7115 = vcmask 7168
      %7116 = vst.msk [vmem:[%s960] sm:$0xff] %vm7115, %v4461
      %7117 = vst.msk [vmem:[%s960 + $0x8] sm:$0xff] %vm7115, %v4466
      %p7118 = scmp.lt.s32.totalorder %s73, 1
      %s7119 = scalar_select %p7118, %s73, 1
      %s7120 = smul.addr %s7119, 2
      %s7121 = smul.addr %s7120, 4
      %s7122 = scalar_lea.vmem %s59, %s7121
      %p7123 = scmp.lt.s32.totalorder %s73, 1
      %s7124 = scalar_select %p7123, %s73, 1
      %s7125 = smul.addr %s7124, 2
      %s7126 = smul.addr %s7125, 8
      %s7127 = scalar_lea.vmem %s61, %s7126
      // Predicated region
      $region137: #{topview_vae_forward.1} parent=135 // pred_check
        %p7128 = pneg %p710
      $region138: #{topview_vae_forward.1} parent=135 // pred_check_branch
        %7130 = sbr.rel (%p7128) target = $region140
      $region139: #{topview_vae_forward.1} parent=135 // pred_region
        _
      $region140: #{topview_vae_forward.1} parent=135 // pred_fallthru
        _
      // Predicated region
      $region141: #{topview_vae_forward.1} parent=135 // pred_check
        %p7131 = pneg %p736
      $region142: #{topview_vae_forward.1} parent=135 // pred_check_branch
        %7133 = sbr.rel (%p7131) target = $region144
      $region143: #{topview_vae_forward.1} parent=135 // pred_region
        _
      $region144: #{topview_vae_forward.1} parent=135 // pred_fallthru
        _
    $region136: #{topview_vae_forward.1} parent=5 // pred_fallthru
      _
    %p7134 = scmp.le.s32.totalorder 2, %s68
    // Predicated region
    $region145: #{topview_vae_forward.1} parent=5 // pred_check
      %p7135 = pneg %p7134
    $region146: #{topview_vae_forward.1} parent=5 // pred_check_branch
      %7137 = sbr.rel (%p7135) target = $region148
    $region147: #{topview_vae_forward.1} parent=5 // pred_region
      %s7138 = ssub.s32 %s68, 2
      // Predicated region
      $region149: #{topview_vae_forward.1} parent=147 // pred_check
        %p7139 = pneg %p716
      $region150: #{topview_vae_forward.1} parent=147 // pred_check_branch
        %7141 = sbr.rel (%p7139) target = $region152
      $region151: #{topview_vae_forward.1} parent=147 // pred_region
        %p7142 = scmp.lt.s32.totalorder %s74, 1
        %s7143 = scalar_select %p7142, %s74, 1
        %s7144 = smul.addr %s7143, 2
        %s7145 = smul.addr %s7144, 4
        %s7146 = scalar_lea.vmem %s59, %s7145
      $region152: #{topview_vae_forward.1} parent=147 // pred_fallthru
        _
      // Predicated region
      $region153: #{topview_vae_forward.1} parent=147 // pred_check
        %p7147 = pneg %p742
      $region154: #{topview_vae_forward.1} parent=147 // pred_check_branch
        %7149 = sbr.rel (%p7147) target = $region156
      $region155: #{topview_vae_forward.1} parent=147 // pred_region
        %p7150 = scmp.lt.s32.totalorder %s74, 1
        %s7151 = scalar_select %p7150, %s74, 1
        %s7152 = smul.addr %s7151, 2
        %s7153 = smul.addr %s7152, 8
        %s7154 = scalar_lea.vmem %s61, %s7153
      $region156: #{topview_vae_forward.1} parent=147 // pred_fallthru
        _
    $region148: #{topview_vae_forward.1} parent=5 // pred_fallthru
      _
  $region6: #{topview_vae_forward.1} parent=0 // loop_footer
    %s72 = sadd.s32 1, %s68
  $region7: #{topview_vae_forward.1} parent=0 // loop_footer_branch
    %67 = sbr.rel target = $region3
  $region8: #{topview_vae_forward.1} parent=0 // loop_exit
    _

</llo_original>
